<compile_context>
chip_gen: v5e
topology: v5e:2x2
jax: 0.10.0
libtpu: 0.0.40
codegen_flags: <defaults>
</compile_context>

<pallas_src>
import functools

import jax
import jax.numpy as jnp
from jax.experimental import pallas as pl
from jax.experimental.pallas import tpu as pltpu


# ----------------------------------------------------------------------------
# helpers
# ----------------------------------------------------------------------------
def _pick_tile(dim, candidates):
    """Largest candidate tile that divides `dim`, else the full dim."""
    for c in candidates:
        if c <= dim and dim % c == 0:
            return c
    return dim


def _pad_cols(w, b, multiple):
    """Zero-pad output columns of (K, N) weight / (N,) bias up to `multiple`."""
    n = w.shape[1]
    pad = (-n) % multiple
    if pad:
        w = jnp.pad(w, ((0, 0), (0, pad)))
        b = jnp.pad(b, ((0, pad),))
    return w, b


# ----------------------------------------------------------------------------
# Fused point-MLP trunk + global max-pool kernel
#   per point: 3 -> 64 -> 128 -> 1024 (BN folded, ReLU between layers),
#   then max over the points axis, accumulated across point tiles.
# ----------------------------------------------------------------------------
def _trunk_kernel(x_ref, w1_ref, b1_ref, w2_ref, b2_ref, w3_ref, b3_ref,
                  o_ref, *, relu3):
    x = x_ref[0]                                             # (tp, 3)   f32
    h = jnp.dot(x, w1_ref[0], preferred_element_type=jnp.float32) + b1_ref[...]
    h = jnp.maximum(h, 0.0)
    h = jnp.dot(h.astype(w2_ref.dtype), w2_ref[...],
                preferred_element_type=jnp.float32) + b2_ref[...]
    h = jnp.maximum(h, 0.0)
    h = jnp.dot(h.astype(w3_ref.dtype), w3_ref[...],
                preferred_element_type=jnp.float32) + b3_ref[...]
    if relu3:
        h = jnp.maximum(h, 0.0)
    tile_max = jnp.max(h, axis=0, keepdims=True)             # (1, 1024) f32

    # Output block is resident across the point-tile (reduction) axis.
    # Must init to -inf: feat c3 has BN but no ReLU, so values can be negative.
    @pl.when(pl.program_id(1) == 0)
    def _():
        o_ref[...] = jnp.full_like(o_ref, -jnp.inf)

    o_ref[...] = jnp.maximum(o_ref[...], tile_max[None])


def pallas_trunk(x, w1, b1, w2, b2, w3, b3, *, relu3):
    """Fused conv trunk (BN folded) + max pool.

    x : (B, N, 3) f32          w1: (Bw, 3, 64) f32 (Bw in {1, B})
    w2: (64, 128) bf16         w3: (128, 1024) bf16
    b*: (1, C)   f32           returns (B, 1024) f32
    """
    B, N, _ = x.shape
    Bw = w1.shape[0]
    # 256-point tiles keep the (tp,1024) f32 intermediate at ~1 MiB; raise to
    # 512-1024 on 128 MiB-VMEM parts if desired.
    tp = _pick_tile(N, (256, 128, 64, 32, 16, 8))
    grid = (B, N // tp)
    w1_map = (lambda b, p: (b, 0, 0)) if Bw == B else (lambda b, p: (0, 0, 0))

    out = pl.pallas_call(
        functools.partial(_trunk_kernel, relu3=relu3),
        out_shape=jax.ShapeDtypeStruct((B, 1, 1024), jnp.float32),
        grid=grid,
        in_specs=[
            pl.BlockSpec((1, tp, 3), lambda b, p: (b, p, 0)),
            pl.BlockSpec((1, 3, 64), w1_map),
            pl.BlockSpec((1, 64), lambda b, p: (0, 0)),
            pl.BlockSpec((64, 128), lambda b, p: (0, 0)),
            pl.BlockSpec((1, 128), lambda b, p: (0, 0)),
            pl.BlockSpec((128, 1024), lambda b, p: (0, 0)),
            pl.BlockSpec((1, 1024), lambda b, p: (0, 0)),
        ],
        out_specs=pl.BlockSpec((1, 1, 1024), lambda b, p: (b, 0, 0)),
        compiler_params=pltpu.CompilerParams(
            dimension_semantics=("parallel", "arbitrary")),
    )(x, w1, b1, w2, b2, w3, b3)
    return out.reshape(B, 1024)


# ----------------------------------------------------------------------------
# Generic tiled linear (BN already folded into w/b): y = relu?(x @ w + b)
# ----------------------------------------------------------------------------
def _linear_kernel(x_ref, w_ref, b_ref, o_ref, acc_ref, *, relu):
    k = pl.program_id(2)

    @pl.when(k == 0)
    def _():
        acc_ref[...] = jnp.zeros_like(acc_ref)

    acc_ref[...] += jnp.dot(x_ref[...], w_ref[...],
                            preferred_element_type=jnp.float32)

    @pl.when(k == pl.num_programs(2) - 1)
    def _():
        y = acc_ref[...] + b_ref[...]
        if relu:
            y = jnp.maximum(y, 0.0)
        o_ref[...] = y.astype(o_ref.dtype)


def pallas_linear(x, w, b, *, relu):
    """x: (M, K) bf16/f32, w: (K, N) bf16, b: (1, N) f32 -> (M, N) f32."""
    M, K = x.shape
    Kw, N = w.shape
    assert K == Kw and b.shape == (1, N)
    tm = _pick_tile(M, (512, 256, 128, 8))     # rows parallel (v7x: 2 TCs)
    tn = _pick_tile(N, (256, 128))             # 256-wide for the 256x256 MXU
    tk = _pick_tile(K, (512, 256, 128))        # K tiled with f32 accumulator
    grid = (M // tm, N // tn, K // tk)
    return pl.pallas_call(
        functools.partial(_linear_kernel, relu=relu),
        out_shape=jax.ShapeDtypeStruct((M, N), jnp.float32),
        grid=grid,
        in_specs=[
            pl.BlockSpec((tm, tk), lambda i, j, k: (i, k)),
            pl.BlockSpec((tk, tn), lambda i, j, k: (k, j)),
            pl.BlockSpec((1, tn), lambda i, j, k: (0, j)),
        ],
        out_specs=pl.BlockSpec((tm, tn), lambda i, j, k: (i, j)),
        scratch_shapes=[pltpu.VMEM((tm, tn), jnp.float32)],
        compiler_params=pltpu.CompilerParams(
            dimension_semantics=("parallel", "parallel", "arbitrary")),
    )(x, w, b)


# ----------------------------------------------------------------------------
# Deterministic parameter init (shapes follow the PyTorch module __init__)
# ----------------------------------------------------------------------------
def _init_linear(key, cin, cout):
    kw, kb = jax.random.split(key)
    bound = 1.0 / jnp.sqrt(jnp.float32(cin))
    w = jax.random.uniform(kw, (cin, cout), jnp.float32, -bound, bound)
    b = jax.random.uniform(kb, (cout,), jnp.float32, -bound, bound)
    return w, b


def _init_bn(key, c, eps=1e-5):
    kg, kb = jax.random.split(key)
    weight = 1.0 + 0.1 * jax.random.normal(kg, (c,), jnp.float32)
    bias = 0.1 * jax.random.normal(kb, (c,), jnp.float32)
    running_mean = jnp.zeros((c,), jnp.float32)
    running_var = jnp.ones((c,), jnp.float32)
    gamma = weight / jnp.sqrt(running_var + eps)
    beta = bias - running_mean * gamma
    return gamma, beta


def init_params(key):
    keys = iter(jax.random.split(key, 32))
    stn = {
        'c1': _init_linear(next(keys), 3, 64), 'bn1': _init_bn(next(keys), 64),
        'c2': _init_linear(next(keys), 64, 128), 'bn2': _init_bn(next(keys), 128),
        'c3': _init_linear(next(keys), 128, 1024), 'bn3': _init_bn(next(keys), 1024),
        'fc1': _init_linear(next(keys), 1024, 512), 'bn4': _init_bn(next(keys), 512),
        'fc2': _init_linear(next(keys), 512, 256), 'bn5': _init_bn(next(keys), 256),
        'fc3': _init_linear(next(keys), 256, 9),
    }
    feat = {
        'c1': _init_linear(next(keys), 3, 64), 'bn1': _init_bn(next(keys), 64),
        'c2': _init_linear(next(keys), 64, 128), 'bn2': _init_bn(next(keys), 128),
        'c3': _init_linear(next(keys), 128, 1024), 'bn3': _init_bn(next(keys), 1024),
    }
    head = {
        'fc1': _init_linear(next(keys), 1024, 512), 'bn1': _init_bn(next(keys), 512),
        'fc2': _init_linear(next(keys), 512, 256), 'bn2': _init_bn(next(keys), 256),
        'fc3': _init_linear(next(keys), 256, 3),   # normal
        'fc4': _init_linear(next(keys), 256, 3),   # center
        'fc5': _init_linear(next(keys), 256, 1),   # minR
        'fc6': _init_linear(next(keys), 256, 1),   # maxR
    }
    return {'stn': stn, 'feat': feat, 'head': head}


def _fold_bn(lin, bn):
    # eval-mode BN folded into the preceding linear:
    #   (x@W + b)*g + s  ==  x@(W*g) + (b*g + s)
    (w, b), (g, s) = lin, bn
    return w * g[None, :], b * g + s


def prepare_params(raw):
    """Fold BN into weights, merge/pad heads, cast matmul weights to bf16."""
    def pack(w, b):
        return w.astype(jnp.bfloat16), b.reshape(1, -1).astype(jnp.float32)

    stn_r, feat_r, head_r = raw['stn'], raw['feat'], raw['head']

    # STN trunk (conv1..3, all ReLU'd).
    w1, b1 = _fold_bn(stn_r['c1'], stn_r['bn1'])
    w2, b2 = _fold_bn(stn_r['c2'], stn_r['bn2'])
    w3, b3 = _fold_bn(stn_r['c3'], stn_r['bn3'])
    stn_trunk = dict(
        w1=w1.reshape(1, 3, 64).astype(jnp.float32), b1=b1.reshape(1, 64),
        w2=w2.astype(jnp.bfloat16), b2=b2.reshape(1, 128),
        w3=w3.astype(jnp.bfloat16), b3=b3.reshape(1, 1024))

    # STN MLP; fc3 (256->9) padded to a lane-dense 128-wide output.
    fw1, fb1 = _fold_bn(stn_r['fc1'], stn_r['bn4'])
    fw2, fb2 = _fold_bn(stn_r['fc2'], stn_r['bn5'])
    fw3, fb3 = _pad_cols(*stn_r['fc3'], 128)
    stn_mlp = dict(fc1=pack(fw1, fb1), fc2=pack(fw2, fb2), fc3=pack(fw3, fb3))

    # Feat trunk; c1 kept in f32 — folded with the STN transform per forward.
    gw1, gb1 = _fold_bn(feat_r['c1'], feat_r['bn1'])
    gw2, gb2 = _fold_bn(feat_r['c2'], feat_r['bn2'])
    gw3, gb3 = _fold_bn(feat_r['c3'], feat_r['bn3'])
    feat_trunk = dict(
        w1=gw1.astype(jnp.float32), b1=gb1.reshape(1, 64),
        w2=gw2.astype(jnp.bfloat16), b2=gb2.reshape(1, 128),
        w3=gw3.astype(jnp.bfloat16), b3=gb3.reshape(1, 1024))

    # Regression head: fc1/fc2 with BN; fc3..fc6 merged into one 256->8 matmul.
    hw1, hb1 = _fold_bn(head_r['fc1'], head_r['bn1'])
    hw2, hb2 = _fold_bn(head_r['fc2'], head_r['bn2'])
    hw_out = jnp.concatenate([head_r['fc3'][0], head_r['fc4'][0],
                              head_r['fc5'][0], head_r['fc6'][0]], axis=1)
    hb_out = jnp.concatenate([head_r['fc3'][1], head_r['fc4'][1],
                              head_r['fc5'][1], head_r['fc6'][1]], axis=0)
    hw_out, hb_out = _pad_cols(hw_out, hb_out, 128)
    head = dict(fc1=pack(hw1, hb1), fc2=pack(hw2, hb2), out=pack(hw_out, hb_out))

    return dict(stn_trunk=stn_trunk, stn_mlp=stn_mlp,
                feat_trunk=feat_trunk, head=head)


# ----------------------------------------------------------------------------
# Forward pass (glue in plain JAX; hot paths in Pallas kernels)
# ----------------------------------------------------------------------------
def pointnet_torus_forward(x_ncw, params):
    # x_ncw: (B, 3, N) PyTorch NCW point cloud.
    x = jnp.transpose(x_ncw, (0, 2, 1)).astype(jnp.float32)        # (B, N, 3)
    B = x.shape[0]

    # --- STN3d: fused trunk + max pool, then tiny MLP -> (B, 3, 3) transform.
    st, sm = params['stn_trunk'], params['stn_mlp']
    g = pallas_trunk(x, st['w1'], st['b1'], st['w2'], st['b2'],
                     st['w3'], st['b3'], relu3=True)               # (B, 1024)
    g = pallas_linear(g.astype(jnp.bfloat16), *sm['fc1'], relu=True)    # (B, 512)
    g = pallas_linear(g.astype(jnp.bfloat16), *sm['fc2'], relu=True)    # (B, 256)
    t9 = pallas_linear(g.astype(jnp.bfloat16), *sm['fc3'], relu=False)[:, :9]
    iden = jnp.eye(3, dtype=jnp.float32).reshape(1, 9)
    trans = (t9 + iden).reshape(B, 3, 3)

    # --- PointNetfeat: the bmm(x, trans) is folded into the first conv:
    #     (x @ trans) @ W1  ==  x @ (trans @ W1)  -> per-batch W1' (B, 3, 64).
    ft = params['feat_trunk']
    w1b = jnp.einsum('bij,jk->bik', trans, ft['w1'])               # (B, 3, 64)
    feat = pallas_trunk(x, w1b, ft['b1'], ft['w2'], ft['b2'],
                        ft['w3'], ft['b3'], relu3=False)           # (B, 1024), bn3 no relu

    # --- Regression head.
    hp = params['head']
    h = pallas_linear(feat.astype(jnp.bfloat16), *hp['fc1'], relu=True)  # (B, 512)
    # Dropout(p=0.3): eval-mode identity.
    h = pallas_linear(h.astype(jnp.bfloat16), *hp['fc2'], relu=True)     # (B, 256)
    out = pallas_linear(h.astype(jnp.bfloat16), *hp['out'], relu=False)  # (B, 128) padded
    normal = out[:, 0:3]
    center = out[:, 3:6]
    minR = out[:, 6:7]
    maxR = out[:, 7:8]
    return normal, center, minR, maxR


if __name__ == "__main__":
    key = jax.random.PRNGKey(0)
    kp, kx = jax.random.split(key)
    params = prepare_params(init_params(kp))

    B, N_PTS = 2, 512                       # 2 point tiles of 256 per batch
    x = jax.random.normal(kx, (B, 3, N_PTS), jnp.float32)   # PyTorch (B, C=3, N)

    normal, center, minR, maxR = jax.jit(pointnet_torus_forward)(x, params)
    jax.block_until_ready((normal, center, minR, maxR))

    assert normal.shape == (B, 3) and normal.dtype == jnp.float32
    assert center.shape == (B, 3) and center.dtype == jnp.float32
    assert minR.shape == (B, 1) and maxR.shape == (B, 1)
    for t in (normal, center, minR, maxR):
        assert bool(jnp.all(jnp.isfinite(t)))
    print("KERNEL_OK")
</pallas_src>

<mosaic_0001>
module attributes {stable_mosaic.version = 11 : i64} {
  func.func @_linear_kernel(%arg0: i32, %arg1: i32, %arg2: i32, %arg3: memref<2x512xbf16, #tpu.memory_space<vmem>>, %arg4: memref<512x256xbf16, #tpu.memory_space<vmem>>, %arg5: memref<1x256xf32, #tpu.memory_space<vmem>>, %arg6: memref<2x256xf32, #tpu.memory_space<vmem>>, %arg7: memref<2x256xf32, #tpu.memory_space<vmem>>) attributes {dimension_semantics = [#tpu.dimension_semantics<parallel>, #tpu.dimension_semantics<parallel>, #tpu.dimension_semantics<arbitrary>], iteration_bounds = array<i64: 1, 2, 2>, scalar_prefetch = 0 : i64, scratch_operands = 1 : i64, tpu.core_type = #tpu.core_type<tc>, window_params = [{transform_indices = @transform_0, window_bounds = array<i64: 2, 512>}, {transform_indices = @transform_1, window_bounds = array<i64: 512, 256>}, {transform_indices = @transform_2, window_bounds = array<i64: 1, 256>}, {transform_indices = @transform_3, window_bounds = array<i64: 2, 256>}]} {
    %c0_i32 = arith.constant 0 : i32
    %0 = arith.cmpi eq, %arg2, %c0_i32 : i32
    %1 = arith.extui %0 : i1 to i32
    %c0_i32_0 = arith.constant 0 : i32
    %2 = arith.cmpi ne, %1, %c0_i32_0 : i32
    scf.if %2 {
      %cst_9 = arith.constant 0.000000e+00 : f32
      %12 = vector.broadcast %cst_9 : f32 to vector<2x256xf32>
      %c0_10 = arith.constant 0 : index
      %c0_11 = arith.constant 0 : index
      %13 = vector.load %arg7[%c0_10, %c0_11] : memref<2x256xf32, #tpu.memory_space<vmem>>, vector<2x256xf32>
      tpu.vector_store %arg7[%c0_10, %c0_11], %12 {strides = array<i32>} : memref<2x256xf32, #tpu.memory_space<vmem>>, vector<2x256xf32>,
    } else {
    }
    %c0 = arith.constant 0 : index
    %c0_1 = arith.constant 0 : index
    %3 = vector.load %arg7[%c0, %c0_1] : memref<2x256xf32, #tpu.memory_space<vmem>>, vector<2x256xf32>
    %c0_2 = arith.constant 0 : index
    %c0_3 = arith.constant 0 : index
    %4 = vector.load %arg3[%c0_2, %c0_3] : memref<2x512xbf16, #tpu.memory_space<vmem>>, vector<2x512xbf16>
    %c0_4 = arith.constant 0 : index
    %c0_5 = arith.constant 0 : index
    %5 = vector.load %arg4[%c0_4, %c0_5] : memref<512x256xbf16, #tpu.memory_space<vmem>>, vector<512x256xbf16>
    %cst = arith.constant dense<0.000000e+00> : vector<2x256xf32>
    %6 = tpu.matmul %4, %5, %cst {dimension_numbers = #tpu.dot_dimension_numbers<[1], [0], [0], [1], [0, 0, 1, 1], [], []>} : vector<2x512xbf16>, vector<512x256xbf16>, vector<2x256xf32> -> vector<2x256xf32>
    %7 = arith.addf %3, %6 : vector<2x256xf32>
    %c0_6 = arith.constant 0 : index
    %c0_7 = arith.constant 0 : index
    %8 = vector.load %arg7[%c0_6, %c0_7] : memref<2x256xf32, #tpu.memory_space<vmem>>, vector<2x256xf32>
    tpu.vector_store %arg7[%c0_6, %c0_7], %7 {strides = array<i32>} : memref<2x256xf32, #tpu.memory_space<vmem>>, vector<2x256xf32>,
    %c1_i32 = arith.constant 1 : i32
    %9 = arith.cmpi eq, %arg2, %c1_i32 : i32
    %10 = arith.extui %9 : i1 to i32
    %c0_i32_8 = arith.constant 0 : i32
    %11 = arith.cmpi ne, %10, %c0_i32_8 : i32
    scf.if %11 {
      %c0_9 = arith.constant 0 : index
      %c0_10 = arith.constant 0 : index
      %12 = vector.load %arg7[%c0_9, %c0_10] : memref<2x256xf32, #tpu.memory_space<vmem>>, vector<2x256xf32>
      %c0_11 = arith.constant 0 : index
      %c0_12 = arith.constant 0 : index
      %13 = vector.load %arg5[%c0_11, %c0_12] : memref<1x256xf32, #tpu.memory_space<vmem>>, vector<1x256xf32>
      %14 = vector.broadcast %13 : vector<1x256xf32> to vector<2x256xf32>
      %15 = arith.addf %12, %14 : vector<2x256xf32>
      %cst_13 = arith.constant 0.000000e+00 : f32
      %16 = vector.broadcast %cst_13 : f32 to vector<2x256xf32>
      %17 = arith.maximumf %15, %16 : vector<2x256xf32>
      %c0_14 = arith.constant 0 : index
      %c0_15 = arith.constant 0 : index
      %18 = vector.load %arg6[%c0_14, %c0_15] : memref<2x256xf32, #tpu.memory_space<vmem>>, vector<2x256xf32>
      tpu.vector_store %arg6[%c0_14, %c0_15], %17 {strides = array<i32>} : memref<2x256xf32, #tpu.memory_space<vmem>>, vector<2x256xf32>,
    } else {
    }
    return
  }
  func.func @transform_0(%arg0: i32, %arg1: i32, %arg2: i32) -> (i32, i32) {
    %c0_i32 = arith.constant 0 : i32
    return %arg0, %arg2 : i32, i32
  }
  func.func @transform_1(%arg0: i32, %arg1: i32, %arg2: i32) -> (i32, i32) {
    %c0_i32 = arith.constant 0 : i32
    return %arg2, %arg1 : i32, i32
  }
  func.func @transform_2(%arg0: i32, %arg1: i32, %arg2: i32) -> (i32, i32) {
    %c0_i32 = arith.constant 0 : i32
    %c0_i32_0 = arith.constant 0 : i32
    return %c0_i32, %arg1 : i32, i32
  }
  func.func @transform_3(%arg0: i32, %arg1: i32, %arg2: i32) -> (i32, i32) {
    %c0_i32 = arith.constant 0 : i32
    return %arg0, %arg1 : i32, i32
  }
}

module attributes {stable_mosaic.version = 11 : i64} {
  func.func @_linear_kernel(%arg0: i32, %arg1: i32, %arg2: i32, %arg3: memref<2x256xbf16, #tpu.memory_space<vmem>>, %arg4: memref<256x128xbf16, #tpu.memory_space<vmem>>, %arg5: memref<1x128xf32, #tpu.memory_space<vmem>>, %arg6: memref<2x128xf32, #tpu.memory_space<vmem>>, %arg7: memref<2x128xf32, #tpu.memory_space<vmem>>) attributes {dimension_semantics = [#tpu.dimension_semantics<parallel>, #tpu.dimension_semantics<parallel>, #tpu.dimension_semantics<arbitrary>], iteration_bounds = array<i64: 1, 1, 1>, scalar_prefetch = 0 : i64, scratch_operands = 1 : i64, tpu.core_type = #tpu.core_type<tc>, window_params = [{transform_indices = @transform_0, window_bounds = array<i64: 2, 256>}, {transform_indices = @transform_1, window_bounds = array<i64: 256, 128>}, {transform_indices = @transform_2, window_bounds = array<i64: 1, 128>}, {transform_indices = @transform_3, window_bounds = array<i64: 2, 128>}]} {
    %c0_i32 = arith.constant 0 : i32
    %0 = arith.cmpi eq, %arg2, %c0_i32 : i32
    %1 = arith.extui %0 : i1 to i32
    %c0_i32_0 = arith.constant 0 : i32
    %2 = arith.cmpi ne, %1, %c0_i32_0 : i32
    scf.if %2 {
      %cst_10 = arith.constant 0.000000e+00 : f32
      %12 = vector.broadcast %cst_10 : f32 to vector<2x128xf32>
      %c0_11 = arith.constant 0 : index
      %c0_12 = arith.constant 0 : index
      %13 = vector.load %arg7[%c0_11, %c0_12] : memref<2x128xf32, #tpu.memory_space<vmem>>, vector<2x128xf32>
      tpu.vector_store %arg7[%c0_11, %c0_12], %12 {strides = array<i32>} : memref<2x128xf32, #tpu.memory_space<vmem>>, vector<2x128xf32>,
    } else {
    }
    %c0 = arith.constant 0 : index
    %c0_1 = arith.constant 0 : index
    %3 = vector.load %arg7[%c0, %c0_1] : memref<2x128xf32, #tpu.memory_space<vmem>>, vector<2x128xf32>
    %c0_2 = arith.constant 0 : index
    %c0_3 = arith.constant 0 : index
    %4 = vector.load %arg3[%c0_2, %c0_3] : memref<2x256xbf16, #tpu.memory_space<vmem>>, vector<2x256xbf16>
    %c0_4 = arith.constant 0 : index
    %c0_5 = arith.constant 0 : index
    %5 = vector.load %arg4[%c0_4, %c0_5] : memref<256x128xbf16, #tpu.memory_space<vmem>>, vector<256x128xbf16>
    %cst = arith.constant dense<0.000000e+00> : vector<2x128xf32>
    %6 = tpu.matmul %4, %5, %cst {dimension_numbers = #tpu.dot_dimension_numbers<[1], [0], [0], [1], [0, 0, 1, 1], [], []>} : vector<2x256xbf16>, vector<256x128xbf16>, vector<2x128xf32> -> vector<2x128xf32>
    %7 = arith.addf %3, %6 : vector<2x128xf32>
    %c0_6 = arith.constant 0 : index
    %c0_7 = arith.constant 0 : index
    %8 = vector.load %arg7[%c0_6, %c0_7] : memref<2x128xf32, #tpu.memory_space<vmem>>, vector<2x128xf32>
    tpu.vector_store %arg7[%c0_6, %c0_7], %7 {strides = array<i32>} : memref<2x128xf32, #tpu.memory_space<vmem>>, vector<2x128xf32>,
    %c0_i32_8 = arith.constant 0 : i32
    %9 = arith.cmpi eq, %arg2, %c0_i32_8 : i32
    %10 = arith.extui %9 : i1 to i32
    %c0_i32_9 = arith.constant 0 : i32
    %11 = arith.cmpi ne, %10, %c0_i32_9 : i32
    scf.if %11 {
      %c0_10 = arith.constant 0 : index
      %c0_11 = arith.constant 0 : index
      %12 = vector.load %arg7[%c0_10, %c0_11] : memref<2x128xf32, #tpu.memory_space<vmem>>, vector<2x128xf32>
      %c0_12 = arith.constant 0 : index
      %c0_13 = arith.constant 0 : index
      %13 = vector.load %arg5[%c0_12, %c0_13] : memref<1x128xf32, #tpu.memory_space<vmem>>, vector<1x128xf32>
      %14 = vector.broadcast %13 : vector<1x128xf32> to vector<2x128xf32>
      %15 = arith.addf %12, %14 : vector<2x128xf32>
      %c0_14 = arith.constant 0 : index
      %c0_15 = arith.constant 0 : index
      %16 = vector.load %arg6[%c0_14, %c0_15] : memref<2x128xf32, #tpu.memory_space<vmem>>, vector<2x128xf32>
      tpu.vector_store %arg6[%c0_14, %c0_15], %15 {strides = array<i32>} : memref<2x128xf32, #tpu.memory_space<vmem>>, vector<2x128xf32>,
    } else {
    }
    return
  }
  func.func @transform_0(%arg0: i32, %arg1: i32, %arg2: i32) -> (i32, i32) {
    %c0_i32 = arith.constant 0 : i32
    return %arg0, %arg2 : i32, i32
  }
  func.func @transform_1(%arg0: i32, %arg1: i32, %arg2: i32) -> (i32, i32) {
    %c0_i32 = arith.constant 0 : i32
    return %arg2, %arg1 : i32, i32
  }
  func.func @transform_2(%arg0: i32, %arg1: i32, %arg2: i32) -> (i32, i32) {
    %c0_i32 = arith.constant 0 : i32
    %c0_i32_0 = arith.constant 0 : i32
    return %c0_i32, %arg1 : i32, i32
  }
  func.func @transform_3(%arg0: i32, %arg1: i32, %arg2: i32) -> (i32, i32) {
    %c0_i32 = arith.constant 0 : i32
    return %arg0, %arg1 : i32, i32
  }
}

module attributes {stable_mosaic.version = 11 : i64} {
  func.func @_trunk_kernel(%arg0: i32, %arg1: i32, %arg2: memref<1x256x3xf32, #tpu.memory_space<vmem>>, %arg3: memref<1x3x64xf32, #tpu.memory_space<vmem>>, %arg4: memref<1x64xf32, #tpu.memory_space<vmem>>, %arg5: memref<64x128xbf16, #tpu.memory_space<vmem>>, %arg6: memref<1x128xf32, #tpu.memory_space<vmem>>, %arg7: memref<128x1024xbf16, #tpu.memory_space<vmem>>, %arg8: memref<1x1024xf32, #tpu.memory_space<vmem>>, %arg9: memref<1x1x1024xf32, #tpu.memory_space<vmem>>) attributes {dimension_semantics = [#tpu.dimension_semantics<parallel>, #tpu.dimension_semantics<arbitrary>], iteration_bounds = array<i64: 2, 2>, scalar_prefetch = 0 : i64, scratch_operands = 0 : i64, tpu.core_type = #tpu.core_type<tc>, window_params = [{transform_indices = @transform_0, window_bounds = array<i64: 1, 256, 3>}, {pipeline_mode = #tpu.pipeline_mode<synchronous>, transform_indices = @transform_1, window_bounds = array<i64: 1, 3, 64>}, {pipeline_mode = #tpu.pipeline_mode<synchronous>, transform_indices = @transform_2, window_bounds = array<i64: 1, 64>}, {pipeline_mode = #tpu.pipeline_mode<synchronous>, transform_indices = @transform_3, window_bounds = array<i64: 64, 128>}, {pipeline_mode = #tpu.pipeline_mode<synchronous>, transform_indices = @transform_4, window_bounds = array<i64: 1, 128>}, {pipeline_mode = #tpu.pipeline_mode<synchronous>, transform_indices = @transform_5, window_bounds = array<i64: 128, 1024>}, {pipeline_mode = #tpu.pipeline_mode<synchronous>, transform_indices = @transform_6, window_bounds = array<i64: 1, 1024>}, {transform_indices = @transform_7, window_bounds = array<i64: 1, 1, 1024>}]} {
    %c0 = arith.constant 0 : index
    %c0_0 = arith.constant 0 : index
    %c0_1 = arith.constant 0 : index
    %0 = vector.load %arg2[%c0, %c0_0, %c0_1] : memref<1x256x3xf32, #tpu.memory_space<vmem>>, vector<1x256x3xf32>
    %1 = vector.shape_cast %0 : vector<1x256x3xf32> to vector<256x3xf32>
    %c0_2 = arith.constant 0 : index
    %c0_3 = arith.constant 0 : index
    %c0_4 = arith.constant 0 : index
    %2 = vector.load %arg3[%c0_2, %c0_3, %c0_4] : memref<1x3x64xf32, #tpu.memory_space<vmem>>, vector<1x3x64xf32>
    %3 = vector.shape_cast %2 : vector<1x3x64xf32> to vector<3x64xf32>
    %cst = arith.constant dense<0.000000e+00> : vector<256x64xf32>
    %4 = tpu.matmul %1, %3, %cst {dimension_numbers = #tpu.dot_dimension_numbers<[1], [0], [0], [1], [0, 0, 1, 1], [], []>} : vector<256x3xf32>, vector<3x64xf32>, vector<256x64xf32> -> vector<256x64xf32>
    %c0_5 = arith.constant 0 : index
    %c0_6 = arith.constant 0 : index
    %5 = vector.load %arg4[%c0_5, %c0_6] : memref<1x64xf32, #tpu.memory_space<vmem>>, vector<1x64xf32>
    %6 = vector.broadcast %5 : vector<1x64xf32> to vector<256x64xf32>
    %7 = arith.addf %4, %6 : vector<256x64xf32>
    %cst_7 = arith.constant 0.000000e+00 : f32
    %8 = vector.broadcast %cst_7 : f32 to vector<256x64xf32>
    %9 = arith.maximumf %7, %8 : vector<256x64xf32>
    %10 = arith.truncf %9 : vector<256x64xf32> to vector<256x64xbf16>
    %c0_8 = arith.constant 0 : index
    %c0_9 = arith.constant 0 : index
    %11 = vector.load %arg5[%c0_8, %c0_9] : memref<64x128xbf16, #tpu.memory_space<vmem>>, vector<64x128xbf16>
    %cst_10 = arith.constant dense<0.000000e+00> : vector<256x128xf32>
    %12 = tpu.matmul %10, %11, %cst_10 {dimension_numbers = #tpu.dot_dimension_numbers<[1], [0], [0], [1], [0, 0, 1, 1], [], []>} : vector<256x64xbf16>, vector<64x128xbf16>, vector<256x128xf32> -> vector<256x128xf32>
    %c0_11 = arith.constant 0 : index
    %c0_12 = arith.constant 0 : index
    %13 = vector.load %arg6[%c0_11, %c0_12] : memref<1x128xf32, #tpu.memory_space<vmem>>, vector<1x128xf32>
    %14 = vector.broadcast %13 : vector<1x128xf32> to vector<256x128xf32>
    %15 = arith.addf %12, %14 : vector<256x128xf32>
    %cst_13 = arith.constant 0.000000e+00 : f32
    %16 = vector.broadcast %cst_13 : f32 to vector<256x128xf32>
    %17 = arith.maximumf %15, %16 : vector<256x128xf32>
    %18 = arith.truncf %17 : vector<256x128xf32> to vector<256x128xbf16>
    %c0_14 = arith.constant 0 : index
    %c0_15 = arith.constant 0 : index
    %19 = vector.load %arg7[%c0_14, %c0_15] : memref<128x1024xbf16, #tpu.memory_space<vmem>>, vector<128x1024xbf16>
    %cst_16 = arith.constant dense<0.000000e+00> : vector<256x1024xf32>
    %20 = tpu.matmul %18, %19, %cst_16 {dimension_numbers = #tpu.dot_dimension_numbers<[1], [0], [0], [1], [0, 0, 1, 1], [], []>} : vector<256x128xbf16>, vector<128x1024xbf16>, vector<256x1024xf32> -> vector<256x1024xf32>
    %c0_17 = arith.constant 0 : index
    %c0_18 = arith.constant 0 : index
    %21 = vector.load %arg8[%c0_17, %c0_18] : memref<1x1024xf32, #tpu.memory_space<vmem>>, vector<1x1024xf32>
    %22 = vector.broadcast %21 : vector<1x1024xf32> to vector<256x1024xf32>
    %23 = arith.addf %20, %22 : vector<256x1024xf32>
    %cst_19 = arith.constant 0.000000e+00 : f32
    %24 = vector.broadcast %cst_19 : f32 to vector<256x1024xf32>
    %25 = arith.maximumf %23, %24 : vector<256x1024xf32>
    %cst_20 = arith.constant dense<0xFF800000> : vector<1024xf32>
    %26 = vector.multi_reduction <maximumf>, %25, %cst_20 [0] : vector<256x1024xf32> to vector<1024xf32>
    %27 = vector.shape_cast %26 : vector<1024xf32> to vector<1x1024xf32>
    %c0_i32 = arith.constant 0 : i32
    %28 = arith.cmpi eq, %arg1, %c0_i32 : i32
    %29 = arith.extui %28 : i1 to i32
    %c0_i32_21 = arith.constant 0 : i32
    %30 = arith.cmpi ne, %29, %c0_i32_21 : i32
    scf.if %30 {
      %cst_28 = arith.constant 0xFF800000 : f32
      %35 = vector.broadcast %cst_28 : f32 to vector<1x1x1024xf32>
      %c0_29 = arith.constant 0 : index
      %c0_30 = arith.constant 0 : index
      %c0_31 = arith.constant 0 : index
      %36 = vector.load %arg9[%c0_29, %c0_30, %c0_31] : memref<1x1x1024xf32, #tpu.memory_space<vmem>>, vector<1x1x1024xf32>
      tpu.vector_store %arg9[%c0_29, %c0_30, %c0_31], %35 {strides = array<i32>} : memref<1x1x1024xf32, #tpu.memory_space<vmem>>, vector<1x1x1024xf32>,
    } else {
    }
    %c0_22 = arith.constant 0 : index
    %c0_23 = arith.constant 0 : index
    %c0_24 = arith.constant 0 : index
    %31 = vector.load %arg9[%c0_22, %c0_23, %c0_24] : memref<1x1x1024xf32, #tpu.memory_space<vmem>>, vector<1x1x1024xf32>
    %32 = vector.shape_cast %27 : vector<1x1024xf32> to vector<1x1x1024xf32>
    %33 = arith.maximumf %31, %32 : vector<1x1x1024xf32>
    %c0_25 = arith.constant 0 : index
    %c0_26 = arith.constant 0 : index
    %c0_27 = arith.constant 0 : index
    %34 = vector.load %arg9[%c0_25, %c0_26, %c0_27] : memref<1x1x1024xf32, #tpu.memory_space<vmem>>, vector<1x1x1024xf32>
    tpu.vector_store %arg9[%c0_25, %c0_26, %c0_27], %33 {strides = array<i32>} : memref<1x1x1024xf32, #tpu.memory_space<vmem>>, vector<1x1x1024xf32>,
    return
  }
  func.func @transform_0(%arg0: i32, %arg1: i32) -> (i32, i32, i32) {
    %c0_i32 = arith.constant 0 : i32
    %c0_i32_0 = arith.constant 0 : i32
    return %arg0, %arg1, %c0_i32 : i32, i32, i32
  }
  func.func @transform_1(%arg0: i32, %arg1: i32) -> (i32, i32, i32) {
    %c0_i32 = arith.constant 0 : i32
    %c0_i32_0 = arith.constant 0 : i32
    %c0_i32_1 = arith.constant 0 : i32
    %c0_i32_2 = arith.constant 0 : i32
    return %c0_i32, %c0_i32_0, %c0_i32_1 : i32, i32, i32
  }
  func.func @transform_2(%arg0: i32, %arg1: i32) -> (i32, i32) {
    %c0_i32 = arith.constant 0 : i32
    %c0_i32_0 = arith.constant 0 : i32
    %c0_i32_1 = arith.constant 0 : i32
    return %c0_i32, %c0_i32_0 : i32, i32
  }
  func.func @transform_3(%arg0: i32, %arg1: i32) -> (i32, i32) {
    %c0_i32 = arith.constant 0 : i32
    %c0_i32_0 = arith.constant 0 : i32
    %c0_i32_1 = arith.constant 0 : i32
    return %c0_i32, %c0_i32_0 : i32, i32
  }
  func.func @transform_4(%arg0: i32, %arg1: i32) -> (i32, i32) {
    %c0_i32 = arith.constant 0 : i32
    %c0_i32_0 = arith.constant 0 : i32
    %c0_i32_1 = arith.constant 0 : i32
    return %c0_i32, %c0_i32_0 : i32, i32
  }
  func.func @transform_5(%arg0: i32, %arg1: i32) -> (i32, i32) {
    %c0_i32 = arith.constant 0 : i32
    %c0_i32_0 = arith.constant 0 : i32
    %c0_i32_1 = arith.constant 0 : i32
    return %c0_i32, %c0_i32_0 : i32, i32
  }
  func.func @transform_6(%arg0: i32, %arg1: i32) -> (i32, i32) {
    %c0_i32 = arith.constant 0 : i32
    %c0_i32_0 = arith.constant 0 : i32
    %c0_i32_1 = arith.constant 0 : i32
    return %c0_i32, %c0_i32_0 : i32, i32
  }
  func.func @transform_7(%arg0: i32, %arg1: i32) -> (i32, i32, i32) {
    %c0_i32 = arith.constant 0 : i32
    %c0_i32_0 = arith.constant 0 : i32
    %c0_i32_1 = arith.constant 0 : i32
    return %arg0, %c0_i32, %c0_i32_0 : i32, i32, i32
  }
}

module attributes {stable_mosaic.version = 11 : i64} {
  func.func @_linear_kernel(%arg0: i32, %arg1: i32, %arg2: i32, %arg3: memref<2x512xbf16, #tpu.memory_space<vmem>>, %arg4: memref<512x256xbf16, #tpu.memory_space<vmem>>, %arg5: memref<1x256xf32, #tpu.memory_space<vmem>>, %arg6: memref<2x256xf32, #tpu.memory_space<vmem>>, %arg7: memref<2x256xf32, #tpu.memory_space<vmem>>) attributes {dimension_semantics = [#tpu.dimension_semantics<parallel>, #tpu.dimension_semantics<parallel>, #tpu.dimension_semantics<arbitrary>], iteration_bounds = array<i64: 1, 1, 1>, scalar_prefetch = 0 : i64, scratch_operands = 1 : i64, tpu.core_type = #tpu.core_type<tc>, window_params = [{transform_indices = @transform_0, window_bounds = array<i64: 2, 512>}, {transform_indices = @transform_1, window_bounds = array<i64: 512, 256>}, {transform_indices = @transform_2, window_bounds = array<i64: 1, 256>}, {transform_indices = @transform_3, window_bounds = array<i64: 2, 256>}]} {
    %c0_i32 = arith.constant 0 : i32
    %0 = arith.cmpi eq, %arg2, %c0_i32 : i32
    %1 = arith.extui %0 : i1 to i32
    %c0_i32_0 = arith.constant 0 : i32
    %2 = arith.cmpi ne, %1, %c0_i32_0 : i32
    scf.if %2 {
      %cst_10 = arith.constant 0.000000e+00 : f32
      %12 = vector.broadcast %cst_10 : f32 to vector<2x256xf32>
      %c0_11 = arith.constant 0 : index
      %c0_12 = arith.constant 0 : index
      %13 = vector.load %arg7[%c0_11, %c0_12] : memref<2x256xf32, #tpu.memory_space<vmem>>, vector<2x256xf32>
      tpu.vector_store %arg7[%c0_11, %c0_12], %12 {strides = array<i32>} : memref<2x256xf32, #tpu.memory_space<vmem>>, vector<2x256xf32>,
    } else {
    }
    %c0 = arith.constant 0 : index
    %c0_1 = arith.constant 0 : index
    %3 = vector.load %arg7[%c0, %c0_1] : memref<2x256xf32, #tpu.memory_space<vmem>>, vector<2x256xf32>
    %c0_2 = arith.constant 0 : index
    %c0_3 = arith.constant 0 : index
    %4 = vector.load %arg3[%c0_2, %c0_3] : memref<2x512xbf16, #tpu.memory_space<vmem>>, vector<2x512xbf16>
    %c0_4 = arith.constant 0 : index
    %c0_5 = arith.constant 0 : index
    %5 = vector.load %arg4[%c0_4, %c0_5] : memref<512x256xbf16, #tpu.memory_space<vmem>>, vector<512x256xbf16>
    %cst = arith.constant dense<0.000000e+00> : vector<2x256xf32>
    %6 = tpu.matmul %4, %5, %cst {dimension_numbers = #tpu.dot_dimension_numbers<[1], [0], [0], [1], [0, 0, 1, 1], [], []>} : vector<2x512xbf16>, vector<512x256xbf16>, vector<2x256xf32> -> vector<2x256xf32>
    %7 = arith.addf %3, %6 : vector<2x256xf32>
    %c0_6 = arith.constant 0 : index
    %c0_7 = arith.constant 0 : index
    %8 = vector.load %arg7[%c0_6, %c0_7] : memref<2x256xf32, #tpu.memory_space<vmem>>, vector<2x256xf32>
    tpu.vector_store %arg7[%c0_6, %c0_7], %7 {strides = array<i32>} : memref<2x256xf32, #tpu.memory_space<vmem>>, vector<2x256xf32>,
    %c0_i32_8 = arith.constant 0 : i32
    %9 = arith.cmpi eq, %arg2, %c0_i32_8 : i32
    %10 = arith.extui %9 : i1 to i32
    %c0_i32_9 = arith.constant 0 : i32
    %11 = arith.cmpi ne, %10, %c0_i32_9 : i32
    scf.if %11 {
      %c0_10 = arith.constant 0 : index
      %c0_11 = arith.constant 0 : index
      %12 = vector.load %arg7[%c0_10, %c0_11] : memref<2x256xf32, #tpu.memory_space<vmem>>, vector<2x256xf32>
      %c0_12 = arith.constant 0 : index
      %c0_13 = arith.constant 0 : index
      %13 = vector.load %arg5[%c0_12, %c0_13] : memref<1x256xf32, #tpu.memory_space<vmem>>, vector<1x256xf32>
      %14 = vector.broadcast %13 : vector<1x256xf32> to vector<2x256xf32>
      %15 = arith.addf %12, %14 : vector<2x256xf32>
      %cst_14 = arith.constant 0.000000e+00 : f32
      %16 = vector.broadcast %cst_14 : f32 to vector<2x256xf32>
      %17 = arith.maximumf %15, %16 : vector<2x256xf32>
      %c0_15 = arith.constant 0 : index
      %c0_16 = arith.constant 0 : index
      %18 = vector.load %arg6[%c0_15, %c0_16] : memref<2x256xf32, #tpu.memory_space<vmem>>, vector<2x256xf32>
      tpu.vector_store %arg6[%c0_15, %c0_16], %17 {strides = array<i32>} : memref<2x256xf32, #tpu.memory_space<vmem>>, vector<2x256xf32>,
    } else {
    }
    return
  }
  func.func @transform_0(%arg0: i32, %arg1: i32, %arg2: i32) -> (i32, i32) {
    %c0_i32 = arith.constant 0 : i32
    return %arg0, %arg2 : i32, i32
  }
  func.func @transform_1(%arg0: i32, %arg1: i32, %arg2: i32) -> (i32, i32) {
    %c0_i32 = arith.constant 0 : i32
    return %arg2, %arg1 : i32, i32
  }
  func.func @transform_2(%arg0: i32, %arg1: i32, %arg2: i32) -> (i32, i32) {
    %c0_i32 = arith.constant 0 : i32
    %c0_i32_0 = arith.constant 0 : i32
    return %c0_i32, %arg1 : i32, i32
  }
  func.func @transform_3(%arg0: i32, %arg1: i32, %arg2: i32) -> (i32, i32) {
    %c0_i32 = arith.constant 0 : i32
    return %arg0, %arg1 : i32, i32
  }
}

module attributes {stable_mosaic.version = 11 : i64} {
  func.func @_trunk_kernel(%arg0: i32, %arg1: i32, %arg2: memref<1x256x3xf32, #tpu.memory_space<vmem>>, %arg3: memref<1x3x64xf32, #tpu.memory_space<vmem>>, %arg4: memref<1x64xf32, #tpu.memory_space<vmem>>, %arg5: memref<64x128xbf16, #tpu.memory_space<vmem>>, %arg6: memref<1x128xf32, #tpu.memory_space<vmem>>, %arg7: memref<128x1024xbf16, #tpu.memory_space<vmem>>, %arg8: memref<1x1024xf32, #tpu.memory_space<vmem>>, %arg9: memref<1x1x1024xf32, #tpu.memory_space<vmem>>) attributes {dimension_semantics = [#tpu.dimension_semantics<parallel>, #tpu.dimension_semantics<arbitrary>], iteration_bounds = array<i64: 2, 2>, scalar_prefetch = 0 : i64, scratch_operands = 0 : i64, tpu.core_type = #tpu.core_type<tc>, window_params = [{transform_indices = @transform_0, window_bounds = array<i64: 1, 256, 3>}, {transform_indices = @transform_1, window_bounds = array<i64: 1, 3, 64>}, {pipeline_mode = #tpu.pipeline_mode<synchronous>, transform_indices = @transform_2, window_bounds = array<i64: 1, 64>}, {pipeline_mode = #tpu.pipeline_mode<synchronous>, transform_indices = @transform_3, window_bounds = array<i64: 64, 128>}, {pipeline_mode = #tpu.pipeline_mode<synchronous>, transform_indices = @transform_4, window_bounds = array<i64: 1, 128>}, {pipeline_mode = #tpu.pipeline_mode<synchronous>, transform_indices = @transform_5, window_bounds = array<i64: 128, 1024>}, {pipeline_mode = #tpu.pipeline_mode<synchronous>, transform_indices = @transform_6, window_bounds = array<i64: 1, 1024>}, {transform_indices = @transform_7, window_bounds = array<i64: 1, 1, 1024>}]} {
    %c0 = arith.constant 0 : index
    %c0_0 = arith.constant 0 : index
    %c0_1 = arith.constant 0 : index
    %0 = vector.load %arg2[%c0, %c0_0, %c0_1] : memref<1x256x3xf32, #tpu.memory_space<vmem>>, vector<1x256x3xf32>
    %1 = vector.shape_cast %0 : vector<1x256x3xf32> to vector<256x3xf32>
    %c0_2 = arith.constant 0 : index
    %c0_3 = arith.constant 0 : index
    %c0_4 = arith.constant 0 : index
    %2 = vector.load %arg3[%c0_2, %c0_3, %c0_4] : memref<1x3x64xf32, #tpu.memory_space<vmem>>, vector<1x3x64xf32>
    %3 = vector.shape_cast %2 : vector<1x3x64xf32> to vector<3x64xf32>
    %cst = arith.constant dense<0.000000e+00> : vector<256x64xf32>
    %4 = tpu.matmul %1, %3, %cst {dimension_numbers = #tpu.dot_dimension_numbers<[1], [0], [0], [1], [0, 0, 1, 1], [], []>} : vector<256x3xf32>, vector<3x64xf32>, vector<256x64xf32> -> vector<256x64xf32>
    %c0_5 = arith.constant 0 : index
    %c0_6 = arith.constant 0 : index
    %5 = vector.load %arg4[%c0_5, %c0_6] : memref<1x64xf32, #tpu.memory_space<vmem>>, vector<1x64xf32>
    %6 = vector.broadcast %5 : vector<1x64xf32> to vector<256x64xf32>
    %7 = arith.addf %4, %6 : vector<256x64xf32>
    %cst_7 = arith.constant 0.000000e+00 : f32
    %8 = vector.broadcast %cst_7 : f32 to vector<256x64xf32>
    %9 = arith.maximumf %7, %8 : vector<256x64xf32>
    %10 = arith.truncf %9 : vector<256x64xf32> to vector<256x64xbf16>
    %c0_8 = arith.constant 0 : index
    %c0_9 = arith.constant 0 : index
    %11 = vector.load %arg5[%c0_8, %c0_9] : memref<64x128xbf16, #tpu.memory_space<vmem>>, vector<64x128xbf16>
    %cst_10 = arith.constant dense<0.000000e+00> : vector<256x128xf32>
    %12 = tpu.matmul %10, %11, %cst_10 {dimension_numbers = #tpu.dot_dimension_numbers<[1], [0], [0], [1], [0, 0, 1, 1], [], []>} : vector<256x64xbf16>, vector<64x128xbf16>, vector<256x128xf32> -> vector<256x128xf32>
    %c0_11 = arith.constant 0 : index
    %c0_12 = arith.constant 0 : index
    %13 = vector.load %arg6[%c0_11, %c0_12] : memref<1x128xf32, #tpu.memory_space<vmem>>, vector<1x128xf32>
    %14 = vector.broadcast %13 : vector<1x128xf32> to vector<256x128xf32>
    %15 = arith.addf %12, %14 : vector<256x128xf32>
    %cst_13 = arith.constant 0.000000e+00 : f32
    %16 = vector.broadcast %cst_13 : f32 to vector<256x128xf32>
    %17 = arith.maximumf %15, %16 : vector<256x128xf32>
    %18 = arith.truncf %17 : vector<256x128xf32> to vector<256x128xbf16>
    %c0_14 = arith.constant 0 : index
    %c0_15 = arith.constant 0 : index
    %19 = vector.load %arg7[%c0_14, %c0_15] : memref<128x1024xbf16, #tpu.memory_space<vmem>>, vector<128x1024xbf16>
    %cst_16 = arith.constant dense<0.000000e+00> : vector<256x1024xf32>
    %20 = tpu.matmul %18, %19, %cst_16 {dimension_numbers = #tpu.dot_dimension_numbers<[1], [0], [0], [1], [0, 0, 1, 1], [], []>} : vector<256x128xbf16>, vector<128x1024xbf16>, vector<256x1024xf32> -> vector<256x1024xf32>
    %c0_17 = arith.constant 0 : index
    %c0_18 = arith.constant 0 : index
    %21 = vector.load %arg8[%c0_17, %c0_18] : memref<1x1024xf32, #tpu.memory_space<vmem>>, vector<1x1024xf32>
    %22 = vector.broadcast %21 : vector<1x1024xf32> to vector<256x1024xf32>
    %23 = arith.addf %20, %22 : vector<256x1024xf32>
    %cst_19 = arith.constant dense<0xFF800000> : vector<1024xf32>
    %24 = vector.multi_reduction <maximumf>, %23, %cst_19 [0] : vector<256x1024xf32> to vector<1024xf32>
    %25 = vector.shape_cast %24 : vector<1024xf32> to vector<1x1024xf32>
    %c0_i32 = arith.constant 0 : i32
    %26 = arith.cmpi eq, %arg1, %c0_i32 : i32
    %27 = arith.extui %26 : i1 to i32
    %c0_i32_20 = arith.constant 0 : i32
    %28 = arith.cmpi ne, %27, %c0_i32_20 : i32
    scf.if %28 {
      %cst_27 = arith.constant 0xFF800000 : f32
      %33 = vector.broadcast %cst_27 : f32 to vector<1x1x1024xf32>
      %c0_28 = arith.constant 0 : index
      %c0_29 = arith.constant 0 : index
      %c0_30 = arith.constant 0 : index
      %34 = vector.load %arg9[%c0_28, %c0_29, %c0_30] : memref<1x1x1024xf32, #tpu.memory_space<vmem>>, vector<1x1x1024xf32>
      tpu.vector_store %arg9[%c0_28, %c0_29, %c0_30], %33 {strides = array<i32>} : memref<1x1x1024xf32, #tpu.memory_space<vmem>>, vector<1x1x1024xf32>,
    } else {
    }
    %c0_21 = arith.constant 0 : index
    %c0_22 = arith.constant 0 : index
    %c0_23 = arith.constant 0 : index
    %29 = vector.load %arg9[%c0_21, %c0_22, %c0_23] : memref<1x1x1024xf32, #tpu.memory_space<vmem>>, vector<1x1x1024xf32>
    %30 = vector.shape_cast %25 : vector<1x1024xf32> to vector<1x1x1024xf32>
    %31 = arith.maximumf %29, %30 : vector<1x1x1024xf32>
    %c0_24 = arith.constant 0 : index
    %c0_25 = arith.constant 0 : index
    %c0_26 = arith.constant 0 : index
    %32 = vector.load %arg9[%c0_24, %c0_25, %c0_26] : memref<1x1x1024xf32, #tpu.memory_space<vmem>>, vector<1x1x1024xf32>
    tpu.vector_store %arg9[%c0_24, %c0_25, %c0_26], %31 {strides = array<i32>} : memref<1x1x1024xf32, #tpu.memory_space<vmem>>, vector<1x1x1024xf32>,
    return
  }
  func.func @transform_0(%arg0: i32, %arg1: i32) -> (i32, i32, i32) {
    %c0_i32 = arith.constant 0 : i32
    %c0_i32_0 = arith.constant 0 : i32
    return %arg0, %arg1, %c0_i32 : i32, i32, i32
  }
  func.func @transform_1(%arg0: i32, %arg1: i32) -> (i32, i32, i32) {
    %c0_i32 = arith.constant 0 : i32
    %c0_i32_0 = arith.constant 0 : i32
    %c0_i32_1 = arith.constant 0 : i32
    return %arg0, %c0_i32, %c0_i32_0 : i32, i32, i32
  }
  func.func @transform_2(%arg0: i32, %arg1: i32) -> (i32, i32) {
    %c0_i32 = arith.constant 0 : i32
    %c0_i32_0 = arith.constant 0 : i32
    %c0_i32_1 = arith.constant 0 : i32
    return %c0_i32, %c0_i32_0 : i32, i32
  }
  func.func @transform_3(%arg0: i32, %arg1: i32) -> (i32, i32) {
    %c0_i32 = arith.constant 0 : i32
    %c0_i32_0 = arith.constant 0 : i32
    %c0_i32_1 = arith.constant 0 : i32
    return %c0_i32, %c0_i32_0 : i32, i32
  }
  func.func @transform_4(%arg0: i32, %arg1: i32) -> (i32, i32) {
    %c0_i32 = arith.constant 0 : i32
    %c0_i32_0 = arith.constant 0 : i32
    %c0_i32_1 = arith.constant 0 : i32
    return %c0_i32, %c0_i32_0 : i32, i32
  }
  func.func @transform_5(%arg0: i32, %arg1: i32) -> (i32, i32) {
    %c0_i32 = arith.constant 0 : i32
    %c0_i32_0 = arith.constant 0 : i32
    %c0_i32_1 = arith.constant 0 : i32
    return %c0_i32, %c0_i32_0 : i32, i32
  }
  func.func @transform_6(%arg0: i32, %arg1: i32) -> (i32, i32) {
    %c0_i32 = arith.constant 0 : i32
    %c0_i32_0 = arith.constant 0 : i32
    %c0_i32_1 = arith.constant 0 : i32
    return %c0_i32, %c0_i32_0 : i32, i32
  }
  func.func @transform_7(%arg0: i32, %arg1: i32) -> (i32, i32, i32) {
    %c0_i32 = arith.constant 0 : i32
    %c0_i32_0 = arith.constant 0 : i32
    %c0_i32_1 = arith.constant 0 : i32
    return %arg0, %c0_i32, %c0_i32_0 : i32, i32, i32
  }
}

module attributes {stable_mosaic.version = 11 : i64} {
  func.func @_linear_kernel(%arg0: i32, %arg1: i32, %arg2: i32, %arg3: memref<2x512xbf16, #tpu.memory_space<vmem>>, %arg4: memref<512x256xbf16, #tpu.memory_space<vmem>>, %arg5: memref<1x256xf32, #tpu.memory_space<vmem>>, %arg6: memref<2x256xf32, #tpu.memory_space<vmem>>, %arg7: memref<2x256xf32, #tpu.memory_space<vmem>>) attributes {dimension_semantics = [#tpu.dimension_semantics<parallel>, #tpu.dimension_semantics<parallel>, #tpu.dimension_semantics<arbitrary>], iteration_bounds = array<i64: 1, 1, 1>, scalar_prefetch = 0 : i64, scratch_operands = 1 : i64, tpu.core_type = #tpu.core_type<tc>, window_params = [{transform_indices = @transform_0, window_bounds = array<i64: 2, 512>}, {transform_indices = @transform_1, window_bounds = array<i64: 512, 256>}, {transform_indices = @transform_2, window_bounds = array<i64: 1, 256>}, {transform_indices = @transform_3, window_bounds = array<i64: 2, 256>}]} {
    %c0_i32 = arith.constant 0 : i32
    %0 = arith.cmpi eq, %arg2, %c0_i32 : i32
    %1 = arith.extui %0 : i1 to i32
    %c0_i32_0 = arith.constant 0 : i32
    %2 = arith.cmpi ne, %1, %c0_i32_0 : i32
    scf.if %2 {
      %cst_10 = arith.constant 0.000000e+00 : f32
      %12 = vector.broadcast %cst_10 : f32 to vector<2x256xf32>
      %c0_11 = arith.constant 0 : index
      %c0_12 = arith.constant 0 : index
      %13 = vector.load %arg7[%c0_11, %c0_12] : memref<2x256xf32, #tpu.memory_space<vmem>>, vector<2x256xf32>
      tpu.vector_store %arg7[%c0_11, %c0_12], %12 {strides = array<i32>} : memref<2x256xf32, #tpu.memory_space<vmem>>, vector<2x256xf32>,
    } else {
    }
    %c0 = arith.constant 0 : index
    %c0_1 = arith.constant 0 : index
    %3 = vector.load %arg7[%c0, %c0_1] : memref<2x256xf32, #tpu.memory_space<vmem>>, vector<2x256xf32>
    %c0_2 = arith.constant 0 : index
    %c0_3 = arith.constant 0 : index
    %4 = vector.load %arg3[%c0_2, %c0_3] : memref<2x512xbf16, #tpu.memory_space<vmem>>, vector<2x512xbf16>
    %c0_4 = arith.constant 0 : index
    %c0_5 = arith.constant 0 : index
    %5 = vector.load %arg4[%c0_4, %c0_5] : memref<512x256xbf16, #tpu.memory_space<vmem>>, vector<512x256xbf16>
    %cst = arith.constant dense<0.000000e+00> : vector<2x256xf32>
    %6 = tpu.matmul %4, %5, %cst {dimension_numbers = #tpu.dot_dimension_numbers<[1], [0], [0], [1], [0, 0, 1, 1], [], []>} : vector<2x512xbf16>, vector<512x256xbf16>, vector<2x256xf32> -> vector<2x256xf32>
    %7 = arith.addf %3, %6 : vector<2x256xf32>
    %c0_6 = arith.constant 0 : index
    %c0_7 = arith.constant 0 : index
    %8 = vector.load %arg7[%c0_6, %c0_7] : memref<2x256xf32, #tpu.memory_space<vmem>>, vector<2x256xf32>
    tpu.vector_store %arg7[%c0_6, %c0_7], %7 {strides = array<i32>} : memref<2x256xf32, #tpu.memory_space<vmem>>, vector<2x256xf32>,
    %c0_i32_8 = arith.constant 0 : i32
    %9 = arith.cmpi eq, %arg2, %c0_i32_8 : i32
    %10 = arith.extui %9 : i1 to i32
    %c0_i32_9 = arith.constant 0 : i32
    %11 = arith.cmpi ne, %10, %c0_i32_9 : i32
    scf.if %11 {
      %c0_10 = arith.constant 0 : index
      %c0_11 = arith.constant 0 : index
      %12 = vector.load %arg7[%c0_10, %c0_11] : memref<2x256xf32, #tpu.memory_space<vmem>>, vector<2x256xf32>
      %c0_12 = arith.constant 0 : index
      %c0_13 = arith.constant 0 : index
      %13 = vector.load %arg5[%c0_12, %c0_13] : memref<1x256xf32, #tpu.memory_space<vmem>>, vector<1x256xf32>
      %14 = vector.broadcast %13 : vector<1x256xf32> to vector<2x256xf32>
      %15 = arith.addf %12, %14 : vector<2x256xf32>
      %cst_14 = arith.constant 0.000000e+00 : f32
      %16 = vector.broadcast %cst_14 : f32 to vector<2x256xf32>
      %17 = arith.maximumf %15, %16 : vector<2x256xf32>
      %c0_15 = arith.constant 0 : index
      %c0_16 = arith.constant 0 : index
      %18 = vector.load %arg6[%c0_15, %c0_16] : memref<2x256xf32, #tpu.memory_space<vmem>>, vector<2x256xf32>
      tpu.vector_store %arg6[%c0_15, %c0_16], %17 {strides = array<i32>} : memref<2x256xf32, #tpu.memory_space<vmem>>, vector<2x256xf32>,
    } else {
    }
    return
  }
  func.func @transform_0(%arg0: i32, %arg1: i32, %arg2: i32) -> (i32, i32) {
    %c0_i32 = arith.constant 0 : i32
    return %arg0, %arg2 : i32, i32
  }
  func.func @transform_1(%arg0: i32, %arg1: i32, %arg2: i32) -> (i32, i32) {
    %c0_i32 = arith.constant 0 : i32
    return %arg2, %arg1 : i32, i32
  }
  func.func @transform_2(%arg0: i32, %arg1: i32, %arg2: i32) -> (i32, i32) {
    %c0_i32 = arith.constant 0 : i32
    %c0_i32_0 = arith.constant 0 : i32
    return %c0_i32, %arg1 : i32, i32
  }
  func.func @transform_3(%arg0: i32, %arg1: i32, %arg2: i32) -> (i32, i32) {
    %c0_i32 = arith.constant 0 : i32
    return %arg0, %arg1 : i32, i32
  }
}

module attributes {stable_mosaic.version = 11 : i64} {
  func.func @_linear_kernel(%arg0: i32, %arg1: i32, %arg2: i32, %arg3: memref<2x512xbf16, #tpu.memory_space<vmem>>, %arg4: memref<512x256xbf16, #tpu.memory_space<vmem>>, %arg5: memref<1x256xf32, #tpu.memory_space<vmem>>, %arg6: memref<2x256xf32, #tpu.memory_space<vmem>>, %arg7: memref<2x256xf32, #tpu.memory_space<vmem>>) attributes {dimension_semantics = [#tpu.dimension_semantics<parallel>, #tpu.dimension_semantics<parallel>, #tpu.dimension_semantics<arbitrary>], iteration_bounds = array<i64: 1, 2, 2>, scalar_prefetch = 0 : i64, scratch_operands = 1 : i64, tpu.core_type = #tpu.core_type<tc>, window_params = [{transform_indices = @transform_0, window_bounds = array<i64: 2, 512>}, {transform_indices = @transform_1, window_bounds = array<i64: 512, 256>}, {transform_indices = @transform_2, window_bounds = array<i64: 1, 256>}, {transform_indices = @transform_3, window_bounds = array<i64: 2, 256>}]} {
    %c0_i32 = arith.constant 0 : i32
    %0 = arith.cmpi eq, %arg2, %c0_i32 : i32
    %1 = arith.extui %0 : i1 to i32
    %c0_i32_0 = arith.constant 0 : i32
    %2 = arith.cmpi ne, %1, %c0_i32_0 : i32
    scf.if %2 {
      %cst_9 = arith.constant 0.000000e+00 : f32
      %12 = vector.broadcast %cst_9 : f32 to vector<2x256xf32>
      %c0_10 = arith.constant 0 : index
      %c0_11 = arith.constant 0 : index
      %13 = vector.load %arg7[%c0_10, %c0_11] : memref<2x256xf32, #tpu.memory_space<vmem>>, vector<2x256xf32>
      tpu.vector_store %arg7[%c0_10, %c0_11], %12 {strides = array<i32>} : memref<2x256xf32, #tpu.memory_space<vmem>>, vector<2x256xf32>,
    } else {
    }
    %c0 = arith.constant 0 : index
    %c0_1 = arith.constant 0 : index
    %3 = vector.load %arg7[%c0, %c0_1] : memref<2x256xf32, #tpu.memory_space<vmem>>, vector<2x256xf32>
    %c0_2 = arith.constant 0 : index
    %c0_3 = arith.constant 0 : index
    %4 = vector.load %arg3[%c0_2, %c0_3] : memref<2x512xbf16, #tpu.memory_space<vmem>>, vector<2x512xbf16>
    %c0_4 = arith.constant 0 : index
    %c0_5 = arith.constant 0 : index
    %5 = vector.load %arg4[%c0_4, %c0_5] : memref<512x256xbf16, #tpu.memory_space<vmem>>, vector<512x256xbf16>
    %cst = arith.constant dense<0.000000e+00> : vector<2x256xf32>
    %6 = tpu.matmul %4, %5, %cst {dimension_numbers = #tpu.dot_dimension_numbers<[1], [0], [0], [1], [0, 0, 1, 1], [], []>} : vector<2x512xbf16>, vector<512x256xbf16>, vector<2x256xf32> -> vector<2x256xf32>
    %7 = arith.addf %3, %6 : vector<2x256xf32>
    %c0_6 = arith.constant 0 : index
    %c0_7 = arith.constant 0 : index
    %8 = vector.load %arg7[%c0_6, %c0_7] : memref<2x256xf32, #tpu.memory_space<vmem>>, vector<2x256xf32>
    tpu.vector_store %arg7[%c0_6, %c0_7], %7 {strides = array<i32>} : memref<2x256xf32, #tpu.memory_space<vmem>>, vector<2x256xf32>,
    %c1_i32 = arith.constant 1 : i32
    %9 = arith.cmpi eq, %arg2, %c1_i32 : i32
    %10 = arith.extui %9 : i1 to i32
    %c0_i32_8 = arith.constant 0 : i32
    %11 = arith.cmpi ne, %10, %c0_i32_8 : i32
    scf.if %11 {
      %c0_9 = arith.constant 0 : index
      %c0_10 = arith.constant 0 : index
      %12 = vector.load %arg7[%c0_9, %c0_10] : memref<2x256xf32, #tpu.memory_space<vmem>>, vector<2x256xf32>
      %c0_11 = arith.constant 0 : index
      %c0_12 = arith.constant 0 : index
      %13 = vector.load %arg5[%c0_11, %c0_12] : memref<1x256xf32, #tpu.memory_space<vmem>>, vector<1x256xf32>
      %14 = vector.broadcast %13 : vector<1x256xf32> to vector<2x256xf32>
      %15 = arith.addf %12, %14 : vector<2x256xf32>
      %cst_13 = arith.constant 0.000000e+00 : f32
      %16 = vector.broadcast %cst_13 : f32 to vector<2x256xf32>
      %17 = arith.maximumf %15, %16 : vector<2x256xf32>
      %c0_14 = arith.constant 0 : index
      %c0_15 = arith.constant 0 : index
      %18 = vector.load %arg6[%c0_14, %c0_15] : memref<2x256xf32, #tpu.memory_space<vmem>>, vector<2x256xf32>
      tpu.vector_store %arg6[%c0_14, %c0_15], %17 {strides = array<i32>} : memref<2x256xf32, #tpu.memory_space<vmem>>, vector<2x256xf32>,
    } else {
    }
    return
  }
  func.func @transform_0(%arg0: i32, %arg1: i32, %arg2: i32) -> (i32, i32) {
    %c0_i32 = arith.constant 0 : i32
    return %arg0, %arg2 : i32, i32
  }
  func.func @transform_1(%arg0: i32, %arg1: i32, %arg2: i32) -> (i32, i32) {
    %c0_i32 = arith.constant 0 : i32
    return %arg2, %arg1 : i32, i32
  }
  func.func @transform_2(%arg0: i32, %arg1: i32, %arg2: i32) -> (i32, i32) {
    %c0_i32 = arith.constant 0 : i32
    %c0_i32_0 = arith.constant 0 : i32
    return %c0_i32, %arg1 : i32, i32
  }
  func.func @transform_3(%arg0: i32, %arg1: i32, %arg2: i32) -> (i32, i32) {
    %c0_i32 = arith.constant 0 : i32
    return %arg0, %arg1 : i32, i32
  }
}

module attributes {stable_mosaic.version = 11 : i64} {
  func.func @_linear_kernel(%arg0: i32, %arg1: i32, %arg2: i32, %arg3: memref<2x256xbf16, #tpu.memory_space<vmem>>, %arg4: memref<256x128xbf16, #tpu.memory_space<vmem>>, %arg5: memref<1x128xf32, #tpu.memory_space<vmem>>, %arg6: memref<2x128xf32, #tpu.memory_space<vmem>>, %arg7: memref<2x128xf32, #tpu.memory_space<vmem>>) attributes {dimension_semantics = [#tpu.dimension_semantics<parallel>, #tpu.dimension_semantics<parallel>, #tpu.dimension_semantics<arbitrary>], iteration_bounds = array<i64: 1, 1, 1>, scalar_prefetch = 0 : i64, scratch_operands = 1 : i64, tpu.core_type = #tpu.core_type<tc>, window_params = [{transform_indices = @transform_0, window_bounds = array<i64: 2, 256>}, {transform_indices = @transform_1, window_bounds = array<i64: 256, 128>}, {transform_indices = @transform_2, window_bounds = array<i64: 1, 128>}, {transform_indices = @transform_3, window_bounds = array<i64: 2, 128>}]} {
    %c0_i32 = arith.constant 0 : i32
    %0 = arith.cmpi eq, %arg2, %c0_i32 : i32
    %1 = arith.extui %0 : i1 to i32
    %c0_i32_0 = arith.constant 0 : i32
    %2 = arith.cmpi ne, %1, %c0_i32_0 : i32
    scf.if %2 {
      %cst_10 = arith.constant 0.000000e+00 : f32
      %12 = vector.broadcast %cst_10 : f32 to vector<2x128xf32>
      %c0_11 = arith.constant 0 : index
      %c0_12 = arith.constant 0 : index
      %13 = vector.load %arg7[%c0_11, %c0_12] : memref<2x128xf32, #tpu.memory_space<vmem>>, vector<2x128xf32>
      tpu.vector_store %arg7[%c0_11, %c0_12], %12 {strides = array<i32>} : memref<2x128xf32, #tpu.memory_space<vmem>>, vector<2x128xf32>,
    } else {
    }
    %c0 = arith.constant 0 : index
    %c0_1 = arith.constant 0 : index
    %3 = vector.load %arg7[%c0, %c0_1] : memref<2x128xf32, #tpu.memory_space<vmem>>, vector<2x128xf32>
    %c0_2 = arith.constant 0 : index
    %c0_3 = arith.constant 0 : index
    %4 = vector.load %arg3[%c0_2, %c0_3] : memref<2x256xbf16, #tpu.memory_space<vmem>>, vector<2x256xbf16>
    %c0_4 = arith.constant 0 : index
    %c0_5 = arith.constant 0 : index
    %5 = vector.load %arg4[%c0_4, %c0_5] : memref<256x128xbf16, #tpu.memory_space<vmem>>, vector<256x128xbf16>
    %cst = arith.constant dense<0.000000e+00> : vector<2x128xf32>
    %6 = tpu.matmul %4, %5, %cst {dimension_numbers = #tpu.dot_dimension_numbers<[1], [0], [0], [1], [0, 0, 1, 1], [], []>} : vector<2x256xbf16>, vector<256x128xbf16>, vector<2x128xf32> -> vector<2x128xf32>
    %7 = arith.addf %3, %6 : vector<2x128xf32>
    %c0_6 = arith.constant 0 : index
    %c0_7 = arith.constant 0 : index
    %8 = vector.load %arg7[%c0_6, %c0_7] : memref<2x128xf32, #tpu.memory_space<vmem>>, vector<2x128xf32>
    tpu.vector_store %arg7[%c0_6, %c0_7], %7 {strides = array<i32>} : memref<2x128xf32, #tpu.memory_space<vmem>>, vector<2x128xf32>,
    %c0_i32_8 = arith.constant 0 : i32
    %9 = arith.cmpi eq, %arg2, %c0_i32_8 : i32
    %10 = arith.extui %9 : i1 to i32
    %c0_i32_9 = arith.constant 0 : i32
    %11 = arith.cmpi ne, %10, %c0_i32_9 : i32
    scf.if %11 {
      %c0_10 = arith.constant 0 : index
      %c0_11 = arith.constant 0 : index
      %12 = vector.load %arg7[%c0_10, %c0_11] : memref<2x128xf32, #tpu.memory_space<vmem>>, vector<2x128xf32>
      %c0_12 = arith.constant 0 : index
      %c0_13 = arith.constant 0 : index
      %13 = vector.load %arg5[%c0_12, %c0_13] : memref<1x128xf32, #tpu.memory_space<vmem>>, vector<1x128xf32>
      %14 = vector.broadcast %13 : vector<1x128xf32> to vector<2x128xf32>
      %15 = arith.addf %12, %14 : vector<2x128xf32>
      %c0_14 = arith.constant 0 : index
      %c0_15 = arith.constant 0 : index
      %16 = vector.load %arg6[%c0_14, %c0_15] : memref<2x128xf32, #tpu.memory_space<vmem>>, vector<2x128xf32>
      tpu.vector_store %arg6[%c0_14, %c0_15], %15 {strides = array<i32>} : memref<2x128xf32, #tpu.memory_space<vmem>>, vector<2x128xf32>,
    } else {
    }
    return
  }
  func.func @transform_0(%arg0: i32, %arg1: i32, %arg2: i32) -> (i32, i32) {
    %c0_i32 = arith.constant 0 : i32
    return %arg0, %arg2 : i32, i32
  }
  func.func @transform_1(%arg0: i32, %arg1: i32, %arg2: i32) -> (i32, i32) {
    %c0_i32 = arith.constant 0 : i32
    return %arg2, %arg1 : i32, i32
  }
  func.func @transform_2(%arg0: i32, %arg1: i32, %arg2: i32) -> (i32, i32) {
    %c0_i32 = arith.constant 0 : i32
    %c0_i32_0 = arith.constant 0 : i32
    return %c0_i32, %arg1 : i32, i32
  }
  func.func @transform_3(%arg0: i32, %arg1: i32, %arg2: i32) -> (i32, i32) {
    %c0_i32 = arith.constant 0 : i32
    return %arg0, %arg1 : i32, i32
  }
}

</mosaic_0001>

<llo_original>
// kernel: pointnet_torus_forward.11
$region0: #{pointnet_torus_forward.11}
  #allocation0 [shape = 'u32[]', space=smem, size = 0x4, offset = 0x4, fixed_abs, tag = 'smem constant byte address 0x4 - core index']
  #allocation1 [shape = 'u32[72,128]{1,0:T(1,128)}', space=vmem, size = 0x9000, scoped, tag = 'internal scratch']
  #allocation2 [shape = 'f32[2,128]{1,0:T(2,128)}', space=vmem, size = 0x400, scoped, tag = 'scratch operand']
  %s0 = inlined_call_operand.vmem [shape: bf16[2,256], index: 0, kind: input, shape index: {}]
  %s1 = inlined_call_operand.hbm [shape: bf16[256,128], index: 1, kind: input, shape index: {}]
  %s2 = inlined_call_operand.hbm [shape: f32[1,128], index: 2, kind: input, shape index: {}]
  %s3 = inlined_call_operand.vmem [shape: f32[2,128], index: 3, kind: output, shape index: {}]
  %s4 = sld [smem:[#allocation0]]
  $region38: #{pointnet_torus_forward.11} parent=0
    _
  %s6 = ssub.s32 1, %s4
  %s7 = scalar_select 0, %s6, %s4
  $region1: #{pointnet_torus_forward.11} parent=0
    #allocation3 [shape = 'u8[65536]{0}', space=vmem, size = 0x10000, scoped, tag = 'input window, operand 1, single buffered']
    #allocation4 [shape = 's32[1]{0}', space=sflag, size = 0x4, scoped, tag = 'scoped memory for pointnet_torus_forward.11']
    #allocation5 [shape = 'u8[512]{0}', space=vmem, size = 0x400, scoped, tag = 'input window, operand 2, single buffered']
    #allocation6 [shape = 's32[1]{0}', space=sflag, size = 0x4, scoped, tag = 'scoped memory for pointnet_torus_forward.11']
    %8 = vsyncpa [#allocation4], 0
    %9 = vsyncpa [#allocation6], 0
    // Predicated region
    $region2: #{pointnet_torus_forward.11} parent=1 // pred_check
      _
    $region3: #{pointnet_torus_forward.11} parent=1 // pred_check_branch
      %11 = sbr.rel (0) target = $region5
    $region4: #{pointnet_torus_forward.11} parent=1 // pred_region
      _
    $region5: #{pointnet_torus_forward.11} parent=1 // pred_fallthru
      _
    // Predicated region
    $region6: #{pointnet_torus_forward.11} parent=1 // pred_check
      _
    $region7: #{pointnet_torus_forward.11} parent=1 // pred_check_branch
      %13 = sbr.rel (0) target = $region9
    $region8: #{pointnet_torus_forward.11} parent=1 // pred_region
      %15 = vsyncadd [#allocation4], 0
      %s16 = sshll.u32 %s1, 4
      %s17 = int_to_ptr.hbm [resolvable:$true] %s16
      %s18 = sshll.u32 [#allocation3], 4
      %s19 = int_to_ptr.vmem [resolvable:$true] %s18
      %24 = dma.hbm_to_vmem [thread:$0]  %s17, 2048, %s19, [#allocation4], 64, 64, 4
    $region9: #{pointnet_torus_forward.11} parent=1 // pred_fallthru
      _
    // Predicated region
    $region10: #{pointnet_torus_forward.11} parent=1 // pred_check
      _
    $region11: #{pointnet_torus_forward.11} parent=1 // pred_check_branch
      %26 = sbr.rel (0) target = $region13
    $region12: #{pointnet_torus_forward.11} parent=1 // pred_region
      %28 = vsyncadd [#allocation6], 0
      %s30 = sshll.u32 %s2, 4
      %s31 = int_to_ptr.hbm [resolvable:$true] %s30
      %s32 = sshll.u32 [#allocation5], 4
      %s33 = int_to_ptr.vmem [resolvable:$true] %s32
      %35 = dma.hbm_to_vmem [thread:$0]  %s31, 16, %s33, [#allocation6]
    $region13: #{pointnet_torus_forward.11} parent=1 // pred_fallthru
      _
    // Predicated region
    $region14: #{pointnet_torus_forward.11} parent=1 // pred_check
      _
    $region15: #{pointnet_torus_forward.11} parent=1 // pred_check_branch
      %37 = sbr.rel (0) target = $region17
    $region16: #{pointnet_torus_forward.11} parent=1 // pred_region
      %39 = dma.done [#allocation4], 2048
    $region17: #{pointnet_torus_forward.11} parent=1 // pred_fallthru
      _
    // Predicated region
    $region18: #{pointnet_torus_forward.11} parent=1 // pred_check
      _
    $region19: #{pointnet_torus_forward.11} parent=1 // pred_check_branch
      %41 = sbr.rel (0) target = $region21
    $region20: #{pointnet_torus_forward.11} parent=1 // pred_region
      %43 = dma.done [#allocation6], 16
    $region21: #{pointnet_torus_forward.11} parent=1 // pred_fallthru
      _
    %p44 = scmp.eq.s32.totalorder 0, 0
    // Predicated region
    $region22: #{pointnet_torus_forward.11} parent=1 // pred_check
      %p45 = pneg %p44
    $region23: #{pointnet_torus_forward.11} parent=1 // pred_check_branch
      %47 = sbr.rel (%p45) target = $region25
    $region24: #{pointnet_torus_forward.11} parent=1 // pred_region
      %48 = vst [vmem:[#allocation2] sm:$0x3] 0.0
    $region25: #{pointnet_torus_forward.11} parent=1 // pred_fallthru
      _
    %v49 = vld [vmem:[#allocation2] sm:$0x3]
    %v50 = vld [vmem:[%s0] sm:$0x3]
    %v51 = vld [vmem:[#allocation3] sm:$0xf]
    %v52 = vld [vmem:[#allocation3 + $0x4] sm:$0xf]
    %v53 = vld [vmem:[#allocation3 + $0x8] sm:$0xf]
    %v54 = vld [vmem:[#allocation3 + $0xc] sm:$0xf]
    %v55 = vld [vmem:[#allocation3 + $0x10] sm:$0xf]
    %v56 = vld [vmem:[#allocation3 + $0x14] sm:$0xf]
    %v57 = vld [vmem:[#allocation3 + $0x18] sm:$0xf]
    %v58 = vld [vmem:[#allocation3 + $0x1c] sm:$0xf]
    %v59 = vld [vmem:[#allocation3 + $0x20] sm:$0xf]
    %v60 = vld [vmem:[#allocation3 + $0x24] sm:$0xf]
    %v61 = vld [vmem:[#allocation3 + $0x28] sm:$0xf]
    %v62 = vld [vmem:[#allocation3 + $0x2c] sm:$0xf]
    %v63 = vld [vmem:[#allocation3 + $0x30] sm:$0xf]
    %v64 = vld [vmem:[#allocation3 + $0x34] sm:$0xf]
    %v65 = vld [vmem:[#allocation3 + $0x38] sm:$0xf]
    %v66 = vld [vmem:[#allocation3 + $0x3c] sm:$0xf]
    %v67 = vld [vmem:[#allocation3 + $0x40] sm:$0xf]
    %v68 = vld [vmem:[#allocation3 + $0x44] sm:$0xf]
    %v69 = vld [vmem:[#allocation3 + $0x48] sm:$0xf]
    %v70 = vld [vmem:[#allocation3 + $0x4c] sm:$0xf]
    %v71 = vld [vmem:[#allocation3 + $0x50] sm:$0xf]
    %v72 = vld [vmem:[#allocation3 + $0x54] sm:$0xf]
    %v73 = vld [vmem:[#allocation3 + $0x58] sm:$0xf]
    %v74 = vld [vmem:[#allocation3 + $0x5c] sm:$0xf]
    %v75 = vld [vmem:[#allocation3 + $0x60] sm:$0xf]
    %v76 = vld [vmem:[#allocation3 + $0x64] sm:$0xf]
    %v77 = vld [vmem:[#allocation3 + $0x68] sm:$0xf]
    %v78 = vld [vmem:[#allocation3 + $0x6c] sm:$0xf]
    %v79 = vld [vmem:[#allocation3 + $0x70] sm:$0xf]
    %v80 = vld [vmem:[#allocation3 + $0x74] sm:$0xf]
    %v81 = vld [vmem:[#allocation3 + $0x78] sm:$0xf]
    %v82 = vld [vmem:[#allocation3 + $0x7c] sm:$0xf]
    %84 = vst [vmem:[#allocation1] ss:$9 sm:$0xff] %v50
    %v85 = vld [vmem:[#allocation1] sm:$0xff]
    %v86 = vld [vmem:[#allocation1 + $0x9] sm:$0xff]
    %v121 = vunpack.c.l.b16 %v51
    %v122 = vunpack.c.l.b16 %v52
    %v123 = vunpack.c.l.b16 %v53
    %v124 = vunpack.c.l.b16 %v54
    %v125 = vunpack.c.l.b16 %v55
    %v126 = vunpack.c.l.b16 %v56
    %v127 = vunpack.c.l.b16 %v57
    %v128 = vunpack.c.l.b16 %v58
    %v129 = vunpack.c.l.b16 %v59
    %v130 = vunpack.c.l.b16 %v60
    %v131 = vunpack.c.l.b16 %v61
    %v132 = vunpack.c.l.b16 %v62
    %v133 = vunpack.c.l.b16 %v63
    %v134 = vunpack.c.l.b16 %v64
    %v135 = vunpack.c.l.b16 %v65
    %v136 = vunpack.c.l.b16 %v66
    %v137 = vunpack.c.l.b16 %v67
    %v138 = vunpack.c.l.b16 %v68
    %v139 = vunpack.c.l.b16 %v69
    %v140 = vunpack.c.l.b16 %v70
    %v141 = vunpack.c.l.b16 %v71
    %v142 = vunpack.c.l.b16 %v72
    %v143 = vunpack.c.l.b16 %v73
    %v144 = vunpack.c.l.b16 %v74
    %v145 = vunpack.c.l.b16 %v75
    %v146 = vunpack.c.l.b16 %v76
    %v147 = vunpack.c.l.b16 %v77
    %v148 = vunpack.c.l.b16 %v78
    %v149 = vunpack.c.l.b16 %v79
    %v150 = vunpack.c.l.b16 %v80
    %v151 = vunpack.c.l.b16 %v81
    %v152 = vunpack.c.l.b16 %v82
    %v153 = vpack.c.b16 %v122, %v121
    %v154 = vpack.c.b16 %v124, %v123
    %v155 = vpack.c.b16 %v126, %v125
    %v156 = vpack.c.b16 %v128, %v127
    %v157 = vpack.c.b16 %v130, %v129
    %v158 = vpack.c.b16 %v132, %v131
    %v159 = vpack.c.b16 %v134, %v133
    %v160 = vpack.c.b16 %v136, %v135
    %v161 = vpack.c.b16 %v138, %v137
    %v162 = vpack.c.b16 %v140, %v139
    %v163 = vpack.c.b16 %v142, %v141
    %v164 = vpack.c.b16 %v144, %v143
    %v165 = vpack.c.b16 %v146, %v145
    %v166 = vpack.c.b16 %v148, %v147
    %v167 = vpack.c.b16 %v150, %v149
    %v168 = vpack.c.b16 %v152, %v151
    %185 = vmatpush.bf16.msra.mxu0 %v160
    %186 = vmatpush.bf16.msra.mxu0 %v159
    %187 = vmatpush.bf16.msra.mxu0 %v158
    %188 = vmatpush.bf16.msra.mxu0 %v157
    %189 = vmatpush.bf16.msra.mxu0 %v156
    %190 = vmatpush.bf16.msra.mxu0 %v155
    %191 = vmatpush.bf16.msra.mxu0 %v154
    %192 = vmatpush.bf16.msra.mxu0 %v153
    %193 = vmatmul.bf16.gmra.mxu0 %v85
    %v194 = vpop.f32.mrf.mxu0
    %v195 = vadd.f32 0.0, %v194
    %v196 = vpop.f32.mrf.mxu0
    %197 = vdwg.mxu0
    %198 = vmatpush.bf16.msra.mxu0 %v168
    %199 = vmatpush.bf16.msra.mxu0 %v167
    %200 = vmatpush.bf16.msra.mxu0 %v166
    %201 = vmatpush.bf16.msra.mxu0 %v165
    %202 = vmatpush.bf16.msra.mxu0 %v164
    %203 = vmatpush.bf16.msra.mxu0 %v163
    %204 = vmatpush.bf16.msra.mxu0 %v162
    %205 = vmatpush.bf16.msra.mxu0 %v161
    %206 = vmatmul.bf16.gmra.mxu0 %v86
    %v207 = vpop.f32.mrf.mxu0
    %v208 = vadd.f32 %v195, %v207
    %v209 = vpop.f32.mrf.mxu0
    %210 = vdwg.mxu0
    %v211 = vadd.f32 %v49, %v208
    %212 = vst [vmem:[#allocation2] sm:$0x3] %v211
    // Predicated region
    $region26: #{pointnet_torus_forward.11} parent=1 // pred_check
      %p213 = pneg %p44
    $region27: #{pointnet_torus_forward.11} parent=1 // pred_check_branch
      %215 = sbr.rel (%p213) target = $region29
    $region28: #{pointnet_torus_forward.11} parent=1 // pred_region
      %v216 = vld [vmem:[#allocation2] sm:$0x3]
      %v217 = vld [vmem:[#allocation5] sm:$0x1]
      %v219 = vperm.slane %v217, 0
      %v221 = vadd.f32 %v216, %v219
      %222 = vst [vmem:[%s3] sm:$0x3] %v221
    $region29: #{pointnet_torus_forward.11} parent=1 // pred_fallthru
      _
    // Predicated region
    $region30: #{pointnet_torus_forward.11} parent=1 // pred_check
      _
    $region31: #{pointnet_torus_forward.11} parent=1 // pred_check_branch
      %224 = sbr.rel (0) target = $region33
    $region32: #{pointnet_torus_forward.11} parent=1 // pred_region
      _
    $region33: #{pointnet_torus_forward.11} parent=1 // pred_fallthru
      _
    // Predicated region
    $region34: #{pointnet_torus_forward.11} parent=1 // pred_check
      _
    $region35: #{pointnet_torus_forward.11} parent=1 // pred_check_branch
      %226 = sbr.rel (0) target = $region37
    $region36: #{pointnet_torus_forward.11} parent=1 // pred_region
      _
    $region37: #{pointnet_torus_forward.11} parent=1 // pred_fallthru
      _
    %227 = vsyncpa [#allocation4], 1
    %228 = vsyncpa [#allocation6], 1

// kernel: pointnet_torus_forward.9
$region0: #{pointnet_torus_forward.9}
  #allocation0 [shape = 'u32[]', space=smem, size = 0x4, offset = 0x4, fixed_abs, tag = 'smem constant byte address 0x4 - core index']
  #allocation1 [shape = 'u32[72,128]{1,0:T(1,128)}', space=vmem, size = 0x9000, scoped, tag = 'internal scratch']
  #allocation2 [shape = 'f32[2,256]{1,0:T(2,128)}', space=vmem, size = 0x800, scoped, tag = 'scratch operand']
  %s0 = inlined_call_operand.vmem [shape: bf16[2,1024], index: 0, kind: input, shape index: {}]
  %s1 = inlined_call_operand.hbm [shape: bf16[1024,512], index: 1, kind: input, shape index: {}]
  %s2 = inlined_call_operand.vmem [shape: f32[1,512], index: 2, kind: input, shape index: {}]
  %s3 = inlined_call_operand.vmem [shape: f32[2,512], index: 3, kind: output, shape index: {}]
  %s4 = sld [smem:[#allocation0]]
  $region57: #{pointnet_torus_forward.9} parent=0
    _
  %s6 = ssub.s32 1, %s4
  %s7 = scalar_select 0, %s6, %s4
  $region1: #{pointnet_torus_forward.9} parent=0
    #allocation3 [shape = 'u8[524288]{0}', space=vmem, size = 0x80000, scoped, tag = 'input window, operand 1']
    #allocation4 [shape = 's32[2]{0}', space=sflag, size = 0x8, scoped, tag = 'scoped memory for pointnet_torus_forward.9']
    %8 = vsyncpa [#allocation4], 0
    %s9 = scalar_lea.sflag [#allocation4], 1
    %10 = vsyncpa %s9, 0
    loop: start=0, step=1, limit=6
    $region2: #{pointnet_torus_forward.9} parent=1 // loop_pre_header
      _
    $region3: #{pointnet_torus_forward.9} parent=1 // loop_header
      %s12 = sphi 0, %s16
      %p13 = scmp.ge.s32.totalorder %s12, 6
      %s19 = sphi 0, %s38
      %s20 = sphi 0, %s34
      %s21 = sphi 0, %s30
      %s22 = sphi 0, %s19
      %s23 = sphi 0, %s20
      %s24 = sphi 0, %s21
      %s25 = sphi 0, %s22
      %s26 = sphi 0, %s23
      %s27 = sphi 0, %s24
      %s43 = sphi 0, %s45
      %s46 = sphi 0, %s43
      %s47 = sphi 0, %s46
      %s63 = sphi 0, %s47
      %s71 = sphi 0, %s73
      %s74 = sphi 0, %s71
      %s75 = sphi 0, %s74
      %s91 = sphi 0, %s75
      %s97 = sphi 0, %s99
      %s100 = sphi 0, %s97
      %s101 = sphi 0, %s100
      %s117 = sphi 0, %s101
      %s125 = sphi 0, %s127
      %s128 = sphi 0, %s125
      %s129 = sphi 0, %s128
      %s145 = sphi 0, %s129
    $region4: #{pointnet_torus_forward.9} parent=1 // loop_header_branch
      %15 = sbr.rel (%p13) target = $region8
    $region5: #{pointnet_torus_forward.9} parent=1 // loop_body
      %s17 = ssub.s32 %s12, 1
      %s18 = ssub.s32 %s12, 2
      %s28 = sadd.s32 1, %s21
      %p29 = scmp.ge.s32.totalorder %s28, 2
      %s30 = scalar_select %p29, 0, %s28
      %s31 = sadd.s32 1, %s20
      %s32 = scalar_select %p29, %s31, %s20
      %p33 = scmp.ge.s32.totalorder %s32, 2
      %s34 = scalar_select %p33, 0, %s32
      %s35 = sadd.s32 1, %s19
      %s36 = scalar_select %p33, %s35, %s19
      %p37 = scmp.ge.s32.totalorder %s36, 1
      %s38 = scalar_select %p37, 0, %s36
      %s39 = ssub.s32 %s19, %s38
      %s40 = ssub.s32 %s21, %s30
      %s41 = sor.u32 %s39, %s40
      %p42 = scmp.eq.s32.totalorder %s41, 0
      %s44 = sadd.s32 %s43, 1
      %s45 = scalar_select %p42, %s43, %s44
      %p48 = pneg %p42
      %p49 = scmp.eq.s32.totalorder %s12, 3
      %p50 = por %p48, %p49
      %p51 = scmp.ne.s32.totalorder %s43, %s46
      %p52 = scmp.eq.s32.totalorder %s12, 0
      %p53 = por %p51, %p52
      %p54 = scmp.ne.s32.totalorder %s43, %s46
      %p55 = scmp.eq.s32.totalorder %s17, 3
      %p56 = por %p54, %p55
      %p57 = scmp.ne.s32.totalorder %s46, %s47
      %p58 = scmp.eq.s32.totalorder %s17, 0
      %p59 = por %p57, %p58
      %p60 = scmp.ne.s32.totalorder %s46, %s47
      %p61 = scmp.eq.s32.totalorder %s18, 3
      %p62 = por %p60, %p61
      %p64 = scmp.ne.s32.totalorder %s47, %s63
      %p65 = scmp.eq.s32.totalorder %s18, 0
      %p66 = por %p64, %p65
      %s67 = ssub.s32 %s21, %s30
      %s68 = ssub.s32 %s20, %s34
      %s69 = sor.u32 %s67, %s68
      %p70 = scmp.eq.s32.totalorder %s69, 0
      %s72 = sadd.s32 %s71, 1
      %s73 = scalar_select %p70, %s71, %s72
      %p76 = pneg %p70
      %p77 = scmp.eq.s32.totalorder %s12, 3
      %p78 = por %p76, %p77
      %p79 = scmp.ne.s32.totalorder %s71, %s74
      %p80 = scmp.eq.s32.totalorder %s12, 0
      %p81 = por %p79, %p80
      %p82 = scmp.ne.s32.totalorder %s71, %s74
      %p83 = scmp.eq.s32.totalorder %s17, 3
      %p84 = por %p82, %p83
      %p85 = scmp.ne.s32.totalorder %s74, %s75
      %p86 = scmp.eq.s32.totalorder %s17, 0
      %p87 = por %p85, %p86
      %p88 = scmp.ne.s32.totalorder %s74, %s75
      %p89 = scmp.eq.s32.totalorder %s18, 3
      %p90 = por %p88, %p89
      %p92 = scmp.ne.s32.totalorder %s75, %s91
      %p93 = scmp.eq.s32.totalorder %s18, 0
      %p94 = por %p92, %p93
      %s95 = ssub.s32 %s20, %s34
      %p96 = scmp.eq.s32.totalorder %s95, 0
      %s98 = sadd.s32 %s97, 1
      %s99 = scalar_select %p96, %s97, %s98
      %p102 = pneg %p96
      %p103 = scmp.eq.s32.totalorder %s12, 3
      %p104 = por %p102, %p103
      %p105 = scmp.ne.s32.totalorder %s97, %s100
      %p106 = scmp.eq.s32.totalorder %s12, 0
      %p107 = por %p105, %p106
      %p108 = scmp.ne.s32.totalorder %s97, %s100
      %p109 = scmp.eq.s32.totalorder %s17, 3
      %p110 = por %p108, %p109
      %p111 = scmp.ne.s32.totalorder %s100, %s101
      %p112 = scmp.eq.s32.totalorder %s17, 0
      %p113 = por %p111, %p112
      %p114 = scmp.ne.s32.totalorder %s100, %s101
      %p115 = scmp.eq.s32.totalorder %s18, 3
      %p116 = por %p114, %p115
      %p118 = scmp.ne.s32.totalorder %s101, %s117
      %p119 = scmp.eq.s32.totalorder %s18, 0
      %p120 = por %p118, %p119
      %s121 = ssub.s32 %s19, %s38
      %s122 = ssub.s32 %s20, %s34
      %s123 = sor.u32 %s121, %s122
      %p124 = scmp.eq.s32.totalorder %s123, 0
      %s126 = sadd.s32 %s125, 1
      %s127 = scalar_select %p124, %s125, %s126
      %p130 = pneg %p124
      %p131 = scmp.eq.s32.totalorder %s12, 3
      %p132 = por %p130, %p131
      %p133 = scmp.ne.s32.totalorder %s125, %s128
      %p134 = scmp.eq.s32.totalorder %s12, 0
      %p135 = por %p133, %p134
      %p136 = scmp.ne.s32.totalorder %s125, %s128
      %p137 = scmp.eq.s32.totalorder %s17, 3
      %p138 = por %p136, %p137
      %p139 = scmp.ne.s32.totalorder %s128, %s129
      %p140 = scmp.eq.s32.totalorder %s17, 0
      %p141 = por %p139, %p140
      %p142 = scmp.ne.s32.totalorder %s128, %s129
      %p143 = scmp.eq.s32.totalorder %s18, 3
      %p144 = por %p142, %p143
      %p146 = scmp.ne.s32.totalorder %s129, %s145
      %p147 = scmp.eq.s32.totalorder %s18, 0
      %p148 = por %p146, %p147
      %p149 = scmp.le.s32.totalorder 1, %s12
      %p150 = scmp.lt.s32.totalorder %s12, 5
      %p151 = pnand %p149, %p150
      %p152 = pneg %p151
      // Predicated region
      $region9: #{pointnet_torus_forward.9} parent=5 // pred_check
        _
      $region10: #{pointnet_torus_forward.9} parent=5 // pred_check_branch
        %154 = sbr.rel (%p151) target = $region12
      $region11: #{pointnet_torus_forward.9} parent=5 // pred_region
        %s155 = ssub.s32 %s12, 1
      $region12: #{pointnet_torus_forward.9} parent=5 // pred_fallthru
        _
      %p156 = scmp.lt.s32.totalorder %s12, 4
      // Predicated region
      $region13: #{pointnet_torus_forward.9} parent=5 // pred_check
        %p157 = pneg %p156
      $region14: #{pointnet_torus_forward.9} parent=5 // pred_check_branch
        %159 = sbr.rel (%p157) target = $region16
      $region15: #{pointnet_torus_forward.9} parent=5 // pred_region
        // Predicated region
        $region17: #{pointnet_torus_forward.9} parent=15 // pred_check
          %p160 = pneg %p53
        $region18: #{pointnet_torus_forward.9} parent=15 // pred_check_branch
          %162 = sbr.rel (%p160) target = $region20
        $region19: #{pointnet_torus_forward.9} parent=15 // pred_region
          %s163 = smul.u32 4, %s21
          %p164 = scmp.lt.s32.totalorder %s19, 0
          %s165 = scalar_select %p164, %s19, 0
          %p166 = scmp.lt.s32.totalorder %s163, 7
          %s167 = scalar_select %p166, %s163, 7
          %s168 = smul.addr %s165, 8
          %s169 = sadd.s32 %s167, %s168
          %s170 = scalar_lea.vmem %s0, %s169
          %s171 = smul.u32 4, %s21
        $region20: #{pointnet_torus_forward.9} parent=15 // pred_fallthru
          _
        // Predicated region
        $region21: #{pointnet_torus_forward.9} parent=15 // pred_check
          %p172 = pneg %p81
        $region22: #{pointnet_torus_forward.9} parent=15 // pred_check_branch
          %174 = sbr.rel (%p172) target = $region24
        $region23: #{pointnet_torus_forward.9} parent=15 // pred_region
          %s175 = sand.u32 %s71, 1
          %s176 = scalar_lea.sflag [#allocation4], %s175
          %s177 = sand.u32 %s71, 1
          %s178 = smul.addr %s177, 512
          %s179 = scalar_lea.vmem [#allocation3], %s178
          %s180 = smul.u32 64, %s21
          %s181 = smul.u32 2, %s20
          %183 = vsyncadd %s176, 0
          %s184 = smul.addr %s180, 4
          %s185 = sadd.s32 %s181, %s184
          %s186 = smul.addr %s185, 4
          %s187 = scalar_lea.hbm %s1, %s186
          %s188 = sshll.u32 %s187, 4
          %s189 = int_to_ptr.hbm [resolvable:$true] %s188
          %s190 = sshll.u32 %s179, 4
          %s191 = int_to_ptr.vmem [resolvable:$true] %s190
          %196 = dma.hbm_to_vmem [thread:$0]  %s189, 8192, %s191, %s176, 256, 128, 8
        $region24: #{pointnet_torus_forward.9} parent=15 // pred_fallthru
          _
        // Predicated region
        $region25: #{pointnet_torus_forward.9} parent=15 // pred_check
          %p197 = pneg %p107
        $region26: #{pointnet_torus_forward.9} parent=15 // pred_check_branch
          %199 = sbr.rel (%p197) target = $region28
        $region27: #{pointnet_torus_forward.9} parent=15 // pred_region
          %s200 = smul.u32 2, %s20
          %p201 = scmp.lt.s32.totalorder %s200, 3
          %s202 = scalar_select %p201, %s200, 3
          %s203 = scalar_lea.vmem %s2, %s202
          %s204 = smul.u32 2, %s20
        $region28: #{pointnet_torus_forward.9} parent=15 // pred_fallthru
          _
      $region16: #{pointnet_torus_forward.9} parent=5 // pred_fallthru
        _
      %p205 = scmp.le.s32.totalorder 1, %s12
      %p206 = scmp.lt.s32.totalorder %s12, 5
      %p207 = pnand %p205, %p206
      %p208 = pneg %p207
      // Predicated region
      $region29: #{pointnet_torus_forward.9} parent=5 // pred_check
        _
      $region30: #{pointnet_torus_forward.9} parent=5 // pred_check_branch
        %210 = sbr.rel (%p207) target = $region32
      $region31: #{pointnet_torus_forward.9} parent=5 // pred_region
        %s211 = ssub.s32 %s12, 1
        %s212 = sand.u32 %s74, 1
        %s213 = scalar_lea.sflag [#allocation4], %s212
        %s214 = sand.u32 %s74, 1
        %s215 = smul.addr %s214, 512
        %s216 = scalar_lea.vmem [#allocation3], %s215
        // Predicated region
        $region33: #{pointnet_torus_forward.9} parent=31 // pred_check
          %p217 = pneg %p87
        $region34: #{pointnet_torus_forward.9} parent=31 // pred_check_branch
          %219 = sbr.rel (%p217) target = $region36
        $region35: #{pointnet_torus_forward.9} parent=31 // pred_region
          %221 = dma.done %s213, 8192
        $region36: #{pointnet_torus_forward.9} parent=31 // pred_fallthru
          _
        %s222 = smul.u32 4, %s24
        %p223 = scmp.lt.s32.totalorder %s22, 0
        %s224 = scalar_select %p223, %s22, 0
        %p225 = scmp.lt.s32.totalorder %s222, 7
        %s226 = scalar_select %p225, %s222, 7
        %s227 = smul.addr %s224, 8
        %s228 = sadd.s32 %s226, %s227
        %s229 = scalar_lea.vmem %s0, %s228
        %p230 = pneg %p59
        %p231 = pneg %p56
        %s232 = sand.u32 %s74, 1
        %s233 = scalar_lea.sflag [#allocation4], %s232
        %s234 = sand.u32 %s74, 1
        %s235 = smul.addr %s234, 512
        %s236 = scalar_lea.vmem [#allocation3], %s235
        %p237 = pneg %p87
        %p238 = pneg %p84
        %s239 = smul.u32 2, %s23
        %p240 = scmp.lt.s32.totalorder %s239, 3
        %s241 = scalar_select %p240, %s239, 3
        %s242 = scalar_lea.vmem %s2, %s241
        %p243 = pneg %p113
        %p244 = pneg %p110
        %p245 = pneg %p141
        %p246 = pneg %p138
        %s247 = smul.u32 2, %s23
        %p248 = scmp.lt.s32.totalorder %s22, 0
        %s249 = scalar_select %p248, %s22, 0
        %p250 = scmp.lt.s32.totalorder %s247, 3
        %s251 = scalar_select %p250, %s247, 3
        %s252 = smul.addr %s249, 4
        %s253 = sadd.s32 %s251, %s252
        %s254 = smul.addr %s253, 2
        %s255 = scalar_lea.vmem %s3, %s254
        %s256 = smul.u32 4, %s24
        %p257 = scmp.lt.s32.totalorder %s22, 0
        %s258 = scalar_select %p257, %s22, 0
        %p259 = scmp.lt.s32.totalorder %s256, 7
        %s260 = scalar_select %p259, %s256, 7
        %s261 = smul.addr %s258, 8
        %s262 = sadd.s32 %s260, %s261
        %s263 = scalar_lea.vmem %s0, %s262
        %s264 = smul.u32 4, %s24
        %s265 = smul.u32 64, %s24
        %s266 = smul.u32 2, %s23
        %s267 = smul.u32 2, %s23
        %p268 = scmp.lt.s32.totalorder %s267, 3
        %s269 = scalar_select %p268, %s267, 3
        %s270 = scalar_lea.vmem %s2, %s269
        %s271 = smul.u32 2, %s23
        %s272 = smul.u32 2, %s23
        %p273 = scmp.lt.s32.totalorder %s22, 0
        %s274 = scalar_select %p273, %s22, 0
        %p275 = scmp.lt.s32.totalorder %s272, 3
        %s276 = scalar_select %p275, %s272, 3
        %s277 = smul.addr %s274, 4
        %s278 = sadd.s32 %s276, %s277
        %s279 = smul.addr %s278, 2
        %s280 = scalar_lea.vmem %s3, %s279
        %s281 = smul.u32 2, %s23
        %p282 = scmp.eq.s32.totalorder %s24, 0
        // Predicated region
        $region37: #{pointnet_torus_forward.9} parent=31 // pred_check
          %p283 = pneg %p282
        $region38: #{pointnet_torus_forward.9} parent=31 // pred_check_branch
          %285 = sbr.rel (%p283) target = $region40
        $region39: #{pointnet_torus_forward.9} parent=31 // pred_region
          %286 = vst [vmem:[#allocation2] sm:$0xf] 0.0
        $region40: #{pointnet_torus_forward.9} parent=31 // pred_fallthru
          _
        %v287 = vld [vmem:[#allocation2] sm:$0xf]
        %v288 = vld [vmem:[%s263] sm:$0xf]
        %v289 = vld [vmem:[%s216] sm:$0xff]
        %v290 = vld [vmem:[%s216 + $0x8] sm:$0xff]
        %v291 = vld [vmem:[%s216 + $0x10] sm:$0xff]
        %v292 = vld [vmem:[%s216 + $0x18] sm:$0xff]
        %v293 = vld [vmem:[%s216 + $0x20] sm:$0xff]
        %v294 = vld [vmem:[%s216 + $0x28] sm:$0xff]
        %v295 = vld [vmem:[%s216 + $0x30] sm:$0xff]
        %v296 = vld [vmem:[%s216 + $0x38] sm:$0xff]
        %v297 = vld [vmem:[%s216 + $0x40] sm:$0xff]
        %v298 = vld [vmem:[%s216 + $0x48] sm:$0xff]
        %v299 = vld [vmem:[%s216 + $0x50] sm:$0xff]
        %v300 = vld [vmem:[%s216 + $0x58] sm:$0xff]
        %v301 = vld [vmem:[%s216 + $0x60] sm:$0xff]
        %v302 = vld [vmem:[%s216 + $0x68] sm:$0xff]
        %v303 = vld [vmem:[%s216 + $0x70] sm:$0xff]
        %v304 = vld [vmem:[%s216 + $0x78] sm:$0xff]
        %v305 = vld [vmem:[%s216 + $0x80] sm:$0xff]
        %v306 = vld [vmem:[%s216 + $0x88] sm:$0xff]
        %v307 = vld [vmem:[%s216 + $0x90] sm:$0xff]
        %v308 = vld [vmem:[%s216 + $0x98] sm:$0xff]
        %v309 = vld [vmem:[%s216 + $0xa0] sm:$0xff]
        %v310 = vld [vmem:[%s216 + $0xa8] sm:$0xff]
        %v311 = vld [vmem:[%s216 + $0xb0] sm:$0xff]
        %v312 = vld [vmem:[%s216 + $0xb8] sm:$0xff]
        %v313 = vld [vmem:[%s216 + $0xc0] sm:$0xff]
        %v314 = vld [vmem:[%s216 + $0xc8] sm:$0xff]
        %v315 = vld [vmem:[%s216 + $0xd0] sm:$0xff]
        %v316 = vld [vmem:[%s216 + $0xd8] sm:$0xff]
        %v317 = vld [vmem:[%s216 + $0xe0] sm:$0xff]
        %v318 = vld [vmem:[%s216 + $0xe8] sm:$0xff]
        %v319 = vld [vmem:[%s216 + $0xf0] sm:$0xff]
        %v320 = vld [vmem:[%s216 + $0xf8] sm:$0xff]
        %v321 = vld [vmem:[%s216 + $0x100] sm:$0xff]
        %v322 = vld [vmem:[%s216 + $0x108] sm:$0xff]
        %v323 = vld [vmem:[%s216 + $0x110] sm:$0xff]
        %v324 = vld [vmem:[%s216 + $0x118] sm:$0xff]
        %v325 = vld [vmem:[%s216 + $0x120] sm:$0xff]
        %v326 = vld [vmem:[%s216 + $0x128] sm:$0xff]
        %v327 = vld [vmem:[%s216 + $0x130] sm:$0xff]
        %v328 = vld [vmem:[%s216 + $0x138] sm:$0xff]
        %v329 = vld [vmem:[%s216 + $0x140] sm:$0xff]
        %v330 = vld [vmem:[%s216 + $0x148] sm:$0xff]
        %v331 = vld [vmem:[%s216 + $0x150] sm:$0xff]
        %v332 = vld [vmem:[%s216 + $0x158] sm:$0xff]
        %v333 = vld [vmem:[%s216 + $0x160] sm:$0xff]
        %v334 = vld [vmem:[%s216 + $0x168] sm:$0xff]
        %v335 = vld [vmem:[%s216 + $0x170] sm:$0xff]
        %v336 = vld [vmem:[%s216 + $0x178] sm:$0xff]
        %v337 = vld [vmem:[%s216 + $0x180] sm:$0xff]
        %v338 = vld [vmem:[%s216 + $0x188] sm:$0xff]
        %v339 = vld [vmem:[%s216 + $0x190] sm:$0xff]
        %v340 = vld [vmem:[%s216 + $0x198] sm:$0xff]
        %v341 = vld [vmem:[%s216 + $0x1a0] sm:$0xff]
        %v342 = vld [vmem:[%s216 + $0x1a8] sm:$0xff]
        %v343 = vld [vmem:[%s216 + $0x1b0] sm:$0xff]
        %v344 = vld [vmem:[%s216 + $0x1b8] sm:$0xff]
        %v345 = vld [vmem:[%s216 + $0x1c0] sm:$0xff]
        %v346 = vld [vmem:[%s216 + $0x1c8] sm:$0xff]
        %v347 = vld [vmem:[%s216 + $0x1d0] sm:$0xff]
        %v348 = vld [vmem:[%s216 + $0x1d8] sm:$0xff]
        %v349 = vld [vmem:[%s216 + $0x1e0] sm:$0xff]
        %v350 = vld [vmem:[%s216 + $0x1e8] sm:$0xff]
        %v351 = vld [vmem:[%s216 + $0x1f0] sm:$0xff]
        %v352 = vld [vmem:[%s216 + $0x1f8] sm:$0xff]
        %354 = vst [vmem:[#allocation1] ss:$9 sm:$0xff] %v288
        %v355 = vld [vmem:[#allocation1] sm:$0xff]
        %v356 = vld [vmem:[#allocation1 + $0x9] sm:$0xff]
        %v357 = vld [vmem:[#allocation1 + $0x12] sm:$0xff]
        %v358 = vld [vmem:[#allocation1 + $0x1b] sm:$0xff]
        %v427 = vunpack.c.l.b16 %v289
        %v428 = vunpack.c.h.b16 %v289
        %v429 = vunpack.c.l.b16 %v290
        %v430 = vunpack.c.h.b16 %v290
        %v431 = vunpack.c.l.b16 %v291
        %v432 = vunpack.c.h.b16 %v291
        %v433 = vunpack.c.l.b16 %v292
        %v434 = vunpack.c.h.b16 %v292
        %v435 = vunpack.c.l.b16 %v293
        %v436 = vunpack.c.h.b16 %v293
        %v437 = vunpack.c.l.b16 %v294
        %v438 = vunpack.c.h.b16 %v294
        %v439 = vunpack.c.l.b16 %v295
        %v440 = vunpack.c.h.b16 %v295
        %v441 = vunpack.c.l.b16 %v296
        %v442 = vunpack.c.h.b16 %v296
        %v443 = vunpack.c.l.b16 %v297
        %v444 = vunpack.c.h.b16 %v297
        %v445 = vunpack.c.l.b16 %v298
        %v446 = vunpack.c.h.b16 %v298
        %v447 = vunpack.c.l.b16 %v299
        %v448 = vunpack.c.h.b16 %v299
        %v449 = vunpack.c.l.b16 %v300
        %v450 = vunpack.c.h.b16 %v300
        %v451 = vunpack.c.l.b16 %v301
        %v452 = vunpack.c.h.b16 %v301
        %v453 = vunpack.c.l.b16 %v302
        %v454 = vunpack.c.h.b16 %v302
        %v455 = vunpack.c.l.b16 %v303
        %v456 = vunpack.c.h.b16 %v303
        %v457 = vunpack.c.l.b16 %v304
        %v458 = vunpack.c.h.b16 %v304
        %v459 = vunpack.c.l.b16 %v305
        %v460 = vunpack.c.h.b16 %v305
        %v461 = vunpack.c.l.b16 %v306
        %v462 = vunpack.c.h.b16 %v306
        %v463 = vunpack.c.l.b16 %v307
        %v464 = vunpack.c.h.b16 %v307
        %v465 = vunpack.c.l.b16 %v308
        %v466 = vunpack.c.h.b16 %v308
        %v467 = vunpack.c.l.b16 %v309
        %v468 = vunpack.c.h.b16 %v309
        %v469 = vunpack.c.l.b16 %v310
        %v470 = vunpack.c.h.b16 %v310
        %v471 = vunpack.c.l.b16 %v311
        %v472 = vunpack.c.h.b16 %v311
        %v473 = vunpack.c.l.b16 %v312
        %v474 = vunpack.c.h.b16 %v312
        %v475 = vunpack.c.l.b16 %v313
        %v476 = vunpack.c.h.b16 %v313
        %v477 = vunpack.c.l.b16 %v314
        %v478 = vunpack.c.h.b16 %v314
        %v479 = vunpack.c.l.b16 %v315
        %v480 = vunpack.c.h.b16 %v315
        %v481 = vunpack.c.l.b16 %v316
        %v482 = vunpack.c.h.b16 %v316
        %v483 = vunpack.c.l.b16 %v317
        %v484 = vunpack.c.h.b16 %v317
        %v485 = vunpack.c.l.b16 %v318
        %v486 = vunpack.c.h.b16 %v318
        %v487 = vunpack.c.l.b16 %v319
        %v488 = vunpack.c.h.b16 %v319
        %v489 = vunpack.c.l.b16 %v320
        %v490 = vunpack.c.h.b16 %v320
        %v491 = vunpack.c.l.b16 %v321
        %v492 = vunpack.c.h.b16 %v321
        %v493 = vunpack.c.l.b16 %v322
        %v494 = vunpack.c.h.b16 %v322
        %v495 = vunpack.c.l.b16 %v323
        %v496 = vunpack.c.h.b16 %v323
        %v497 = vunpack.c.l.b16 %v324
        %v498 = vunpack.c.h.b16 %v324
        %v499 = vunpack.c.l.b16 %v325
        %v500 = vunpack.c.h.b16 %v325
        %v501 = vunpack.c.l.b16 %v326
        %v502 = vunpack.c.h.b16 %v326
        %v503 = vunpack.c.l.b16 %v327
        %v504 = vunpack.c.h.b16 %v327
        %v505 = vunpack.c.l.b16 %v328
        %v506 = vunpack.c.h.b16 %v328
        %v507 = vunpack.c.l.b16 %v329
        %v508 = vunpack.c.h.b16 %v329
        %v509 = vunpack.c.l.b16 %v330
        %v510 = vunpack.c.h.b16 %v330
        %v511 = vunpack.c.l.b16 %v331
        %v512 = vunpack.c.h.b16 %v331
        %v513 = vunpack.c.l.b16 %v332
        %v514 = vunpack.c.h.b16 %v332
        %v515 = vunpack.c.l.b16 %v333
        %v516 = vunpack.c.h.b16 %v333
        %v517 = vunpack.c.l.b16 %v334
        %v518 = vunpack.c.h.b16 %v334
        %v519 = vunpack.c.l.b16 %v335
        %v520 = vunpack.c.h.b16 %v335
        %v521 = vunpack.c.l.b16 %v336
        %v522 = vunpack.c.h.b16 %v336
        %v523 = vunpack.c.l.b16 %v337
        %v524 = vunpack.c.h.b16 %v337
        %v525 = vunpack.c.l.b16 %v338
        %v526 = vunpack.c.h.b16 %v338
        %v527 = vunpack.c.l.b16 %v339
        %v528 = vunpack.c.h.b16 %v339
        %v529 = vunpack.c.l.b16 %v340
        %v530 = vunpack.c.h.b16 %v340
        %v531 = vunpack.c.l.b16 %v341
        %v532 = vunpack.c.h.b16 %v341
        %v533 = vunpack.c.l.b16 %v342
        %v534 = vunpack.c.h.b16 %v342
        %v535 = vunpack.c.l.b16 %v343
        %v536 = vunpack.c.h.b16 %v343
        %v537 = vunpack.c.l.b16 %v344
        %v538 = vunpack.c.h.b16 %v344
        %v539 = vunpack.c.l.b16 %v345
        %v540 = vunpack.c.h.b16 %v345
        %v541 = vunpack.c.l.b16 %v346
        %v542 = vunpack.c.h.b16 %v346
        %v543 = vunpack.c.l.b16 %v347
        %v544 = vunpack.c.h.b16 %v347
        %v545 = vunpack.c.l.b16 %v348
        %v546 = vunpack.c.h.b16 %v348
        %v547 = vunpack.c.l.b16 %v349
        %v548 = vunpack.c.h.b16 %v349
        %v549 = vunpack.c.l.b16 %v350
        %v550 = vunpack.c.h.b16 %v350
        %v551 = vunpack.c.l.b16 %v351
        %v552 = vunpack.c.h.b16 %v351
        %v553 = vunpack.c.l.b16 %v352
        %v554 = vunpack.c.h.b16 %v352
        %v555 = vpack.c.b16 %v429, %v427
        %v556 = vpack.c.b16 %v430, %v428
        %v557 = vpack.c.b16 %v433, %v431
        %v558 = vpack.c.b16 %v434, %v432
        %v559 = vpack.c.b16 %v437, %v435
        %v560 = vpack.c.b16 %v438, %v436
        %v561 = vpack.c.b16 %v441, %v439
        %v562 = vpack.c.b16 %v442, %v440
        %v563 = vpack.c.b16 %v445, %v443
        %v564 = vpack.c.b16 %v446, %v444
        %v565 = vpack.c.b16 %v449, %v447
        %v566 = vpack.c.b16 %v450, %v448
        %v567 = vpack.c.b16 %v453, %v451
        %v568 = vpack.c.b16 %v454, %v452
        %v569 = vpack.c.b16 %v457, %v455
        %v570 = vpack.c.b16 %v458, %v456
        %v571 = vpack.c.b16 %v461, %v459
        %v572 = vpack.c.b16 %v462, %v460
        %v573 = vpack.c.b16 %v465, %v463
        %v574 = vpack.c.b16 %v466, %v464
        %v575 = vpack.c.b16 %v469, %v467
        %v576 = vpack.c.b16 %v470, %v468
        %v577 = vpack.c.b16 %v473, %v471
        %v578 = vpack.c.b16 %v474, %v472
        %v579 = vpack.c.b16 %v477, %v475
        %v580 = vpack.c.b16 %v478, %v476
        %v581 = vpack.c.b16 %v481, %v479
        %v582 = vpack.c.b16 %v482, %v480
        %v583 = vpack.c.b16 %v485, %v483
        %v584 = vpack.c.b16 %v486, %v484
        %v585 = vpack.c.b16 %v489, %v487
        %v586 = vpack.c.b16 %v490, %v488
        %v587 = vpack.c.b16 %v493, %v491
        %v588 = vpack.c.b16 %v494, %v492
        %v589 = vpack.c.b16 %v497, %v495
        %v590 = vpack.c.b16 %v498, %v496
        %v591 = vpack.c.b16 %v501, %v499
        %v592 = vpack.c.b16 %v502, %v500
        %v593 = vpack.c.b16 %v505, %v503
        %v594 = vpack.c.b16 %v506, %v504
        %v595 = vpack.c.b16 %v509, %v507
        %v596 = vpack.c.b16 %v510, %v508
        %v597 = vpack.c.b16 %v513, %v511
        %v598 = vpack.c.b16 %v514, %v512
        %v599 = vpack.c.b16 %v517, %v515
        %v600 = vpack.c.b16 %v518, %v516
        %v601 = vpack.c.b16 %v521, %v519
        %v602 = vpack.c.b16 %v522, %v520
        %v603 = vpack.c.b16 %v525, %v523
        %v604 = vpack.c.b16 %v526, %v524
        %v605 = vpack.c.b16 %v529, %v527
        %v606 = vpack.c.b16 %v530, %v528
        %v607 = vpack.c.b16 %v533, %v531
        %v608 = vpack.c.b16 %v534, %v532
        %v609 = vpack.c.b16 %v537, %v535
        %v610 = vpack.c.b16 %v538, %v536
        %v611 = vpack.c.b16 %v541, %v539
        %v612 = vpack.c.b16 %v542, %v540
        %v613 = vpack.c.b16 %v545, %v543
        %v614 = vpack.c.b16 %v546, %v544
        %v615 = vpack.c.b16 %v549, %v547
        %v616 = vpack.c.b16 %v550, %v548
        %v617 = vpack.c.b16 %v553, %v551
        %v618 = vpack.c.b16 %v554, %v552
        %683 = vmatpush.bf16.msra.mxu0 %v569
        %684 = vmatpush.bf16.msra.mxu0 %v567
        %685 = vmatpush.bf16.msra.mxu0 %v565
        %686 = vmatpush.bf16.msra.mxu0 %v563
        %687 = vmatpush.bf16.msra.mxu0 %v561
        %688 = vmatpush.bf16.msra.mxu0 %v559
        %689 = vmatpush.bf16.msra.mxu0 %v557
        %690 = vmatpush.bf16.msra.mxu0 %v555
        %691 = vmatmul.bf16.gmra.mxu0 %v355
        %v692 = vpop.f32.mrf.mxu0
        %v693 = vadd.f32 0.0, %v692
        %v694 = vpop.f32.mrf.mxu0
        %695 = vdwg.mxu0
        %696 = vmatpush.bf16.msra.mxu0 %v585
        %697 = vmatpush.bf16.msra.mxu0 %v583
        %698 = vmatpush.bf16.msra.mxu0 %v581
        %699 = vmatpush.bf16.msra.mxu0 %v579
        %700 = vmatpush.bf16.msra.mxu0 %v577
        %701 = vmatpush.bf16.msra.mxu0 %v575
        %702 = vmatpush.bf16.msra.mxu0 %v573
        %703 = vmatpush.bf16.msra.mxu0 %v571
        %704 = vmatmul.bf16.gmra.mxu0 %v356
        %v705 = vpop.f32.mrf.mxu0
        %v706 = vadd.f32 %v693, %v705
        %v707 = vpop.f32.mrf.mxu0
        %708 = vdwg.mxu0
        %709 = vmatpush.bf16.msra.mxu0 %v601
        %710 = vmatpush.bf16.msra.mxu0 %v599
        %711 = vmatpush.bf16.msra.mxu0 %v597
        %712 = vmatpush.bf16.msra.mxu0 %v595
        %713 = vmatpush.bf16.msra.mxu0 %v593
        %714 = vmatpush.bf16.msra.mxu0 %v591
        %715 = vmatpush.bf16.msra.mxu0 %v589
        %716 = vmatpush.bf16.msra.mxu0 %v587
        %717 = vmatmul.bf16.gmra.mxu0 %v357
        %v718 = vpop.f32.mrf.mxu0
        %v719 = vadd.f32 %v706, %v718
        %v720 = vpop.f32.mrf.mxu0
        %721 = vdwg.mxu0
        %722 = vmatpush.bf16.msra.mxu0 %v617
        %723 = vmatpush.bf16.msra.mxu0 %v615
        %724 = vmatpush.bf16.msra.mxu0 %v613
        %725 = vmatpush.bf16.msra.mxu0 %v611
        %726 = vmatpush.bf16.msra.mxu0 %v609
        %727 = vmatpush.bf16.msra.mxu0 %v607
        %728 = vmatpush.bf16.msra.mxu0 %v605
        %729 = vmatpush.bf16.msra.mxu0 %v603
        %730 = vmatmul.bf16.gmra.mxu0 %v358
        %v731 = vpop.f32.mrf.mxu0
        %v732 = vadd.f32 %v719, %v731
        %v733 = vpop.f32.mrf.mxu0
        %734 = vdwg.mxu0
        %735 = vmatpush.bf16.msra.mxu0 %v570
        %736 = vmatpush.bf16.msra.mxu0 %v568
        %737 = vmatpush.bf16.msra.mxu0 %v566
        %738 = vmatpush.bf16.msra.mxu0 %v564
        %739 = vmatpush.bf16.msra.mxu0 %v562
        %740 = vmatpush.bf16.msra.mxu0 %v560
        %741 = vmatpush.bf16.msra.mxu0 %v558
        %742 = vmatpush.bf16.msra.mxu0 %v556
        %743 = vmatmul.bf16.gmra.mxu0 %v355
        %v744 = vpop.f32.mrf.mxu0
        %v745 = vadd.f32 0.0, %v744
        %v746 = vpop.f32.mrf.mxu0
        %747 = vdwg.mxu0
        %748 = vmatpush.bf16.msra.mxu0 %v586
        %749 = vmatpush.bf16.msra.mxu0 %v584
        %750 = vmatpush.bf16.msra.mxu0 %v582
        %751 = vmatpush.bf16.msra.mxu0 %v580
        %752 = vmatpush.bf16.msra.mxu0 %v578
        %753 = vmatpush.bf16.msra.mxu0 %v576
        %754 = vmatpush.bf16.msra.mxu0 %v574
        %755 = vmatpush.bf16.msra.mxu0 %v572
        %756 = vmatmul.bf16.gmra.mxu0 %v356
        %v757 = vpop.f32.mrf.mxu0
        %v758 = vadd.f32 %v745, %v757
        %v759 = vpop.f32.mrf.mxu0
        %760 = vdwg.mxu0
        %761 = vmatpush.bf16.msra.mxu0 %v602
        %762 = vmatpush.bf16.msra.mxu0 %v600
        %763 = vmatpush.bf16.msra.mxu0 %v598
        %764 = vmatpush.bf16.msra.mxu0 %v596
        %765 = vmatpush.bf16.msra.mxu0 %v594
        %766 = vmatpush.bf16.msra.mxu0 %v592
        %767 = vmatpush.bf16.msra.mxu0 %v590
        %768 = vmatpush.bf16.msra.mxu0 %v588
        %769 = vmatmul.bf16.gmra.mxu0 %v357
        %v770 = vpop.f32.mrf.mxu0
        %v771 = vadd.f32 %v758, %v770
        %v772 = vpop.f32.mrf.mxu0
        %773 = vdwg.mxu0
        %774 = vmatpush.bf16.msra.mxu0 %v618
        %775 = vmatpush.bf16.msra.mxu0 %v616
        %776 = vmatpush.bf16.msra.mxu0 %v614
        %777 = vmatpush.bf16.msra.mxu0 %v612
        %778 = vmatpush.bf16.msra.mxu0 %v610
        %779 = vmatpush.bf16.msra.mxu0 %v608
        %780 = vmatpush.bf16.msra.mxu0 %v606
        %781 = vmatpush.bf16.msra.mxu0 %v604
        %782 = vmatmul.bf16.gmra.mxu0 %v358
        %v783 = vpop.f32.mrf.mxu0
        %v784 = vadd.f32 %v771, %v783
        %v785 = vpop.f32.mrf.mxu0
        %786 = vdwg.mxu0
        %v789 = vrot.slane %v784, 6
        %vm790 = vcmask 1041408
        %v791 = vsel %vm790, %v732, %v789
        %v793 = vadd.f32 %v287, %v791
        %794 = vst [vmem:[#allocation2] sm:$0xf] %v793
        %p795 = scmp.eq.s32.totalorder %s24, 1
        // Predicated region
        $region41: #{pointnet_torus_forward.9} parent=31 // pred_check
          %p796 = pneg %p795
        $region42: #{pointnet_torus_forward.9} parent=31 // pred_check_branch
          %798 = sbr.rel (%p796) target = $region44
        $region43: #{pointnet_torus_forward.9} parent=31 // pred_region
          %v799 = vld [vmem:[#allocation2] sm:$0xf]
          %v800 = vld [vmem:[%s270] sm:$0x3]
          %v802 = vperm.slane %v800, 0
          %v803 = vperm.slane %v800, 1
          %v804 = vrot.slane %v803, 6
          %v805 = vsel %vm790, %v802, %v804
          %v807 = vadd.f32 %v799, %v805
          %v808 = vmax.f32 %v807, 0.0
          %809 = vst [vmem:[%s280] sm:$0xf] %v808
        $region44: #{pointnet_torus_forward.9} parent=31 // pred_fallthru
          _
        %s810 = smul.u32 2, %s23
        %p811 = scmp.lt.s32.totalorder %s22, 0
        %s812 = scalar_select %p811, %s22, 0
        %p813 = scmp.lt.s32.totalorder %s810, 3
        %s814 = scalar_select %p813, %s810, 3
        %s815 = smul.addr %s812, 4
        %s816 = sadd.s32 %s814, %s815
        %s817 = smul.addr %s816, 2
        %s818 = scalar_lea.vmem %s3, %s817
        // Predicated region
        $region45: #{pointnet_torus_forward.9} parent=31 // pred_check
          %p819 = pneg %p138
        $region46: #{pointnet_torus_forward.9} parent=31 // pred_check_branch
          %821 = sbr.rel (%p819) target = $region48
        $region47: #{pointnet_torus_forward.9} parent=31 // pred_region
          %s822 = smul.u32 2, %s23
        $region48: #{pointnet_torus_forward.9} parent=31 // pred_fallthru
          _
      $region32: #{pointnet_torus_forward.9} parent=5 // pred_fallthru
        _
      %p823 = scmp.le.s32.totalorder 2, %s12
      // Predicated region
      $region49: #{pointnet_torus_forward.9} parent=5 // pred_check
        %p824 = pneg %p823
      $region50: #{pointnet_torus_forward.9} parent=5 // pred_check_branch
        %826 = sbr.rel (%p824) target = $region52
      $region51: #{pointnet_torus_forward.9} parent=5 // pred_region
        %s827 = ssub.s32 %s12, 2
        // Predicated region
        $region53: #{pointnet_torus_forward.9} parent=51 // pred_check
          %p828 = pneg %p144
        $region54: #{pointnet_torus_forward.9} parent=51 // pred_check_branch
          %830 = sbr.rel (%p828) target = $region56
        $region55: #{pointnet_torus_forward.9} parent=51 // pred_region
          %s831 = smul.u32 2, %s26
          %p832 = scmp.lt.s32.totalorder %s25, 0
          %s833 = scalar_select %p832, %s25, 0
          %p834 = scmp.lt.s32.totalorder %s831, 3
          %s835 = scalar_select %p834, %s831, 3
          %s836 = smul.addr %s833, 4
          %s837 = sadd.s32 %s835, %s836
          %s838 = smul.addr %s837, 2
          %s839 = scalar_lea.vmem %s3, %s838
        $region56: #{pointnet_torus_forward.9} parent=51 // pred_fallthru
          _
      $region52: #{pointnet_torus_forward.9} parent=5 // pred_fallthru
        _
    $region6: #{pointnet_torus_forward.9} parent=1 // loop_footer
      %s16 = sadd.s32 1, %s12
    $region7: #{pointnet_torus_forward.9} parent=1 // loop_footer_branch
      %11 = sbr.rel target = $region3
    $region8: #{pointnet_torus_forward.9} parent=1 // loop_exit
      _
    %840 = vsyncpa [#allocation4], 1
    %s841 = scalar_lea.sflag [#allocation4], 1
    %842 = vsyncpa %s841, 1

// kernel: pointnet_torus_forward.10
$region0: #{pointnet_torus_forward.10}
  #allocation0 [shape = 'u32[]', space=smem, size = 0x4, offset = 0x4, fixed_abs, tag = 'smem constant byte address 0x4 - core index']
  #allocation1 [shape = 'u32[72,128]{1,0:T(1,128)}', space=vmem, size = 0x9000, scoped, tag = 'internal scratch']
  #allocation2 [shape = 'f32[2,256]{1,0:T(2,128)}', space=vmem, size = 0x800, scoped, tag = 'scratch operand']
  %s0 = inlined_call_operand.vmem [shape: bf16[2,512], index: 0, kind: input, shape index: {}]
  %s1 = inlined_call_operand.vmem [shape: bf16[512,256], index: 1, kind: input, shape index: {}]
  %s2 = inlined_call_operand.vmem [shape: f32[1,256], index: 2, kind: input, shape index: {}]
  %s3 = inlined_call_operand.vmem [shape: f32[2,256], index: 3, kind: output, shape index: {}]
  %s4 = sld [smem:[#allocation0]]
  $region30: #{pointnet_torus_forward.10} parent=0
    _
  %s6 = ssub.s32 1, %s4
  %s7 = scalar_select 0, %s6, %s4
  // Predicated region
  $region2: #{pointnet_torus_forward.10} parent=0 // pred_check
    _
  $region3: #{pointnet_torus_forward.10} parent=0 // pred_check_branch
    %9 = sbr.rel (0) target = $region5
  $region4: #{pointnet_torus_forward.10} parent=0 // pred_region
    _
  $region5: #{pointnet_torus_forward.10} parent=0 // pred_fallthru
    _
  // Predicated region
  $region6: #{pointnet_torus_forward.10} parent=0 // pred_check
    _
  $region7: #{pointnet_torus_forward.10} parent=0 // pred_check_branch
    %11 = sbr.rel (0) target = $region9
  $region8: #{pointnet_torus_forward.10} parent=0 // pred_region
    _
  $region9: #{pointnet_torus_forward.10} parent=0 // pred_fallthru
    _
  // Predicated region
  $region10: #{pointnet_torus_forward.10} parent=0 // pred_check
    _
  $region11: #{pointnet_torus_forward.10} parent=0 // pred_check_branch
    %13 = sbr.rel (0) target = $region13
  $region12: #{pointnet_torus_forward.10} parent=0 // pred_region
    _
  $region13: #{pointnet_torus_forward.10} parent=0 // pred_fallthru
    _
  %p14 = scmp.eq.s32.totalorder 0, 0
  // Predicated region
  $region14: #{pointnet_torus_forward.10} parent=0 // pred_check
    %p15 = pneg %p14
  $region15: #{pointnet_torus_forward.10} parent=0 // pred_check_branch
    %17 = sbr.rel (%p15) target = $region17
  $region16: #{pointnet_torus_forward.10} parent=0 // pred_region
    %18 = vst [vmem:[#allocation2] sm:$0xf] 0.0
  $region17: #{pointnet_torus_forward.10} parent=0 // pred_fallthru
    _
  %v19 = vld [vmem:[#allocation2] sm:$0xf]
  %v20 = vld [vmem:[%s0] sm:$0xf]
  %v21 = vld [vmem:[%s1] sm:$0xff]
  %v22 = vld [vmem:[%s1 + $0x8] sm:$0xff]
  %v23 = vld [vmem:[%s1 + $0x10] sm:$0xff]
  %v24 = vld [vmem:[%s1 + $0x18] sm:$0xff]
  %v25 = vld [vmem:[%s1 + $0x20] sm:$0xff]
  %v26 = vld [vmem:[%s1 + $0x28] sm:$0xff]
  %v27 = vld [vmem:[%s1 + $0x30] sm:$0xff]
  %v28 = vld [vmem:[%s1 + $0x38] sm:$0xff]
  %v29 = vld [vmem:[%s1 + $0x40] sm:$0xff]
  %v30 = vld [vmem:[%s1 + $0x48] sm:$0xff]
  %v31 = vld [vmem:[%s1 + $0x50] sm:$0xff]
  %v32 = vld [vmem:[%s1 + $0x58] sm:$0xff]
  %v33 = vld [vmem:[%s1 + $0x60] sm:$0xff]
  %v34 = vld [vmem:[%s1 + $0x68] sm:$0xff]
  %v35 = vld [vmem:[%s1 + $0x70] sm:$0xff]
  %v36 = vld [vmem:[%s1 + $0x78] sm:$0xff]
  %v37 = vld [vmem:[%s1 + $0x80] sm:$0xff]
  %v38 = vld [vmem:[%s1 + $0x88] sm:$0xff]
  %v39 = vld [vmem:[%s1 + $0x90] sm:$0xff]
  %v40 = vld [vmem:[%s1 + $0x98] sm:$0xff]
  %v41 = vld [vmem:[%s1 + $0xa0] sm:$0xff]
  %v42 = vld [vmem:[%s1 + $0xa8] sm:$0xff]
  %v43 = vld [vmem:[%s1 + $0xb0] sm:$0xff]
  %v44 = vld [vmem:[%s1 + $0xb8] sm:$0xff]
  %v45 = vld [vmem:[%s1 + $0xc0] sm:$0xff]
  %v46 = vld [vmem:[%s1 + $0xc8] sm:$0xff]
  %v47 = vld [vmem:[%s1 + $0xd0] sm:$0xff]
  %v48 = vld [vmem:[%s1 + $0xd8] sm:$0xff]
  %v49 = vld [vmem:[%s1 + $0xe0] sm:$0xff]
  %v50 = vld [vmem:[%s1 + $0xe8] sm:$0xff]
  %v51 = vld [vmem:[%s1 + $0xf0] sm:$0xff]
  %v52 = vld [vmem:[%s1 + $0xf8] sm:$0xff]
  %v53 = vld [vmem:[%s1 + $0x100] sm:$0xff]
  %v54 = vld [vmem:[%s1 + $0x108] sm:$0xff]
  %v55 = vld [vmem:[%s1 + $0x110] sm:$0xff]
  %v56 = vld [vmem:[%s1 + $0x118] sm:$0xff]
  %v57 = vld [vmem:[%s1 + $0x120] sm:$0xff]
  %v58 = vld [vmem:[%s1 + $0x128] sm:$0xff]
  %v59 = vld [vmem:[%s1 + $0x130] sm:$0xff]
  %v60 = vld [vmem:[%s1 + $0x138] sm:$0xff]
  %v61 = vld [vmem:[%s1 + $0x140] sm:$0xff]
  %v62 = vld [vmem:[%s1 + $0x148] sm:$0xff]
  %v63 = vld [vmem:[%s1 + $0x150] sm:$0xff]
  %v64 = vld [vmem:[%s1 + $0x158] sm:$0xff]
  %v65 = vld [vmem:[%s1 + $0x160] sm:$0xff]
  %v66 = vld [vmem:[%s1 + $0x168] sm:$0xff]
  %v67 = vld [vmem:[%s1 + $0x170] sm:$0xff]
  %v68 = vld [vmem:[%s1 + $0x178] sm:$0xff]
  %v69 = vld [vmem:[%s1 + $0x180] sm:$0xff]
  %v70 = vld [vmem:[%s1 + $0x188] sm:$0xff]
  %v71 = vld [vmem:[%s1 + $0x190] sm:$0xff]
  %v72 = vld [vmem:[%s1 + $0x198] sm:$0xff]
  %v73 = vld [vmem:[%s1 + $0x1a0] sm:$0xff]
  %v74 = vld [vmem:[%s1 + $0x1a8] sm:$0xff]
  %v75 = vld [vmem:[%s1 + $0x1b0] sm:$0xff]
  %v76 = vld [vmem:[%s1 + $0x1b8] sm:$0xff]
  %v77 = vld [vmem:[%s1 + $0x1c0] sm:$0xff]
  %v78 = vld [vmem:[%s1 + $0x1c8] sm:$0xff]
  %v79 = vld [vmem:[%s1 + $0x1d0] sm:$0xff]
  %v80 = vld [vmem:[%s1 + $0x1d8] sm:$0xff]
  %v81 = vld [vmem:[%s1 + $0x1e0] sm:$0xff]
  %v82 = vld [vmem:[%s1 + $0x1e8] sm:$0xff]
  %v83 = vld [vmem:[%s1 + $0x1f0] sm:$0xff]
  %v84 = vld [vmem:[%s1 + $0x1f8] sm:$0xff]
  %86 = vst [vmem:[#allocation1] ss:$9 sm:$0xff] %v20
  %v87 = vld [vmem:[#allocation1] sm:$0xff]
  %v88 = vld [vmem:[#allocation1 + $0x9] sm:$0xff]
  %v89 = vld [vmem:[#allocation1 + $0x12] sm:$0xff]
  %v90 = vld [vmem:[#allocation1 + $0x1b] sm:$0xff]
  %v159 = vunpack.c.l.b16 %v21
  %v160 = vunpack.c.h.b16 %v21
  %v161 = vunpack.c.l.b16 %v22
  %v162 = vunpack.c.h.b16 %v22
  %v163 = vunpack.c.l.b16 %v23
  %v164 = vunpack.c.h.b16 %v23
  %v165 = vunpack.c.l.b16 %v24
  %v166 = vunpack.c.h.b16 %v24
  %v167 = vunpack.c.l.b16 %v25
  %v168 = vunpack.c.h.b16 %v25
  %v169 = vunpack.c.l.b16 %v26
  %v170 = vunpack.c.h.b16 %v26
  %v171 = vunpack.c.l.b16 %v27
  %v172 = vunpack.c.h.b16 %v27
  %v173 = vunpack.c.l.b16 %v28
  %v174 = vunpack.c.h.b16 %v28
  %v175 = vunpack.c.l.b16 %v29
  %v176 = vunpack.c.h.b16 %v29
  %v177 = vunpack.c.l.b16 %v30
  %v178 = vunpack.c.h.b16 %v30
  %v179 = vunpack.c.l.b16 %v31
  %v180 = vunpack.c.h.b16 %v31
  %v181 = vunpack.c.l.b16 %v32
  %v182 = vunpack.c.h.b16 %v32
  %v183 = vunpack.c.l.b16 %v33
  %v184 = vunpack.c.h.b16 %v33
  %v185 = vunpack.c.l.b16 %v34
  %v186 = vunpack.c.h.b16 %v34
  %v187 = vunpack.c.l.b16 %v35
  %v188 = vunpack.c.h.b16 %v35
  %v189 = vunpack.c.l.b16 %v36
  %v190 = vunpack.c.h.b16 %v36
  %v191 = vunpack.c.l.b16 %v37
  %v192 = vunpack.c.h.b16 %v37
  %v193 = vunpack.c.l.b16 %v38
  %v194 = vunpack.c.h.b16 %v38
  %v195 = vunpack.c.l.b16 %v39
  %v196 = vunpack.c.h.b16 %v39
  %v197 = vunpack.c.l.b16 %v40
  %v198 = vunpack.c.h.b16 %v40
  %v199 = vunpack.c.l.b16 %v41
  %v200 = vunpack.c.h.b16 %v41
  %v201 = vunpack.c.l.b16 %v42
  %v202 = vunpack.c.h.b16 %v42
  %v203 = vunpack.c.l.b16 %v43
  %v204 = vunpack.c.h.b16 %v43
  %v205 = vunpack.c.l.b16 %v44
  %v206 = vunpack.c.h.b16 %v44
  %v207 = vunpack.c.l.b16 %v45
  %v208 = vunpack.c.h.b16 %v45
  %v209 = vunpack.c.l.b16 %v46
  %v210 = vunpack.c.h.b16 %v46
  %v211 = vunpack.c.l.b16 %v47
  %v212 = vunpack.c.h.b16 %v47
  %v213 = vunpack.c.l.b16 %v48
  %v214 = vunpack.c.h.b16 %v48
  %v215 = vunpack.c.l.b16 %v49
  %v216 = vunpack.c.h.b16 %v49
  %v217 = vunpack.c.l.b16 %v50
  %v218 = vunpack.c.h.b16 %v50
  %v219 = vunpack.c.l.b16 %v51
  %v220 = vunpack.c.h.b16 %v51
  %v221 = vunpack.c.l.b16 %v52
  %v222 = vunpack.c.h.b16 %v52
  %v223 = vunpack.c.l.b16 %v53
  %v224 = vunpack.c.h.b16 %v53
  %v225 = vunpack.c.l.b16 %v54
  %v226 = vunpack.c.h.b16 %v54
  %v227 = vunpack.c.l.b16 %v55
  %v228 = vunpack.c.h.b16 %v55
  %v229 = vunpack.c.l.b16 %v56
  %v230 = vunpack.c.h.b16 %v56
  %v231 = vunpack.c.l.b16 %v57
  %v232 = vunpack.c.h.b16 %v57
  %v233 = vunpack.c.l.b16 %v58
  %v234 = vunpack.c.h.b16 %v58
  %v235 = vunpack.c.l.b16 %v59
  %v236 = vunpack.c.h.b16 %v59
  %v237 = vunpack.c.l.b16 %v60
  %v238 = vunpack.c.h.b16 %v60
  %v239 = vunpack.c.l.b16 %v61
  %v240 = vunpack.c.h.b16 %v61
  %v241 = vunpack.c.l.b16 %v62
  %v242 = vunpack.c.h.b16 %v62
  %v243 = vunpack.c.l.b16 %v63
  %v244 = vunpack.c.h.b16 %v63
  %v245 = vunpack.c.l.b16 %v64
  %v246 = vunpack.c.h.b16 %v64
  %v247 = vunpack.c.l.b16 %v65
  %v248 = vunpack.c.h.b16 %v65
  %v249 = vunpack.c.l.b16 %v66
  %v250 = vunpack.c.h.b16 %v66
  %v251 = vunpack.c.l.b16 %v67
  %v252 = vunpack.c.h.b16 %v67
  %v253 = vunpack.c.l.b16 %v68
  %v254 = vunpack.c.h.b16 %v68
  %v255 = vunpack.c.l.b16 %v69
  %v256 = vunpack.c.h.b16 %v69
  %v257 = vunpack.c.l.b16 %v70
  %v258 = vunpack.c.h.b16 %v70
  %v259 = vunpack.c.l.b16 %v71
  %v260 = vunpack.c.h.b16 %v71
  %v261 = vunpack.c.l.b16 %v72
  %v262 = vunpack.c.h.b16 %v72
  %v263 = vunpack.c.l.b16 %v73
  %v264 = vunpack.c.h.b16 %v73
  %v265 = vunpack.c.l.b16 %v74
  %v266 = vunpack.c.h.b16 %v74
  %v267 = vunpack.c.l.b16 %v75
  %v268 = vunpack.c.h.b16 %v75
  %v269 = vunpack.c.l.b16 %v76
  %v270 = vunpack.c.h.b16 %v76
  %v271 = vunpack.c.l.b16 %v77
  %v272 = vunpack.c.h.b16 %v77
  %v273 = vunpack.c.l.b16 %v78
  %v274 = vunpack.c.h.b16 %v78
  %v275 = vunpack.c.l.b16 %v79
  %v276 = vunpack.c.h.b16 %v79
  %v277 = vunpack.c.l.b16 %v80
  %v278 = vunpack.c.h.b16 %v80
  %v279 = vunpack.c.l.b16 %v81
  %v280 = vunpack.c.h.b16 %v81
  %v281 = vunpack.c.l.b16 %v82
  %v282 = vunpack.c.h.b16 %v82
  %v283 = vunpack.c.l.b16 %v83
  %v284 = vunpack.c.h.b16 %v83
  %v285 = vunpack.c.l.b16 %v84
  %v286 = vunpack.c.h.b16 %v84
  %v287 = vpack.c.b16 %v161, %v159
  %v288 = vpack.c.b16 %v162, %v160
  %v289 = vpack.c.b16 %v165, %v163
  %v290 = vpack.c.b16 %v166, %v164
  %v291 = vpack.c.b16 %v169, %v167
  %v292 = vpack.c.b16 %v170, %v168
  %v293 = vpack.c.b16 %v173, %v171
  %v294 = vpack.c.b16 %v174, %v172
  %v295 = vpack.c.b16 %v177, %v175
  %v296 = vpack.c.b16 %v178, %v176
  %v297 = vpack.c.b16 %v181, %v179
  %v298 = vpack.c.b16 %v182, %v180
  %v299 = vpack.c.b16 %v185, %v183
  %v300 = vpack.c.b16 %v186, %v184
  %v301 = vpack.c.b16 %v189, %v187
  %v302 = vpack.c.b16 %v190, %v188
  %v303 = vpack.c.b16 %v193, %v191
  %v304 = vpack.c.b16 %v194, %v192
  %v305 = vpack.c.b16 %v197, %v195
  %v306 = vpack.c.b16 %v198, %v196
  %v307 = vpack.c.b16 %v201, %v199
  %v308 = vpack.c.b16 %v202, %v200
  %v309 = vpack.c.b16 %v205, %v203
  %v310 = vpack.c.b16 %v206, %v204
  %v311 = vpack.c.b16 %v209, %v207
  %v312 = vpack.c.b16 %v210, %v208
  %v313 = vpack.c.b16 %v213, %v211
  %v314 = vpack.c.b16 %v214, %v212
  %v315 = vpack.c.b16 %v217, %v215
  %v316 = vpack.c.b16 %v218, %v216
  %v317 = vpack.c.b16 %v221, %v219
  %v318 = vpack.c.b16 %v222, %v220
  %v319 = vpack.c.b16 %v225, %v223
  %v320 = vpack.c.b16 %v226, %v224
  %v321 = vpack.c.b16 %v229, %v227
  %v322 = vpack.c.b16 %v230, %v228
  %v323 = vpack.c.b16 %v233, %v231
  %v324 = vpack.c.b16 %v234, %v232
  %v325 = vpack.c.b16 %v237, %v235
  %v326 = vpack.c.b16 %v238, %v236
  %v327 = vpack.c.b16 %v241, %v239
  %v328 = vpack.c.b16 %v242, %v240
  %v329 = vpack.c.b16 %v245, %v243
  %v330 = vpack.c.b16 %v246, %v244
  %v331 = vpack.c.b16 %v249, %v247
  %v332 = vpack.c.b16 %v250, %v248
  %v333 = vpack.c.b16 %v253, %v251
  %v334 = vpack.c.b16 %v254, %v252
  %v335 = vpack.c.b16 %v257, %v255
  %v336 = vpack.c.b16 %v258, %v256
  %v337 = vpack.c.b16 %v261, %v259
  %v338 = vpack.c.b16 %v262, %v260
  %v339 = vpack.c.b16 %v265, %v263
  %v340 = vpack.c.b16 %v266, %v264
  %v341 = vpack.c.b16 %v269, %v267
  %v342 = vpack.c.b16 %v270, %v268
  %v343 = vpack.c.b16 %v273, %v271
  %v344 = vpack.c.b16 %v274, %v272
  %v345 = vpack.c.b16 %v277, %v275
  %v346 = vpack.c.b16 %v278, %v276
  %v347 = vpack.c.b16 %v281, %v279
  %v348 = vpack.c.b16 %v282, %v280
  %v349 = vpack.c.b16 %v285, %v283
  %v350 = vpack.c.b16 %v286, %v284
  %415 = vmatpush.bf16.msra.mxu0 %v301
  %416 = vmatpush.bf16.msra.mxu0 %v299
  %417 = vmatpush.bf16.msra.mxu0 %v297
  %418 = vmatpush.bf16.msra.mxu0 %v295
  %419 = vmatpush.bf16.msra.mxu0 %v293
  %420 = vmatpush.bf16.msra.mxu0 %v291
  %421 = vmatpush.bf16.msra.mxu0 %v289
  %422 = vmatpush.bf16.msra.mxu0 %v287
  %423 = vmatmul.bf16.gmra.mxu0 %v87
  %v424 = vpop.f32.mrf.mxu0
  %v425 = vadd.f32 0.0, %v424
  %v426 = vpop.f32.mrf.mxu0
  %427 = vdwg.mxu0
  %428 = vmatpush.bf16.msra.mxu0 %v317
  %429 = vmatpush.bf16.msra.mxu0 %v315
  %430 = vmatpush.bf16.msra.mxu0 %v313
  %431 = vmatpush.bf16.msra.mxu0 %v311
  %432 = vmatpush.bf16.msra.mxu0 %v309
  %433 = vmatpush.bf16.msra.mxu0 %v307
  %434 = vmatpush.bf16.msra.mxu0 %v305
  %435 = vmatpush.bf16.msra.mxu0 %v303
  %436 = vmatmul.bf16.gmra.mxu0 %v88
  %v437 = vpop.f32.mrf.mxu0
  %v438 = vadd.f32 %v425, %v437
  %v439 = vpop.f32.mrf.mxu0
  %440 = vdwg.mxu0
  %441 = vmatpush.bf16.msra.mxu0 %v333
  %442 = vmatpush.bf16.msra.mxu0 %v331
  %443 = vmatpush.bf16.msra.mxu0 %v329
  %444 = vmatpush.bf16.msra.mxu0 %v327
  %445 = vmatpush.bf16.msra.mxu0 %v325
  %446 = vmatpush.bf16.msra.mxu0 %v323
  %447 = vmatpush.bf16.msra.mxu0 %v321
  %448 = vmatpush.bf16.msra.mxu0 %v319
  %449 = vmatmul.bf16.gmra.mxu0 %v89
  %v450 = vpop.f32.mrf.mxu0
  %v451 = vadd.f32 %v438, %v450
  %v452 = vpop.f32.mrf.mxu0
  %453 = vdwg.mxu0
  %454 = vmatpush.bf16.msra.mxu0 %v349
  %455 = vmatpush.bf16.msra.mxu0 %v347
  %456 = vmatpush.bf16.msra.mxu0 %v345
  %457 = vmatpush.bf16.msra.mxu0 %v343
  %458 = vmatpush.bf16.msra.mxu0 %v341
  %459 = vmatpush.bf16.msra.mxu0 %v339
  %460 = vmatpush.bf16.msra.mxu0 %v337
  %461 = vmatpush.bf16.msra.mxu0 %v335
  %462 = vmatmul.bf16.gmra.mxu0 %v90
  %v463 = vpop.f32.mrf.mxu0
  %v464 = vadd.f32 %v451, %v463
  %v465 = vpop.f32.mrf.mxu0
  %466 = vdwg.mxu0
  %467 = vmatpush.bf16.msra.mxu0 %v302
  %468 = vmatpush.bf16.msra.mxu0 %v300
  %469 = vmatpush.bf16.msra.mxu0 %v298
  %470 = vmatpush.bf16.msra.mxu0 %v296
  %471 = vmatpush.bf16.msra.mxu0 %v294
  %472 = vmatpush.bf16.msra.mxu0 %v292
  %473 = vmatpush.bf16.msra.mxu0 %v290
  %474 = vmatpush.bf16.msra.mxu0 %v288
  %475 = vmatmul.bf16.gmra.mxu0 %v87
  %v476 = vpop.f32.mrf.mxu0
  %v477 = vadd.f32 0.0, %v476
  %v478 = vpop.f32.mrf.mxu0
  %479 = vdwg.mxu0
  %480 = vmatpush.bf16.msra.mxu0 %v318
  %481 = vmatpush.bf16.msra.mxu0 %v316
  %482 = vmatpush.bf16.msra.mxu0 %v314
  %483 = vmatpush.bf16.msra.mxu0 %v312
  %484 = vmatpush.bf16.msra.mxu0 %v310
  %485 = vmatpush.bf16.msra.mxu0 %v308
  %486 = vmatpush.bf16.msra.mxu0 %v306
  %487 = vmatpush.bf16.msra.mxu0 %v304
  %488 = vmatmul.bf16.gmra.mxu0 %v88
  %v489 = vpop.f32.mrf.mxu0
  %v490 = vadd.f32 %v477, %v489
  %v491 = vpop.f32.mrf.mxu0
  %492 = vdwg.mxu0
  %493 = vmatpush.bf16.msra.mxu0 %v334
  %494 = vmatpush.bf16.msra.mxu0 %v332
  %495 = vmatpush.bf16.msra.mxu0 %v330
  %496 = vmatpush.bf16.msra.mxu0 %v328
  %497 = vmatpush.bf16.msra.mxu0 %v326
  %498 = vmatpush.bf16.msra.mxu0 %v324
  %499 = vmatpush.bf16.msra.mxu0 %v322
  %500 = vmatpush.bf16.msra.mxu0 %v320
  %501 = vmatmul.bf16.gmra.mxu0 %v89
  %v502 = vpop.f32.mrf.mxu0
  %v503 = vadd.f32 %v490, %v502
  %v504 = vpop.f32.mrf.mxu0
  %505 = vdwg.mxu0
  %506 = vmatpush.bf16.msra.mxu0 %v350
  %507 = vmatpush.bf16.msra.mxu0 %v348
  %508 = vmatpush.bf16.msra.mxu0 %v346
  %509 = vmatpush.bf16.msra.mxu0 %v344
  %510 = vmatpush.bf16.msra.mxu0 %v342
  %511 = vmatpush.bf16.msra.mxu0 %v340
  %512 = vmatpush.bf16.msra.mxu0 %v338
  %513 = vmatpush.bf16.msra.mxu0 %v336
  %514 = vmatmul.bf16.gmra.mxu0 %v90
  %v515 = vpop.f32.mrf.mxu0
  %v516 = vadd.f32 %v503, %v515
  %v517 = vpop.f32.mrf.mxu0
  %518 = vdwg.mxu0
  %v521 = vrot.slane %v516, 6
  %vm522 = vcmask 1041408
  %v523 = vsel %vm522, %v464, %v521
  %v525 = vadd.f32 %v19, %v523
  %526 = vst [vmem:[#allocation2] sm:$0xf] %v525
  // Predicated region
  $region18: #{pointnet_torus_forward.10} parent=0 // pred_check
    %p527 = pneg %p14
  $region19: #{pointnet_torus_forward.10} parent=0 // pred_check_branch
    %529 = sbr.rel (%p527) target = $region21
  $region20: #{pointnet_torus_forward.10} parent=0 // pred_region
    %v530 = vld [vmem:[#allocation2] sm:$0xf]
    %v531 = vld [vmem:[%s2] sm:$0x3]
    %v533 = vperm.slane %v531, 0
    %v534 = vperm.slane %v531, 1
    %v535 = vrot.slane %v534, 6
    %v536 = vsel %vm522, %v533, %v535
    %v538 = vadd.f32 %v530, %v536
    %v539 = vmax.f32 %v538, 0.0
    %540 = vst [vmem:[%s3] sm:$0xf] %v539
  $region21: #{pointnet_torus_forward.10} parent=0 // pred_fallthru
    _
  // Predicated region
  $region22: #{pointnet_torus_forward.10} parent=0 // pred_check
    _
  $region23: #{pointnet_torus_forward.10} parent=0 // pred_check_branch
    %542 = sbr.rel (0) target = $region25
  $region24: #{pointnet_torus_forward.10} parent=0 // pred_region
    _
  $region25: #{pointnet_torus_forward.10} parent=0 // pred_fallthru
    _
  // Predicated region
  $region26: #{pointnet_torus_forward.10} parent=0 // pred_check
    _
  $region27: #{pointnet_torus_forward.10} parent=0 // pred_check_branch
    %544 = sbr.rel (0) target = $region29
  $region28: #{pointnet_torus_forward.10} parent=0 // pred_region
    _
  $region29: #{pointnet_torus_forward.10} parent=0 // pred_fallthru
    _

// kernel: pointnet_torus_forward.8
$region0: #{pointnet_torus_forward.8}
  #allocation0 [shape = 'u32[]', space=smem, size = 0x4, offset = 0x4, fixed_abs, tag = 'smem constant byte address 0x4 - core index']
  #allocation1 [shape = 'u32[72,128]{1,0:T(1,128)}', space=vmem, size = 0x9000, scoped, tag = 'internal scratch']
  %s0 = inlined_call_operand.vmem [shape: f32[2,512,3], index: 0, kind: input, shape index: {}]
  %s1 = inlined_call_operand.vmem [shape: f32[1,3,64], index: 1, kind: input, shape index: {}]
  %s2 = inlined_call_operand.hbm [shape: f32[1,64], index: 2, kind: input, shape index: {}]
  %s3 = inlined_call_operand.vmem [shape: bf16[64,128], index: 3, kind: input, shape index: {}]
  %s4 = inlined_call_operand.hbm [shape: f32[1,128], index: 4, kind: input, shape index: {}]
  %s5 = inlined_call_operand.vmem [shape: bf16[128,1024], index: 5, kind: input, shape index: {}]
  %s6 = inlined_call_operand.hbm [shape: f32[1,1024], index: 6, kind: input, shape index: {}]
  %s7 = inlined_call_operand.vmem [shape: f32[2,1,1024], index: 7, kind: output, shape index: {}]
  %s8 = sld [smem:[#allocation0]]
  $region77: #{pointnet_torus_forward.8} parent=0
    _
  %s10 = ssub.s32 1, %s8
  %s11 = scalar_select 0, %s10, %s8
  $region1: #{pointnet_torus_forward.8} parent=0
    #allocation2 [shape = 'u8[512]{0}', space=vmem, size = 0x400, scoped, tag = 'input window, operand 2, single buffered']
    #allocation3 [shape = 's32[2]{0}', space=sflag, size = 0x8, scoped, tag = 'scoped memory for pointnet_torus_forward.8']
    #allocation4 [shape = 'u8[512]{0}', space=vmem, size = 0x400, scoped, tag = 'input window, operand 4, single buffered']
    #allocation5 [shape = 's32[1]{0}', space=sflag, size = 0x4, scoped, tag = 'scoped memory for pointnet_torus_forward.8']
    #allocation6 [shape = 'u8[4096]{0}', space=vmem, size = 0x1000, scoped, tag = 'input window, operand 6, single buffered']
    %12 = vsyncpa [#allocation3], 0
    %13 = vsyncpa [#allocation5], 0
    loop: start=0, step=1, limit=6
    $region2: #{pointnet_torus_forward.8} parent=1 // loop_pre_header
      _
    $region3: #{pointnet_torus_forward.8} parent=1 // loop_header
      %s15 = sphi 0, %s19
      %p16 = scmp.ge.s32.totalorder %s15, 6
      %s22 = sphi 0, %s34
      %s23 = sphi 0, %s30
      %s24 = sphi 0, %s22
      %s25 = sphi 0, %s23
      %s26 = sphi 0, %s24
      %s27 = sphi 0, %s25
      %s39 = sphi 0, %s41
      %s42 = sphi 0, %s39
      %s43 = sphi 0, %s42
      %s59 = sphi 0, %s43
      %s63 = sphi 0, %s63
      %s65 = sphi 0, %s63
      %s66 = sphi 0, %s65
      %s80 = sphi 0, %s66
      %s84 = sphi 0, %s84
      %s86 = sphi 0, %s84
      %s87 = sphi 0, %s86
      %s101 = sphi 0, %s87
      %s105 = sphi 0, %s105
      %s107 = sphi 0, %s105
      %s108 = sphi 0, %s107
      %s122 = sphi 0, %s108
      %s126 = sphi 0, %s126
      %s128 = sphi 0, %s126
      %s129 = sphi 0, %s128
      %s143 = sphi 0, %s129
      %s147 = sphi 0, %s147
      %s149 = sphi 0, %s147
      %s150 = sphi 0, %s149
      %s164 = sphi 0, %s150
      %s168 = sphi 0, %s168
      %s170 = sphi 0, %s168
      %s171 = sphi 0, %s170
      %s185 = sphi 0, %s171
      %s191 = sphi 0, %s193
      %s194 = sphi 0, %s191
      %s195 = sphi 0, %s194
      %s211 = sphi 0, %s195
    $region4: #{pointnet_torus_forward.8} parent=1 // loop_header_branch
      %18 = sbr.rel (%p16) target = $region8
    $region5: #{pointnet_torus_forward.8} parent=1 // loop_body
      %s20 = ssub.s32 %s15, 1
      %s21 = ssub.s32 %s15, 2
      %s28 = sadd.s32 1, %s23
      %p29 = scmp.ge.s32.totalorder %s28, 2
      %s30 = scalar_select %p29, 0, %s28
      %s31 = sadd.s32 1, %s22
      %s32 = scalar_select %p29, %s31, %s22
      %p33 = scmp.ge.s32.totalorder %s32, 2
      %s34 = scalar_select %p33, 0, %s32
      %s35 = ssub.s32 %s22, %s34
      %s36 = ssub.s32 %s23, %s30
      %s37 = sor.u32 %s35, %s36
      %p38 = scmp.eq.s32.totalorder %s37, 0
      %s40 = sadd.s32 %s39, 1
      %s41 = scalar_select %p38, %s39, %s40
      %p44 = pneg %p38
      %p45 = scmp.eq.s32.totalorder %s15, 3
      %p46 = por %p44, %p45
      %p47 = scmp.ne.s32.totalorder %s39, %s42
      %p48 = scmp.eq.s32.totalorder %s15, 0
      %p49 = por %p47, %p48
      %p50 = scmp.ne.s32.totalorder %s39, %s42
      %p51 = scmp.eq.s32.totalorder %s20, 3
      %p52 = por %p50, %p51
      %p53 = scmp.ne.s32.totalorder %s42, %s43
      %p54 = scmp.eq.s32.totalorder %s20, 0
      %p55 = por %p53, %p54
      %p56 = scmp.ne.s32.totalorder %s42, %s43
      %p57 = scmp.eq.s32.totalorder %s21, 3
      %p58 = por %p56, %p57
      %p60 = scmp.ne.s32.totalorder %s43, %s59
      %p61 = scmp.eq.s32.totalorder %s21, 0
      %p62 = por %p60, %p61
      %s64 = sadd.s32 %s63, 1
      %p67 = scmp.eq.s32.totalorder %s15, 3
      %p68 = scmp.ne.s32.totalorder %s63, %s65
      %p69 = scmp.eq.s32.totalorder %s15, 0
      %p70 = por %p68, %p69
      %p71 = scmp.ne.s32.totalorder %s63, %s65
      %p72 = scmp.eq.s32.totalorder %s20, 3
      %p73 = por %p71, %p72
      %p74 = scmp.ne.s32.totalorder %s65, %s66
      %p75 = scmp.eq.s32.totalorder %s20, 0
      %p76 = por %p74, %p75
      %p77 = scmp.ne.s32.totalorder %s65, %s66
      %p78 = scmp.eq.s32.totalorder %s21, 3
      %p79 = por %p77, %p78
      %p81 = scmp.ne.s32.totalorder %s66, %s80
      %p82 = scmp.eq.s32.totalorder %s21, 0
      %p83 = por %p81, %p82
      %s85 = sadd.s32 %s84, 1
      %p88 = scmp.eq.s32.totalorder %s15, 3
      %p89 = scmp.ne.s32.totalorder %s84, %s86
      %p90 = scmp.eq.s32.totalorder %s15, 0
      %p91 = por %p89, %p90
      %p92 = scmp.ne.s32.totalorder %s84, %s86
      %p93 = scmp.eq.s32.totalorder %s20, 3
      %p94 = por %p92, %p93
      %p95 = scmp.ne.s32.totalorder %s86, %s87
      %p96 = scmp.eq.s32.totalorder %s20, 0
      %p97 = por %p95, %p96
      %p98 = scmp.ne.s32.totalorder %s86, %s87
      %p99 = scmp.eq.s32.totalorder %s21, 3
      %p100 = por %p98, %p99
      %p102 = scmp.ne.s32.totalorder %s87, %s101
      %p103 = scmp.eq.s32.totalorder %s21, 0
      %p104 = por %p102, %p103
      %s106 = sadd.s32 %s105, 1
      %p109 = scmp.eq.s32.totalorder %s15, 3
      %p110 = scmp.ne.s32.totalorder %s105, %s107
      %p111 = scmp.eq.s32.totalorder %s15, 0
      %p112 = por %p110, %p111
      %p113 = scmp.ne.s32.totalorder %s105, %s107
      %p114 = scmp.eq.s32.totalorder %s20, 3
      %p115 = por %p113, %p114
      %p116 = scmp.ne.s32.totalorder %s107, %s108
      %p117 = scmp.eq.s32.totalorder %s20, 0
      %p118 = por %p116, %p117
      %p119 = scmp.ne.s32.totalorder %s107, %s108
      %p120 = scmp.eq.s32.totalorder %s21, 3
      %p121 = por %p119, %p120
      %p123 = scmp.ne.s32.totalorder %s108, %s122
      %p124 = scmp.eq.s32.totalorder %s21, 0
      %p125 = por %p123, %p124
      %s127 = sadd.s32 %s126, 1
      %p130 = scmp.eq.s32.totalorder %s15, 3
      %p131 = scmp.ne.s32.totalorder %s126, %s128
      %p132 = scmp.eq.s32.totalorder %s15, 0
      %p133 = por %p131, %p132
      %p134 = scmp.ne.s32.totalorder %s126, %s128
      %p135 = scmp.eq.s32.totalorder %s20, 3
      %p136 = por %p134, %p135
      %p137 = scmp.ne.s32.totalorder %s128, %s129
      %p138 = scmp.eq.s32.totalorder %s20, 0
      %p139 = por %p137, %p138
      %p140 = scmp.ne.s32.totalorder %s128, %s129
      %p141 = scmp.eq.s32.totalorder %s21, 3
      %p142 = por %p140, %p141
      %p144 = scmp.ne.s32.totalorder %s129, %s143
      %p145 = scmp.eq.s32.totalorder %s21, 0
      %p146 = por %p144, %p145
      %s148 = sadd.s32 %s147, 1
      %p151 = scmp.eq.s32.totalorder %s15, 3
      %p152 = scmp.ne.s32.totalorder %s147, %s149
      %p153 = scmp.eq.s32.totalorder %s15, 0
      %p154 = por %p152, %p153
      %p155 = scmp.ne.s32.totalorder %s147, %s149
      %p156 = scmp.eq.s32.totalorder %s20, 3
      %p157 = por %p155, %p156
      %p158 = scmp.ne.s32.totalorder %s149, %s150
      %p159 = scmp.eq.s32.totalorder %s20, 0
      %p160 = por %p158, %p159
      %p161 = scmp.ne.s32.totalorder %s149, %s150
      %p162 = scmp.eq.s32.totalorder %s21, 3
      %p163 = por %p161, %p162
      %p165 = scmp.ne.s32.totalorder %s150, %s164
      %p166 = scmp.eq.s32.totalorder %s21, 0
      %p167 = por %p165, %p166
      %s169 = sadd.s32 %s168, 1
      %p172 = scmp.eq.s32.totalorder %s15, 3
      %p173 = scmp.ne.s32.totalorder %s168, %s170
      %p174 = scmp.eq.s32.totalorder %s15, 0
      %p175 = por %p173, %p174
      %p176 = scmp.ne.s32.totalorder %s168, %s170
      %p177 = scmp.eq.s32.totalorder %s20, 3
      %p178 = por %p176, %p177
      %p179 = scmp.ne.s32.totalorder %s170, %s171
      %p180 = scmp.eq.s32.totalorder %s20, 0
      %p181 = por %p179, %p180
      %p182 = scmp.ne.s32.totalorder %s170, %s171
      %p183 = scmp.eq.s32.totalorder %s21, 3
      %p184 = por %p182, %p183
      %p186 = scmp.ne.s32.totalorder %s171, %s185
      %p187 = scmp.eq.s32.totalorder %s21, 0
      %p188 = por %p186, %p187
      %s189 = ssub.s32 %s22, %s34
      %p190 = scmp.eq.s32.totalorder %s189, 0
      %s192 = sadd.s32 %s191, 1
      %s193 = scalar_select %p190, %s191, %s192
      %p196 = pneg %p190
      %p197 = scmp.eq.s32.totalorder %s15, 3
      %p198 = por %p196, %p197
      %p199 = scmp.ne.s32.totalorder %s191, %s194
      %p200 = scmp.eq.s32.totalorder %s15, 0
      %p201 = por %p199, %p200
      %p202 = scmp.ne.s32.totalorder %s191, %s194
      %p203 = scmp.eq.s32.totalorder %s20, 3
      %p204 = por %p202, %p203
      %p205 = scmp.ne.s32.totalorder %s194, %s195
      %p206 = scmp.eq.s32.totalorder %s20, 0
      %p207 = por %p205, %p206
      %p208 = scmp.ne.s32.totalorder %s194, %s195
      %p209 = scmp.eq.s32.totalorder %s21, 3
      %p210 = por %p208, %p209
      %p212 = scmp.ne.s32.totalorder %s195, %s211
      %p213 = scmp.eq.s32.totalorder %s21, 0
      %p214 = por %p212, %p213
      %p215 = scmp.le.s32.totalorder 1, %s15
      %p216 = scmp.lt.s32.totalorder %s15, 5
      %p217 = pnand %p215, %p216
      %p218 = pneg %p217
      // Predicated region
      $region9: #{pointnet_torus_forward.8} parent=5 // pred_check
        _
      $region10: #{pointnet_torus_forward.8} parent=5 // pred_check_branch
        %220 = sbr.rel (%p217) target = $region12
      $region11: #{pointnet_torus_forward.8} parent=5 // pred_region
        %s221 = ssub.s32 %s15, 1
        // Predicated region
        $region13: #{pointnet_torus_forward.8} parent=11 // pred_check
          %p222 = pneg %p76
        $region14: #{pointnet_torus_forward.8} parent=11 // pred_check_branch
          %224 = sbr.rel (%p222) target = $region16
        $region15: #{pointnet_torus_forward.8} parent=11 // pred_region
          _
        $region16: #{pointnet_torus_forward.8} parent=11 // pred_fallthru
          _
        // Predicated region
        $region17: #{pointnet_torus_forward.8} parent=11 // pred_check
          %p225 = pneg %p97
        $region18: #{pointnet_torus_forward.8} parent=11 // pred_check_branch
          %227 = sbr.rel (%p225) target = $region20
        $region19: #{pointnet_torus_forward.8} parent=11 // pred_region
          %229 = vsyncadd [#allocation3], 0
          %s231 = sshll.u32 %s2, 4
          %s232 = int_to_ptr.hbm [resolvable:$true] %s231
          %s233 = sshll.u32 [#allocation2], 4
          %s234 = int_to_ptr.vmem [resolvable:$true] %s233
          %236 = dma.hbm_to_vmem [thread:$0]  %s232, 16, %s234, [#allocation3]
        $region20: #{pointnet_torus_forward.8} parent=11 // pred_fallthru
          _
        // Predicated region
        $region21: #{pointnet_torus_forward.8} parent=11 // pred_check
          %p237 = pneg %p118
        $region22: #{pointnet_torus_forward.8} parent=11 // pred_check_branch
          %239 = sbr.rel (%p237) target = $region24
        $region23: #{pointnet_torus_forward.8} parent=11 // pred_region
          _
        $region24: #{pointnet_torus_forward.8} parent=11 // pred_fallthru
          _
        // Predicated region
        $region25: #{pointnet_torus_forward.8} parent=11 // pred_check
          %p240 = pneg %p139
        $region26: #{pointnet_torus_forward.8} parent=11 // pred_check_branch
          %242 = sbr.rel (%p240) target = $region28
        $region27: #{pointnet_torus_forward.8} parent=11 // pred_region
          %244 = vsyncadd [#allocation5], 0
          %s246 = sshll.u32 %s4, 4
          %s247 = int_to_ptr.hbm [resolvable:$true] %s246
          %s248 = sshll.u32 [#allocation4], 4
          %s249 = int_to_ptr.vmem [resolvable:$true] %s248
          %251 = dma.hbm_to_vmem [thread:$0]  %s247, 16, %s249, [#allocation5]
        $region28: #{pointnet_torus_forward.8} parent=11 // pred_fallthru
          _
        // Predicated region
        $region29: #{pointnet_torus_forward.8} parent=11 // pred_check
          %p252 = pneg %p160
        $region30: #{pointnet_torus_forward.8} parent=11 // pred_check_branch
          %254 = sbr.rel (%p252) target = $region32
        $region31: #{pointnet_torus_forward.8} parent=11 // pred_region
          _
        $region32: #{pointnet_torus_forward.8} parent=11 // pred_fallthru
          _
        // Predicated region
        $region33: #{pointnet_torus_forward.8} parent=11 // pred_check
          %p255 = pneg %p181
        $region34: #{pointnet_torus_forward.8} parent=11 // pred_check_branch
          %257 = sbr.rel (%p255) target = $region36
        $region35: #{pointnet_torus_forward.8} parent=11 // pred_region
          %259 = vsyncadd [#allocation5], 0
          %s261 = sshll.u32 %s6, 4
          %s262 = int_to_ptr.hbm [resolvable:$true] %s261
          %s263 = sshll.u32 [#allocation6], 4
          %s264 = int_to_ptr.vmem [resolvable:$true] %s263
          %266 = dma.hbm_to_vmem [thread:$0]  %s262, 128, %s264, [#allocation5]
        $region36: #{pointnet_torus_forward.8} parent=11 // pred_fallthru
          _
      $region12: #{pointnet_torus_forward.8} parent=5 // pred_fallthru
        _
      %p267 = scmp.lt.s32.totalorder %s15, 4
      // Predicated region
      $region37: #{pointnet_torus_forward.8} parent=5 // pred_check
        %p268 = pneg %p267
      $region38: #{pointnet_torus_forward.8} parent=5 // pred_check_branch
        %270 = sbr.rel (%p268) target = $region40
      $region39: #{pointnet_torus_forward.8} parent=5 // pred_region
        // Predicated region
        $region41: #{pointnet_torus_forward.8} parent=39 // pred_check
          %p271 = pneg %p49
        $region42: #{pointnet_torus_forward.8} parent=39 // pred_check_branch
          %273 = sbr.rel (%p271) target = $region44
        $region43: #{pointnet_torus_forward.8} parent=39 // pred_region
          %s274 = smul.u32 32, %s23
          %p275 = scmp.lt.s32.totalorder %s22, 1
          %s276 = scalar_select %p275, %s22, 1
          %p277 = scmp.lt.s32.totalorder %s274, 63
          %s278 = scalar_select %p277, %s274, 63
          %s279 = smul.addr %s276, 64
          %s280 = sadd.s32 %s278, %s279
          %s281 = smul.addr %s280, 8
          %s282 = scalar_lea.vmem %s0, %s281
          %s283 = smul.u32 32, %s23
        $region44: #{pointnet_torus_forward.8} parent=39 // pred_fallthru
          _
      $region40: #{pointnet_torus_forward.8} parent=5 // pred_fallthru
        _
      %p284 = scmp.le.s32.totalorder 1, %s15
      %p285 = scmp.lt.s32.totalorder %s15, 5
      %p286 = pnand %p284, %p285
      %p287 = pneg %p286
      // Predicated region
      $region45: #{pointnet_torus_forward.8} parent=5 // pred_check
        _
      $region46: #{pointnet_torus_forward.8} parent=5 // pred_check_branch
        %289 = sbr.rel (%p286) target = $region48
      $region47: #{pointnet_torus_forward.8} parent=5 // pred_region
        %s290 = ssub.s32 %s15, 1
        // Predicated region
        $region49: #{pointnet_torus_forward.8} parent=47 // pred_check
          %p291 = pneg %p97
        $region50: #{pointnet_torus_forward.8} parent=47 // pred_check_branch
          %293 = sbr.rel (%p291) target = $region52
        $region51: #{pointnet_torus_forward.8} parent=47 // pred_region
          %295 = dma.done [#allocation3], 16
        $region52: #{pointnet_torus_forward.8} parent=47 // pred_fallthru
          _
        // Predicated region
        $region53: #{pointnet_torus_forward.8} parent=47 // pred_check
          %p296 = pneg %p139
        $region54: #{pointnet_torus_forward.8} parent=47 // pred_check_branch
          %298 = sbr.rel (%p296) target = $region56
        $region55: #{pointnet_torus_forward.8} parent=47 // pred_region
          %300 = dma.done [#allocation5], 16
        $region56: #{pointnet_torus_forward.8} parent=47 // pred_fallthru
          _
        // Predicated region
        $region57: #{pointnet_torus_forward.8} parent=47 // pred_check
          %p301 = pneg %p181
        $region58: #{pointnet_torus_forward.8} parent=47 // pred_check_branch
          %303 = sbr.rel (%p301) target = $region60
        $region59: #{pointnet_torus_forward.8} parent=47 // pred_region
          %305 = dma.done [#allocation5], 128
        $region60: #{pointnet_torus_forward.8} parent=47 // pred_fallthru
          _
        %s306 = smul.u32 32, %s25
        %p307 = scmp.lt.s32.totalorder %s24, 1
        %s308 = scalar_select %p307, %s24, 1
        %p309 = scmp.lt.s32.totalorder %s306, 63
        %s310 = scalar_select %p309, %s306, 63
        %s311 = smul.addr %s308, 64
        %s312 = sadd.s32 %s310, %s311
        %s313 = smul.addr %s312, 8
        %s314 = scalar_lea.vmem %s0, %s313
        %p315 = pneg %p55
        %p316 = pneg %p52
        %p317 = pneg %p76
        %p318 = pneg %p73
        %p319 = pneg %p97
        %p320 = pneg %p94
        %p321 = pneg %p118
        %p322 = pneg %p115
        %p323 = pneg %p139
        %p324 = pneg %p136
        %p325 = pneg %p160
        %p326 = pneg %p157
        %p327 = pneg %p181
        %p328 = pneg %p178
        %p329 = pneg %p207
        %p330 = pneg %p204
        %p331 = scmp.lt.s32.totalorder %s24, 1
        %s332 = scalar_select %p331, %s24, 1
        %s333 = smul.addr %s332, 8
        %s334 = scalar_lea.vmem %s7, %s333
        %s335 = smul.u32 32, %s25
        %p336 = scmp.lt.s32.totalorder %s24, 1
        %s337 = scalar_select %p336, %s24, 1
        %p338 = scmp.lt.s32.totalorder %s335, 63
        %s339 = scalar_select %p338, %s335, 63
        %s340 = smul.addr %s337, 64
        %s341 = sadd.s32 %s339, %s340
        %s342 = smul.addr %s341, 8
        %s343 = scalar_lea.vmem %s0, %s342
        %s344 = smul.u32 32, %s25
        %p345 = scmp.lt.s32.totalorder %s24, 1
        %s346 = scalar_select %p345, %s24, 1
        %s347 = smul.addr %s346, 8
        %s348 = scalar_lea.vmem %s7, %s347
        %v350 = vld [vmem:[%s343] sm:$0xff]
        %v351 = vld [vmem:[%s343 + $0x8] sm:$0xff]
        %v352 = vld [vmem:[%s343 + $0x10] sm:$0xff]
        %v353 = vld [vmem:[%s343 + $0x18] sm:$0xff]
        %v354 = vld [vmem:[%s343 + $0x20] sm:$0xff]
        %v355 = vld [vmem:[%s343 + $0x28] sm:$0xff]
        %v356 = vld [vmem:[%s343 + $0x30] sm:$0xff]
        %v357 = vld [vmem:[%s343 + $0x38] sm:$0xff]
        %v358 = vld [vmem:[%s343 + $0x40] sm:$0xff]
        %v359 = vld [vmem:[%s343 + $0x48] sm:$0xff]
        %v360 = vld [vmem:[%s343 + $0x50] sm:$0xff]
        %v361 = vld [vmem:[%s343 + $0x58] sm:$0xff]
        %v362 = vld [vmem:[%s343 + $0x60] sm:$0xff]
        %v363 = vld [vmem:[%s343 + $0x68] sm:$0xff]
        %v364 = vld [vmem:[%s343 + $0x70] sm:$0xff]
        %v365 = vld [vmem:[%s343 + $0x78] sm:$0xff]
        %v366 = vld [vmem:[%s343 + $0x80] sm:$0xff]
        %v367 = vld [vmem:[%s343 + $0x88] sm:$0xff]
        %v368 = vld [vmem:[%s343 + $0x90] sm:$0xff]
        %v369 = vld [vmem:[%s343 + $0x98] sm:$0xff]
        %v370 = vld [vmem:[%s343 + $0xa0] sm:$0xff]
        %v371 = vld [vmem:[%s343 + $0xa8] sm:$0xff]
        %v372 = vld [vmem:[%s343 + $0xb0] sm:$0xff]
        %v373 = vld [vmem:[%s343 + $0xb8] sm:$0xff]
        %v374 = vld [vmem:[%s343 + $0xc0] sm:$0xff]
        %v375 = vld [vmem:[%s343 + $0xc8] sm:$0xff]
        %v376 = vld [vmem:[%s343 + $0xd0] sm:$0xff]
        %v377 = vld [vmem:[%s343 + $0xd8] sm:$0xff]
        %v378 = vld [vmem:[%s343 + $0xe0] sm:$0xff]
        %v379 = vld [vmem:[%s343 + $0xe8] sm:$0xff]
        %v380 = vld [vmem:[%s343 + $0xf0] sm:$0xff]
        %v381 = vld [vmem:[%s343 + $0xf8] sm:$0xff]
        %v382 = vld [vmem:[%s1] sm:$0x7]
        %v383 = vld [vmem:[#allocation2] sm:$0x1]
        %v385 = vperm.slane %v383, 0
        %vm387 = vcmask 23552
        %v389 = vsel %vm387, %v350, 0
        %v392 = vsel %vm387, %v351, 0
        %v395 = vsel %vm387, %v352, 0
        %v398 = vsel %vm387, %v353, 0
        %v401 = vsel %vm387, %v354, 0
        %v404 = vsel %vm387, %v355, 0
        %v407 = vsel %vm387, %v356, 0
        %v410 = vsel %vm387, %v357, 0
        %v413 = vsel %vm387, %v358, 0
        %v416 = vsel %vm387, %v359, 0
        %v419 = vsel %vm387, %v360, 0
        %v422 = vsel %vm387, %v361, 0
        %v425 = vsel %vm387, %v362, 0
        %v428 = vsel %vm387, %v363, 0
        %v431 = vsel %vm387, %v364, 0
        %v434 = vsel %vm387, %v365, 0
        %v437 = vsel %vm387, %v366, 0
        %v440 = vsel %vm387, %v367, 0
        %v443 = vsel %vm387, %v368, 0
        %v446 = vsel %vm387, %v369, 0
        %v449 = vsel %vm387, %v370, 0
        %v452 = vsel %vm387, %v371, 0
        %v455 = vsel %vm387, %v372, 0
        %v458 = vsel %vm387, %v373, 0
        %v461 = vsel %vm387, %v374, 0
        %v464 = vsel %vm387, %v375, 0
        %v467 = vsel %vm387, %v376, 0
        %v470 = vsel %vm387, %v377, 0
        %v473 = vsel %vm387, %v378, 0
        %v476 = vsel %vm387, %v379, 0
        %v479 = vsel %vm387, %v380, 0
        %v482 = vsel %vm387, %v381, 0
        %vm484 = vcmask 1042432
        %v486 = vsel %vm484, %v382, 0
        %488 = vmatpush.msra.mxu0 0.0
        %489 = vmatpush.msra.mxu0 0.0
        %490 = vmatpush.msra.mxu0 0.0
        %491 = vmatpush.msra.mxu0 0.0
        %492 = vmatpush.msra.mxu0 0.0
        %493 = vmatpush.msra.mxu0 0.0
        %494 = vmatpush.msra.mxu0 0.0
        %495 = vmatpush.msra.mxu0 0.0
        %496 = vmatpush.msra.mxu0 0.0
        %497 = vmatpush.msra.mxu0 0.0
        %498 = vmatpush.msra.mxu0 0.0
        %499 = vmatpush.msra.mxu0 0.0
        %500 = vmatpush.msra.mxu0 0.0
        %501 = vmatpush.msra.mxu0 0.0
        %502 = vmatpush.msra.mxu0 0.0
        %503 = vmatpush.msra.mxu0 %v486
        %504 = vmatmul.f32.gmra.mxu0 %v389
        %v505 = vpop.f32.mrf.mxu0
        %v506 = vadd.f32 %v385, %v505
        %507 = vmatmul.f32.gmra.mxu0 %v392
        %v508 = vpop.f32.mrf.mxu0
        %v509 = vadd.f32 %v385, %v508
        %510 = vmatmul.f32.gmra.mxu0 %v395
        %v511 = vpop.f32.mrf.mxu0
        %v512 = vadd.f32 %v385, %v511
        %513 = vmatmul.f32.gmra.mxu0 %v398
        %v514 = vpop.f32.mrf.mxu0
        %v515 = vadd.f32 %v385, %v514
        %516 = vmatmul.f32.gmra.mxu0 %v401
        %v517 = vpop.f32.mrf.mxu0
        %v518 = vadd.f32 %v385, %v517
        %519 = vmatmul.f32.gmra.mxu0 %v404
        %v520 = vpop.f32.mrf.mxu0
        %v521 = vadd.f32 %v385, %v520
        %522 = vmatmul.f32.gmra.mxu0 %v407
        %v523 = vpop.f32.mrf.mxu0
        %v524 = vadd.f32 %v385, %v523
        %525 = vmatmul.f32.gmra.mxu0 %v410
        %v526 = vpop.f32.mrf.mxu0
        %v527 = vadd.f32 %v385, %v526
        %528 = vmatmul.f32.gmra.mxu0 %v413
        %v529 = vpop.f32.mrf.mxu0
        %v530 = vadd.f32 %v385, %v529
        %531 = vmatmul.f32.gmra.mxu0 %v416
        %v532 = vpop.f32.mrf.mxu0
        %v533 = vadd.f32 %v385, %v532
        %534 = vmatmul.f32.gmra.mxu0 %v419
        %v535 = vpop.f32.mrf.mxu0
        %v536 = vadd.f32 %v385, %v535
        %537 = vmatmul.f32.gmra.mxu0 %v422
        %v538 = vpop.f32.mrf.mxu0
        %v539 = vadd.f32 %v385, %v538
        %540 = vmatmul.f32.gmra.mxu0 %v425
        %v541 = vpop.f32.mrf.mxu0
        %v542 = vadd.f32 %v385, %v541
        %543 = vmatmul.f32.gmra.mxu0 %v428
        %v544 = vpop.f32.mrf.mxu0
        %v545 = vadd.f32 %v385, %v544
        %546 = vmatmul.f32.gmra.mxu0 %v431
        %v547 = vpop.f32.mrf.mxu0
        %v548 = vadd.f32 %v385, %v547
        %549 = vmatmul.f32.gmra.mxu0 %v434
        %v550 = vpop.f32.mrf.mxu0
        %v551 = vadd.f32 %v385, %v550
        %552 = vmatmul.f32.gmra.mxu0 %v437
        %v553 = vpop.f32.mrf.mxu0
        %v554 = vadd.f32 %v385, %v553
        %555 = vmatmul.f32.gmra.mxu0 %v440
        %v556 = vpop.f32.mrf.mxu0
        %v557 = vadd.f32 %v385, %v556
        %558 = vmatmul.f32.gmra.mxu0 %v443
        %v559 = vpop.f32.mrf.mxu0
        %v560 = vadd.f32 %v385, %v559
        %561 = vmatmul.f32.gmra.mxu0 %v446
        %v562 = vpop.f32.mrf.mxu0
        %v563 = vadd.f32 %v385, %v562
        %564 = vmatmul.f32.gmra.mxu0 %v449
        %v565 = vpop.f32.mrf.mxu0
        %v566 = vadd.f32 %v385, %v565
        %567 = vmatmul.f32.gmra.mxu0 %v452
        %v568 = vpop.f32.mrf.mxu0
        %v569 = vadd.f32 %v385, %v568
        %570 = vmatmul.f32.gmra.mxu0 %v455
        %v571 = vpop.f32.mrf.mxu0
        %v572 = vadd.f32 %v385, %v571
        %573 = vmatmul.f32.gmra.mxu0 %v458
        %v574 = vpop.f32.mrf.mxu0
        %v575 = vadd.f32 %v385, %v574
        %576 = vmatmul.f32.gmra.mxu0 %v461
        %v577 = vpop.f32.mrf.mxu0
        %v578 = vadd.f32 %v385, %v577
        %579 = vmatmul.f32.gmra.mxu0 %v464
        %v580 = vpop.f32.mrf.mxu0
        %v581 = vadd.f32 %v385, %v580
        %582 = vmatmul.f32.gmra.mxu0 %v467
        %v583 = vpop.f32.mrf.mxu0
        %v584 = vadd.f32 %v385, %v583
        %585 = vmatmul.f32.gmra.mxu0 %v470
        %v586 = vpop.f32.mrf.mxu0
        %v587 = vadd.f32 %v385, %v586
        %588 = vmatmul.f32.gmra.mxu0 %v473
        %v589 = vpop.f32.mrf.mxu0
        %v590 = vadd.f32 %v385, %v589
        %591 = vmatmul.f32.gmra.mxu0 %v476
        %v592 = vpop.f32.mrf.mxu0
        %v593 = vadd.f32 %v385, %v592
        %594 = vmatmul.f32.gmra.mxu0 %v479
        %v595 = vpop.f32.mrf.mxu0
        %v596 = vadd.f32 %v385, %v595
        %597 = vmatmul.f32.gmra.mxu0 %v482
        %v598 = vpop.f32.mrf.mxu0
        %v599 = vadd.f32 %v385, %v598
        %600 = vdwg.mxu0
        %v601 = vmax.f32 %v506, 0.0
        %v602 = vmax.f32 %v509, 0.0
        %v603 = vmax.f32 %v512, 0.0
        %v604 = vmax.f32 %v515, 0.0
        %v605 = vmax.f32 %v518, 0.0
        %v606 = vmax.f32 %v521, 0.0
        %v607 = vmax.f32 %v524, 0.0
        %v608 = vmax.f32 %v527, 0.0
        %v609 = vmax.f32 %v530, 0.0
        %v610 = vmax.f32 %v533, 0.0
        %v611 = vmax.f32 %v536, 0.0
        %v612 = vmax.f32 %v539, 0.0
        %v613 = vmax.f32 %v542, 0.0
        %v614 = vmax.f32 %v545, 0.0
        %v615 = vmax.f32 %v548, 0.0
        %v616 = vmax.f32 %v551, 0.0
        %v617 = vmax.f32 %v554, 0.0
        %v618 = vmax.f32 %v557, 0.0
        %v619 = vmax.f32 %v560, 0.0
        %v620 = vmax.f32 %v563, 0.0
        %v621 = vmax.f32 %v566, 0.0
        %v622 = vmax.f32 %v569, 0.0
        %v623 = vmax.f32 %v572, 0.0
        %v624 = vmax.f32 %v575, 0.0
        %v625 = vmax.f32 %v578, 0.0
        %v626 = vmax.f32 %v581, 0.0
        %v627 = vmax.f32 %v584, 0.0
        %v628 = vmax.f32 %v587, 0.0
        %v629 = vmax.f32 %v590, 0.0
        %v630 = vmax.f32 %v593, 0.0
        %v631 = vmax.f32 %v596, 0.0
        %v632 = vmax.f32 %v599, 0.0
        %v633 = vpack.c.bf16 %v602, %v601
        %v634 = vpack.c.bf16 %v604, %v603
        %v635 = vpack.c.bf16 %v606, %v605
        %v636 = vpack.c.bf16 %v608, %v607
        %v637 = vpack.c.bf16 %v610, %v609
        %v638 = vpack.c.bf16 %v612, %v611
        %v639 = vpack.c.bf16 %v614, %v613
        %v640 = vpack.c.bf16 %v616, %v615
        %v641 = vpack.c.bf16 %v618, %v617
        %v642 = vpack.c.bf16 %v620, %v619
        %v643 = vpack.c.bf16 %v622, %v621
        %v644 = vpack.c.bf16 %v624, %v623
        %v645 = vpack.c.bf16 %v626, %v625
        %v646 = vpack.c.bf16 %v628, %v627
        %v647 = vpack.c.bf16 %v630, %v629
        %v648 = vpack.c.bf16 %v632, %v631
        %v649 = vld [vmem:[%s3] sm:$0xf]
        %v650 = vld [vmem:[%s3 + $0x4] sm:$0xf]
        %v651 = vld [vmem:[%s3 + $0x8] sm:$0xf]
        %v652 = vld [vmem:[%s3 + $0xc] sm:$0xf]
        %v653 = vld [vmem:[%s3 + $0x10] sm:$0xf]
        %v654 = vld [vmem:[%s3 + $0x14] sm:$0xf]
        %v655 = vld [vmem:[%s3 + $0x18] sm:$0xf]
        %v656 = vld [vmem:[%s3 + $0x1c] sm:$0xf]
        %v657 = vld [vmem:[#allocation4] sm:$0x1]
        %v659 = vperm.slane %v657, 0
        %v669 = vunpack.c.l.b16 %v649
        %v670 = vunpack.c.l.b16 %v650
        %v671 = vunpack.c.l.b16 %v651
        %v672 = vunpack.c.l.b16 %v652
        %v673 = vunpack.c.l.b16 %v653
        %v674 = vunpack.c.l.b16 %v654
        %v675 = vunpack.c.l.b16 %v655
        %v676 = vunpack.c.l.b16 %v656
        %v677 = vpack.c.b16 %v670, %v669
        %v678 = vpack.c.b16 %v672, %v671
        %v679 = vpack.c.b16 %v674, %v673
        %v680 = vpack.c.b16 %v676, %v675
        %vm685 = vcmask 523264
        %v687 = vsel %vm685, %v633, 0
        %v690 = vsel %vm685, %v634, 0
        %v693 = vsel %vm685, %v635, 0
        %v696 = vsel %vm685, %v636, 0
        %v699 = vsel %vm685, %v637, 0
        %v702 = vsel %vm685, %v638, 0
        %v705 = vsel %vm685, %v639, 0
        %v708 = vsel %vm685, %v640, 0
        %v711 = vsel %vm685, %v641, 0
        %v714 = vsel %vm685, %v642, 0
        %v717 = vsel %vm685, %v643, 0
        %v720 = vsel %vm685, %v644, 0
        %v723 = vsel %vm685, %v645, 0
        %v726 = vsel %vm685, %v646, 0
        %v729 = vsel %vm685, %v647, 0
        %v732 = vsel %vm685, %v648, 0
        %734 = vmatpush.bf16.msra.mxu0 0
        %735 = vmatpush.bf16.msra.mxu0 0
        %736 = vmatpush.bf16.msra.mxu0 0
        %737 = vmatpush.bf16.msra.mxu0 0
        %738 = vmatpush.bf16.msra.mxu0 %v680
        %739 = vmatpush.bf16.msra.mxu0 %v679
        %740 = vmatpush.bf16.msra.mxu0 %v678
        %741 = vmatpush.bf16.msra.mxu0 %v677
        %742 = vmatmul.bf16.gmra.mxu0 %v687
        %v743 = vpop.f32.mrf.mxu0
        %v744 = vadd.f32 %v659, %v743
        %v745 = vpop.f32.mrf.mxu0
        %v746 = vadd.f32 %v659, %v745
        %747 = vmatmul.bf16.gmra.mxu0 %v690
        %v748 = vpop.f32.mrf.mxu0
        %v749 = vadd.f32 %v659, %v748
        %v750 = vpop.f32.mrf.mxu0
        %v751 = vadd.f32 %v659, %v750
        %752 = vmatmul.bf16.gmra.mxu0 %v693
        %v753 = vpop.f32.mrf.mxu0
        %v754 = vadd.f32 %v659, %v753
        %v755 = vpop.f32.mrf.mxu0
        %v756 = vadd.f32 %v659, %v755
        %757 = vmatmul.bf16.gmra.mxu0 %v696
        %v758 = vpop.f32.mrf.mxu0
        %v759 = vadd.f32 %v659, %v758
        %v760 = vpop.f32.mrf.mxu0
        %v761 = vadd.f32 %v659, %v760
        %762 = vmatmul.bf16.gmra.mxu0 %v699
        %v763 = vpop.f32.mrf.mxu0
        %v764 = vadd.f32 %v659, %v763
        %v765 = vpop.f32.mrf.mxu0
        %v766 = vadd.f32 %v659, %v765
        %767 = vmatmul.bf16.gmra.mxu0 %v702
        %v768 = vpop.f32.mrf.mxu0
        %v769 = vadd.f32 %v659, %v768
        %v770 = vpop.f32.mrf.mxu0
        %v771 = vadd.f32 %v659, %v770
        %772 = vmatmul.bf16.gmra.mxu0 %v705
        %v773 = vpop.f32.mrf.mxu0
        %v774 = vadd.f32 %v659, %v773
        %v775 = vpop.f32.mrf.mxu0
        %v776 = vadd.f32 %v659, %v775
        %777 = vmatmul.bf16.gmra.mxu0 %v708
        %v778 = vpop.f32.mrf.mxu0
        %v779 = vadd.f32 %v659, %v778
        %v780 = vpop.f32.mrf.mxu0
        %v781 = vadd.f32 %v659, %v780
        %782 = vmatmul.bf16.gmra.mxu0 %v711
        %v783 = vpop.f32.mrf.mxu0
        %v784 = vadd.f32 %v659, %v783
        %v785 = vpop.f32.mrf.mxu0
        %v786 = vadd.f32 %v659, %v785
        %787 = vmatmul.bf16.gmra.mxu0 %v714
        %v788 = vpop.f32.mrf.mxu0
        %v789 = vadd.f32 %v659, %v788
        %v790 = vpop.f32.mrf.mxu0
        %v791 = vadd.f32 %v659, %v790
        %792 = vmatmul.bf16.gmra.mxu0 %v717
        %v793 = vpop.f32.mrf.mxu0
        %v794 = vadd.f32 %v659, %v793
        %v795 = vpop.f32.mrf.mxu0
        %v796 = vadd.f32 %v659, %v795
        %797 = vmatmul.bf16.gmra.mxu0 %v720
        %v798 = vpop.f32.mrf.mxu0
        %v799 = vadd.f32 %v659, %v798
        %v800 = vpop.f32.mrf.mxu0
        %v801 = vadd.f32 %v659, %v800
        %802 = vmatmul.bf16.gmra.mxu0 %v723
        %v803 = vpop.f32.mrf.mxu0
        %v804 = vadd.f32 %v659, %v803
        %v805 = vpop.f32.mrf.mxu0
        %v806 = vadd.f32 %v659, %v805
        %807 = vmatmul.bf16.gmra.mxu0 %v726
        %v808 = vpop.f32.mrf.mxu0
        %v809 = vadd.f32 %v659, %v808
        %v810 = vpop.f32.mrf.mxu0
        %v811 = vadd.f32 %v659, %v810
        %812 = vmatmul.bf16.gmra.mxu0 %v729
        %v813 = vpop.f32.mrf.mxu0
        %v814 = vadd.f32 %v659, %v813
        %v815 = vpop.f32.mrf.mxu0
        %v816 = vadd.f32 %v659, %v815
        %817 = vmatmul.bf16.gmra.mxu0 %v732
        %v818 = vpop.f32.mrf.mxu0
        %v819 = vadd.f32 %v659, %v818
        %v820 = vpop.f32.mrf.mxu0
        %v821 = vadd.f32 %v659, %v820
        %822 = vdwg.mxu0
        %v823 = vmax.f32 %v744, 0.0
        %v824 = vmax.f32 %v746, 0.0
        %v825 = vmax.f32 %v749, 0.0
        %v826 = vmax.f32 %v751, 0.0
        %v827 = vmax.f32 %v754, 0.0
        %v828 = vmax.f32 %v756, 0.0
        %v829 = vmax.f32 %v759, 0.0
        %v830 = vmax.f32 %v761, 0.0
        %v831 = vmax.f32 %v764, 0.0
        %v832 = vmax.f32 %v766, 0.0
        %v833 = vmax.f32 %v769, 0.0
        %v834 = vmax.f32 %v771, 0.0
        %v835 = vmax.f32 %v774, 0.0
        %v836 = vmax.f32 %v776, 0.0
        %v837 = vmax.f32 %v779, 0.0
        %v838 = vmax.f32 %v781, 0.0
        %v839 = vmax.f32 %v784, 0.0
        %v840 = vmax.f32 %v786, 0.0
        %v841 = vmax.f32 %v789, 0.0
        %v842 = vmax.f32 %v791, 0.0
        %v843 = vmax.f32 %v794, 0.0
        %v844 = vmax.f32 %v796, 0.0
        %v845 = vmax.f32 %v799, 0.0
        %v846 = vmax.f32 %v801, 0.0
        %v847 = vmax.f32 %v804, 0.0
        %v848 = vmax.f32 %v806, 0.0
        %v849 = vmax.f32 %v809, 0.0
        %v850 = vmax.f32 %v811, 0.0
        %v851 = vmax.f32 %v814, 0.0
        %v852 = vmax.f32 %v816, 0.0
        %v853 = vmax.f32 %v819, 0.0
        %v854 = vmax.f32 %v821, 0.0
        %v855 = vpack.c.bf16 %v824, %v823
        %v856 = vpack.c.bf16 %v826, %v825
        %v857 = vpack.c.bf16 %v828, %v827
        %v858 = vpack.c.bf16 %v830, %v829
        %v859 = vpack.c.bf16 %v832, %v831
        %v860 = vpack.c.bf16 %v834, %v833
        %v861 = vpack.c.bf16 %v836, %v835
        %v862 = vpack.c.bf16 %v838, %v837
        %v863 = vpack.c.bf16 %v840, %v839
        %v864 = vpack.c.bf16 %v842, %v841
        %v865 = vpack.c.bf16 %v844, %v843
        %v866 = vpack.c.bf16 %v846, %v845
        %v867 = vpack.c.bf16 %v848, %v847
        %v868 = vpack.c.bf16 %v850, %v849
        %v869 = vpack.c.bf16 %v852, %v851
        %v870 = vpack.c.bf16 %v854, %v853
        %v871 = vld [vmem:[%s5] sm:$0xff]
        %v872 = vld [vmem:[%s5 + $0x8] sm:$0xff]
        %v873 = vld [vmem:[%s5 + $0x10] sm:$0xff]
        %v874 = vld [vmem:[%s5 + $0x18] sm:$0xff]
        %v875 = vld [vmem:[%s5 + $0x20] sm:$0xff]
        %v876 = vld [vmem:[%s5 + $0x28] sm:$0xff]
        %v877 = vld [vmem:[%s5 + $0x30] sm:$0xff]
        %v878 = vld [vmem:[%s5 + $0x38] sm:$0xff]
        %v879 = vld [vmem:[%s5 + $0x40] sm:$0xff]
        %v880 = vld [vmem:[%s5 + $0x48] sm:$0xff]
        %v881 = vld [vmem:[%s5 + $0x50] sm:$0xff]
        %v882 = vld [vmem:[%s5 + $0x58] sm:$0xff]
        %v883 = vld [vmem:[%s5 + $0x60] sm:$0xff]
        %v884 = vld [vmem:[%s5 + $0x68] sm:$0xff]
        %v885 = vld [vmem:[%s5 + $0x70] sm:$0xff]
        %v886 = vld [vmem:[%s5 + $0x78] sm:$0xff]
        %v887 = vld [vmem:[%s5 + $0x80] sm:$0xff]
        %v888 = vld [vmem:[%s5 + $0x88] sm:$0xff]
        %v889 = vld [vmem:[%s5 + $0x90] sm:$0xff]
        %v890 = vld [vmem:[%s5 + $0x98] sm:$0xff]
        %v891 = vld [vmem:[%s5 + $0xa0] sm:$0xff]
        %v892 = vld [vmem:[%s5 + $0xa8] sm:$0xff]
        %v893 = vld [vmem:[%s5 + $0xb0] sm:$0xff]
        %v894 = vld [vmem:[%s5 + $0xb8] sm:$0xff]
        %v895 = vld [vmem:[%s5 + $0xc0] sm:$0xff]
        %v896 = vld [vmem:[%s5 + $0xc8] sm:$0xff]
        %v897 = vld [vmem:[%s5 + $0xd0] sm:$0xff]
        %v898 = vld [vmem:[%s5 + $0xd8] sm:$0xff]
        %v899 = vld [vmem:[%s5 + $0xe0] sm:$0xff]
        %v900 = vld [vmem:[%s5 + $0xe8] sm:$0xff]
        %v901 = vld [vmem:[%s5 + $0xf0] sm:$0xff]
        %v902 = vld [vmem:[%s5 + $0xf8] sm:$0xff]
        %v903 = vld [vmem:[%s5 + $0x100] sm:$0xff]
        %v904 = vld [vmem:[%s5 + $0x108] sm:$0xff]
        %v905 = vld [vmem:[%s5 + $0x110] sm:$0xff]
        %v906 = vld [vmem:[%s5 + $0x118] sm:$0xff]
        %v907 = vld [vmem:[%s5 + $0x120] sm:$0xff]
        %v908 = vld [vmem:[%s5 + $0x128] sm:$0xff]
        %v909 = vld [vmem:[%s5 + $0x130] sm:$0xff]
        %v910 = vld [vmem:[%s5 + $0x138] sm:$0xff]
        %v911 = vld [vmem:[%s5 + $0x140] sm:$0xff]
        %v912 = vld [vmem:[%s5 + $0x148] sm:$0xff]
        %v913 = vld [vmem:[%s5 + $0x150] sm:$0xff]
        %v914 = vld [vmem:[%s5 + $0x158] sm:$0xff]
        %v915 = vld [vmem:[%s5 + $0x160] sm:$0xff]
        %v916 = vld [vmem:[%s5 + $0x168] sm:$0xff]
        %v917 = vld [vmem:[%s5 + $0x170] sm:$0xff]
        %v918 = vld [vmem:[%s5 + $0x178] sm:$0xff]
        %v919 = vld [vmem:[%s5 + $0x180] sm:$0xff]
        %v920 = vld [vmem:[%s5 + $0x188] sm:$0xff]
        %v921 = vld [vmem:[%s5 + $0x190] sm:$0xff]
        %v922 = vld [vmem:[%s5 + $0x198] sm:$0xff]
        %v923 = vld [vmem:[%s5 + $0x1a0] sm:$0xff]
        %v924 = vld [vmem:[%s5 + $0x1a8] sm:$0xff]
        %v925 = vld [vmem:[%s5 + $0x1b0] sm:$0xff]
        %v926 = vld [vmem:[%s5 + $0x1b8] sm:$0xff]
        %v927 = vld [vmem:[%s5 + $0x1c0] sm:$0xff]
        %v928 = vld [vmem:[%s5 + $0x1c8] sm:$0xff]
        %v929 = vld [vmem:[%s5 + $0x1d0] sm:$0xff]
        %v930 = vld [vmem:[%s5 + $0x1d8] sm:$0xff]
        %v931 = vld [vmem:[%s5 + $0x1e0] sm:$0xff]
        %v932 = vld [vmem:[%s5 + $0x1e8] sm:$0xff]
        %v933 = vld [vmem:[%s5 + $0x1f0] sm:$0xff]
        %v934 = vld [vmem:[%s5 + $0x1f8] sm:$0xff]
        %v935 = vld [vmem:[#allocation6] sm:$0xff]
        %v937 = vperm.slane %v935, 0
        %v938 = vperm.slane %v935, 1
        %v939 = vperm.slane %v935, 2
        %v940 = vperm.slane %v935, 3
        %v941 = vperm.slane %v935, 4
        %v942 = vperm.slane %v935, 5
        %v943 = vperm.slane %v935, 6
        %v944 = vperm.slane %v935, 7
        %v1017 = vunpack.c.l.b16 %v871
        %v1018 = vunpack.c.h.b16 %v871
        %v1019 = vunpack.c.l.b16 %v872
        %v1020 = vunpack.c.h.b16 %v872
        %v1021 = vunpack.c.l.b16 %v873
        %v1022 = vunpack.c.h.b16 %v873
        %v1023 = vunpack.c.l.b16 %v874
        %v1024 = vunpack.c.h.b16 %v874
        %v1025 = vunpack.c.l.b16 %v875
        %v1026 = vunpack.c.h.b16 %v875
        %v1027 = vunpack.c.l.b16 %v876
        %v1028 = vunpack.c.h.b16 %v876
        %v1029 = vunpack.c.l.b16 %v877
        %v1030 = vunpack.c.h.b16 %v877
        %v1031 = vunpack.c.l.b16 %v878
        %v1032 = vunpack.c.h.b16 %v878
        %v1033 = vunpack.c.l.b16 %v879
        %v1034 = vunpack.c.h.b16 %v879
        %v1035 = vunpack.c.l.b16 %v880
        %v1036 = vunpack.c.h.b16 %v880
        %v1037 = vunpack.c.l.b16 %v881
        %v1038 = vunpack.c.h.b16 %v881
        %v1039 = vunpack.c.l.b16 %v882
        %v1040 = vunpack.c.h.b16 %v882
        %v1041 = vunpack.c.l.b16 %v883
        %v1042 = vunpack.c.h.b16 %v883
        %v1043 = vunpack.c.l.b16 %v884
        %v1044 = vunpack.c.h.b16 %v884
        %v1045 = vunpack.c.l.b16 %v885
        %v1046 = vunpack.c.h.b16 %v885
        %v1047 = vunpack.c.l.b16 %v886
        %v1048 = vunpack.c.h.b16 %v886
        %v1049 = vunpack.c.l.b16 %v887
        %v1050 = vunpack.c.h.b16 %v887
        %v1051 = vunpack.c.l.b16 %v888
        %v1052 = vunpack.c.h.b16 %v888
        %v1053 = vunpack.c.l.b16 %v889
        %v1054 = vunpack.c.h.b16 %v889
        %v1055 = vunpack.c.l.b16 %v890
        %v1056 = vunpack.c.h.b16 %v890
        %v1057 = vunpack.c.l.b16 %v891
        %v1058 = vunpack.c.h.b16 %v891
        %v1059 = vunpack.c.l.b16 %v892
        %v1060 = vunpack.c.h.b16 %v892
        %v1061 = vunpack.c.l.b16 %v893
        %v1062 = vunpack.c.h.b16 %v893
        %v1063 = vunpack.c.l.b16 %v894
        %v1064 = vunpack.c.h.b16 %v894
        %v1065 = vunpack.c.l.b16 %v895
        %v1066 = vunpack.c.h.b16 %v895
        %v1067 = vunpack.c.l.b16 %v896
        %v1068 = vunpack.c.h.b16 %v896
        %v1069 = vunpack.c.l.b16 %v897
        %v1070 = vunpack.c.h.b16 %v897
        %v1071 = vunpack.c.l.b16 %v898
        %v1072 = vunpack.c.h.b16 %v898
        %v1073 = vunpack.c.l.b16 %v899
        %v1074 = vunpack.c.h.b16 %v899
        %v1075 = vunpack.c.l.b16 %v900
        %v1076 = vunpack.c.h.b16 %v900
        %v1077 = vunpack.c.l.b16 %v901
        %v1078 = vunpack.c.h.b16 %v901
        %v1079 = vunpack.c.l.b16 %v902
        %v1080 = vunpack.c.h.b16 %v902
        %v1081 = vunpack.c.l.b16 %v903
        %v1082 = vunpack.c.h.b16 %v903
        %v1083 = vunpack.c.l.b16 %v904
        %v1084 = vunpack.c.h.b16 %v904
        %v1085 = vunpack.c.l.b16 %v905
        %v1086 = vunpack.c.h.b16 %v905
        %v1087 = vunpack.c.l.b16 %v906
        %v1088 = vunpack.c.h.b16 %v906
        %v1089 = vunpack.c.l.b16 %v907
        %v1090 = vunpack.c.h.b16 %v907
        %v1091 = vunpack.c.l.b16 %v908
        %v1092 = vunpack.c.h.b16 %v908
        %v1093 = vunpack.c.l.b16 %v909
        %v1094 = vunpack.c.h.b16 %v909
        %v1095 = vunpack.c.l.b16 %v910
        %v1096 = vunpack.c.h.b16 %v910
        %v1097 = vunpack.c.l.b16 %v911
        %v1098 = vunpack.c.h.b16 %v911
        %v1099 = vunpack.c.l.b16 %v912
        %v1100 = vunpack.c.h.b16 %v912
        %v1101 = vunpack.c.l.b16 %v913
        %v1102 = vunpack.c.h.b16 %v913
        %v1103 = vunpack.c.l.b16 %v914
        %v1104 = vunpack.c.h.b16 %v914
        %v1105 = vunpack.c.l.b16 %v915
        %v1106 = vunpack.c.h.b16 %v915
        %v1107 = vunpack.c.l.b16 %v916
        %v1108 = vunpack.c.h.b16 %v916
        %v1109 = vunpack.c.l.b16 %v917
        %v1110 = vunpack.c.h.b16 %v917
        %v1111 = vunpack.c.l.b16 %v918
        %v1112 = vunpack.c.h.b16 %v918
        %v1113 = vunpack.c.l.b16 %v919
        %v1114 = vunpack.c.h.b16 %v919
        %v1115 = vunpack.c.l.b16 %v920
        %v1116 = vunpack.c.h.b16 %v920
        %v1117 = vunpack.c.l.b16 %v921
        %v1118 = vunpack.c.h.b16 %v921
        %v1119 = vunpack.c.l.b16 %v922
        %v1120 = vunpack.c.h.b16 %v922
        %v1121 = vunpack.c.l.b16 %v923
        %v1122 = vunpack.c.h.b16 %v923
        %v1123 = vunpack.c.l.b16 %v924
        %v1124 = vunpack.c.h.b16 %v924
        %v1125 = vunpack.c.l.b16 %v925
        %v1126 = vunpack.c.h.b16 %v925
        %v1127 = vunpack.c.l.b16 %v926
        %v1128 = vunpack.c.h.b16 %v926
        %v1129 = vunpack.c.l.b16 %v927
        %v1130 = vunpack.c.h.b16 %v927
        %v1131 = vunpack.c.l.b16 %v928
        %v1132 = vunpack.c.h.b16 %v928
        %v1133 = vunpack.c.l.b16 %v929
        %v1134 = vunpack.c.h.b16 %v929
        %v1135 = vunpack.c.l.b16 %v930
        %v1136 = vunpack.c.h.b16 %v930
        %v1137 = vunpack.c.l.b16 %v931
        %v1138 = vunpack.c.h.b16 %v931
        %v1139 = vunpack.c.l.b16 %v932
        %v1140 = vunpack.c.h.b16 %v932
        %v1141 = vunpack.c.l.b16 %v933
        %v1142 = vunpack.c.h.b16 %v933
        %v1143 = vunpack.c.l.b16 %v934
        %v1144 = vunpack.c.h.b16 %v934
        %v1145 = vpack.c.b16 %v1025, %v1017
        %v1146 = vpack.c.b16 %v1026, %v1018
        %v1147 = vpack.c.b16 %v1027, %v1019
        %v1148 = vpack.c.b16 %v1028, %v1020
        %v1149 = vpack.c.b16 %v1029, %v1021
        %v1150 = vpack.c.b16 %v1030, %v1022
        %v1151 = vpack.c.b16 %v1031, %v1023
        %v1152 = vpack.c.b16 %v1032, %v1024
        %v1153 = vpack.c.b16 %v1041, %v1033
        %v1154 = vpack.c.b16 %v1042, %v1034
        %v1155 = vpack.c.b16 %v1043, %v1035
        %v1156 = vpack.c.b16 %v1044, %v1036
        %v1157 = vpack.c.b16 %v1045, %v1037
        %v1158 = vpack.c.b16 %v1046, %v1038
        %v1159 = vpack.c.b16 %v1047, %v1039
        %v1160 = vpack.c.b16 %v1048, %v1040
        %v1161 = vpack.c.b16 %v1057, %v1049
        %v1162 = vpack.c.b16 %v1058, %v1050
        %v1163 = vpack.c.b16 %v1059, %v1051
        %v1164 = vpack.c.b16 %v1060, %v1052
        %v1165 = vpack.c.b16 %v1061, %v1053
        %v1166 = vpack.c.b16 %v1062, %v1054
        %v1167 = vpack.c.b16 %v1063, %v1055
        %v1168 = vpack.c.b16 %v1064, %v1056
        %v1169 = vpack.c.b16 %v1073, %v1065
        %v1170 = vpack.c.b16 %v1074, %v1066
        %v1171 = vpack.c.b16 %v1075, %v1067
        %v1172 = vpack.c.b16 %v1076, %v1068
        %v1173 = vpack.c.b16 %v1077, %v1069
        %v1174 = vpack.c.b16 %v1078, %v1070
        %v1175 = vpack.c.b16 %v1079, %v1071
        %v1176 = vpack.c.b16 %v1080, %v1072
        %v1177 = vpack.c.b16 %v1089, %v1081
        %v1178 = vpack.c.b16 %v1090, %v1082
        %v1179 = vpack.c.b16 %v1091, %v1083
        %v1180 = vpack.c.b16 %v1092, %v1084
        %v1181 = vpack.c.b16 %v1093, %v1085
        %v1182 = vpack.c.b16 %v1094, %v1086
        %v1183 = vpack.c.b16 %v1095, %v1087
        %v1184 = vpack.c.b16 %v1096, %v1088
        %v1185 = vpack.c.b16 %v1105, %v1097
        %v1186 = vpack.c.b16 %v1106, %v1098
        %v1187 = vpack.c.b16 %v1107, %v1099
        %v1188 = vpack.c.b16 %v1108, %v1100
        %v1189 = vpack.c.b16 %v1109, %v1101
        %v1190 = vpack.c.b16 %v1110, %v1102
        %v1191 = vpack.c.b16 %v1111, %v1103
        %v1192 = vpack.c.b16 %v1112, %v1104
        %v1193 = vpack.c.b16 %v1121, %v1113
        %v1194 = vpack.c.b16 %v1122, %v1114
        %v1195 = vpack.c.b16 %v1123, %v1115
        %v1196 = vpack.c.b16 %v1124, %v1116
        %v1197 = vpack.c.b16 %v1125, %v1117
        %v1198 = vpack.c.b16 %v1126, %v1118
        %v1199 = vpack.c.b16 %v1127, %v1119
        %v1200 = vpack.c.b16 %v1128, %v1120
        %v1201 = vpack.c.b16 %v1137, %v1129
        %v1202 = vpack.c.b16 %v1138, %v1130
        %v1203 = vpack.c.b16 %v1139, %v1131
        %v1204 = vpack.c.b16 %v1140, %v1132
        %v1205 = vpack.c.b16 %v1141, %v1133
        %v1206 = vpack.c.b16 %v1142, %v1134
        %v1207 = vpack.c.b16 %v1143, %v1135
        %v1208 = vpack.c.b16 %v1144, %v1136
        %1273 = vmatpush.bf16.msra.mxu0 %v1201
        %1274 = vmatpush.bf16.msra.mxu0 %v1193
        %1275 = vmatpush.bf16.msra.mxu0 %v1185
        %1276 = vmatpush.bf16.msra.mxu0 %v1177
        %1277 = vmatpush.bf16.msra.mxu0 %v1169
        %1278 = vmatpush.bf16.msra.mxu0 %v1161
        %1279 = vmatpush.bf16.msra.mxu0 %v1153
        %1280 = vmatpush.bf16.msra.mxu0 %v1145
        %1281 = vmatmul.bf16.gmra.mxu0 %v855
        %v1282 = vpop.f32.mrf.mxu0
        %v1283 = vadd.f32 %v937, %v1282
        %v1284 = vpop.f32.mrf.mxu0
        %v1285 = vadd.f32 %v937, %v1284
        %1286 = vmatmul.bf16.gmra.mxu0 %v856
        %v1287 = vpop.f32.mrf.mxu0
        %v1288 = vadd.f32 %v937, %v1287
        %v1289 = vpop.f32.mrf.mxu0
        %v1290 = vadd.f32 %v937, %v1289
        %1291 = vmatmul.bf16.gmra.mxu0 %v857
        %v1292 = vpop.f32.mrf.mxu0
        %v1293 = vadd.f32 %v937, %v1292
        %v1294 = vpop.f32.mrf.mxu0
        %v1295 = vadd.f32 %v937, %v1294
        %1296 = vmatmul.bf16.gmra.mxu0 %v858
        %v1297 = vpop.f32.mrf.mxu0
        %v1298 = vadd.f32 %v937, %v1297
        %v1299 = vpop.f32.mrf.mxu0
        %v1300 = vadd.f32 %v937, %v1299
        %1301 = vmatmul.bf16.gmra.mxu0 %v859
        %v1302 = vpop.f32.mrf.mxu0
        %v1303 = vadd.f32 %v937, %v1302
        %v1304 = vpop.f32.mrf.mxu0
        %v1305 = vadd.f32 %v937, %v1304
        %1306 = vmatmul.bf16.gmra.mxu0 %v860
        %v1307 = vpop.f32.mrf.mxu0
        %v1308 = vadd.f32 %v937, %v1307
        %v1309 = vpop.f32.mrf.mxu0
        %v1310 = vadd.f32 %v937, %v1309
        %1311 = vmatmul.bf16.gmra.mxu0 %v861
        %v1312 = vpop.f32.mrf.mxu0
        %v1313 = vadd.f32 %v937, %v1312
        %v1314 = vpop.f32.mrf.mxu0
        %v1315 = vadd.f32 %v937, %v1314
        %1316 = vmatmul.bf16.gmra.mxu0 %v862
        %v1317 = vpop.f32.mrf.mxu0
        %v1318 = vadd.f32 %v937, %v1317
        %v1319 = vpop.f32.mrf.mxu0
        %v1320 = vadd.f32 %v937, %v1319
        %1321 = vmatmul.bf16.gmra.mxu0 %v863
        %v1322 = vpop.f32.mrf.mxu0
        %v1323 = vadd.f32 %v937, %v1322
        %v1324 = vpop.f32.mrf.mxu0
        %v1325 = vadd.f32 %v937, %v1324
        %1326 = vmatmul.bf16.gmra.mxu0 %v864
        %v1327 = vpop.f32.mrf.mxu0
        %v1328 = vadd.f32 %v937, %v1327
        %v1329 = vpop.f32.mrf.mxu0
        %v1330 = vadd.f32 %v937, %v1329
        %1331 = vmatmul.bf16.gmra.mxu0 %v865
        %v1332 = vpop.f32.mrf.mxu0
        %v1333 = vadd.f32 %v937, %v1332
        %v1334 = vpop.f32.mrf.mxu0
        %v1335 = vadd.f32 %v937, %v1334
        %1336 = vmatmul.bf16.gmra.mxu0 %v866
        %v1337 = vpop.f32.mrf.mxu0
        %v1338 = vadd.f32 %v937, %v1337
        %v1339 = vpop.f32.mrf.mxu0
        %v1340 = vadd.f32 %v937, %v1339
        %1341 = vmatmul.bf16.gmra.mxu0 %v867
        %v1342 = vpop.f32.mrf.mxu0
        %v1343 = vadd.f32 %v937, %v1342
        %v1344 = vpop.f32.mrf.mxu0
        %v1345 = vadd.f32 %v937, %v1344
        %1346 = vmatmul.bf16.gmra.mxu0 %v868
        %v1347 = vpop.f32.mrf.mxu0
        %v1348 = vadd.f32 %v937, %v1347
        %v1349 = vpop.f32.mrf.mxu0
        %v1350 = vadd.f32 %v937, %v1349
        %1351 = vmatmul.bf16.gmra.mxu0 %v869
        %v1352 = vpop.f32.mrf.mxu0
        %v1353 = vadd.f32 %v937, %v1352
        %v1354 = vpop.f32.mrf.mxu0
        %v1355 = vadd.f32 %v937, %v1354
        %1356 = vmatmul.bf16.gmra.mxu0 %v870
        %v1357 = vpop.f32.mrf.mxu0
        %v1358 = vadd.f32 %v937, %v1357
        %v1359 = vpop.f32.mrf.mxu0
        %v1360 = vadd.f32 %v937, %v1359
        %1361 = vdwg.mxu0
        %1362 = vmatpush.bf16.msra.mxu0 %v1202
        %1363 = vmatpush.bf16.msra.mxu0 %v1194
        %1364 = vmatpush.bf16.msra.mxu0 %v1186
        %1365 = vmatpush.bf16.msra.mxu0 %v1178
        %1366 = vmatpush.bf16.msra.mxu0 %v1170
        %1367 = vmatpush.bf16.msra.mxu0 %v1162
        %1368 = vmatpush.bf16.msra.mxu0 %v1154
        %1369 = vmatpush.bf16.msra.mxu0 %v1146
        %1370 = vmatmul.bf16.gmra.mxu0 %v855
        %v1371 = vpop.f32.mrf.mxu0
        %v1372 = vadd.f32 %v938, %v1371
        %v1373 = vpop.f32.mrf.mxu0
        %v1374 = vadd.f32 %v938, %v1373
        %1375 = vmatmul.bf16.gmra.mxu0 %v856
        %v1376 = vpop.f32.mrf.mxu0
        %v1377 = vadd.f32 %v938, %v1376
        %v1378 = vpop.f32.mrf.mxu0
        %v1379 = vadd.f32 %v938, %v1378
        %1380 = vmatmul.bf16.gmra.mxu0 %v857
        %v1381 = vpop.f32.mrf.mxu0
        %v1382 = vadd.f32 %v938, %v1381
        %v1383 = vpop.f32.mrf.mxu0
        %v1384 = vadd.f32 %v938, %v1383
        %1385 = vmatmul.bf16.gmra.mxu0 %v858
        %v1386 = vpop.f32.mrf.mxu0
        %v1387 = vadd.f32 %v938, %v1386
        %v1388 = vpop.f32.mrf.mxu0
        %v1389 = vadd.f32 %v938, %v1388
        %1390 = vmatmul.bf16.gmra.mxu0 %v859
        %v1391 = vpop.f32.mrf.mxu0
        %v1392 = vadd.f32 %v938, %v1391
        %v1393 = vpop.f32.mrf.mxu0
        %v1394 = vadd.f32 %v938, %v1393
        %1395 = vmatmul.bf16.gmra.mxu0 %v860
        %v1396 = vpop.f32.mrf.mxu0
        %v1397 = vadd.f32 %v938, %v1396
        %v1398 = vpop.f32.mrf.mxu0
        %v1399 = vadd.f32 %v938, %v1398
        %1400 = vmatmul.bf16.gmra.mxu0 %v861
        %v1401 = vpop.f32.mrf.mxu0
        %v1402 = vadd.f32 %v938, %v1401
        %v1403 = vpop.f32.mrf.mxu0
        %v1404 = vadd.f32 %v938, %v1403
        %1405 = vmatmul.bf16.gmra.mxu0 %v862
        %v1406 = vpop.f32.mrf.mxu0
        %v1407 = vadd.f32 %v938, %v1406
        %v1408 = vpop.f32.mrf.mxu0
        %v1409 = vadd.f32 %v938, %v1408
        %1410 = vmatmul.bf16.gmra.mxu0 %v863
        %v1411 = vpop.f32.mrf.mxu0
        %v1412 = vadd.f32 %v938, %v1411
        %v1413 = vpop.f32.mrf.mxu0
        %v1414 = vadd.f32 %v938, %v1413
        %1415 = vmatmul.bf16.gmra.mxu0 %v864
        %v1416 = vpop.f32.mrf.mxu0
        %v1417 = vadd.f32 %v938, %v1416
        %v1418 = vpop.f32.mrf.mxu0
        %v1419 = vadd.f32 %v938, %v1418
        %1420 = vmatmul.bf16.gmra.mxu0 %v865
        %v1421 = vpop.f32.mrf.mxu0
        %v1422 = vadd.f32 %v938, %v1421
        %v1423 = vpop.f32.mrf.mxu0
        %v1424 = vadd.f32 %v938, %v1423
        %1425 = vmatmul.bf16.gmra.mxu0 %v866
        %v1426 = vpop.f32.mrf.mxu0
        %v1427 = vadd.f32 %v938, %v1426
        %v1428 = vpop.f32.mrf.mxu0
        %v1429 = vadd.f32 %v938, %v1428
        %1430 = vmatmul.bf16.gmra.mxu0 %v867
        %v1431 = vpop.f32.mrf.mxu0
        %v1432 = vadd.f32 %v938, %v1431
        %v1433 = vpop.f32.mrf.mxu0
        %v1434 = vadd.f32 %v938, %v1433
        %1435 = vmatmul.bf16.gmra.mxu0 %v868
        %v1436 = vpop.f32.mrf.mxu0
        %v1437 = vadd.f32 %v938, %v1436
        %v1438 = vpop.f32.mrf.mxu0
        %v1439 = vadd.f32 %v938, %v1438
        %1440 = vmatmul.bf16.gmra.mxu0 %v869
        %v1441 = vpop.f32.mrf.mxu0
        %v1442 = vadd.f32 %v938, %v1441
        %v1443 = vpop.f32.mrf.mxu0
        %v1444 = vadd.f32 %v938, %v1443
        %1445 = vmatmul.bf16.gmra.mxu0 %v870
        %v1446 = vpop.f32.mrf.mxu0
        %v1447 = vadd.f32 %v938, %v1446
        %v1448 = vpop.f32.mrf.mxu0
        %v1449 = vadd.f32 %v938, %v1448
        %1450 = vdwg.mxu0
        %1451 = vmatpush.bf16.msra.mxu0 %v1203
        %1452 = vmatpush.bf16.msra.mxu0 %v1195
        %1453 = vmatpush.bf16.msra.mxu0 %v1187
        %1454 = vmatpush.bf16.msra.mxu0 %v1179
        %1455 = vmatpush.bf16.msra.mxu0 %v1171
        %1456 = vmatpush.bf16.msra.mxu0 %v1163
        %1457 = vmatpush.bf16.msra.mxu0 %v1155
        %1458 = vmatpush.bf16.msra.mxu0 %v1147
        %1459 = vmatmul.bf16.gmra.mxu0 %v855
        %v1460 = vpop.f32.mrf.mxu0
        %v1461 = vadd.f32 %v939, %v1460
        %v1462 = vpop.f32.mrf.mxu0
        %v1463 = vadd.f32 %v939, %v1462
        %1464 = vmatmul.bf16.gmra.mxu0 %v856
        %v1465 = vpop.f32.mrf.mxu0
        %v1466 = vadd.f32 %v939, %v1465
        %v1467 = vpop.f32.mrf.mxu0
        %v1468 = vadd.f32 %v939, %v1467
        %1469 = vmatmul.bf16.gmra.mxu0 %v857
        %v1470 = vpop.f32.mrf.mxu0
        %v1471 = vadd.f32 %v939, %v1470
        %v1472 = vpop.f32.mrf.mxu0
        %v1473 = vadd.f32 %v939, %v1472
        %1474 = vmatmul.bf16.gmra.mxu0 %v858
        %v1475 = vpop.f32.mrf.mxu0
        %v1476 = vadd.f32 %v939, %v1475
        %v1477 = vpop.f32.mrf.mxu0
        %v1478 = vadd.f32 %v939, %v1477
        %1479 = vmatmul.bf16.gmra.mxu0 %v859
        %v1480 = vpop.f32.mrf.mxu0
        %v1481 = vadd.f32 %v939, %v1480
        %v1482 = vpop.f32.mrf.mxu0
        %v1483 = vadd.f32 %v939, %v1482
        %1484 = vmatmul.bf16.gmra.mxu0 %v860
        %v1485 = vpop.f32.mrf.mxu0
        %v1486 = vadd.f32 %v939, %v1485
        %v1487 = vpop.f32.mrf.mxu0
        %v1488 = vadd.f32 %v939, %v1487
        %1489 = vmatmul.bf16.gmra.mxu0 %v861
        %v1490 = vpop.f32.mrf.mxu0
        %v1491 = vadd.f32 %v939, %v1490
        %v1492 = vpop.f32.mrf.mxu0
        %v1493 = vadd.f32 %v939, %v1492
        %1494 = vmatmul.bf16.gmra.mxu0 %v862
        %v1495 = vpop.f32.mrf.mxu0
        %v1496 = vadd.f32 %v939, %v1495
        %v1497 = vpop.f32.mrf.mxu0
        %v1498 = vadd.f32 %v939, %v1497
        %1499 = vmatmul.bf16.gmra.mxu0 %v863
        %v1500 = vpop.f32.mrf.mxu0
        %v1501 = vadd.f32 %v939, %v1500
        %v1502 = vpop.f32.mrf.mxu0
        %v1503 = vadd.f32 %v939, %v1502
        %1504 = vmatmul.bf16.gmra.mxu0 %v864
        %v1505 = vpop.f32.mrf.mxu0
        %v1506 = vadd.f32 %v939, %v1505
        %v1507 = vpop.f32.mrf.mxu0
        %v1508 = vadd.f32 %v939, %v1507
        %1509 = vmatmul.bf16.gmra.mxu0 %v865
        %v1510 = vpop.f32.mrf.mxu0
        %v1511 = vadd.f32 %v939, %v1510
        %v1512 = vpop.f32.mrf.mxu0
        %v1513 = vadd.f32 %v939, %v1512
        %1514 = vmatmul.bf16.gmra.mxu0 %v866
        %v1515 = vpop.f32.mrf.mxu0
        %v1516 = vadd.f32 %v939, %v1515
        %v1517 = vpop.f32.mrf.mxu0
        %v1518 = vadd.f32 %v939, %v1517
        %1519 = vmatmul.bf16.gmra.mxu0 %v867
        %v1520 = vpop.f32.mrf.mxu0
        %v1521 = vadd.f32 %v939, %v1520
        %v1522 = vpop.f32.mrf.mxu0
        %v1523 = vadd.f32 %v939, %v1522
        %1524 = vmatmul.bf16.gmra.mxu0 %v868
        %v1525 = vpop.f32.mrf.mxu0
        %v1526 = vadd.f32 %v939, %v1525
        %v1527 = vpop.f32.mrf.mxu0
        %v1528 = vadd.f32 %v939, %v1527
        %1529 = vmatmul.bf16.gmra.mxu0 %v869
        %v1530 = vpop.f32.mrf.mxu0
        %v1531 = vadd.f32 %v939, %v1530
        %v1532 = vpop.f32.mrf.mxu0
        %v1533 = vadd.f32 %v939, %v1532
        %1534 = vmatmul.bf16.gmra.mxu0 %v870
        %v1535 = vpop.f32.mrf.mxu0
        %v1536 = vadd.f32 %v939, %v1535
        %v1537 = vpop.f32.mrf.mxu0
        %v1538 = vadd.f32 %v939, %v1537
        %1539 = vdwg.mxu0
        %1540 = vmatpush.bf16.msra.mxu0 %v1204
        %1541 = vmatpush.bf16.msra.mxu0 %v1196
        %1542 = vmatpush.bf16.msra.mxu0 %v1188
        %1543 = vmatpush.bf16.msra.mxu0 %v1180
        %1544 = vmatpush.bf16.msra.mxu0 %v1172
        %1545 = vmatpush.bf16.msra.mxu0 %v1164
        %1546 = vmatpush.bf16.msra.mxu0 %v1156
        %1547 = vmatpush.bf16.msra.mxu0 %v1148
        %1548 = vmatmul.bf16.gmra.mxu0 %v855
        %v1549 = vpop.f32.mrf.mxu0
        %v1550 = vadd.f32 %v940, %v1549
        %v1551 = vpop.f32.mrf.mxu0
        %v1552 = vadd.f32 %v940, %v1551
        %1553 = vmatmul.bf16.gmra.mxu0 %v856
        %v1554 = vpop.f32.mrf.mxu0
        %v1555 = vadd.f32 %v940, %v1554
        %v1556 = vpop.f32.mrf.mxu0
        %v1557 = vadd.f32 %v940, %v1556
        %1558 = vmatmul.bf16.gmra.mxu0 %v857
        %v1559 = vpop.f32.mrf.mxu0
        %v1560 = vadd.f32 %v940, %v1559
        %v1561 = vpop.f32.mrf.mxu0
        %v1562 = vadd.f32 %v940, %v1561
        %1563 = vmatmul.bf16.gmra.mxu0 %v858
        %v1564 = vpop.f32.mrf.mxu0
        %v1565 = vadd.f32 %v940, %v1564
        %v1566 = vpop.f32.mrf.mxu0
        %v1567 = vadd.f32 %v940, %v1566
        %1568 = vmatmul.bf16.gmra.mxu0 %v859
        %v1569 = vpop.f32.mrf.mxu0
        %v1570 = vadd.f32 %v940, %v1569
        %v1571 = vpop.f32.mrf.mxu0
        %v1572 = vadd.f32 %v940, %v1571
        %1573 = vmatmul.bf16.gmra.mxu0 %v860
        %v1574 = vpop.f32.mrf.mxu0
        %v1575 = vadd.f32 %v940, %v1574
        %v1576 = vpop.f32.mrf.mxu0
        %v1577 = vadd.f32 %v940, %v1576
        %1578 = vmatmul.bf16.gmra.mxu0 %v861
        %v1579 = vpop.f32.mrf.mxu0
        %v1580 = vadd.f32 %v940, %v1579
        %v1581 = vpop.f32.mrf.mxu0
        %v1582 = vadd.f32 %v940, %v1581
        %1583 = vmatmul.bf16.gmra.mxu0 %v862
        %v1584 = vpop.f32.mrf.mxu0
        %v1585 = vadd.f32 %v940, %v1584
        %v1586 = vpop.f32.mrf.mxu0
        %v1587 = vadd.f32 %v940, %v1586
        %1588 = vmatmul.bf16.gmra.mxu0 %v863
        %v1589 = vpop.f32.mrf.mxu0
        %v1590 = vadd.f32 %v940, %v1589
        %v1591 = vpop.f32.mrf.mxu0
        %v1592 = vadd.f32 %v940, %v1591
        %1593 = vmatmul.bf16.gmra.mxu0 %v864
        %v1594 = vpop.f32.mrf.mxu0
        %v1595 = vadd.f32 %v940, %v1594
        %v1596 = vpop.f32.mrf.mxu0
        %v1597 = vadd.f32 %v940, %v1596
        %1598 = vmatmul.bf16.gmra.mxu0 %v865
        %v1599 = vpop.f32.mrf.mxu0
        %v1600 = vadd.f32 %v940, %v1599
        %v1601 = vpop.f32.mrf.mxu0
        %v1602 = vadd.f32 %v940, %v1601
        %1603 = vmatmul.bf16.gmra.mxu0 %v866
        %v1604 = vpop.f32.mrf.mxu0
        %v1605 = vadd.f32 %v940, %v1604
        %v1606 = vpop.f32.mrf.mxu0
        %v1607 = vadd.f32 %v940, %v1606
        %1608 = vmatmul.bf16.gmra.mxu0 %v867
        %v1609 = vpop.f32.mrf.mxu0
        %v1610 = vadd.f32 %v940, %v1609
        %v1611 = vpop.f32.mrf.mxu0
        %v1612 = vadd.f32 %v940, %v1611
        %1613 = vmatmul.bf16.gmra.mxu0 %v868
        %v1614 = vpop.f32.mrf.mxu0
        %v1615 = vadd.f32 %v940, %v1614
        %v1616 = vpop.f32.mrf.mxu0
        %v1617 = vadd.f32 %v940, %v1616
        %1618 = vmatmul.bf16.gmra.mxu0 %v869
        %v1619 = vpop.f32.mrf.mxu0
        %v1620 = vadd.f32 %v940, %v1619
        %v1621 = vpop.f32.mrf.mxu0
        %v1622 = vadd.f32 %v940, %v1621
        %1623 = vmatmul.bf16.gmra.mxu0 %v870
        %v1624 = vpop.f32.mrf.mxu0
        %v1625 = vadd.f32 %v940, %v1624
        %v1626 = vpop.f32.mrf.mxu0
        %v1627 = vadd.f32 %v940, %v1626
        %1628 = vdwg.mxu0
        %1629 = vmatpush.bf16.msra.mxu0 %v1205
        %1630 = vmatpush.bf16.msra.mxu0 %v1197
        %1631 = vmatpush.bf16.msra.mxu0 %v1189
        %1632 = vmatpush.bf16.msra.mxu0 %v1181
        %1633 = vmatpush.bf16.msra.mxu0 %v1173
        %1634 = vmatpush.bf16.msra.mxu0 %v1165
        %1635 = vmatpush.bf16.msra.mxu0 %v1157
        %1636 = vmatpush.bf16.msra.mxu0 %v1149
        %1637 = vmatmul.bf16.gmra.mxu0 %v855
        %v1638 = vpop.f32.mrf.mxu0
        %v1639 = vadd.f32 %v941, %v1638
        %v1640 = vpop.f32.mrf.mxu0
        %v1641 = vadd.f32 %v941, %v1640
        %1642 = vmatmul.bf16.gmra.mxu0 %v856
        %v1643 = vpop.f32.mrf.mxu0
        %v1644 = vadd.f32 %v941, %v1643
        %v1645 = vpop.f32.mrf.mxu0
        %v1646 = vadd.f32 %v941, %v1645
        %1647 = vmatmul.bf16.gmra.mxu0 %v857
        %v1648 = vpop.f32.mrf.mxu0
        %v1649 = vadd.f32 %v941, %v1648
        %v1650 = vpop.f32.mrf.mxu0
        %v1651 = vadd.f32 %v941, %v1650
        %1652 = vmatmul.bf16.gmra.mxu0 %v858
        %v1653 = vpop.f32.mrf.mxu0
        %v1654 = vadd.f32 %v941, %v1653
        %v1655 = vpop.f32.mrf.mxu0
        %v1656 = vadd.f32 %v941, %v1655
        %1657 = vmatmul.bf16.gmra.mxu0 %v859
        %v1658 = vpop.f32.mrf.mxu0
        %v1659 = vadd.f32 %v941, %v1658
        %v1660 = vpop.f32.mrf.mxu0
        %v1661 = vadd.f32 %v941, %v1660
        %1662 = vmatmul.bf16.gmra.mxu0 %v860
        %v1663 = vpop.f32.mrf.mxu0
        %v1664 = vadd.f32 %v941, %v1663
        %v1665 = vpop.f32.mrf.mxu0
        %v1666 = vadd.f32 %v941, %v1665
        %1667 = vmatmul.bf16.gmra.mxu0 %v861
        %v1668 = vpop.f32.mrf.mxu0
        %v1669 = vadd.f32 %v941, %v1668
        %v1670 = vpop.f32.mrf.mxu0
        %v1671 = vadd.f32 %v941, %v1670
        %1672 = vmatmul.bf16.gmra.mxu0 %v862
        %v1673 = vpop.f32.mrf.mxu0
        %v1674 = vadd.f32 %v941, %v1673
        %v1675 = vpop.f32.mrf.mxu0
        %v1676 = vadd.f32 %v941, %v1675
        %1677 = vmatmul.bf16.gmra.mxu0 %v863
        %v1678 = vpop.f32.mrf.mxu0
        %v1679 = vadd.f32 %v941, %v1678
        %v1680 = vpop.f32.mrf.mxu0
        %v1681 = vadd.f32 %v941, %v1680
        %1682 = vmatmul.bf16.gmra.mxu0 %v864
        %v1683 = vpop.f32.mrf.mxu0
        %v1684 = vadd.f32 %v941, %v1683
        %v1685 = vpop.f32.mrf.mxu0
        %v1686 = vadd.f32 %v941, %v1685
        %1687 = vmatmul.bf16.gmra.mxu0 %v865
        %v1688 = vpop.f32.mrf.mxu0
        %v1689 = vadd.f32 %v941, %v1688
        %v1690 = vpop.f32.mrf.mxu0
        %v1691 = vadd.f32 %v941, %v1690
        %1692 = vmatmul.bf16.gmra.mxu0 %v866
        %v1693 = vpop.f32.mrf.mxu0
        %v1694 = vadd.f32 %v941, %v1693
        %v1695 = vpop.f32.mrf.mxu0
        %v1696 = vadd.f32 %v941, %v1695
        %1697 = vmatmul.bf16.gmra.mxu0 %v867
        %v1698 = vpop.f32.mrf.mxu0
        %v1699 = vadd.f32 %v941, %v1698
        %v1700 = vpop.f32.mrf.mxu0
        %v1701 = vadd.f32 %v941, %v1700
        %1702 = vmatmul.bf16.gmra.mxu0 %v868
        %v1703 = vpop.f32.mrf.mxu0
        %v1704 = vadd.f32 %v941, %v1703
        %v1705 = vpop.f32.mrf.mxu0
        %v1706 = vadd.f32 %v941, %v1705
        %1707 = vmatmul.bf16.gmra.mxu0 %v869
        %v1708 = vpop.f32.mrf.mxu0
        %v1709 = vadd.f32 %v941, %v1708
        %v1710 = vpop.f32.mrf.mxu0
        %v1711 = vadd.f32 %v941, %v1710
        %1712 = vmatmul.bf16.gmra.mxu0 %v870
        %v1713 = vpop.f32.mrf.mxu0
        %v1714 = vadd.f32 %v941, %v1713
        %v1715 = vpop.f32.mrf.mxu0
        %v1716 = vadd.f32 %v941, %v1715
        %1717 = vdwg.mxu0
        %1718 = vmatpush.bf16.msra.mxu0 %v1206
        %1719 = vmatpush.bf16.msra.mxu0 %v1198
        %1720 = vmatpush.bf16.msra.mxu0 %v1190
        %1721 = vmatpush.bf16.msra.mxu0 %v1182
        %1722 = vmatpush.bf16.msra.mxu0 %v1174
        %1723 = vmatpush.bf16.msra.mxu0 %v1166
        %1724 = vmatpush.bf16.msra.mxu0 %v1158
        %1725 = vmatpush.bf16.msra.mxu0 %v1150
        %1726 = vmatmul.bf16.gmra.mxu0 %v855
        %v1727 = vpop.f32.mrf.mxu0
        %v1728 = vadd.f32 %v942, %v1727
        %v1729 = vpop.f32.mrf.mxu0
        %v1730 = vadd.f32 %v942, %v1729
        %1731 = vmatmul.bf16.gmra.mxu0 %v856
        %v1732 = vpop.f32.mrf.mxu0
        %v1733 = vadd.f32 %v942, %v1732
        %v1734 = vpop.f32.mrf.mxu0
        %v1735 = vadd.f32 %v942, %v1734
        %1736 = vmatmul.bf16.gmra.mxu0 %v857
        %v1737 = vpop.f32.mrf.mxu0
        %v1738 = vadd.f32 %v942, %v1737
        %v1739 = vpop.f32.mrf.mxu0
        %v1740 = vadd.f32 %v942, %v1739
        %1741 = vmatmul.bf16.gmra.mxu0 %v858
        %v1742 = vpop.f32.mrf.mxu0
        %v1743 = vadd.f32 %v942, %v1742
        %v1744 = vpop.f32.mrf.mxu0
        %v1745 = vadd.f32 %v942, %v1744
        %1746 = vmatmul.bf16.gmra.mxu0 %v859
        %v1747 = vpop.f32.mrf.mxu0
        %v1748 = vadd.f32 %v942, %v1747
        %v1749 = vpop.f32.mrf.mxu0
        %v1750 = vadd.f32 %v942, %v1749
        %1751 = vmatmul.bf16.gmra.mxu0 %v860
        %v1752 = vpop.f32.mrf.mxu0
        %v1753 = vadd.f32 %v942, %v1752
        %v1754 = vpop.f32.mrf.mxu0
        %v1755 = vadd.f32 %v942, %v1754
        %1756 = vmatmul.bf16.gmra.mxu0 %v861
        %v1757 = vpop.f32.mrf.mxu0
        %v1758 = vadd.f32 %v942, %v1757
        %v1759 = vpop.f32.mrf.mxu0
        %v1760 = vadd.f32 %v942, %v1759
        %1761 = vmatmul.bf16.gmra.mxu0 %v862
        %v1762 = vpop.f32.mrf.mxu0
        %v1763 = vadd.f32 %v942, %v1762
        %v1764 = vpop.f32.mrf.mxu0
        %v1765 = vadd.f32 %v942, %v1764
        %1766 = vmatmul.bf16.gmra.mxu0 %v863
        %v1767 = vpop.f32.mrf.mxu0
        %v1768 = vadd.f32 %v942, %v1767
        %v1769 = vpop.f32.mrf.mxu0
        %v1770 = vadd.f32 %v942, %v1769
        %1771 = vmatmul.bf16.gmra.mxu0 %v864
        %v1772 = vpop.f32.mrf.mxu0
        %v1773 = vadd.f32 %v942, %v1772
        %v1774 = vpop.f32.mrf.mxu0
        %v1775 = vadd.f32 %v942, %v1774
        %1776 = vmatmul.bf16.gmra.mxu0 %v865
        %v1777 = vpop.f32.mrf.mxu0
        %v1778 = vadd.f32 %v942, %v1777
        %v1779 = vpop.f32.mrf.mxu0
        %v1780 = vadd.f32 %v942, %v1779
        %1781 = vmatmul.bf16.gmra.mxu0 %v866
        %v1782 = vpop.f32.mrf.mxu0
        %v1783 = vadd.f32 %v942, %v1782
        %v1784 = vpop.f32.mrf.mxu0
        %v1785 = vadd.f32 %v942, %v1784
        %1786 = vmatmul.bf16.gmra.mxu0 %v867
        %v1787 = vpop.f32.mrf.mxu0
        %v1788 = vadd.f32 %v942, %v1787
        %v1789 = vpop.f32.mrf.mxu0
        %v1790 = vadd.f32 %v942, %v1789
        %1791 = vmatmul.bf16.gmra.mxu0 %v868
        %v1792 = vpop.f32.mrf.mxu0
        %v1793 = vadd.f32 %v942, %v1792
        %v1794 = vpop.f32.mrf.mxu0
        %v1795 = vadd.f32 %v942, %v1794
        %1796 = vmatmul.bf16.gmra.mxu0 %v869
        %v1797 = vpop.f32.mrf.mxu0
        %v1798 = vadd.f32 %v942, %v1797
        %v1799 = vpop.f32.mrf.mxu0
        %v1800 = vadd.f32 %v942, %v1799
        %1801 = vmatmul.bf16.gmra.mxu0 %v870
        %v1802 = vpop.f32.mrf.mxu0
        %v1803 = vadd.f32 %v942, %v1802
        %v1804 = vpop.f32.mrf.mxu0
        %v1805 = vadd.f32 %v942, %v1804
        %1806 = vdwg.mxu0
        %1807 = vmatpush.bf16.msra.mxu0 %v1207
        %1808 = vmatpush.bf16.msra.mxu0 %v1199
        %1809 = vmatpush.bf16.msra.mxu0 %v1191
        %1810 = vmatpush.bf16.msra.mxu0 %v1183
        %1811 = vmatpush.bf16.msra.mxu0 %v1175
        %1812 = vmatpush.bf16.msra.mxu0 %v1167
        %1813 = vmatpush.bf16.msra.mxu0 %v1159
        %1814 = vmatpush.bf16.msra.mxu0 %v1151
        %1815 = vmatmul.bf16.gmra.mxu0 %v855
        %v1816 = vpop.f32.mrf.mxu0
        %v1817 = vadd.f32 %v943, %v1816
        %v1818 = vpop.f32.mrf.mxu0
        %v1819 = vadd.f32 %v943, %v1818
        %1820 = vmatmul.bf16.gmra.mxu0 %v856
        %v1821 = vpop.f32.mrf.mxu0
        %v1822 = vadd.f32 %v943, %v1821
        %v1823 = vpop.f32.mrf.mxu0
        %v1824 = vadd.f32 %v943, %v1823
        %1825 = vmatmul.bf16.gmra.mxu0 %v857
        %v1826 = vpop.f32.mrf.mxu0
        %v1827 = vadd.f32 %v943, %v1826
        %v1828 = vpop.f32.mrf.mxu0
        %v1829 = vadd.f32 %v943, %v1828
        %1830 = vmatmul.bf16.gmra.mxu0 %v858
        %v1831 = vpop.f32.mrf.mxu0
        %v1832 = vadd.f32 %v943, %v1831
        %v1833 = vpop.f32.mrf.mxu0
        %v1834 = vadd.f32 %v943, %v1833
        %1835 = vmatmul.bf16.gmra.mxu0 %v859
        %v1836 = vpop.f32.mrf.mxu0
        %v1837 = vadd.f32 %v943, %v1836
        %v1838 = vpop.f32.mrf.mxu0
        %v1839 = vadd.f32 %v943, %v1838
        %1840 = vmatmul.bf16.gmra.mxu0 %v860
        %v1841 = vpop.f32.mrf.mxu0
        %v1842 = vadd.f32 %v943, %v1841
        %v1843 = vpop.f32.mrf.mxu0
        %v1844 = vadd.f32 %v943, %v1843
        %1845 = vmatmul.bf16.gmra.mxu0 %v861
        %v1846 = vpop.f32.mrf.mxu0
        %v1847 = vadd.f32 %v943, %v1846
        %v1848 = vpop.f32.mrf.mxu0
        %v1849 = vadd.f32 %v943, %v1848
        %1850 = vmatmul.bf16.gmra.mxu0 %v862
        %v1851 = vpop.f32.mrf.mxu0
        %v1852 = vadd.f32 %v943, %v1851
        %v1853 = vpop.f32.mrf.mxu0
        %v1854 = vadd.f32 %v943, %v1853
        %1855 = vmatmul.bf16.gmra.mxu0 %v863
        %v1856 = vpop.f32.mrf.mxu0
        %v1857 = vadd.f32 %v943, %v1856
        %v1858 = vpop.f32.mrf.mxu0
        %v1859 = vadd.f32 %v943, %v1858
        %1860 = vmatmul.bf16.gmra.mxu0 %v864
        %v1861 = vpop.f32.mrf.mxu0
        %v1862 = vadd.f32 %v943, %v1861
        %v1863 = vpop.f32.mrf.mxu0
        %v1864 = vadd.f32 %v943, %v1863
        %1865 = vmatmul.bf16.gmra.mxu0 %v865
        %v1866 = vpop.f32.mrf.mxu0
        %v1867 = vadd.f32 %v943, %v1866
        %v1868 = vpop.f32.mrf.mxu0
        %v1869 = vadd.f32 %v943, %v1868
        %1870 = vmatmul.bf16.gmra.mxu0 %v866
        %v1871 = vpop.f32.mrf.mxu0
        %v1872 = vadd.f32 %v943, %v1871
        %v1873 = vpop.f32.mrf.mxu0
        %v1874 = vadd.f32 %v943, %v1873
        %1875 = vmatmul.bf16.gmra.mxu0 %v867
        %v1876 = vpop.f32.mrf.mxu0
        %v1877 = vadd.f32 %v943, %v1876
        %v1878 = vpop.f32.mrf.mxu0
        %v1879 = vadd.f32 %v943, %v1878
        %1880 = vmatmul.bf16.gmra.mxu0 %v868
        %v1881 = vpop.f32.mrf.mxu0
        %v1882 = vadd.f32 %v943, %v1881
        %v1883 = vpop.f32.mrf.mxu0
        %v1884 = vadd.f32 %v943, %v1883
        %1885 = vmatmul.bf16.gmra.mxu0 %v869
        %v1886 = vpop.f32.mrf.mxu0
        %v1887 = vadd.f32 %v943, %v1886
        %v1888 = vpop.f32.mrf.mxu0
        %v1889 = vadd.f32 %v943, %v1888
        %1890 = vmatmul.bf16.gmra.mxu0 %v870
        %v1891 = vpop.f32.mrf.mxu0
        %v1892 = vadd.f32 %v943, %v1891
        %v1893 = vpop.f32.mrf.mxu0
        %v1894 = vadd.f32 %v943, %v1893
        %1895 = vdwg.mxu0
        %1896 = vmatpush.bf16.msra.mxu0 %v1208
        %1897 = vmatpush.bf16.msra.mxu0 %v1200
        %1898 = vmatpush.bf16.msra.mxu0 %v1192
        %1899 = vmatpush.bf16.msra.mxu0 %v1184
        %1900 = vmatpush.bf16.msra.mxu0 %v1176
        %1901 = vmatpush.bf16.msra.mxu0 %v1168
        %1902 = vmatpush.bf16.msra.mxu0 %v1160
        %1903 = vmatpush.bf16.msra.mxu0 %v1152
        %1904 = vmatmul.bf16.gmra.mxu0 %v855
        %v1905 = vpop.f32.mrf.mxu0
        %v1906 = vadd.f32 %v944, %v1905
        %v1907 = vpop.f32.mrf.mxu0
        %v1908 = vadd.f32 %v944, %v1907
        %1909 = vmatmul.bf16.gmra.mxu0 %v856
        %v1910 = vpop.f32.mrf.mxu0
        %v1911 = vadd.f32 %v944, %v1910
        %v1912 = vpop.f32.mrf.mxu0
        %v1913 = vadd.f32 %v944, %v1912
        %1914 = vmatmul.bf16.gmra.mxu0 %v857
        %v1915 = vpop.f32.mrf.mxu0
        %v1916 = vadd.f32 %v944, %v1915
        %v1917 = vpop.f32.mrf.mxu0
        %v1918 = vadd.f32 %v944, %v1917
        %1919 = vmatmul.bf16.gmra.mxu0 %v858
        %v1920 = vpop.f32.mrf.mxu0
        %v1921 = vadd.f32 %v944, %v1920
        %v1922 = vpop.f32.mrf.mxu0
        %v1923 = vadd.f32 %v944, %v1922
        %1924 = vmatmul.bf16.gmra.mxu0 %v859
        %v1925 = vpop.f32.mrf.mxu0
        %v1926 = vadd.f32 %v944, %v1925
        %v1927 = vpop.f32.mrf.mxu0
        %v1928 = vadd.f32 %v944, %v1927
        %1929 = vmatmul.bf16.gmra.mxu0 %v860
        %v1930 = vpop.f32.mrf.mxu0
        %v1931 = vadd.f32 %v944, %v1930
        %v1932 = vpop.f32.mrf.mxu0
        %v1933 = vadd.f32 %v944, %v1932
        %1934 = vmatmul.bf16.gmra.mxu0 %v861
        %v1935 = vpop.f32.mrf.mxu0
        %v1936 = vadd.f32 %v944, %v1935
        %v1937 = vpop.f32.mrf.mxu0
        %v1938 = vadd.f32 %v944, %v1937
        %1939 = vmatmul.bf16.gmra.mxu0 %v862
        %v1940 = vpop.f32.mrf.mxu0
        %v1941 = vadd.f32 %v944, %v1940
        %v1942 = vpop.f32.mrf.mxu0
        %v1943 = vadd.f32 %v944, %v1942
        %1944 = vmatmul.bf16.gmra.mxu0 %v863
        %v1945 = vpop.f32.mrf.mxu0
        %v1946 = vadd.f32 %v944, %v1945
        %v1947 = vpop.f32.mrf.mxu0
        %v1948 = vadd.f32 %v944, %v1947
        %1949 = vmatmul.bf16.gmra.mxu0 %v864
        %v1950 = vpop.f32.mrf.mxu0
        %v1951 = vadd.f32 %v944, %v1950
        %v1952 = vpop.f32.mrf.mxu0
        %v1953 = vadd.f32 %v944, %v1952
        %1954 = vmatmul.bf16.gmra.mxu0 %v865
        %v1955 = vpop.f32.mrf.mxu0
        %v1956 = vadd.f32 %v944, %v1955
        %v1957 = vpop.f32.mrf.mxu0
        %v1958 = vadd.f32 %v944, %v1957
        %1959 = vmatmul.bf16.gmra.mxu0 %v866
        %v1960 = vpop.f32.mrf.mxu0
        %v1961 = vadd.f32 %v944, %v1960
        %v1962 = vpop.f32.mrf.mxu0
        %v1963 = vadd.f32 %v944, %v1962
        %1964 = vmatmul.bf16.gmra.mxu0 %v867
        %v1965 = vpop.f32.mrf.mxu0
        %v1966 = vadd.f32 %v944, %v1965
        %v1967 = vpop.f32.mrf.mxu0
        %v1968 = vadd.f32 %v944, %v1967
        %1969 = vmatmul.bf16.gmra.mxu0 %v868
        %v1970 = vpop.f32.mrf.mxu0
        %v1971 = vadd.f32 %v944, %v1970
        %v1972 = vpop.f32.mrf.mxu0
        %v1973 = vadd.f32 %v944, %v1972
        %1974 = vmatmul.bf16.gmra.mxu0 %v869
        %v1975 = vpop.f32.mrf.mxu0
        %v1976 = vadd.f32 %v944, %v1975
        %v1977 = vpop.f32.mrf.mxu0
        %v1978 = vadd.f32 %v944, %v1977
        %1979 = vmatmul.bf16.gmra.mxu0 %v870
        %v1980 = vpop.f32.mrf.mxu0
        %v1981 = vadd.f32 %v944, %v1980
        %v1982 = vpop.f32.mrf.mxu0
        %v1983 = vadd.f32 %v944, %v1982
        %1984 = vdwg.mxu0
        %v1985 = vmax.f32 %v1283, 0.0
        %v1986 = vmax.f32 %v1372, 0.0
        %v1987 = vmax.f32 %v1461, 0.0
        %v1988 = vmax.f32 %v1550, 0.0
        %v1989 = vmax.f32 %v1639, 0.0
        %v1990 = vmax.f32 %v1728, 0.0
        %v1991 = vmax.f32 %v1817, 0.0
        %v1992 = vmax.f32 %v1906, 0.0
        %v1993 = vmax.f32 %v1285, 0.0
        %v1994 = vmax.f32 %v1374, 0.0
        %v1995 = vmax.f32 %v1463, 0.0
        %v1996 = vmax.f32 %v1552, 0.0
        %v1997 = vmax.f32 %v1641, 0.0
        %v1998 = vmax.f32 %v1730, 0.0
        %v1999 = vmax.f32 %v1819, 0.0
        %v2000 = vmax.f32 %v1908, 0.0
        %v2001 = vmax.f32 %v1288, 0.0
        %v2002 = vmax.f32 %v1377, 0.0
        %v2003 = vmax.f32 %v1466, 0.0
        %v2004 = vmax.f32 %v1555, 0.0
        %v2005 = vmax.f32 %v1644, 0.0
        %v2006 = vmax.f32 %v1733, 0.0
        %v2007 = vmax.f32 %v1822, 0.0
        %v2008 = vmax.f32 %v1911, 0.0
        %v2009 = vmax.f32 %v1290, 0.0
        %v2010 = vmax.f32 %v1379, 0.0
        %v2011 = vmax.f32 %v1468, 0.0
        %v2012 = vmax.f32 %v1557, 0.0
        %v2013 = vmax.f32 %v1646, 0.0
        %v2014 = vmax.f32 %v1735, 0.0
        %v2015 = vmax.f32 %v1824, 0.0
        %v2016 = vmax.f32 %v1913, 0.0
        %v2017 = vmax.f32 %v1293, 0.0
        %v2018 = vmax.f32 %v1382, 0.0
        %v2019 = vmax.f32 %v1471, 0.0
        %v2020 = vmax.f32 %v1560, 0.0
        %v2021 = vmax.f32 %v1649, 0.0
        %v2022 = vmax.f32 %v1738, 0.0
        %v2023 = vmax.f32 %v1827, 0.0
        %v2024 = vmax.f32 %v1916, 0.0
        %v2025 = vmax.f32 %v1295, 0.0
        %v2026 = vmax.f32 %v1384, 0.0
        %v2027 = vmax.f32 %v1473, 0.0
        %v2028 = vmax.f32 %v1562, 0.0
        %v2029 = vmax.f32 %v1651, 0.0
        %v2030 = vmax.f32 %v1740, 0.0
        %v2031 = vmax.f32 %v1829, 0.0
        %v2032 = vmax.f32 %v1918, 0.0
        %v2033 = vmax.f32 %v1298, 0.0
        %v2034 = vmax.f32 %v1387, 0.0
        %v2035 = vmax.f32 %v1476, 0.0
        %v2036 = vmax.f32 %v1565, 0.0
        %v2037 = vmax.f32 %v1654, 0.0
        %v2038 = vmax.f32 %v1743, 0.0
        %v2039 = vmax.f32 %v1832, 0.0
        %v2040 = vmax.f32 %v1921, 0.0
        %v2041 = vmax.f32 %v1300, 0.0
        %v2042 = vmax.f32 %v1389, 0.0
        %v2043 = vmax.f32 %v1478, 0.0
        %v2044 = vmax.f32 %v1567, 0.0
        %v2045 = vmax.f32 %v1656, 0.0
        %v2046 = vmax.f32 %v1745, 0.0
        %v2047 = vmax.f32 %v1834, 0.0
        %v2048 = vmax.f32 %v1923, 0.0
        %v2049 = vmax.f32 %v1303, 0.0
        %v2050 = vmax.f32 %v1392, 0.0
        %v2051 = vmax.f32 %v1481, 0.0
        %v2052 = vmax.f32 %v1570, 0.0
        %v2053 = vmax.f32 %v1659, 0.0
        %v2054 = vmax.f32 %v1748, 0.0
        %v2055 = vmax.f32 %v1837, 0.0
        %v2056 = vmax.f32 %v1926, 0.0
        %v2057 = vmax.f32 %v1305, 0.0
        %v2058 = vmax.f32 %v1394, 0.0
        %v2059 = vmax.f32 %v1483, 0.0
        %v2060 = vmax.f32 %v1572, 0.0
        %v2061 = vmax.f32 %v1661, 0.0
        %v2062 = vmax.f32 %v1750, 0.0
        %v2063 = vmax.f32 %v1839, 0.0
        %v2064 = vmax.f32 %v1928, 0.0
        %v2065 = vmax.f32 %v1308, 0.0
        %v2066 = vmax.f32 %v1397, 0.0
        %v2067 = vmax.f32 %v1486, 0.0
        %v2068 = vmax.f32 %v1575, 0.0
        %v2069 = vmax.f32 %v1664, 0.0
        %v2070 = vmax.f32 %v1753, 0.0
        %v2071 = vmax.f32 %v1842, 0.0
        %v2072 = vmax.f32 %v1931, 0.0
        %v2073 = vmax.f32 %v1310, 0.0
        %v2074 = vmax.f32 %v1399, 0.0
        %v2075 = vmax.f32 %v1488, 0.0
        %v2076 = vmax.f32 %v1577, 0.0
        %v2077 = vmax.f32 %v1666, 0.0
        %v2078 = vmax.f32 %v1755, 0.0
        %v2079 = vmax.f32 %v1844, 0.0
        %v2080 = vmax.f32 %v1933, 0.0
        %v2081 = vmax.f32 %v1313, 0.0
        %v2082 = vmax.f32 %v1402, 0.0
        %v2083 = vmax.f32 %v1491, 0.0
        %v2084 = vmax.f32 %v1580, 0.0
        %v2085 = vmax.f32 %v1669, 0.0
        %v2086 = vmax.f32 %v1758, 0.0
        %v2087 = vmax.f32 %v1847, 0.0
        %v2088 = vmax.f32 %v1936, 0.0
        %v2089 = vmax.f32 %v1315, 0.0
        %v2090 = vmax.f32 %v1404, 0.0
        %v2091 = vmax.f32 %v1493, 0.0
        %v2092 = vmax.f32 %v1582, 0.0
        %v2093 = vmax.f32 %v1671, 0.0
        %v2094 = vmax.f32 %v1760, 0.0
        %v2095 = vmax.f32 %v1849, 0.0
        %v2096 = vmax.f32 %v1938, 0.0
        %v2097 = vmax.f32 %v1318, 0.0
        %v2098 = vmax.f32 %v1407, 0.0
        %v2099 = vmax.f32 %v1496, 0.0
        %v2100 = vmax.f32 %v1585, 0.0
        %v2101 = vmax.f32 %v1674, 0.0
        %v2102 = vmax.f32 %v1763, 0.0
        %v2103 = vmax.f32 %v1852, 0.0
        %v2104 = vmax.f32 %v1941, 0.0
        %v2105 = vmax.f32 %v1320, 0.0
        %v2106 = vmax.f32 %v1409, 0.0
        %v2107 = vmax.f32 %v1498, 0.0
        %v2108 = vmax.f32 %v1587, 0.0
        %v2109 = vmax.f32 %v1676, 0.0
        %v2110 = vmax.f32 %v1765, 0.0
        %v2111 = vmax.f32 %v1854, 0.0
        %v2112 = vmax.f32 %v1943, 0.0
        %v2113 = vmax.f32 %v1323, 0.0
        %v2114 = vmax.f32 %v1412, 0.0
        %v2115 = vmax.f32 %v1501, 0.0
        %v2116 = vmax.f32 %v1590, 0.0
        %v2117 = vmax.f32 %v1679, 0.0
        %v2118 = vmax.f32 %v1768, 0.0
        %v2119 = vmax.f32 %v1857, 0.0
        %v2120 = vmax.f32 %v1946, 0.0
        %v2121 = vmax.f32 %v1325, 0.0
        %v2122 = vmax.f32 %v1414, 0.0
        %v2123 = vmax.f32 %v1503, 0.0
        %v2124 = vmax.f32 %v1592, 0.0
        %v2125 = vmax.f32 %v1681, 0.0
        %v2126 = vmax.f32 %v1770, 0.0
        %v2127 = vmax.f32 %v1859, 0.0
        %v2128 = vmax.f32 %v1948, 0.0
        %v2129 = vmax.f32 %v1328, 0.0
        %v2130 = vmax.f32 %v1417, 0.0
        %v2131 = vmax.f32 %v1506, 0.0
        %v2132 = vmax.f32 %v1595, 0.0
        %v2133 = vmax.f32 %v1684, 0.0
        %v2134 = vmax.f32 %v1773, 0.0
        %v2135 = vmax.f32 %v1862, 0.0
        %v2136 = vmax.f32 %v1951, 0.0
        %v2137 = vmax.f32 %v1330, 0.0
        %v2138 = vmax.f32 %v1419, 0.0
        %v2139 = vmax.f32 %v1508, 0.0
        %v2140 = vmax.f32 %v1597, 0.0
        %v2141 = vmax.f32 %v1686, 0.0
        %v2142 = vmax.f32 %v1775, 0.0
        %v2143 = vmax.f32 %v1864, 0.0
        %v2144 = vmax.f32 %v1953, 0.0
        %v2145 = vmax.f32 %v1333, 0.0
        %v2146 = vmax.f32 %v1422, 0.0
        %v2147 = vmax.f32 %v1511, 0.0
        %v2148 = vmax.f32 %v1600, 0.0
        %v2149 = vmax.f32 %v1689, 0.0
        %v2150 = vmax.f32 %v1778, 0.0
        %v2151 = vmax.f32 %v1867, 0.0
        %v2152 = vmax.f32 %v1956, 0.0
        %v2153 = vmax.f32 %v1335, 0.0
        %v2154 = vmax.f32 %v1424, 0.0
        %v2155 = vmax.f32 %v1513, 0.0
        %v2156 = vmax.f32 %v1602, 0.0
        %v2157 = vmax.f32 %v1691, 0.0
        %v2158 = vmax.f32 %v1780, 0.0
        %v2159 = vmax.f32 %v1869, 0.0
        %v2160 = vmax.f32 %v1958, 0.0
        %v2161 = vmax.f32 %v1338, 0.0
        %v2162 = vmax.f32 %v1427, 0.0
        %v2163 = vmax.f32 %v1516, 0.0
        %v2164 = vmax.f32 %v1605, 0.0
        %v2165 = vmax.f32 %v1694, 0.0
        %v2166 = vmax.f32 %v1783, 0.0
        %v2167 = vmax.f32 %v1872, 0.0
        %v2168 = vmax.f32 %v1961, 0.0
        %v2169 = vmax.f32 %v1340, 0.0
        %v2170 = vmax.f32 %v1429, 0.0
        %v2171 = vmax.f32 %v1518, 0.0
        %v2172 = vmax.f32 %v1607, 0.0
        %v2173 = vmax.f32 %v1696, 0.0
        %v2174 = vmax.f32 %v1785, 0.0
        %v2175 = vmax.f32 %v1874, 0.0
        %v2176 = vmax.f32 %v1963, 0.0
        %v2177 = vmax.f32 %v1343, 0.0
        %v2178 = vmax.f32 %v1432, 0.0
        %v2179 = vmax.f32 %v1521, 0.0
        %v2180 = vmax.f32 %v1610, 0.0
        %v2181 = vmax.f32 %v1699, 0.0
        %v2182 = vmax.f32 %v1788, 0.0
        %v2183 = vmax.f32 %v1877, 0.0
        %v2184 = vmax.f32 %v1966, 0.0
        %v2185 = vmax.f32 %v1345, 0.0
        %v2186 = vmax.f32 %v1434, 0.0
        %v2187 = vmax.f32 %v1523, 0.0
        %v2188 = vmax.f32 %v1612, 0.0
        %v2189 = vmax.f32 %v1701, 0.0
        %v2190 = vmax.f32 %v1790, 0.0
        %v2191 = vmax.f32 %v1879, 0.0
        %v2192 = vmax.f32 %v1968, 0.0
        %v2193 = vmax.f32 %v1348, 0.0
        %v2194 = vmax.f32 %v1437, 0.0
        %v2195 = vmax.f32 %v1526, 0.0
        %v2196 = vmax.f32 %v1615, 0.0
        %v2197 = vmax.f32 %v1704, 0.0
        %v2198 = vmax.f32 %v1793, 0.0
        %v2199 = vmax.f32 %v1882, 0.0
        %v2200 = vmax.f32 %v1971, 0.0
        %v2201 = vmax.f32 %v1350, 0.0
        %v2202 = vmax.f32 %v1439, 0.0
        %v2203 = vmax.f32 %v1528, 0.0
        %v2204 = vmax.f32 %v1617, 0.0
        %v2205 = vmax.f32 %v1706, 0.0
        %v2206 = vmax.f32 %v1795, 0.0
        %v2207 = vmax.f32 %v1884, 0.0
        %v2208 = vmax.f32 %v1973, 0.0
        %v2209 = vmax.f32 %v1353, 0.0
        %v2210 = vmax.f32 %v1442, 0.0
        %v2211 = vmax.f32 %v1531, 0.0
        %v2212 = vmax.f32 %v1620, 0.0
        %v2213 = vmax.f32 %v1709, 0.0
        %v2214 = vmax.f32 %v1798, 0.0
        %v2215 = vmax.f32 %v1887, 0.0
        %v2216 = vmax.f32 %v1976, 0.0
        %v2217 = vmax.f32 %v1355, 0.0
        %v2218 = vmax.f32 %v1444, 0.0
        %v2219 = vmax.f32 %v1533, 0.0
        %v2220 = vmax.f32 %v1622, 0.0
        %v2221 = vmax.f32 %v1711, 0.0
        %v2222 = vmax.f32 %v1800, 0.0
        %v2223 = vmax.f32 %v1889, 0.0
        %v2224 = vmax.f32 %v1978, 0.0
        %v2225 = vmax.f32 %v1358, 0.0
        %v2226 = vmax.f32 %v1447, 0.0
        %v2227 = vmax.f32 %v1536, 0.0
        %v2228 = vmax.f32 %v1625, 0.0
        %v2229 = vmax.f32 %v1714, 0.0
        %v2230 = vmax.f32 %v1803, 0.0
        %v2231 = vmax.f32 %v1892, 0.0
        %v2232 = vmax.f32 %v1981, 0.0
        %v2233 = vmax.f32 %v1360, 0.0
        %v2234 = vmax.f32 %v1449, 0.0
        %v2235 = vmax.f32 %v1538, 0.0
        %v2236 = vmax.f32 %v1627, 0.0
        %v2237 = vmax.f32 %v1716, 0.0
        %v2238 = vmax.f32 %v1805, 0.0
        %v2239 = vmax.f32 %v1894, 0.0
        %v2240 = vmax.f32 %v1983, 0.0
        %v2241 = vmax.f32 %v1985, %v1993
        %v2242 = vmax.f32 %v2241, %v2001
        %v2243 = vmax.f32 %v2242, %v2009
        %v2244 = vmax.f32 %v2243, %v2017
        %v2245 = vmax.f32 %v2244, %v2025
        %v2246 = vmax.f32 %v2245, %v2033
        %v2247 = vmax.f32 %v2246, %v2041
        %v2248 = vmax.f32 %v2247, %v2049
        %v2249 = vmax.f32 %v2248, %v2057
        %v2250 = vmax.f32 %v2249, %v2065
        %v2251 = vmax.f32 %v2250, %v2073
        %v2252 = vmax.f32 %v2251, %v2081
        %v2253 = vmax.f32 %v2252, %v2089
        %v2254 = vmax.f32 %v2253, %v2097
        %v2255 = vmax.f32 %v2254, %v2105
        %v2256 = vmax.f32 %v2255, %v2113
        %v2257 = vmax.f32 %v2256, %v2121
        %v2258 = vmax.f32 %v2257, %v2129
        %v2259 = vmax.f32 %v2258, %v2137
        %v2260 = vmax.f32 %v2259, %v2145
        %v2261 = vmax.f32 %v2260, %v2153
        %v2262 = vmax.f32 %v2261, %v2161
        %v2263 = vmax.f32 %v2262, %v2169
        %v2264 = vmax.f32 %v2263, %v2177
        %v2265 = vmax.f32 %v2264, %v2185
        %v2266 = vmax.f32 %v2265, %v2193
        %v2267 = vmax.f32 %v2266, %v2201
        %v2268 = vmax.f32 %v2267, %v2209
        %v2269 = vmax.f32 %v2268, %v2217
        %v2270 = vmax.f32 %v2269, %v2225
        %v2271 = vmax.f32 %v2270, %v2233
        %v2272 = vrot.slane %v2271, 4
        %v2273 = vmax.f32 %v2271, %v2272
        %v2274 = vrot.slane %v2273, 2
        %v2275 = vmax.f32 %v2273, %v2274
        %v2276 = vrot.slane %v2275, 1
        %v2277 = vmax.f32 %v2275, %v2276
        %v2278 = vmax.f32 %v1986, %v1994
        %v2279 = vmax.f32 %v2278, %v2002
        %v2280 = vmax.f32 %v2279, %v2010
        %v2281 = vmax.f32 %v2280, %v2018
        %v2282 = vmax.f32 %v2281, %v2026
        %v2283 = vmax.f32 %v2282, %v2034
        %v2284 = vmax.f32 %v2283, %v2042
        %v2285 = vmax.f32 %v2284, %v2050
        %v2286 = vmax.f32 %v2285, %v2058
        %v2287 = vmax.f32 %v2286, %v2066
        %v2288 = vmax.f32 %v2287, %v2074
        %v2289 = vmax.f32 %v2288, %v2082
        %v2290 = vmax.f32 %v2289, %v2090
        %v2291 = vmax.f32 %v2290, %v2098
        %v2292 = vmax.f32 %v2291, %v2106
        %v2293 = vmax.f32 %v2292, %v2114
        %v2294 = vmax.f32 %v2293, %v2122
        %v2295 = vmax.f32 %v2294, %v2130
        %v2296 = vmax.f32 %v2295, %v2138
        %v2297 = vmax.f32 %v2296, %v2146
        %v2298 = vmax.f32 %v2297, %v2154
        %v2299 = vmax.f32 %v2298, %v2162
        %v2300 = vmax.f32 %v2299, %v2170
        %v2301 = vmax.f32 %v2300, %v2178
        %v2302 = vmax.f32 %v2301, %v2186
        %v2303 = vmax.f32 %v2302, %v2194
        %v2304 = vmax.f32 %v2303, %v2202
        %v2305 = vmax.f32 %v2304, %v2210
        %v2306 = vmax.f32 %v2305, %v2218
        %v2307 = vmax.f32 %v2306, %v2226
        %v2308 = vmax.f32 %v2307, %v2234
        %v2309 = vrot.slane %v2308, 4
        %v2310 = vmax.f32 %v2308, %v2309
        %v2311 = vrot.slane %v2310, 2
        %v2312 = vmax.f32 %v2310, %v2311
        %v2313 = vrot.slane %v2312, 1
        %v2314 = vmax.f32 %v2312, %v2313
        %v2315 = vmax.f32 %v1987, %v1995
        %v2316 = vmax.f32 %v2315, %v2003
        %v2317 = vmax.f32 %v2316, %v2011
        %v2318 = vmax.f32 %v2317, %v2019
        %v2319 = vmax.f32 %v2318, %v2027
        %v2320 = vmax.f32 %v2319, %v2035
        %v2321 = vmax.f32 %v2320, %v2043
        %v2322 = vmax.f32 %v2321, %v2051
        %v2323 = vmax.f32 %v2322, %v2059
        %v2324 = vmax.f32 %v2323, %v2067
        %v2325 = vmax.f32 %v2324, %v2075
        %v2326 = vmax.f32 %v2325, %v2083
        %v2327 = vmax.f32 %v2326, %v2091
        %v2328 = vmax.f32 %v2327, %v2099
        %v2329 = vmax.f32 %v2328, %v2107
        %v2330 = vmax.f32 %v2329, %v2115
        %v2331 = vmax.f32 %v2330, %v2123
        %v2332 = vmax.f32 %v2331, %v2131
        %v2333 = vmax.f32 %v2332, %v2139
        %v2334 = vmax.f32 %v2333, %v2147
        %v2335 = vmax.f32 %v2334, %v2155
        %v2336 = vmax.f32 %v2335, %v2163
        %v2337 = vmax.f32 %v2336, %v2171
        %v2338 = vmax.f32 %v2337, %v2179
        %v2339 = vmax.f32 %v2338, %v2187
        %v2340 = vmax.f32 %v2339, %v2195
        %v2341 = vmax.f32 %v2340, %v2203
        %v2342 = vmax.f32 %v2341, %v2211
        %v2343 = vmax.f32 %v2342, %v2219
        %v2344 = vmax.f32 %v2343, %v2227
        %v2345 = vmax.f32 %v2344, %v2235
        %v2346 = vrot.slane %v2345, 4
        %v2347 = vmax.f32 %v2345, %v2346
        %v2348 = vrot.slane %v2347, 2
        %v2349 = vmax.f32 %v2347, %v2348
        %v2350 = vrot.slane %v2349, 1
        %v2351 = vmax.f32 %v2349, %v2350
        %v2352 = vmax.f32 %v1988, %v1996
        %v2353 = vmax.f32 %v2352, %v2004
        %v2354 = vmax.f32 %v2353, %v2012
        %v2355 = vmax.f32 %v2354, %v2020
        %v2356 = vmax.f32 %v2355, %v2028
        %v2357 = vmax.f32 %v2356, %v2036
        %v2358 = vmax.f32 %v2357, %v2044
        %v2359 = vmax.f32 %v2358, %v2052
        %v2360 = vmax.f32 %v2359, %v2060
        %v2361 = vmax.f32 %v2360, %v2068
        %v2362 = vmax.f32 %v2361, %v2076
        %v2363 = vmax.f32 %v2362, %v2084
        %v2364 = vmax.f32 %v2363, %v2092
        %v2365 = vmax.f32 %v2364, %v2100
        %v2366 = vmax.f32 %v2365, %v2108
        %v2367 = vmax.f32 %v2366, %v2116
        %v2368 = vmax.f32 %v2367, %v2124
        %v2369 = vmax.f32 %v2368, %v2132
        %v2370 = vmax.f32 %v2369, %v2140
        %v2371 = vmax.f32 %v2370, %v2148
        %v2372 = vmax.f32 %v2371, %v2156
        %v2373 = vmax.f32 %v2372, %v2164
        %v2374 = vmax.f32 %v2373, %v2172
        %v2375 = vmax.f32 %v2374, %v2180
        %v2376 = vmax.f32 %v2375, %v2188
        %v2377 = vmax.f32 %v2376, %v2196
        %v2378 = vmax.f32 %v2377, %v2204
        %v2379 = vmax.f32 %v2378, %v2212
        %v2380 = vmax.f32 %v2379, %v2220
        %v2381 = vmax.f32 %v2380, %v2228
        %v2382 = vmax.f32 %v2381, %v2236
        %v2383 = vrot.slane %v2382, 4
        %v2384 = vmax.f32 %v2382, %v2383
        %v2385 = vrot.slane %v2384, 2
        %v2386 = vmax.f32 %v2384, %v2385
        %v2387 = vrot.slane %v2386, 1
        %v2388 = vmax.f32 %v2386, %v2387
        %v2389 = vmax.f32 %v1989, %v1997
        %v2390 = vmax.f32 %v2389, %v2005
        %v2391 = vmax.f32 %v2390, %v2013
        %v2392 = vmax.f32 %v2391, %v2021
        %v2393 = vmax.f32 %v2392, %v2029
        %v2394 = vmax.f32 %v2393, %v2037
        %v2395 = vmax.f32 %v2394, %v2045
        %v2396 = vmax.f32 %v2395, %v2053
        %v2397 = vmax.f32 %v2396, %v2061
        %v2398 = vmax.f32 %v2397, %v2069
        %v2399 = vmax.f32 %v2398, %v2077
        %v2400 = vmax.f32 %v2399, %v2085
        %v2401 = vmax.f32 %v2400, %v2093
        %v2402 = vmax.f32 %v2401, %v2101
        %v2403 = vmax.f32 %v2402, %v2109
        %v2404 = vmax.f32 %v2403, %v2117
        %v2405 = vmax.f32 %v2404, %v2125
        %v2406 = vmax.f32 %v2405, %v2133
        %v2407 = vmax.f32 %v2406, %v2141
        %v2408 = vmax.f32 %v2407, %v2149
        %v2409 = vmax.f32 %v2408, %v2157
        %v2410 = vmax.f32 %v2409, %v2165
        %v2411 = vmax.f32 %v2410, %v2173
        %v2412 = vmax.f32 %v2411, %v2181
        %v2413 = vmax.f32 %v2412, %v2189
        %v2414 = vmax.f32 %v2413, %v2197
        %v2415 = vmax.f32 %v2414, %v2205
        %v2416 = vmax.f32 %v2415, %v2213
        %v2417 = vmax.f32 %v2416, %v2221
        %v2418 = vmax.f32 %v2417, %v2229
        %v2419 = vmax.f32 %v2418, %v2237
        %v2420 = vrot.slane %v2419, 4
        %v2421 = vmax.f32 %v2419, %v2420
        %v2422 = vrot.slane %v2421, 2
        %v2423 = vmax.f32 %v2421, %v2422
        %v2424 = vrot.slane %v2423, 1
        %v2425 = vmax.f32 %v2423, %v2424
        %v2426 = vmax.f32 %v1990, %v1998
        %v2427 = vmax.f32 %v2426, %v2006
        %v2428 = vmax.f32 %v2427, %v2014
        %v2429 = vmax.f32 %v2428, %v2022
        %v2430 = vmax.f32 %v2429, %v2030
        %v2431 = vmax.f32 %v2430, %v2038
        %v2432 = vmax.f32 %v2431, %v2046
        %v2433 = vmax.f32 %v2432, %v2054
        %v2434 = vmax.f32 %v2433, %v2062
        %v2435 = vmax.f32 %v2434, %v2070
        %v2436 = vmax.f32 %v2435, %v2078
        %v2437 = vmax.f32 %v2436, %v2086
        %v2438 = vmax.f32 %v2437, %v2094
        %v2439 = vmax.f32 %v2438, %v2102
        %v2440 = vmax.f32 %v2439, %v2110
        %v2441 = vmax.f32 %v2440, %v2118
        %v2442 = vmax.f32 %v2441, %v2126
        %v2443 = vmax.f32 %v2442, %v2134
        %v2444 = vmax.f32 %v2443, %v2142
        %v2445 = vmax.f32 %v2444, %v2150
        %v2446 = vmax.f32 %v2445, %v2158
        %v2447 = vmax.f32 %v2446, %v2166
        %v2448 = vmax.f32 %v2447, %v2174
        %v2449 = vmax.f32 %v2448, %v2182
        %v2450 = vmax.f32 %v2449, %v2190
        %v2451 = vmax.f32 %v2450, %v2198
        %v2452 = vmax.f32 %v2451, %v2206
        %v2453 = vmax.f32 %v2452, %v2214
        %v2454 = vmax.f32 %v2453, %v2222
        %v2455 = vmax.f32 %v2454, %v2230
        %v2456 = vmax.f32 %v2455, %v2238
        %v2457 = vrot.slane %v2456, 4
        %v2458 = vmax.f32 %v2456, %v2457
        %v2459 = vrot.slane %v2458, 2
        %v2460 = vmax.f32 %v2458, %v2459
        %v2461 = vrot.slane %v2460, 1
        %v2462 = vmax.f32 %v2460, %v2461
        %v2463 = vmax.f32 %v1991, %v1999
        %v2464 = vmax.f32 %v2463, %v2007
        %v2465 = vmax.f32 %v2464, %v2015
        %v2466 = vmax.f32 %v2465, %v2023
        %v2467 = vmax.f32 %v2466, %v2031
        %v2468 = vmax.f32 %v2467, %v2039
        %v2469 = vmax.f32 %v2468, %v2047
        %v2470 = vmax.f32 %v2469, %v2055
        %v2471 = vmax.f32 %v2470, %v2063
        %v2472 = vmax.f32 %v2471, %v2071
        %v2473 = vmax.f32 %v2472, %v2079
        %v2474 = vmax.f32 %v2473, %v2087
        %v2475 = vmax.f32 %v2474, %v2095
        %v2476 = vmax.f32 %v2475, %v2103
        %v2477 = vmax.f32 %v2476, %v2111
        %v2478 = vmax.f32 %v2477, %v2119
        %v2479 = vmax.f32 %v2478, %v2127
        %v2480 = vmax.f32 %v2479, %v2135
        %v2481 = vmax.f32 %v2480, %v2143
        %v2482 = vmax.f32 %v2481, %v2151
        %v2483 = vmax.f32 %v2482, %v2159
        %v2484 = vmax.f32 %v2483, %v2167
        %v2485 = vmax.f32 %v2484, %v2175
        %v2486 = vmax.f32 %v2485, %v2183
        %v2487 = vmax.f32 %v2486, %v2191
        %v2488 = vmax.f32 %v2487, %v2199
        %v2489 = vmax.f32 %v2488, %v2207
        %v2490 = vmax.f32 %v2489, %v2215
        %v2491 = vmax.f32 %v2490, %v2223
        %v2492 = vmax.f32 %v2491, %v2231
        %v2493 = vmax.f32 %v2492, %v2239
        %v2494 = vrot.slane %v2493, 4
        %v2495 = vmax.f32 %v2493, %v2494
        %v2496 = vrot.slane %v2495, 2
        %v2497 = vmax.f32 %v2495, %v2496
        %v2498 = vrot.slane %v2497, 1
        %v2499 = vmax.f32 %v2497, %v2498
        %v2500 = vmax.f32 %v1992, %v2000
        %v2501 = vmax.f32 %v2500, %v2008
        %v2502 = vmax.f32 %v2501, %v2016
        %v2503 = vmax.f32 %v2502, %v2024
        %v2504 = vmax.f32 %v2503, %v2032
        %v2505 = vmax.f32 %v2504, %v2040
        %v2506 = vmax.f32 %v2505, %v2048
        %v2507 = vmax.f32 %v2506, %v2056
        %v2508 = vmax.f32 %v2507, %v2064
        %v2509 = vmax.f32 %v2508, %v2072
        %v2510 = vmax.f32 %v2509, %v2080
        %v2511 = vmax.f32 %v2510, %v2088
        %v2512 = vmax.f32 %v2511, %v2096
        %v2513 = vmax.f32 %v2512, %v2104
        %v2514 = vmax.f32 %v2513, %v2112
        %v2515 = vmax.f32 %v2514, %v2120
        %v2516 = vmax.f32 %v2515, %v2128
        %v2517 = vmax.f32 %v2516, %v2136
        %v2518 = vmax.f32 %v2517, %v2144
        %v2519 = vmax.f32 %v2518, %v2152
        %v2520 = vmax.f32 %v2519, %v2160
        %v2521 = vmax.f32 %v2520, %v2168
        %v2522 = vmax.f32 %v2521, %v2176
        %v2523 = vmax.f32 %v2522, %v2184
        %v2524 = vmax.f32 %v2523, %v2192
        %v2525 = vmax.f32 %v2524, %v2200
        %v2526 = vmax.f32 %v2525, %v2208
        %v2527 = vmax.f32 %v2526, %v2216
        %v2528 = vmax.f32 %v2527, %v2224
        %v2529 = vmax.f32 %v2528, %v2232
        %v2530 = vmax.f32 %v2529, %v2240
        %v2531 = vrot.slane %v2530, 4
        %v2532 = vmax.f32 %v2530, %v2531
        %v2533 = vrot.slane %v2532, 2
        %v2534 = vmax.f32 %v2532, %v2533
        %v2535 = vrot.slane %v2534, 1
        %v2536 = vmax.f32 %v2534, %v2535
        %p2537 = scmp.eq.s32.totalorder %s25, 0
        // Predicated region
        $region61: #{pointnet_torus_forward.8} parent=47 // pred_check
          %p2538 = pneg %p2537
        $region62: #{pointnet_torus_forward.8} parent=47 // pred_check_branch
          %2540 = sbr.rel (%p2538) target = $region64
        $region63: #{pointnet_torus_forward.8} parent=47 // pred_region
          %2541 = vst [vmem:[%s348] sm:$0xff] -inf
        $region64: #{pointnet_torus_forward.8} parent=47 // pred_fallthru
          _
        %v2542 = vld [vmem:[%s348] sm:$0xff]
        %v2551 = vrot.slane %v2314, 7
        %v2552 = vrot.slane %v2351, 6
        %v2553 = vrot.slane %v2388, 5
        %v2554 = vrot.slane %v2425, 4
        %v2555 = vrot.slane %v2462, 3
        %v2556 = vrot.slane %v2499, 2
        %v2557 = vrot.slane %v2536, 1
        %vm2558 = vcmask 1040384
        %v2559 = vsel %vm2558, %v2277, %v2551
        %vm2560 = vcmask 1042434
        %v2561 = vsel %vm2560, %v2552, %v2553
        %vm2562 = vcmask 1041408
        %v2563 = vsel %vm2562, %v2559, %v2561
        %vm2564 = vcmask 1044484
        %v2565 = vsel %vm2564, %v2554, %v2555
        %vm2566 = vcmask 1046534
        %v2567 = vsel %vm2566, %v2556, %v2557
        %vm2568 = vcmask 1045508
        %v2569 = vsel %vm2568, %v2565, %v2567
        %vm2570 = vcmask 1043456
        %v2571 = vsel %vm2570, %v2563, %v2569
        %v2573 = vmax.f32 %v2542, %v2571
        %2574 = vst [vmem:[%s348] sm:$0xff] %v2573
        %p2575 = scmp.lt.s32.totalorder %s24, 1
        %s2576 = scalar_select %p2575, %s24, 1
        %s2577 = smul.addr %s2576, 8
        %s2578 = scalar_lea.vmem %s7, %s2577
        // Predicated region
        $region65: #{pointnet_torus_forward.8} parent=47 // pred_check
          %p2579 = pneg %p204
        $region66: #{pointnet_torus_forward.8} parent=47 // pred_check_branch
          %2581 = sbr.rel (%p2579) target = $region68
        $region67: #{pointnet_torus_forward.8} parent=47 // pred_region
          _
        $region68: #{pointnet_torus_forward.8} parent=47 // pred_fallthru
          _
      $region48: #{pointnet_torus_forward.8} parent=5 // pred_fallthru
        _
      %p2582 = scmp.le.s32.totalorder 2, %s15
      // Predicated region
      $region69: #{pointnet_torus_forward.8} parent=5 // pred_check
        %p2583 = pneg %p2582
      $region70: #{pointnet_torus_forward.8} parent=5 // pred_check_branch
        %2585 = sbr.rel (%p2583) target = $region72
      $region71: #{pointnet_torus_forward.8} parent=5 // pred_region
        %s2586 = ssub.s32 %s15, 2
        // Predicated region
        $region73: #{pointnet_torus_forward.8} parent=71 // pred_check
          %p2587 = pneg %p210
        $region74: #{pointnet_torus_forward.8} parent=71 // pred_check_branch
          %2589 = sbr.rel (%p2587) target = $region76
        $region75: #{pointnet_torus_forward.8} parent=71 // pred_region
          %p2590 = scmp.lt.s32.totalorder %s26, 1
          %s2591 = scalar_select %p2590, %s26, 1
          %s2592 = smul.addr %s2591, 8
          %s2593 = scalar_lea.vmem %s7, %s2592
        $region76: #{pointnet_torus_forward.8} parent=71 // pred_fallthru
          _
      $region72: #{pointnet_torus_forward.8} parent=5 // pred_fallthru
        _
    $region6: #{pointnet_torus_forward.8} parent=1 // loop_footer
      %s19 = sadd.s32 1, %s15
    $region7: #{pointnet_torus_forward.8} parent=1 // loop_footer_branch
      %14 = sbr.rel target = $region3
    $region8: #{pointnet_torus_forward.8} parent=1 // loop_exit
      _
    %2594 = vsyncpa [#allocation3], 1
    %s2595 = scalar_lea.sflag [#allocation3], 1
    %2596 = vsyncpa %s2595, 1
    %2597 = vsyncpa [#allocation5], 1

// kernel: pointnet_torus_forward.14
$region0: #{pointnet_torus_forward.14}
  #allocation0 [shape = 'u32[]', space=smem, size = 0x4, offset = 0x4, fixed_abs, tag = 'smem constant byte address 0x4 - core index']
  #allocation1 [shape = 'u32[72,128]{1,0:T(1,128)}', space=vmem, size = 0x9000, scoped, tag = 'internal scratch']
  #allocation2 [shape = 'f32[2,256]{1,0:T(2,128)}', space=vmem, size = 0x800, scoped, tag = 'scratch operand']
  %s0 = inlined_call_operand.vmem [shape: bf16[2,512], index: 0, kind: input, shape index: {}]
  %s1 = inlined_call_operand.hbm [shape: bf16[512,256], index: 1, kind: input, shape index: {}]
  %s2 = inlined_call_operand.hbm [shape: f32[1,256], index: 2, kind: input, shape index: {}]
  %s3 = inlined_call_operand.vmem [shape: f32[2,256], index: 3, kind: output, shape index: {}]
  %s4 = sld [smem:[#allocation0]]
  $region38: #{pointnet_torus_forward.14} parent=0
    _
  %s6 = ssub.s32 1, %s4
  %s7 = scalar_select 0, %s6, %s4
  $region1: #{pointnet_torus_forward.14} parent=0
    #allocation3 [shape = 'u8[262144]{0}', space=vmem, size = 0x40000, scoped, tag = 'input window, operand 1, single buffered']
    #allocation4 [shape = 's32[1]{0}', space=sflag, size = 0x4, scoped, tag = 'scoped memory for pointnet_torus_forward.14']
    #allocation5 [shape = 'u8[1024]{0}', space=vmem, size = 0x400, scoped, tag = 'input window, operand 2, single buffered']
    #allocation6 [shape = 's32[1]{0}', space=sflag, size = 0x4, scoped, tag = 'scoped memory for pointnet_torus_forward.14']
    %8 = vsyncpa [#allocation4], 0
    %9 = vsyncpa [#allocation6], 0
    // Predicated region
    $region2: #{pointnet_torus_forward.14} parent=1 // pred_check
      _
    $region3: #{pointnet_torus_forward.14} parent=1 // pred_check_branch
      %11 = sbr.rel (0) target = $region5
    $region4: #{pointnet_torus_forward.14} parent=1 // pred_region
      _
    $region5: #{pointnet_torus_forward.14} parent=1 // pred_fallthru
      _
    // Predicated region
    $region6: #{pointnet_torus_forward.14} parent=1 // pred_check
      _
    $region7: #{pointnet_torus_forward.14} parent=1 // pred_check_branch
      %13 = sbr.rel (0) target = $region9
    $region8: #{pointnet_torus_forward.14} parent=1 // pred_region
      %15 = vsyncadd [#allocation4], 0
      %s16 = sshll.u32 %s1, 4
      %s17 = int_to_ptr.hbm [resolvable:$true] %s16
      %s18 = sshll.u32 [#allocation3], 4
      %s19 = int_to_ptr.vmem [resolvable:$true] %s18
      %24 = dma.hbm_to_vmem [thread:$0]  %s17, 8192, %s19, [#allocation4], 128, 128, 8
    $region9: #{pointnet_torus_forward.14} parent=1 // pred_fallthru
      _
    // Predicated region
    $region10: #{pointnet_torus_forward.14} parent=1 // pred_check
      _
    $region11: #{pointnet_torus_forward.14} parent=1 // pred_check_branch
      %26 = sbr.rel (0) target = $region13
    $region12: #{pointnet_torus_forward.14} parent=1 // pred_region
      %28 = vsyncadd [#allocation6], 0
      %s30 = sshll.u32 %s2, 4
      %s31 = int_to_ptr.hbm [resolvable:$true] %s30
      %s32 = sshll.u32 [#allocation5], 4
      %s33 = int_to_ptr.vmem [resolvable:$true] %s32
      %35 = dma.hbm_to_vmem [thread:$0]  %s31, 32, %s33, [#allocation6]
    $region13: #{pointnet_torus_forward.14} parent=1 // pred_fallthru
      _
    // Predicated region
    $region14: #{pointnet_torus_forward.14} parent=1 // pred_check
      _
    $region15: #{pointnet_torus_forward.14} parent=1 // pred_check_branch
      %37 = sbr.rel (0) target = $region17
    $region16: #{pointnet_torus_forward.14} parent=1 // pred_region
      %39 = dma.done [#allocation4], 8192
    $region17: #{pointnet_torus_forward.14} parent=1 // pred_fallthru
      _
    // Predicated region
    $region18: #{pointnet_torus_forward.14} parent=1 // pred_check
      _
    $region19: #{pointnet_torus_forward.14} parent=1 // pred_check_branch
      %41 = sbr.rel (0) target = $region21
    $region20: #{pointnet_torus_forward.14} parent=1 // pred_region
      %43 = dma.done [#allocation6], 32
    $region21: #{pointnet_torus_forward.14} parent=1 // pred_fallthru
      _
    %p44 = scmp.eq.s32.totalorder 0, 0
    // Predicated region
    $region22: #{pointnet_torus_forward.14} parent=1 // pred_check
      %p45 = pneg %p44
    $region23: #{pointnet_torus_forward.14} parent=1 // pred_check_branch
      %47 = sbr.rel (%p45) target = $region25
    $region24: #{pointnet_torus_forward.14} parent=1 // pred_region
      %48 = vst [vmem:[#allocation2] sm:$0xf] 0.0
    $region25: #{pointnet_torus_forward.14} parent=1 // pred_fallthru
      _
    %v49 = vld [vmem:[#allocation2] sm:$0xf]
    %v50 = vld [vmem:[%s0] sm:$0xf]
    %v51 = vld [vmem:[#allocation3] sm:$0xff]
    %v52 = vld [vmem:[#allocation3 + $0x8] sm:$0xff]
    %v53 = vld [vmem:[#allocation3 + $0x10] sm:$0xff]
    %v54 = vld [vmem:[#allocation3 + $0x18] sm:$0xff]
    %v55 = vld [vmem:[#allocation3 + $0x20] sm:$0xff]
    %v56 = vld [vmem:[#allocation3 + $0x28] sm:$0xff]
    %v57 = vld [vmem:[#allocation3 + $0x30] sm:$0xff]
    %v58 = vld [vmem:[#allocation3 + $0x38] sm:$0xff]
    %v59 = vld [vmem:[#allocation3 + $0x40] sm:$0xff]
    %v60 = vld [vmem:[#allocation3 + $0x48] sm:$0xff]
    %v61 = vld [vmem:[#allocation3 + $0x50] sm:$0xff]
    %v62 = vld [vmem:[#allocation3 + $0x58] sm:$0xff]
    %v63 = vld [vmem:[#allocation3 + $0x60] sm:$0xff]
    %v64 = vld [vmem:[#allocation3 + $0x68] sm:$0xff]
    %v65 = vld [vmem:[#allocation3 + $0x70] sm:$0xff]
    %v66 = vld [vmem:[#allocation3 + $0x78] sm:$0xff]
    %v67 = vld [vmem:[#allocation3 + $0x80] sm:$0xff]
    %v68 = vld [vmem:[#allocation3 + $0x88] sm:$0xff]
    %v69 = vld [vmem:[#allocation3 + $0x90] sm:$0xff]
    %v70 = vld [vmem:[#allocation3 + $0x98] sm:$0xff]
    %v71 = vld [vmem:[#allocation3 + $0xa0] sm:$0xff]
    %v72 = vld [vmem:[#allocation3 + $0xa8] sm:$0xff]
    %v73 = vld [vmem:[#allocation3 + $0xb0] sm:$0xff]
    %v74 = vld [vmem:[#allocation3 + $0xb8] sm:$0xff]
    %v75 = vld [vmem:[#allocation3 + $0xc0] sm:$0xff]
    %v76 = vld [vmem:[#allocation3 + $0xc8] sm:$0xff]
    %v77 = vld [vmem:[#allocation3 + $0xd0] sm:$0xff]
    %v78 = vld [vmem:[#allocation3 + $0xd8] sm:$0xff]
    %v79 = vld [vmem:[#allocation3 + $0xe0] sm:$0xff]
    %v80 = vld [vmem:[#allocation3 + $0xe8] sm:$0xff]
    %v81 = vld [vmem:[#allocation3 + $0xf0] sm:$0xff]
    %v82 = vld [vmem:[#allocation3 + $0xf8] sm:$0xff]
    %v83 = vld [vmem:[#allocation3 + $0x100] sm:$0xff]
    %v84 = vld [vmem:[#allocation3 + $0x108] sm:$0xff]
    %v85 = vld [vmem:[#allocation3 + $0x110] sm:$0xff]
    %v86 = vld [vmem:[#allocation3 + $0x118] sm:$0xff]
    %v87 = vld [vmem:[#allocation3 + $0x120] sm:$0xff]
    %v88 = vld [vmem:[#allocation3 + $0x128] sm:$0xff]
    %v89 = vld [vmem:[#allocation3 + $0x130] sm:$0xff]
    %v90 = vld [vmem:[#allocation3 + $0x138] sm:$0xff]
    %v91 = vld [vmem:[#allocation3 + $0x140] sm:$0xff]
    %v92 = vld [vmem:[#allocation3 + $0x148] sm:$0xff]
    %v93 = vld [vmem:[#allocation3 + $0x150] sm:$0xff]
    %v94 = vld [vmem:[#allocation3 + $0x158] sm:$0xff]
    %v95 = vld [vmem:[#allocation3 + $0x160] sm:$0xff]
    %v96 = vld [vmem:[#allocation3 + $0x168] sm:$0xff]
    %v97 = vld [vmem:[#allocation3 + $0x170] sm:$0xff]
    %v98 = vld [vmem:[#allocation3 + $0x178] sm:$0xff]
    %v99 = vld [vmem:[#allocation3 + $0x180] sm:$0xff]
    %v100 = vld [vmem:[#allocation3 + $0x188] sm:$0xff]
    %v101 = vld [vmem:[#allocation3 + $0x190] sm:$0xff]
    %v102 = vld [vmem:[#allocation3 + $0x198] sm:$0xff]
    %v103 = vld [vmem:[#allocation3 + $0x1a0] sm:$0xff]
    %v104 = vld [vmem:[#allocation3 + $0x1a8] sm:$0xff]
    %v105 = vld [vmem:[#allocation3 + $0x1b0] sm:$0xff]
    %v106 = vld [vmem:[#allocation3 + $0x1b8] sm:$0xff]
    %v107 = vld [vmem:[#allocation3 + $0x1c0] sm:$0xff]
    %v108 = vld [vmem:[#allocation3 + $0x1c8] sm:$0xff]
    %v109 = vld [vmem:[#allocation3 + $0x1d0] sm:$0xff]
    %v110 = vld [vmem:[#allocation3 + $0x1d8] sm:$0xff]
    %v111 = vld [vmem:[#allocation3 + $0x1e0] sm:$0xff]
    %v112 = vld [vmem:[#allocation3 + $0x1e8] sm:$0xff]
    %v113 = vld [vmem:[#allocation3 + $0x1f0] sm:$0xff]
    %v114 = vld [vmem:[#allocation3 + $0x1f8] sm:$0xff]
    %116 = vst [vmem:[#allocation1] ss:$9 sm:$0xff] %v50
    %v117 = vld [vmem:[#allocation1] sm:$0xff]
    %v118 = vld [vmem:[#allocation1 + $0x9] sm:$0xff]
    %v119 = vld [vmem:[#allocation1 + $0x12] sm:$0xff]
    %v120 = vld [vmem:[#allocation1 + $0x1b] sm:$0xff]
    %v189 = vunpack.c.l.b16 %v51
    %v190 = vunpack.c.h.b16 %v51
    %v191 = vunpack.c.l.b16 %v52
    %v192 = vunpack.c.h.b16 %v52
    %v193 = vunpack.c.l.b16 %v53
    %v194 = vunpack.c.h.b16 %v53
    %v195 = vunpack.c.l.b16 %v54
    %v196 = vunpack.c.h.b16 %v54
    %v197 = vunpack.c.l.b16 %v55
    %v198 = vunpack.c.h.b16 %v55
    %v199 = vunpack.c.l.b16 %v56
    %v200 = vunpack.c.h.b16 %v56
    %v201 = vunpack.c.l.b16 %v57
    %v202 = vunpack.c.h.b16 %v57
    %v203 = vunpack.c.l.b16 %v58
    %v204 = vunpack.c.h.b16 %v58
    %v205 = vunpack.c.l.b16 %v59
    %v206 = vunpack.c.h.b16 %v59
    %v207 = vunpack.c.l.b16 %v60
    %v208 = vunpack.c.h.b16 %v60
    %v209 = vunpack.c.l.b16 %v61
    %v210 = vunpack.c.h.b16 %v61
    %v211 = vunpack.c.l.b16 %v62
    %v212 = vunpack.c.h.b16 %v62
    %v213 = vunpack.c.l.b16 %v63
    %v214 = vunpack.c.h.b16 %v63
    %v215 = vunpack.c.l.b16 %v64
    %v216 = vunpack.c.h.b16 %v64
    %v217 = vunpack.c.l.b16 %v65
    %v218 = vunpack.c.h.b16 %v65
    %v219 = vunpack.c.l.b16 %v66
    %v220 = vunpack.c.h.b16 %v66
    %v221 = vunpack.c.l.b16 %v67
    %v222 = vunpack.c.h.b16 %v67
    %v223 = vunpack.c.l.b16 %v68
    %v224 = vunpack.c.h.b16 %v68
    %v225 = vunpack.c.l.b16 %v69
    %v226 = vunpack.c.h.b16 %v69
    %v227 = vunpack.c.l.b16 %v70
    %v228 = vunpack.c.h.b16 %v70
    %v229 = vunpack.c.l.b16 %v71
    %v230 = vunpack.c.h.b16 %v71
    %v231 = vunpack.c.l.b16 %v72
    %v232 = vunpack.c.h.b16 %v72
    %v233 = vunpack.c.l.b16 %v73
    %v234 = vunpack.c.h.b16 %v73
    %v235 = vunpack.c.l.b16 %v74
    %v236 = vunpack.c.h.b16 %v74
    %v237 = vunpack.c.l.b16 %v75
    %v238 = vunpack.c.h.b16 %v75
    %v239 = vunpack.c.l.b16 %v76
    %v240 = vunpack.c.h.b16 %v76
    %v241 = vunpack.c.l.b16 %v77
    %v242 = vunpack.c.h.b16 %v77
    %v243 = vunpack.c.l.b16 %v78
    %v244 = vunpack.c.h.b16 %v78
    %v245 = vunpack.c.l.b16 %v79
    %v246 = vunpack.c.h.b16 %v79
    %v247 = vunpack.c.l.b16 %v80
    %v248 = vunpack.c.h.b16 %v80
    %v249 = vunpack.c.l.b16 %v81
    %v250 = vunpack.c.h.b16 %v81
    %v251 = vunpack.c.l.b16 %v82
    %v252 = vunpack.c.h.b16 %v82
    %v253 = vunpack.c.l.b16 %v83
    %v254 = vunpack.c.h.b16 %v83
    %v255 = vunpack.c.l.b16 %v84
    %v256 = vunpack.c.h.b16 %v84
    %v257 = vunpack.c.l.b16 %v85
    %v258 = vunpack.c.h.b16 %v85
    %v259 = vunpack.c.l.b16 %v86
    %v260 = vunpack.c.h.b16 %v86
    %v261 = vunpack.c.l.b16 %v87
    %v262 = vunpack.c.h.b16 %v87
    %v263 = vunpack.c.l.b16 %v88
    %v264 = vunpack.c.h.b16 %v88
    %v265 = vunpack.c.l.b16 %v89
    %v266 = vunpack.c.h.b16 %v89
    %v267 = vunpack.c.l.b16 %v90
    %v268 = vunpack.c.h.b16 %v90
    %v269 = vunpack.c.l.b16 %v91
    %v270 = vunpack.c.h.b16 %v91
    %v271 = vunpack.c.l.b16 %v92
    %v272 = vunpack.c.h.b16 %v92
    %v273 = vunpack.c.l.b16 %v93
    %v274 = vunpack.c.h.b16 %v93
    %v275 = vunpack.c.l.b16 %v94
    %v276 = vunpack.c.h.b16 %v94
    %v277 = vunpack.c.l.b16 %v95
    %v278 = vunpack.c.h.b16 %v95
    %v279 = vunpack.c.l.b16 %v96
    %v280 = vunpack.c.h.b16 %v96
    %v281 = vunpack.c.l.b16 %v97
    %v282 = vunpack.c.h.b16 %v97
    %v283 = vunpack.c.l.b16 %v98
    %v284 = vunpack.c.h.b16 %v98
    %v285 = vunpack.c.l.b16 %v99
    %v286 = vunpack.c.h.b16 %v99
    %v287 = vunpack.c.l.b16 %v100
    %v288 = vunpack.c.h.b16 %v100
    %v289 = vunpack.c.l.b16 %v101
    %v290 = vunpack.c.h.b16 %v101
    %v291 = vunpack.c.l.b16 %v102
    %v292 = vunpack.c.h.b16 %v102
    %v293 = vunpack.c.l.b16 %v103
    %v294 = vunpack.c.h.b16 %v103
    %v295 = vunpack.c.l.b16 %v104
    %v296 = vunpack.c.h.b16 %v104
    %v297 = vunpack.c.l.b16 %v105
    %v298 = vunpack.c.h.b16 %v105
    %v299 = vunpack.c.l.b16 %v106
    %v300 = vunpack.c.h.b16 %v106
    %v301 = vunpack.c.l.b16 %v107
    %v302 = vunpack.c.h.b16 %v107
    %v303 = vunpack.c.l.b16 %v108
    %v304 = vunpack.c.h.b16 %v108
    %v305 = vunpack.c.l.b16 %v109
    %v306 = vunpack.c.h.b16 %v109
    %v307 = vunpack.c.l.b16 %v110
    %v308 = vunpack.c.h.b16 %v110
    %v309 = vunpack.c.l.b16 %v111
    %v310 = vunpack.c.h.b16 %v111
    %v311 = vunpack.c.l.b16 %v112
    %v312 = vunpack.c.h.b16 %v112
    %v313 = vunpack.c.l.b16 %v113
    %v314 = vunpack.c.h.b16 %v113
    %v315 = vunpack.c.l.b16 %v114
    %v316 = vunpack.c.h.b16 %v114
    %v317 = vpack.c.b16 %v191, %v189
    %v318 = vpack.c.b16 %v192, %v190
    %v319 = vpack.c.b16 %v195, %v193
    %v320 = vpack.c.b16 %v196, %v194
    %v321 = vpack.c.b16 %v199, %v197
    %v322 = vpack.c.b16 %v200, %v198
    %v323 = vpack.c.b16 %v203, %v201
    %v324 = vpack.c.b16 %v204, %v202
    %v325 = vpack.c.b16 %v207, %v205
    %v326 = vpack.c.b16 %v208, %v206
    %v327 = vpack.c.b16 %v211, %v209
    %v328 = vpack.c.b16 %v212, %v210
    %v329 = vpack.c.b16 %v215, %v213
    %v330 = vpack.c.b16 %v216, %v214
    %v331 = vpack.c.b16 %v219, %v217
    %v332 = vpack.c.b16 %v220, %v218
    %v333 = vpack.c.b16 %v223, %v221
    %v334 = vpack.c.b16 %v224, %v222
    %v335 = vpack.c.b16 %v227, %v225
    %v336 = vpack.c.b16 %v228, %v226
    %v337 = vpack.c.b16 %v231, %v229
    %v338 = vpack.c.b16 %v232, %v230
    %v339 = vpack.c.b16 %v235, %v233
    %v340 = vpack.c.b16 %v236, %v234
    %v341 = vpack.c.b16 %v239, %v237
    %v342 = vpack.c.b16 %v240, %v238
    %v343 = vpack.c.b16 %v243, %v241
    %v344 = vpack.c.b16 %v244, %v242
    %v345 = vpack.c.b16 %v247, %v245
    %v346 = vpack.c.b16 %v248, %v246
    %v347 = vpack.c.b16 %v251, %v249
    %v348 = vpack.c.b16 %v252, %v250
    %v349 = vpack.c.b16 %v255, %v253
    %v350 = vpack.c.b16 %v256, %v254
    %v351 = vpack.c.b16 %v259, %v257
    %v352 = vpack.c.b16 %v260, %v258
    %v353 = vpack.c.b16 %v263, %v261
    %v354 = vpack.c.b16 %v264, %v262
    %v355 = vpack.c.b16 %v267, %v265
    %v356 = vpack.c.b16 %v268, %v266
    %v357 = vpack.c.b16 %v271, %v269
    %v358 = vpack.c.b16 %v272, %v270
    %v359 = vpack.c.b16 %v275, %v273
    %v360 = vpack.c.b16 %v276, %v274
    %v361 = vpack.c.b16 %v279, %v277
    %v362 = vpack.c.b16 %v280, %v278
    %v363 = vpack.c.b16 %v283, %v281
    %v364 = vpack.c.b16 %v284, %v282
    %v365 = vpack.c.b16 %v287, %v285
    %v366 = vpack.c.b16 %v288, %v286
    %v367 = vpack.c.b16 %v291, %v289
    %v368 = vpack.c.b16 %v292, %v290
    %v369 = vpack.c.b16 %v295, %v293
    %v370 = vpack.c.b16 %v296, %v294
    %v371 = vpack.c.b16 %v299, %v297
    %v372 = vpack.c.b16 %v300, %v298
    %v373 = vpack.c.b16 %v303, %v301
    %v374 = vpack.c.b16 %v304, %v302
    %v375 = vpack.c.b16 %v307, %v305
    %v376 = vpack.c.b16 %v308, %v306
    %v377 = vpack.c.b16 %v311, %v309
    %v378 = vpack.c.b16 %v312, %v310
    %v379 = vpack.c.b16 %v315, %v313
    %v380 = vpack.c.b16 %v316, %v314
    %445 = vmatpush.bf16.msra.mxu0 %v331
    %446 = vmatpush.bf16.msra.mxu0 %v329
    %447 = vmatpush.bf16.msra.mxu0 %v327
    %448 = vmatpush.bf16.msra.mxu0 %v325
    %449 = vmatpush.bf16.msra.mxu0 %v323
    %450 = vmatpush.bf16.msra.mxu0 %v321
    %451 = vmatpush.bf16.msra.mxu0 %v319
    %452 = vmatpush.bf16.msra.mxu0 %v317
    %453 = vmatmul.bf16.gmra.mxu0 %v117
    %v454 = vpop.f32.mrf.mxu0
    %v455 = vadd.f32 0.0, %v454
    %v456 = vpop.f32.mrf.mxu0
    %457 = vdwg.mxu0
    %458 = vmatpush.bf16.msra.mxu0 %v347
    %459 = vmatpush.bf16.msra.mxu0 %v345
    %460 = vmatpush.bf16.msra.mxu0 %v343
    %461 = vmatpush.bf16.msra.mxu0 %v341
    %462 = vmatpush.bf16.msra.mxu0 %v339
    %463 = vmatpush.bf16.msra.mxu0 %v337
    %464 = vmatpush.bf16.msra.mxu0 %v335
    %465 = vmatpush.bf16.msra.mxu0 %v333
    %466 = vmatmul.bf16.gmra.mxu0 %v118
    %v467 = vpop.f32.mrf.mxu0
    %v468 = vadd.f32 %v455, %v467
    %v469 = vpop.f32.mrf.mxu0
    %470 = vdwg.mxu0
    %471 = vmatpush.bf16.msra.mxu0 %v363
    %472 = vmatpush.bf16.msra.mxu0 %v361
    %473 = vmatpush.bf16.msra.mxu0 %v359
    %474 = vmatpush.bf16.msra.mxu0 %v357
    %475 = vmatpush.bf16.msra.mxu0 %v355
    %476 = vmatpush.bf16.msra.mxu0 %v353
    %477 = vmatpush.bf16.msra.mxu0 %v351
    %478 = vmatpush.bf16.msra.mxu0 %v349
    %479 = vmatmul.bf16.gmra.mxu0 %v119
    %v480 = vpop.f32.mrf.mxu0
    %v481 = vadd.f32 %v468, %v480
    %v482 = vpop.f32.mrf.mxu0
    %483 = vdwg.mxu0
    %484 = vmatpush.bf16.msra.mxu0 %v379
    %485 = vmatpush.bf16.msra.mxu0 %v377
    %486 = vmatpush.bf16.msra.mxu0 %v375
    %487 = vmatpush.bf16.msra.mxu0 %v373
    %488 = vmatpush.bf16.msra.mxu0 %v371
    %489 = vmatpush.bf16.msra.mxu0 %v369
    %490 = vmatpush.bf16.msra.mxu0 %v367
    %491 = vmatpush.bf16.msra.mxu0 %v365
    %492 = vmatmul.bf16.gmra.mxu0 %v120
    %v493 = vpop.f32.mrf.mxu0
    %v494 = vadd.f32 %v481, %v493
    %v495 = vpop.f32.mrf.mxu0
    %496 = vdwg.mxu0
    %497 = vmatpush.bf16.msra.mxu0 %v332
    %498 = vmatpush.bf16.msra.mxu0 %v330
    %499 = vmatpush.bf16.msra.mxu0 %v328
    %500 = vmatpush.bf16.msra.mxu0 %v326
    %501 = vmatpush.bf16.msra.mxu0 %v324
    %502 = vmatpush.bf16.msra.mxu0 %v322
    %503 = vmatpush.bf16.msra.mxu0 %v320
    %504 = vmatpush.bf16.msra.mxu0 %v318
    %505 = vmatmul.bf16.gmra.mxu0 %v117
    %v506 = vpop.f32.mrf.mxu0
    %v507 = vadd.f32 0.0, %v506
    %v508 = vpop.f32.mrf.mxu0
    %509 = vdwg.mxu0
    %510 = vmatpush.bf16.msra.mxu0 %v348
    %511 = vmatpush.bf16.msra.mxu0 %v346
    %512 = vmatpush.bf16.msra.mxu0 %v344
    %513 = vmatpush.bf16.msra.mxu0 %v342
    %514 = vmatpush.bf16.msra.mxu0 %v340
    %515 = vmatpush.bf16.msra.mxu0 %v338
    %516 = vmatpush.bf16.msra.mxu0 %v336
    %517 = vmatpush.bf16.msra.mxu0 %v334
    %518 = vmatmul.bf16.gmra.mxu0 %v118
    %v519 = vpop.f32.mrf.mxu0
    %v520 = vadd.f32 %v507, %v519
    %v521 = vpop.f32.mrf.mxu0
    %522 = vdwg.mxu0
    %523 = vmatpush.bf16.msra.mxu0 %v364
    %524 = vmatpush.bf16.msra.mxu0 %v362
    %525 = vmatpush.bf16.msra.mxu0 %v360
    %526 = vmatpush.bf16.msra.mxu0 %v358
    %527 = vmatpush.bf16.msra.mxu0 %v356
    %528 = vmatpush.bf16.msra.mxu0 %v354
    %529 = vmatpush.bf16.msra.mxu0 %v352
    %530 = vmatpush.bf16.msra.mxu0 %v350
    %531 = vmatmul.bf16.gmra.mxu0 %v119
    %v532 = vpop.f32.mrf.mxu0
    %v533 = vadd.f32 %v520, %v532
    %v534 = vpop.f32.mrf.mxu0
    %535 = vdwg.mxu0
    %536 = vmatpush.bf16.msra.mxu0 %v380
    %537 = vmatpush.bf16.msra.mxu0 %v378
    %538 = vmatpush.bf16.msra.mxu0 %v376
    %539 = vmatpush.bf16.msra.mxu0 %v374
    %540 = vmatpush.bf16.msra.mxu0 %v372
    %541 = vmatpush.bf16.msra.mxu0 %v370
    %542 = vmatpush.bf16.msra.mxu0 %v368
    %543 = vmatpush.bf16.msra.mxu0 %v366
    %544 = vmatmul.bf16.gmra.mxu0 %v120
    %v545 = vpop.f32.mrf.mxu0
    %v546 = vadd.f32 %v533, %v545
    %v547 = vpop.f32.mrf.mxu0
    %548 = vdwg.mxu0
    %v551 = vrot.slane %v546, 6
    %vm552 = vcmask 1041408
    %v553 = vsel %vm552, %v494, %v551
    %v555 = vadd.f32 %v49, %v553
    %556 = vst [vmem:[#allocation2] sm:$0xf] %v555
    // Predicated region
    $region26: #{pointnet_torus_forward.14} parent=1 // pred_check
      %p557 = pneg %p44
    $region27: #{pointnet_torus_forward.14} parent=1 // pred_check_branch
      %559 = sbr.rel (%p557) target = $region29
    $region28: #{pointnet_torus_forward.14} parent=1 // pred_region
      %v560 = vld [vmem:[#allocation2] sm:$0xf]
      %v561 = vld [vmem:[#allocation5] sm:$0x3]
      %v563 = vperm.slane %v561, 0
      %v564 = vperm.slane %v561, 1
      %v565 = vrot.slane %v564, 6
      %v566 = vsel %vm552, %v563, %v565
      %v568 = vadd.f32 %v560, %v566
      %v569 = vmax.f32 %v568, 0.0
      %570 = vst [vmem:[%s3] sm:$0xf] %v569
    $region29: #{pointnet_torus_forward.14} parent=1 // pred_fallthru
      _
    // Predicated region
    $region30: #{pointnet_torus_forward.14} parent=1 // pred_check
      _
    $region31: #{pointnet_torus_forward.14} parent=1 // pred_check_branch
      %572 = sbr.rel (0) target = $region33
    $region32: #{pointnet_torus_forward.14} parent=1 // pred_region
      _
    $region33: #{pointnet_torus_forward.14} parent=1 // pred_fallthru
      _
    // Predicated region
    $region34: #{pointnet_torus_forward.14} parent=1 // pred_check
      _
    $region35: #{pointnet_torus_forward.14} parent=1 // pred_check_branch
      %574 = sbr.rel (0) target = $region37
    $region36: #{pointnet_torus_forward.14} parent=1 // pred_region
      _
    $region37: #{pointnet_torus_forward.14} parent=1 // pred_fallthru
      _
    %575 = vsyncpa [#allocation4], 1
    %576 = vsyncpa [#allocation6], 1

// kernel: pointnet_torus_forward.13
$region0: #{pointnet_torus_forward.13}
  #allocation0 [shape = 'u32[]', space=smem, size = 0x4, offset = 0x4, fixed_abs, tag = 'smem constant byte address 0x4 - core index']
  #allocation1 [shape = 'u32[72,128]{1,0:T(1,128)}', space=vmem, size = 0x9000, scoped, tag = 'internal scratch']
  #allocation2 [shape = 'f32[2,256]{1,0:T(2,128)}', space=vmem, size = 0x800, scoped, tag = 'scratch operand']
  %s0 = inlined_call_operand.vmem [shape: bf16[2,1024], index: 0, kind: input, shape index: {}]
  %s1 = inlined_call_operand.hbm [shape: bf16[1024,512], index: 1, kind: input, shape index: {}]
  %s2 = inlined_call_operand.hbm [shape: f32[1,512], index: 2, kind: input, shape index: {}]
  %s3 = inlined_call_operand.vmem [shape: f32[2,512], index: 3, kind: output, shape index: {}]
  %s4 = sld [smem:[#allocation0]]
  $region61: #{pointnet_torus_forward.13} parent=0
    _
  %s6 = ssub.s32 1, %s4
  %s7 = scalar_select 0, %s6, %s4
  $region1: #{pointnet_torus_forward.13} parent=0
    #allocation3 [shape = 'u8[524288]{0}', space=vmem, size = 0x80000, scoped, tag = 'input window, operand 1']
    #allocation4 [shape = 's32[2]{0}', space=sflag, size = 0x8, scoped, tag = 'scoped memory for pointnet_torus_forward.13']
    #allocation5 [shape = 'u8[2048]{0}', space=vmem, size = 0x800, scoped, tag = 'input window, operand 2']
    #allocation6 [shape = 's32[2]{0}', space=sflag, size = 0x8, scoped, tag = 'scoped memory for pointnet_torus_forward.13']
    %8 = vsyncpa [#allocation4], 0
    %s9 = scalar_lea.sflag [#allocation4], 1
    %10 = vsyncpa %s9, 0
    %11 = vsyncpa [#allocation6], 0
    %s12 = scalar_lea.sflag [#allocation6], 1
    %13 = vsyncpa %s12, 0
    loop: start=0, step=1, limit=6
    $region2: #{pointnet_torus_forward.13} parent=1 // loop_pre_header
      _
    $region3: #{pointnet_torus_forward.13} parent=1 // loop_header
      %s15 = sphi 0, %s19
      %p16 = scmp.ge.s32.totalorder %s15, 6
      %s22 = sphi 0, %s41
      %s23 = sphi 0, %s37
      %s24 = sphi 0, %s33
      %s25 = sphi 0, %s22
      %s26 = sphi 0, %s23
      %s27 = sphi 0, %s24
      %s28 = sphi 0, %s25
      %s29 = sphi 0, %s26
      %s30 = sphi 0, %s27
      %s46 = sphi 0, %s48
      %s49 = sphi 0, %s46
      %s50 = sphi 0, %s49
      %s66 = sphi 0, %s50
      %s74 = sphi 0, %s76
      %s77 = sphi 0, %s74
      %s78 = sphi 0, %s77
      %s94 = sphi 0, %s78
      %s100 = sphi 0, %s102
      %s103 = sphi 0, %s100
      %s104 = sphi 0, %s103
      %s120 = sphi 0, %s104
      %s128 = sphi 0, %s130
      %s131 = sphi 0, %s128
      %s132 = sphi 0, %s131
      %s148 = sphi 0, %s132
    $region4: #{pointnet_torus_forward.13} parent=1 // loop_header_branch
      %18 = sbr.rel (%p16) target = $region8
    $region5: #{pointnet_torus_forward.13} parent=1 // loop_body
      %s20 = ssub.s32 %s15, 1
      %s21 = ssub.s32 %s15, 2
      %s31 = sadd.s32 1, %s24
      %p32 = scmp.ge.s32.totalorder %s31, 2
      %s33 = scalar_select %p32, 0, %s31
      %s34 = sadd.s32 1, %s23
      %s35 = scalar_select %p32, %s34, %s23
      %p36 = scmp.ge.s32.totalorder %s35, 2
      %s37 = scalar_select %p36, 0, %s35
      %s38 = sadd.s32 1, %s22
      %s39 = scalar_select %p36, %s38, %s22
      %p40 = scmp.ge.s32.totalorder %s39, 1
      %s41 = scalar_select %p40, 0, %s39
      %s42 = ssub.s32 %s22, %s41
      %s43 = ssub.s32 %s24, %s33
      %s44 = sor.u32 %s42, %s43
      %p45 = scmp.eq.s32.totalorder %s44, 0
      %s47 = sadd.s32 %s46, 1
      %s48 = scalar_select %p45, %s46, %s47
      %p51 = pneg %p45
      %p52 = scmp.eq.s32.totalorder %s15, 3
      %p53 = por %p51, %p52
      %p54 = scmp.ne.s32.totalorder %s46, %s49
      %p55 = scmp.eq.s32.totalorder %s15, 0
      %p56 = por %p54, %p55
      %p57 = scmp.ne.s32.totalorder %s46, %s49
      %p58 = scmp.eq.s32.totalorder %s20, 3
      %p59 = por %p57, %p58
      %p60 = scmp.ne.s32.totalorder %s49, %s50
      %p61 = scmp.eq.s32.totalorder %s20, 0
      %p62 = por %p60, %p61
      %p63 = scmp.ne.s32.totalorder %s49, %s50
      %p64 = scmp.eq.s32.totalorder %s21, 3
      %p65 = por %p63, %p64
      %p67 = scmp.ne.s32.totalorder %s50, %s66
      %p68 = scmp.eq.s32.totalorder %s21, 0
      %p69 = por %p67, %p68
      %s70 = ssub.s32 %s24, %s33
      %s71 = ssub.s32 %s23, %s37
      %s72 = sor.u32 %s70, %s71
      %p73 = scmp.eq.s32.totalorder %s72, 0
      %s75 = sadd.s32 %s74, 1
      %s76 = scalar_select %p73, %s74, %s75
      %p79 = pneg %p73
      %p80 = scmp.eq.s32.totalorder %s15, 3
      %p81 = por %p79, %p80
      %p82 = scmp.ne.s32.totalorder %s74, %s77
      %p83 = scmp.eq.s32.totalorder %s15, 0
      %p84 = por %p82, %p83
      %p85 = scmp.ne.s32.totalorder %s74, %s77
      %p86 = scmp.eq.s32.totalorder %s20, 3
      %p87 = por %p85, %p86
      %p88 = scmp.ne.s32.totalorder %s77, %s78
      %p89 = scmp.eq.s32.totalorder %s20, 0
      %p90 = por %p88, %p89
      %p91 = scmp.ne.s32.totalorder %s77, %s78
      %p92 = scmp.eq.s32.totalorder %s21, 3
      %p93 = por %p91, %p92
      %p95 = scmp.ne.s32.totalorder %s78, %s94
      %p96 = scmp.eq.s32.totalorder %s21, 0
      %p97 = por %p95, %p96
      %s98 = ssub.s32 %s23, %s37
      %p99 = scmp.eq.s32.totalorder %s98, 0
      %s101 = sadd.s32 %s100, 1
      %s102 = scalar_select %p99, %s100, %s101
      %p105 = pneg %p99
      %p106 = scmp.eq.s32.totalorder %s15, 3
      %p107 = por %p105, %p106
      %p108 = scmp.ne.s32.totalorder %s100, %s103
      %p109 = scmp.eq.s32.totalorder %s15, 0
      %p110 = por %p108, %p109
      %p111 = scmp.ne.s32.totalorder %s100, %s103
      %p112 = scmp.eq.s32.totalorder %s20, 3
      %p113 = por %p111, %p112
      %p114 = scmp.ne.s32.totalorder %s103, %s104
      %p115 = scmp.eq.s32.totalorder %s20, 0
      %p116 = por %p114, %p115
      %p117 = scmp.ne.s32.totalorder %s103, %s104
      %p118 = scmp.eq.s32.totalorder %s21, 3
      %p119 = por %p117, %p118
      %p121 = scmp.ne.s32.totalorder %s104, %s120
      %p122 = scmp.eq.s32.totalorder %s21, 0
      %p123 = por %p121, %p122
      %s124 = ssub.s32 %s22, %s41
      %s125 = ssub.s32 %s23, %s37
      %s126 = sor.u32 %s124, %s125
      %p127 = scmp.eq.s32.totalorder %s126, 0
      %s129 = sadd.s32 %s128, 1
      %s130 = scalar_select %p127, %s128, %s129
      %p133 = pneg %p127
      %p134 = scmp.eq.s32.totalorder %s15, 3
      %p135 = por %p133, %p134
      %p136 = scmp.ne.s32.totalorder %s128, %s131
      %p137 = scmp.eq.s32.totalorder %s15, 0
      %p138 = por %p136, %p137
      %p139 = scmp.ne.s32.totalorder %s128, %s131
      %p140 = scmp.eq.s32.totalorder %s20, 3
      %p141 = por %p139, %p140
      %p142 = scmp.ne.s32.totalorder %s131, %s132
      %p143 = scmp.eq.s32.totalorder %s20, 0
      %p144 = por %p142, %p143
      %p145 = scmp.ne.s32.totalorder %s131, %s132
      %p146 = scmp.eq.s32.totalorder %s21, 3
      %p147 = por %p145, %p146
      %p149 = scmp.ne.s32.totalorder %s132, %s148
      %p150 = scmp.eq.s32.totalorder %s21, 0
      %p151 = por %p149, %p150
      %p152 = scmp.le.s32.totalorder 1, %s15
      %p153 = scmp.lt.s32.totalorder %s15, 5
      %p154 = pnand %p152, %p153
      %p155 = pneg %p154
      // Predicated region
      $region9: #{pointnet_torus_forward.13} parent=5 // pred_check
        _
      $region10: #{pointnet_torus_forward.13} parent=5 // pred_check_branch
        %157 = sbr.rel (%p154) target = $region12
      $region11: #{pointnet_torus_forward.13} parent=5 // pred_region
        %s158 = ssub.s32 %s15, 1
      $region12: #{pointnet_torus_forward.13} parent=5 // pred_fallthru
        _
      %p159 = scmp.lt.s32.totalorder %s15, 4
      // Predicated region
      $region13: #{pointnet_torus_forward.13} parent=5 // pred_check
        %p160 = pneg %p159
      $region14: #{pointnet_torus_forward.13} parent=5 // pred_check_branch
        %162 = sbr.rel (%p160) target = $region16
      $region15: #{pointnet_torus_forward.13} parent=5 // pred_region
        // Predicated region
        $region17: #{pointnet_torus_forward.13} parent=15 // pred_check
          %p163 = pneg %p56
        $region18: #{pointnet_torus_forward.13} parent=15 // pred_check_branch
          %165 = sbr.rel (%p163) target = $region20
        $region19: #{pointnet_torus_forward.13} parent=15 // pred_region
          %s166 = smul.u32 4, %s24
          %p167 = scmp.lt.s32.totalorder %s22, 0
          %s168 = scalar_select %p167, %s22, 0
          %p169 = scmp.lt.s32.totalorder %s166, 7
          %s170 = scalar_select %p169, %s166, 7
          %s171 = smul.addr %s168, 8
          %s172 = sadd.s32 %s170, %s171
          %s173 = scalar_lea.vmem %s0, %s172
          %s174 = smul.u32 4, %s24
        $region20: #{pointnet_torus_forward.13} parent=15 // pred_fallthru
          _
        // Predicated region
        $region21: #{pointnet_torus_forward.13} parent=15 // pred_check
          %p175 = pneg %p84
        $region22: #{pointnet_torus_forward.13} parent=15 // pred_check_branch
          %177 = sbr.rel (%p175) target = $region24
        $region23: #{pointnet_torus_forward.13} parent=15 // pred_region
          %s178 = sand.u32 %s74, 1
          %s179 = scalar_lea.sflag [#allocation4], %s178
          %s180 = sand.u32 %s74, 1
          %s181 = smul.addr %s180, 512
          %s182 = scalar_lea.vmem [#allocation3], %s181
          %s183 = smul.u32 64, %s24
          %s184 = smul.u32 2, %s23
          %186 = vsyncadd %s179, 0
          %s187 = smul.addr %s183, 4
          %s188 = sadd.s32 %s184, %s187
          %s189 = smul.addr %s188, 4
          %s190 = scalar_lea.hbm %s1, %s189
          %s191 = sshll.u32 %s190, 4
          %s192 = int_to_ptr.hbm [resolvable:$true] %s191
          %s193 = sshll.u32 %s182, 4
          %s194 = int_to_ptr.vmem [resolvable:$true] %s193
          %199 = dma.hbm_to_vmem [thread:$0]  %s192, 8192, %s194, %s179, 256, 128, 8
        $region24: #{pointnet_torus_forward.13} parent=15 // pred_fallthru
          _
        // Predicated region
        $region25: #{pointnet_torus_forward.13} parent=15 // pred_check
          %p200 = pneg %p110
        $region26: #{pointnet_torus_forward.13} parent=15 // pred_check_branch
          %202 = sbr.rel (%p200) target = $region28
        $region27: #{pointnet_torus_forward.13} parent=15 // pred_region
          %s203 = sand.u32 %s100, 1
          %s204 = scalar_lea.sflag [#allocation6], %s203
          %s205 = sand.u32 %s100, 1
          %s206 = smul.addr %s205, 2
          %s207 = scalar_lea.vmem [#allocation5], %s206
          %s208 = smul.u32 2, %s23
          %210 = vsyncadd %s204, 0
          %s211 = scalar_lea.hbm %s2, %s208
          %s213 = sshll.u32 %s211, 4
          %s214 = int_to_ptr.hbm [resolvable:$true] %s213
          %s215 = sshll.u32 %s207, 4
          %s216 = int_to_ptr.vmem [resolvable:$true] %s215
          %218 = dma.hbm_to_vmem [thread:$0]  %s214, 32, %s216, %s204
        $region28: #{pointnet_torus_forward.13} parent=15 // pred_fallthru
          _
      $region16: #{pointnet_torus_forward.13} parent=5 // pred_fallthru
        _
      %p219 = scmp.le.s32.totalorder 1, %s15
      %p220 = scmp.lt.s32.totalorder %s15, 5
      %p221 = pnand %p219, %p220
      %p222 = pneg %p221
      // Predicated region
      $region29: #{pointnet_torus_forward.13} parent=5 // pred_check
        _
      $region30: #{pointnet_torus_forward.13} parent=5 // pred_check_branch
        %224 = sbr.rel (%p221) target = $region32
      $region31: #{pointnet_torus_forward.13} parent=5 // pred_region
        %s225 = ssub.s32 %s15, 1
        %s226 = sand.u32 %s77, 1
        %s227 = scalar_lea.sflag [#allocation4], %s226
        %s228 = sand.u32 %s77, 1
        %s229 = smul.addr %s228, 512
        %s230 = scalar_lea.vmem [#allocation3], %s229
        // Predicated region
        $region33: #{pointnet_torus_forward.13} parent=31 // pred_check
          %p231 = pneg %p90
        $region34: #{pointnet_torus_forward.13} parent=31 // pred_check_branch
          %233 = sbr.rel (%p231) target = $region36
        $region35: #{pointnet_torus_forward.13} parent=31 // pred_region
          %235 = dma.done %s227, 8192
        $region36: #{pointnet_torus_forward.13} parent=31 // pred_fallthru
          _
        %s236 = sand.u32 %s103, 1
        %s237 = scalar_lea.sflag [#allocation6], %s236
        %s238 = sand.u32 %s103, 1
        %s239 = smul.addr %s238, 2
        %s240 = scalar_lea.vmem [#allocation5], %s239
        // Predicated region
        $region37: #{pointnet_torus_forward.13} parent=31 // pred_check
          %p241 = pneg %p116
        $region38: #{pointnet_torus_forward.13} parent=31 // pred_check_branch
          %243 = sbr.rel (%p241) target = $region40
        $region39: #{pointnet_torus_forward.13} parent=31 // pred_region
          %245 = dma.done %s237, 32
        $region40: #{pointnet_torus_forward.13} parent=31 // pred_fallthru
          _
        %s246 = smul.u32 4, %s27
        %p247 = scmp.lt.s32.totalorder %s25, 0
        %s248 = scalar_select %p247, %s25, 0
        %p249 = scmp.lt.s32.totalorder %s246, 7
        %s250 = scalar_select %p249, %s246, 7
        %s251 = smul.addr %s248, 8
        %s252 = sadd.s32 %s250, %s251
        %s253 = scalar_lea.vmem %s0, %s252
        %p254 = pneg %p62
        %p255 = pneg %p59
        %s256 = sand.u32 %s77, 1
        %s257 = scalar_lea.sflag [#allocation4], %s256
        %s258 = sand.u32 %s77, 1
        %s259 = smul.addr %s258, 512
        %s260 = scalar_lea.vmem [#allocation3], %s259
        %p261 = pneg %p90
        %p262 = pneg %p87
        %s263 = sand.u32 %s103, 1
        %s264 = scalar_lea.sflag [#allocation6], %s263
        %s265 = sand.u32 %s103, 1
        %s266 = smul.addr %s265, 2
        %s267 = scalar_lea.vmem [#allocation5], %s266
        %p268 = pneg %p116
        %p269 = pneg %p113
        %p270 = pneg %p144
        %p271 = pneg %p141
        %s272 = smul.u32 2, %s26
        %p273 = scmp.lt.s32.totalorder %s25, 0
        %s274 = scalar_select %p273, %s25, 0
        %p275 = scmp.lt.s32.totalorder %s272, 3
        %s276 = scalar_select %p275, %s272, 3
        %s277 = smul.addr %s274, 4
        %s278 = sadd.s32 %s276, %s277
        %s279 = smul.addr %s278, 2
        %s280 = scalar_lea.vmem %s3, %s279
        %s281 = smul.u32 4, %s27
        %p282 = scmp.lt.s32.totalorder %s25, 0
        %s283 = scalar_select %p282, %s25, 0
        %p284 = scmp.lt.s32.totalorder %s281, 7
        %s285 = scalar_select %p284, %s281, 7
        %s286 = smul.addr %s283, 8
        %s287 = sadd.s32 %s285, %s286
        %s288 = scalar_lea.vmem %s0, %s287
        %s289 = smul.u32 4, %s27
        %s290 = smul.u32 64, %s27
        %s291 = smul.u32 2, %s26
        %s292 = smul.u32 2, %s26
        %s293 = smul.u32 2, %s26
        %p294 = scmp.lt.s32.totalorder %s25, 0
        %s295 = scalar_select %p294, %s25, 0
        %p296 = scmp.lt.s32.totalorder %s293, 3
        %s297 = scalar_select %p296, %s293, 3
        %s298 = smul.addr %s295, 4
        %s299 = sadd.s32 %s297, %s298
        %s300 = smul.addr %s299, 2
        %s301 = scalar_lea.vmem %s3, %s300
        %s302 = smul.u32 2, %s26
        %p303 = scmp.eq.s32.totalorder %s27, 0
        // Predicated region
        $region41: #{pointnet_torus_forward.13} parent=31 // pred_check
          %p304 = pneg %p303
        $region42: #{pointnet_torus_forward.13} parent=31 // pred_check_branch
          %306 = sbr.rel (%p304) target = $region44
        $region43: #{pointnet_torus_forward.13} parent=31 // pred_region
          %307 = vst [vmem:[#allocation2] sm:$0xf] 0.0
        $region44: #{pointnet_torus_forward.13} parent=31 // pred_fallthru
          _
        %v308 = vld [vmem:[#allocation2] sm:$0xf]
        %v309 = vld [vmem:[%s288] sm:$0xf]
        %v310 = vld [vmem:[%s230] sm:$0xff]
        %v311 = vld [vmem:[%s230 + $0x8] sm:$0xff]
        %v312 = vld [vmem:[%s230 + $0x10] sm:$0xff]
        %v313 = vld [vmem:[%s230 + $0x18] sm:$0xff]
        %v314 = vld [vmem:[%s230 + $0x20] sm:$0xff]
        %v315 = vld [vmem:[%s230 + $0x28] sm:$0xff]
        %v316 = vld [vmem:[%s230 + $0x30] sm:$0xff]
        %v317 = vld [vmem:[%s230 + $0x38] sm:$0xff]
        %v318 = vld [vmem:[%s230 + $0x40] sm:$0xff]
        %v319 = vld [vmem:[%s230 + $0x48] sm:$0xff]
        %v320 = vld [vmem:[%s230 + $0x50] sm:$0xff]
        %v321 = vld [vmem:[%s230 + $0x58] sm:$0xff]
        %v322 = vld [vmem:[%s230 + $0x60] sm:$0xff]
        %v323 = vld [vmem:[%s230 + $0x68] sm:$0xff]
        %v324 = vld [vmem:[%s230 + $0x70] sm:$0xff]
        %v325 = vld [vmem:[%s230 + $0x78] sm:$0xff]
        %v326 = vld [vmem:[%s230 + $0x80] sm:$0xff]
        %v327 = vld [vmem:[%s230 + $0x88] sm:$0xff]
        %v328 = vld [vmem:[%s230 + $0x90] sm:$0xff]
        %v329 = vld [vmem:[%s230 + $0x98] sm:$0xff]
        %v330 = vld [vmem:[%s230 + $0xa0] sm:$0xff]
        %v331 = vld [vmem:[%s230 + $0xa8] sm:$0xff]
        %v332 = vld [vmem:[%s230 + $0xb0] sm:$0xff]
        %v333 = vld [vmem:[%s230 + $0xb8] sm:$0xff]
        %v334 = vld [vmem:[%s230 + $0xc0] sm:$0xff]
        %v335 = vld [vmem:[%s230 + $0xc8] sm:$0xff]
        %v336 = vld [vmem:[%s230 + $0xd0] sm:$0xff]
        %v337 = vld [vmem:[%s230 + $0xd8] sm:$0xff]
        %v338 = vld [vmem:[%s230 + $0xe0] sm:$0xff]
        %v339 = vld [vmem:[%s230 + $0xe8] sm:$0xff]
        %v340 = vld [vmem:[%s230 + $0xf0] sm:$0xff]
        %v341 = vld [vmem:[%s230 + $0xf8] sm:$0xff]
        %v342 = vld [vmem:[%s230 + $0x100] sm:$0xff]
        %v343 = vld [vmem:[%s230 + $0x108] sm:$0xff]
        %v344 = vld [vmem:[%s230 + $0x110] sm:$0xff]
        %v345 = vld [vmem:[%s230 + $0x118] sm:$0xff]
        %v346 = vld [vmem:[%s230 + $0x120] sm:$0xff]
        %v347 = vld [vmem:[%s230 + $0x128] sm:$0xff]
        %v348 = vld [vmem:[%s230 + $0x130] sm:$0xff]
        %v349 = vld [vmem:[%s230 + $0x138] sm:$0xff]
        %v350 = vld [vmem:[%s230 + $0x140] sm:$0xff]
        %v351 = vld [vmem:[%s230 + $0x148] sm:$0xff]
        %v352 = vld [vmem:[%s230 + $0x150] sm:$0xff]
        %v353 = vld [vmem:[%s230 + $0x158] sm:$0xff]
        %v354 = vld [vmem:[%s230 + $0x160] sm:$0xff]
        %v355 = vld [vmem:[%s230 + $0x168] sm:$0xff]
        %v356 = vld [vmem:[%s230 + $0x170] sm:$0xff]
        %v357 = vld [vmem:[%s230 + $0x178] sm:$0xff]
        %v358 = vld [vmem:[%s230 + $0x180] sm:$0xff]
        %v359 = vld [vmem:[%s230 + $0x188] sm:$0xff]
        %v360 = vld [vmem:[%s230 + $0x190] sm:$0xff]
        %v361 = vld [vmem:[%s230 + $0x198] sm:$0xff]
        %v362 = vld [vmem:[%s230 + $0x1a0] sm:$0xff]
        %v363 = vld [vmem:[%s230 + $0x1a8] sm:$0xff]
        %v364 = vld [vmem:[%s230 + $0x1b0] sm:$0xff]
        %v365 = vld [vmem:[%s230 + $0x1b8] sm:$0xff]
        %v366 = vld [vmem:[%s230 + $0x1c0] sm:$0xff]
        %v367 = vld [vmem:[%s230 + $0x1c8] sm:$0xff]
        %v368 = vld [vmem:[%s230 + $0x1d0] sm:$0xff]
        %v369 = vld [vmem:[%s230 + $0x1d8] sm:$0xff]
        %v370 = vld [vmem:[%s230 + $0x1e0] sm:$0xff]
        %v371 = vld [vmem:[%s230 + $0x1e8] sm:$0xff]
        %v372 = vld [vmem:[%s230 + $0x1f0] sm:$0xff]
        %v373 = vld [vmem:[%s230 + $0x1f8] sm:$0xff]
        %375 = vst [vmem:[#allocation1] ss:$9 sm:$0xff] %v309
        %v376 = vld [vmem:[#allocation1] sm:$0xff]
        %v377 = vld [vmem:[#allocation1 + $0x9] sm:$0xff]
        %v378 = vld [vmem:[#allocation1 + $0x12] sm:$0xff]
        %v379 = vld [vmem:[#allocation1 + $0x1b] sm:$0xff]
        %v448 = vunpack.c.l.b16 %v310
        %v449 = vunpack.c.h.b16 %v310
        %v450 = vunpack.c.l.b16 %v311
        %v451 = vunpack.c.h.b16 %v311
        %v452 = vunpack.c.l.b16 %v312
        %v453 = vunpack.c.h.b16 %v312
        %v454 = vunpack.c.l.b16 %v313
        %v455 = vunpack.c.h.b16 %v313
        %v456 = vunpack.c.l.b16 %v314
        %v457 = vunpack.c.h.b16 %v314
        %v458 = vunpack.c.l.b16 %v315
        %v459 = vunpack.c.h.b16 %v315
        %v460 = vunpack.c.l.b16 %v316
        %v461 = vunpack.c.h.b16 %v316
        %v462 = vunpack.c.l.b16 %v317
        %v463 = vunpack.c.h.b16 %v317
        %v464 = vunpack.c.l.b16 %v318
        %v465 = vunpack.c.h.b16 %v318
        %v466 = vunpack.c.l.b16 %v319
        %v467 = vunpack.c.h.b16 %v319
        %v468 = vunpack.c.l.b16 %v320
        %v469 = vunpack.c.h.b16 %v320
        %v470 = vunpack.c.l.b16 %v321
        %v471 = vunpack.c.h.b16 %v321
        %v472 = vunpack.c.l.b16 %v322
        %v473 = vunpack.c.h.b16 %v322
        %v474 = vunpack.c.l.b16 %v323
        %v475 = vunpack.c.h.b16 %v323
        %v476 = vunpack.c.l.b16 %v324
        %v477 = vunpack.c.h.b16 %v324
        %v478 = vunpack.c.l.b16 %v325
        %v479 = vunpack.c.h.b16 %v325
        %v480 = vunpack.c.l.b16 %v326
        %v481 = vunpack.c.h.b16 %v326
        %v482 = vunpack.c.l.b16 %v327
        %v483 = vunpack.c.h.b16 %v327
        %v484 = vunpack.c.l.b16 %v328
        %v485 = vunpack.c.h.b16 %v328
        %v486 = vunpack.c.l.b16 %v329
        %v487 = vunpack.c.h.b16 %v329
        %v488 = vunpack.c.l.b16 %v330
        %v489 = vunpack.c.h.b16 %v330
        %v490 = vunpack.c.l.b16 %v331
        %v491 = vunpack.c.h.b16 %v331
        %v492 = vunpack.c.l.b16 %v332
        %v493 = vunpack.c.h.b16 %v332
        %v494 = vunpack.c.l.b16 %v333
        %v495 = vunpack.c.h.b16 %v333
        %v496 = vunpack.c.l.b16 %v334
        %v497 = vunpack.c.h.b16 %v334
        %v498 = vunpack.c.l.b16 %v335
        %v499 = vunpack.c.h.b16 %v335
        %v500 = vunpack.c.l.b16 %v336
        %v501 = vunpack.c.h.b16 %v336
        %v502 = vunpack.c.l.b16 %v337
        %v503 = vunpack.c.h.b16 %v337
        %v504 = vunpack.c.l.b16 %v338
        %v505 = vunpack.c.h.b16 %v338
        %v506 = vunpack.c.l.b16 %v339
        %v507 = vunpack.c.h.b16 %v339
        %v508 = vunpack.c.l.b16 %v340
        %v509 = vunpack.c.h.b16 %v340
        %v510 = vunpack.c.l.b16 %v341
        %v511 = vunpack.c.h.b16 %v341
        %v512 = vunpack.c.l.b16 %v342
        %v513 = vunpack.c.h.b16 %v342
        %v514 = vunpack.c.l.b16 %v343
        %v515 = vunpack.c.h.b16 %v343
        %v516 = vunpack.c.l.b16 %v344
        %v517 = vunpack.c.h.b16 %v344
        %v518 = vunpack.c.l.b16 %v345
        %v519 = vunpack.c.h.b16 %v345
        %v520 = vunpack.c.l.b16 %v346
        %v521 = vunpack.c.h.b16 %v346
        %v522 = vunpack.c.l.b16 %v347
        %v523 = vunpack.c.h.b16 %v347
        %v524 = vunpack.c.l.b16 %v348
        %v525 = vunpack.c.h.b16 %v348
        %v526 = vunpack.c.l.b16 %v349
        %v527 = vunpack.c.h.b16 %v349
        %v528 = vunpack.c.l.b16 %v350
        %v529 = vunpack.c.h.b16 %v350
        %v530 = vunpack.c.l.b16 %v351
        %v531 = vunpack.c.h.b16 %v351
        %v532 = vunpack.c.l.b16 %v352
        %v533 = vunpack.c.h.b16 %v352
        %v534 = vunpack.c.l.b16 %v353
        %v535 = vunpack.c.h.b16 %v353
        %v536 = vunpack.c.l.b16 %v354
        %v537 = vunpack.c.h.b16 %v354
        %v538 = vunpack.c.l.b16 %v355
        %v539 = vunpack.c.h.b16 %v355
        %v540 = vunpack.c.l.b16 %v356
        %v541 = vunpack.c.h.b16 %v356
        %v542 = vunpack.c.l.b16 %v357
        %v543 = vunpack.c.h.b16 %v357
        %v544 = vunpack.c.l.b16 %v358
        %v545 = vunpack.c.h.b16 %v358
        %v546 = vunpack.c.l.b16 %v359
        %v547 = vunpack.c.h.b16 %v359
        %v548 = vunpack.c.l.b16 %v360
        %v549 = vunpack.c.h.b16 %v360
        %v550 = vunpack.c.l.b16 %v361
        %v551 = vunpack.c.h.b16 %v361
        %v552 = vunpack.c.l.b16 %v362
        %v553 = vunpack.c.h.b16 %v362
        %v554 = vunpack.c.l.b16 %v363
        %v555 = vunpack.c.h.b16 %v363
        %v556 = vunpack.c.l.b16 %v364
        %v557 = vunpack.c.h.b16 %v364
        %v558 = vunpack.c.l.b16 %v365
        %v559 = vunpack.c.h.b16 %v365
        %v560 = vunpack.c.l.b16 %v366
        %v561 = vunpack.c.h.b16 %v366
        %v562 = vunpack.c.l.b16 %v367
        %v563 = vunpack.c.h.b16 %v367
        %v564 = vunpack.c.l.b16 %v368
        %v565 = vunpack.c.h.b16 %v368
        %v566 = vunpack.c.l.b16 %v369
        %v567 = vunpack.c.h.b16 %v369
        %v568 = vunpack.c.l.b16 %v370
        %v569 = vunpack.c.h.b16 %v370
        %v570 = vunpack.c.l.b16 %v371
        %v571 = vunpack.c.h.b16 %v371
        %v572 = vunpack.c.l.b16 %v372
        %v573 = vunpack.c.h.b16 %v372
        %v574 = vunpack.c.l.b16 %v373
        %v575 = vunpack.c.h.b16 %v373
        %v576 = vpack.c.b16 %v450, %v448
        %v577 = vpack.c.b16 %v451, %v449
        %v578 = vpack.c.b16 %v454, %v452
        %v579 = vpack.c.b16 %v455, %v453
        %v580 = vpack.c.b16 %v458, %v456
        %v581 = vpack.c.b16 %v459, %v457
        %v582 = vpack.c.b16 %v462, %v460
        %v583 = vpack.c.b16 %v463, %v461
        %v584 = vpack.c.b16 %v466, %v464
        %v585 = vpack.c.b16 %v467, %v465
        %v586 = vpack.c.b16 %v470, %v468
        %v587 = vpack.c.b16 %v471, %v469
        %v588 = vpack.c.b16 %v474, %v472
        %v589 = vpack.c.b16 %v475, %v473
        %v590 = vpack.c.b16 %v478, %v476
        %v591 = vpack.c.b16 %v479, %v477
        %v592 = vpack.c.b16 %v482, %v480
        %v593 = vpack.c.b16 %v483, %v481
        %v594 = vpack.c.b16 %v486, %v484
        %v595 = vpack.c.b16 %v487, %v485
        %v596 = vpack.c.b16 %v490, %v488
        %v597 = vpack.c.b16 %v491, %v489
        %v598 = vpack.c.b16 %v494, %v492
        %v599 = vpack.c.b16 %v495, %v493
        %v600 = vpack.c.b16 %v498, %v496
        %v601 = vpack.c.b16 %v499, %v497
        %v602 = vpack.c.b16 %v502, %v500
        %v603 = vpack.c.b16 %v503, %v501
        %v604 = vpack.c.b16 %v506, %v504
        %v605 = vpack.c.b16 %v507, %v505
        %v606 = vpack.c.b16 %v510, %v508
        %v607 = vpack.c.b16 %v511, %v509
        %v608 = vpack.c.b16 %v514, %v512
        %v609 = vpack.c.b16 %v515, %v513
        %v610 = vpack.c.b16 %v518, %v516
        %v611 = vpack.c.b16 %v519, %v517
        %v612 = vpack.c.b16 %v522, %v520
        %v613 = vpack.c.b16 %v523, %v521
        %v614 = vpack.c.b16 %v526, %v524
        %v615 = vpack.c.b16 %v527, %v525
        %v616 = vpack.c.b16 %v530, %v528
        %v617 = vpack.c.b16 %v531, %v529
        %v618 = vpack.c.b16 %v534, %v532
        %v619 = vpack.c.b16 %v535, %v533
        %v620 = vpack.c.b16 %v538, %v536
        %v621 = vpack.c.b16 %v539, %v537
        %v622 = vpack.c.b16 %v542, %v540
        %v623 = vpack.c.b16 %v543, %v541
        %v624 = vpack.c.b16 %v546, %v544
        %v625 = vpack.c.b16 %v547, %v545
        %v626 = vpack.c.b16 %v550, %v548
        %v627 = vpack.c.b16 %v551, %v549
        %v628 = vpack.c.b16 %v554, %v552
        %v629 = vpack.c.b16 %v555, %v553
        %v630 = vpack.c.b16 %v558, %v556
        %v631 = vpack.c.b16 %v559, %v557
        %v632 = vpack.c.b16 %v562, %v560
        %v633 = vpack.c.b16 %v563, %v561
        %v634 = vpack.c.b16 %v566, %v564
        %v635 = vpack.c.b16 %v567, %v565
        %v636 = vpack.c.b16 %v570, %v568
        %v637 = vpack.c.b16 %v571, %v569
        %v638 = vpack.c.b16 %v574, %v572
        %v639 = vpack.c.b16 %v575, %v573
        %704 = vmatpush.bf16.msra.mxu0 %v590
        %705 = vmatpush.bf16.msra.mxu0 %v588
        %706 = vmatpush.bf16.msra.mxu0 %v586
        %707 = vmatpush.bf16.msra.mxu0 %v584
        %708 = vmatpush.bf16.msra.mxu0 %v582
        %709 = vmatpush.bf16.msra.mxu0 %v580
        %710 = vmatpush.bf16.msra.mxu0 %v578
        %711 = vmatpush.bf16.msra.mxu0 %v576
        %712 = vmatmul.bf16.gmra.mxu0 %v376
        %v713 = vpop.f32.mrf.mxu0
        %v714 = vadd.f32 0.0, %v713
        %v715 = vpop.f32.mrf.mxu0
        %716 = vdwg.mxu0
        %717 = vmatpush.bf16.msra.mxu0 %v606
        %718 = vmatpush.bf16.msra.mxu0 %v604
        %719 = vmatpush.bf16.msra.mxu0 %v602
        %720 = vmatpush.bf16.msra.mxu0 %v600
        %721 = vmatpush.bf16.msra.mxu0 %v598
        %722 = vmatpush.bf16.msra.mxu0 %v596
        %723 = vmatpush.bf16.msra.mxu0 %v594
        %724 = vmatpush.bf16.msra.mxu0 %v592
        %725 = vmatmul.bf16.gmra.mxu0 %v377
        %v726 = vpop.f32.mrf.mxu0
        %v727 = vadd.f32 %v714, %v726
        %v728 = vpop.f32.mrf.mxu0
        %729 = vdwg.mxu0
        %730 = vmatpush.bf16.msra.mxu0 %v622
        %731 = vmatpush.bf16.msra.mxu0 %v620
        %732 = vmatpush.bf16.msra.mxu0 %v618
        %733 = vmatpush.bf16.msra.mxu0 %v616
        %734 = vmatpush.bf16.msra.mxu0 %v614
        %735 = vmatpush.bf16.msra.mxu0 %v612
        %736 = vmatpush.bf16.msra.mxu0 %v610
        %737 = vmatpush.bf16.msra.mxu0 %v608
        %738 = vmatmul.bf16.gmra.mxu0 %v378
        %v739 = vpop.f32.mrf.mxu0
        %v740 = vadd.f32 %v727, %v739
        %v741 = vpop.f32.mrf.mxu0
        %742 = vdwg.mxu0
        %743 = vmatpush.bf16.msra.mxu0 %v638
        %744 = vmatpush.bf16.msra.mxu0 %v636
        %745 = vmatpush.bf16.msra.mxu0 %v634
        %746 = vmatpush.bf16.msra.mxu0 %v632
        %747 = vmatpush.bf16.msra.mxu0 %v630
        %748 = vmatpush.bf16.msra.mxu0 %v628
        %749 = vmatpush.bf16.msra.mxu0 %v626
        %750 = vmatpush.bf16.msra.mxu0 %v624
        %751 = vmatmul.bf16.gmra.mxu0 %v379
        %v752 = vpop.f32.mrf.mxu0
        %v753 = vadd.f32 %v740, %v752
        %v754 = vpop.f32.mrf.mxu0
        %755 = vdwg.mxu0
        %756 = vmatpush.bf16.msra.mxu0 %v591
        %757 = vmatpush.bf16.msra.mxu0 %v589
        %758 = vmatpush.bf16.msra.mxu0 %v587
        %759 = vmatpush.bf16.msra.mxu0 %v585
        %760 = vmatpush.bf16.msra.mxu0 %v583
        %761 = vmatpush.bf16.msra.mxu0 %v581
        %762 = vmatpush.bf16.msra.mxu0 %v579
        %763 = vmatpush.bf16.msra.mxu0 %v577
        %764 = vmatmul.bf16.gmra.mxu0 %v376
        %v765 = vpop.f32.mrf.mxu0
        %v766 = vadd.f32 0.0, %v765
        %v767 = vpop.f32.mrf.mxu0
        %768 = vdwg.mxu0
        %769 = vmatpush.bf16.msra.mxu0 %v607
        %770 = vmatpush.bf16.msra.mxu0 %v605
        %771 = vmatpush.bf16.msra.mxu0 %v603
        %772 = vmatpush.bf16.msra.mxu0 %v601
        %773 = vmatpush.bf16.msra.mxu0 %v599
        %774 = vmatpush.bf16.msra.mxu0 %v597
        %775 = vmatpush.bf16.msra.mxu0 %v595
        %776 = vmatpush.bf16.msra.mxu0 %v593
        %777 = vmatmul.bf16.gmra.mxu0 %v377
        %v778 = vpop.f32.mrf.mxu0
        %v779 = vadd.f32 %v766, %v778
        %v780 = vpop.f32.mrf.mxu0
        %781 = vdwg.mxu0
        %782 = vmatpush.bf16.msra.mxu0 %v623
        %783 = vmatpush.bf16.msra.mxu0 %v621
        %784 = vmatpush.bf16.msra.mxu0 %v619
        %785 = vmatpush.bf16.msra.mxu0 %v617
        %786 = vmatpush.bf16.msra.mxu0 %v615
        %787 = vmatpush.bf16.msra.mxu0 %v613
        %788 = vmatpush.bf16.msra.mxu0 %v611
        %789 = vmatpush.bf16.msra.mxu0 %v609
        %790 = vmatmul.bf16.gmra.mxu0 %v378
        %v791 = vpop.f32.mrf.mxu0
        %v792 = vadd.f32 %v779, %v791
        %v793 = vpop.f32.mrf.mxu0
        %794 = vdwg.mxu0
        %795 = vmatpush.bf16.msra.mxu0 %v639
        %796 = vmatpush.bf16.msra.mxu0 %v637
        %797 = vmatpush.bf16.msra.mxu0 %v635
        %798 = vmatpush.bf16.msra.mxu0 %v633
        %799 = vmatpush.bf16.msra.mxu0 %v631
        %800 = vmatpush.bf16.msra.mxu0 %v629
        %801 = vmatpush.bf16.msra.mxu0 %v627
        %802 = vmatpush.bf16.msra.mxu0 %v625
        %803 = vmatmul.bf16.gmra.mxu0 %v379
        %v804 = vpop.f32.mrf.mxu0
        %v805 = vadd.f32 %v792, %v804
        %v806 = vpop.f32.mrf.mxu0
        %807 = vdwg.mxu0
        %v810 = vrot.slane %v805, 6
        %vm811 = vcmask 1041408
        %v812 = vsel %vm811, %v753, %v810
        %v814 = vadd.f32 %v308, %v812
        %815 = vst [vmem:[#allocation2] sm:$0xf] %v814
        %p816 = scmp.eq.s32.totalorder %s27, 1
        // Predicated region
        $region45: #{pointnet_torus_forward.13} parent=31 // pred_check
          %p817 = pneg %p816
        $region46: #{pointnet_torus_forward.13} parent=31 // pred_check_branch
          %819 = sbr.rel (%p817) target = $region48
        $region47: #{pointnet_torus_forward.13} parent=31 // pred_region
          %v820 = vld [vmem:[#allocation2] sm:$0xf]
          %v821 = vld [vmem:[%s240] sm:$0x3]
          %v823 = vperm.slane %v821, 0
          %v824 = vperm.slane %v821, 1
          %v825 = vrot.slane %v824, 6
          %v826 = vsel %vm811, %v823, %v825
          %v828 = vadd.f32 %v820, %v826
          %v829 = vmax.f32 %v828, 0.0
          %830 = vst [vmem:[%s301] sm:$0xf] %v829
        $region48: #{pointnet_torus_forward.13} parent=31 // pred_fallthru
          _
        %s831 = smul.u32 2, %s26
        %p832 = scmp.lt.s32.totalorder %s25, 0
        %s833 = scalar_select %p832, %s25, 0
        %p834 = scmp.lt.s32.totalorder %s831, 3
        %s835 = scalar_select %p834, %s831, 3
        %s836 = smul.addr %s833, 4
        %s837 = sadd.s32 %s835, %s836
        %s838 = smul.addr %s837, 2
        %s839 = scalar_lea.vmem %s3, %s838
        // Predicated region
        $region49: #{pointnet_torus_forward.13} parent=31 // pred_check
          %p840 = pneg %p141
        $region50: #{pointnet_torus_forward.13} parent=31 // pred_check_branch
          %842 = sbr.rel (%p840) target = $region52
        $region51: #{pointnet_torus_forward.13} parent=31 // pred_region
          %s843 = smul.u32 2, %s26
        $region52: #{pointnet_torus_forward.13} parent=31 // pred_fallthru
          _
      $region32: #{pointnet_torus_forward.13} parent=5 // pred_fallthru
        _
      %p844 = scmp.le.s32.totalorder 2, %s15
      // Predicated region
      $region53: #{pointnet_torus_forward.13} parent=5 // pred_check
        %p845 = pneg %p844
      $region54: #{pointnet_torus_forward.13} parent=5 // pred_check_branch
        %847 = sbr.rel (%p845) target = $region56
      $region55: #{pointnet_torus_forward.13} parent=5 // pred_region
        %s848 = ssub.s32 %s15, 2
        // Predicated region
        $region57: #{pointnet_torus_forward.13} parent=55 // pred_check
          %p849 = pneg %p147
        $region58: #{pointnet_torus_forward.13} parent=55 // pred_check_branch
          %851 = sbr.rel (%p849) target = $region60
        $region59: #{pointnet_torus_forward.13} parent=55 // pred_region
          %s852 = smul.u32 2, %s29
          %p853 = scmp.lt.s32.totalorder %s28, 0
          %s854 = scalar_select %p853, %s28, 0
          %p855 = scmp.lt.s32.totalorder %s852, 3
          %s856 = scalar_select %p855, %s852, 3
          %s857 = smul.addr %s854, 4
          %s858 = sadd.s32 %s856, %s857
          %s859 = smul.addr %s858, 2
          %s860 = scalar_lea.vmem %s3, %s859
        $region60: #{pointnet_torus_forward.13} parent=55 // pred_fallthru
          _
      $region56: #{pointnet_torus_forward.13} parent=5 // pred_fallthru
        _
    $region6: #{pointnet_torus_forward.13} parent=1 // loop_footer
      %s19 = sadd.s32 1, %s15
    $region7: #{pointnet_torus_forward.13} parent=1 // loop_footer_branch
      %14 = sbr.rel target = $region3
    $region8: #{pointnet_torus_forward.13} parent=1 // loop_exit
      _
    %861 = vsyncpa [#allocation4], 1
    %s862 = scalar_lea.sflag [#allocation4], 1
    %863 = vsyncpa %s862, 1
    %864 = vsyncpa [#allocation6], 1
    %s865 = scalar_lea.sflag [#allocation6], 1
    %866 = vsyncpa %s865, 1

// kernel: pointnet_torus_forward.12
$region0: #{pointnet_torus_forward.12}
  #allocation0 [shape = 'u32[]', space=smem, size = 0x4, offset = 0x4, fixed_abs, tag = 'smem constant byte address 0x4 - core index']
  #allocation1 [shape = 'u32[72,128]{1,0:T(1,128)}', space=vmem, size = 0x9000, scoped, tag = 'internal scratch']
  %s0 = inlined_call_operand.vmem [shape: f32[2,512,3], index: 0, kind: input, shape index: {}]
  %s1 = inlined_call_operand.vmem [shape: f32[2,3,64], index: 1, kind: input, shape index: {}]
  %s2 = inlined_call_operand.hbm [shape: f32[1,64], index: 2, kind: input, shape index: {}]
  %s3 = inlined_call_operand.hbm [shape: bf16[64,128], index: 3, kind: input, shape index: {}]
  %s4 = inlined_call_operand.hbm [shape: f32[1,128], index: 4, kind: input, shape index: {}]
  %s5 = inlined_call_operand.hbm [shape: bf16[128,1024], index: 5, kind: input, shape index: {}]
  %s6 = inlined_call_operand.hbm [shape: f32[1,1024], index: 6, kind: input, shape index: {}]
  %s7 = inlined_call_operand.vmem [shape: f32[2,1,1024], index: 7, kind: output, shape index: {}]
  %s8 = sld [smem:[#allocation0]]
  $region85: #{pointnet_torus_forward.12} parent=0
    _
  %s10 = ssub.s32 1, %s8
  %s11 = scalar_select 0, %s10, %s8
  $region1: #{pointnet_torus_forward.12} parent=0
    #allocation2 [shape = 'u8[512]{0}', space=vmem, size = 0x400, scoped, tag = 'input window, operand 2, single buffered']
    #allocation3 [shape = 's32[2]{0}', space=sflag, size = 0x8, scoped, tag = 'scoped memory for pointnet_torus_forward.12']
    #allocation4 [shape = 'u8[16384]{0}', space=vmem, size = 0x4000, scoped, tag = 'input window, operand 3, single buffered']
    #allocation5 [shape = 's32[1]{0}', space=sflag, size = 0x4, scoped, tag = 'scoped memory for pointnet_torus_forward.12']
    #allocation6 [shape = 'u8[512]{0}', space=vmem, size = 0x400, scoped, tag = 'input window, operand 4, single buffered']
    #allocation7 [shape = 'u8[262144]{0}', space=vmem, size = 0x40000, scoped, tag = 'input window, operand 5, single buffered']
    #allocation8 [shape = 's32[1]{0}', space=sflag, size = 0x4, scoped, tag = 'scoped memory for pointnet_torus_forward.12']
    #allocation9 [shape = 'u8[4096]{0}', space=vmem, size = 0x1000, scoped, tag = 'input window, operand 6, single buffered']
    %12 = vsyncpa [#allocation3], 0
    %13 = vsyncpa [#allocation5], 0
    %14 = vsyncpa [#allocation8], 0
    loop: start=0, step=1, limit=6
    $region2: #{pointnet_torus_forward.12} parent=1 // loop_pre_header
      _
    $region3: #{pointnet_torus_forward.12} parent=1 // loop_header
      %s16 = sphi 0, %s20
      %p17 = scmp.ge.s32.totalorder %s16, 6
      %s23 = sphi 0, %s35
      %s24 = sphi 0, %s31
      %s25 = sphi 0, %s23
      %s26 = sphi 0, %s24
      %s27 = sphi 0, %s25
      %s28 = sphi 0, %s26
      %s40 = sphi 0, %s42
      %s43 = sphi 0, %s40
      %s44 = sphi 0, %s43
      %s60 = sphi 0, %s44
      %s66 = sphi 0, %s68
      %s69 = sphi 0, %s66
      %s70 = sphi 0, %s69
      %s86 = sphi 0, %s70
      %s90 = sphi 0, %s90
      %s92 = sphi 0, %s90
      %s93 = sphi 0, %s92
      %s107 = sphi 0, %s93
      %s111 = sphi 0, %s111
      %s113 = sphi 0, %s111
      %s114 = sphi 0, %s113
      %s128 = sphi 0, %s114
      %s132 = sphi 0, %s132
      %s134 = sphi 0, %s132
      %s135 = sphi 0, %s134
      %s149 = sphi 0, %s135
      %s153 = sphi 0, %s153
      %s155 = sphi 0, %s153
      %s156 = sphi 0, %s155
      %s170 = sphi 0, %s156
      %s174 = sphi 0, %s174
      %s176 = sphi 0, %s174
      %s177 = sphi 0, %s176
      %s191 = sphi 0, %s177
      %s197 = sphi 0, %s199
      %s200 = sphi 0, %s197
      %s201 = sphi 0, %s200
      %s217 = sphi 0, %s201
    $region4: #{pointnet_torus_forward.12} parent=1 // loop_header_branch
      %19 = sbr.rel (%p17) target = $region8
    $region5: #{pointnet_torus_forward.12} parent=1 // loop_body
      %s21 = ssub.s32 %s16, 1
      %s22 = ssub.s32 %s16, 2
      %s29 = sadd.s32 1, %s24
      %p30 = scmp.ge.s32.totalorder %s29, 2
      %s31 = scalar_select %p30, 0, %s29
      %s32 = sadd.s32 1, %s23
      %s33 = scalar_select %p30, %s32, %s23
      %p34 = scmp.ge.s32.totalorder %s33, 2
      %s35 = scalar_select %p34, 0, %s33
      %s36 = ssub.s32 %s23, %s35
      %s37 = ssub.s32 %s24, %s31
      %s38 = sor.u32 %s36, %s37
      %p39 = scmp.eq.s32.totalorder %s38, 0
      %s41 = sadd.s32 %s40, 1
      %s42 = scalar_select %p39, %s40, %s41
      %p45 = pneg %p39
      %p46 = scmp.eq.s32.totalorder %s16, 3
      %p47 = por %p45, %p46
      %p48 = scmp.ne.s32.totalorder %s40, %s43
      %p49 = scmp.eq.s32.totalorder %s16, 0
      %p50 = por %p48, %p49
      %p51 = scmp.ne.s32.totalorder %s40, %s43
      %p52 = scmp.eq.s32.totalorder %s21, 3
      %p53 = por %p51, %p52
      %p54 = scmp.ne.s32.totalorder %s43, %s44
      %p55 = scmp.eq.s32.totalorder %s21, 0
      %p56 = por %p54, %p55
      %p57 = scmp.ne.s32.totalorder %s43, %s44
      %p58 = scmp.eq.s32.totalorder %s22, 3
      %p59 = por %p57, %p58
      %p61 = scmp.ne.s32.totalorder %s44, %s60
      %p62 = scmp.eq.s32.totalorder %s22, 0
      %p63 = por %p61, %p62
      %s64 = ssub.s32 %s23, %s35
      %p65 = scmp.eq.s32.totalorder %s64, 0
      %s67 = sadd.s32 %s66, 1
      %s68 = scalar_select %p65, %s66, %s67
      %p71 = pneg %p65
      %p72 = scmp.eq.s32.totalorder %s16, 3
      %p73 = por %p71, %p72
      %p74 = scmp.ne.s32.totalorder %s66, %s69
      %p75 = scmp.eq.s32.totalorder %s16, 0
      %p76 = por %p74, %p75
      %p77 = scmp.ne.s32.totalorder %s66, %s69
      %p78 = scmp.eq.s32.totalorder %s21, 3
      %p79 = por %p77, %p78
      %p80 = scmp.ne.s32.totalorder %s69, %s70
      %p81 = scmp.eq.s32.totalorder %s21, 0
      %p82 = por %p80, %p81
      %p83 = scmp.ne.s32.totalorder %s69, %s70
      %p84 = scmp.eq.s32.totalorder %s22, 3
      %p85 = por %p83, %p84
      %p87 = scmp.ne.s32.totalorder %s70, %s86
      %p88 = scmp.eq.s32.totalorder %s22, 0
      %p89 = por %p87, %p88
      %s91 = sadd.s32 %s90, 1
      %p94 = scmp.eq.s32.totalorder %s16, 3
      %p95 = scmp.ne.s32.totalorder %s90, %s92
      %p96 = scmp.eq.s32.totalorder %s16, 0
      %p97 = por %p95, %p96
      %p98 = scmp.ne.s32.totalorder %s90, %s92
      %p99 = scmp.eq.s32.totalorder %s21, 3
      %p100 = por %p98, %p99
      %p101 = scmp.ne.s32.totalorder %s92, %s93
      %p102 = scmp.eq.s32.totalorder %s21, 0
      %p103 = por %p101, %p102
      %p104 = scmp.ne.s32.totalorder %s92, %s93
      %p105 = scmp.eq.s32.totalorder %s22, 3
      %p106 = por %p104, %p105
      %p108 = scmp.ne.s32.totalorder %s93, %s107
      %p109 = scmp.eq.s32.totalorder %s22, 0
      %p110 = por %p108, %p109
      %s112 = sadd.s32 %s111, 1
      %p115 = scmp.eq.s32.totalorder %s16, 3
      %p116 = scmp.ne.s32.totalorder %s111, %s113
      %p117 = scmp.eq.s32.totalorder %s16, 0
      %p118 = por %p116, %p117
      %p119 = scmp.ne.s32.totalorder %s111, %s113
      %p120 = scmp.eq.s32.totalorder %s21, 3
      %p121 = por %p119, %p120
      %p122 = scmp.ne.s32.totalorder %s113, %s114
      %p123 = scmp.eq.s32.totalorder %s21, 0
      %p124 = por %p122, %p123
      %p125 = scmp.ne.s32.totalorder %s113, %s114
      %p126 = scmp.eq.s32.totalorder %s22, 3
      %p127 = por %p125, %p126
      %p129 = scmp.ne.s32.totalorder %s114, %s128
      %p130 = scmp.eq.s32.totalorder %s22, 0
      %p131 = por %p129, %p130
      %s133 = sadd.s32 %s132, 1
      %p136 = scmp.eq.s32.totalorder %s16, 3
      %p137 = scmp.ne.s32.totalorder %s132, %s134
      %p138 = scmp.eq.s32.totalorder %s16, 0
      %p139 = por %p137, %p138
      %p140 = scmp.ne.s32.totalorder %s132, %s134
      %p141 = scmp.eq.s32.totalorder %s21, 3
      %p142 = por %p140, %p141
      %p143 = scmp.ne.s32.totalorder %s134, %s135
      %p144 = scmp.eq.s32.totalorder %s21, 0
      %p145 = por %p143, %p144
      %p146 = scmp.ne.s32.totalorder %s134, %s135
      %p147 = scmp.eq.s32.totalorder %s22, 3
      %p148 = por %p146, %p147
      %p150 = scmp.ne.s32.totalorder %s135, %s149
      %p151 = scmp.eq.s32.totalorder %s22, 0
      %p152 = por %p150, %p151
      %s154 = sadd.s32 %s153, 1
      %p157 = scmp.eq.s32.totalorder %s16, 3
      %p158 = scmp.ne.s32.totalorder %s153, %s155
      %p159 = scmp.eq.s32.totalorder %s16, 0
      %p160 = por %p158, %p159
      %p161 = scmp.ne.s32.totalorder %s153, %s155
      %p162 = scmp.eq.s32.totalorder %s21, 3
      %p163 = por %p161, %p162
      %p164 = scmp.ne.s32.totalorder %s155, %s156
      %p165 = scmp.eq.s32.totalorder %s21, 0
      %p166 = por %p164, %p165
      %p167 = scmp.ne.s32.totalorder %s155, %s156
      %p168 = scmp.eq.s32.totalorder %s22, 3
      %p169 = por %p167, %p168
      %p171 = scmp.ne.s32.totalorder %s156, %s170
      %p172 = scmp.eq.s32.totalorder %s22, 0
      %p173 = por %p171, %p172
      %s175 = sadd.s32 %s174, 1
      %p178 = scmp.eq.s32.totalorder %s16, 3
      %p179 = scmp.ne.s32.totalorder %s174, %s176
      %p180 = scmp.eq.s32.totalorder %s16, 0
      %p181 = por %p179, %p180
      %p182 = scmp.ne.s32.totalorder %s174, %s176
      %p183 = scmp.eq.s32.totalorder %s21, 3
      %p184 = por %p182, %p183
      %p185 = scmp.ne.s32.totalorder %s176, %s177
      %p186 = scmp.eq.s32.totalorder %s21, 0
      %p187 = por %p185, %p186
      %p188 = scmp.ne.s32.totalorder %s176, %s177
      %p189 = scmp.eq.s32.totalorder %s22, 3
      %p190 = por %p188, %p189
      %p192 = scmp.ne.s32.totalorder %s177, %s191
      %p193 = scmp.eq.s32.totalorder %s22, 0
      %p194 = por %p192, %p193
      %s195 = ssub.s32 %s23, %s35
      %p196 = scmp.eq.s32.totalorder %s195, 0
      %s198 = sadd.s32 %s197, 1
      %s199 = scalar_select %p196, %s197, %s198
      %p202 = pneg %p196
      %p203 = scmp.eq.s32.totalorder %s16, 3
      %p204 = por %p202, %p203
      %p205 = scmp.ne.s32.totalorder %s197, %s200
      %p206 = scmp.eq.s32.totalorder %s16, 0
      %p207 = por %p205, %p206
      %p208 = scmp.ne.s32.totalorder %s197, %s200
      %p209 = scmp.eq.s32.totalorder %s21, 3
      %p210 = por %p208, %p209
      %p211 = scmp.ne.s32.totalorder %s200, %s201
      %p212 = scmp.eq.s32.totalorder %s21, 0
      %p213 = por %p211, %p212
      %p214 = scmp.ne.s32.totalorder %s200, %s201
      %p215 = scmp.eq.s32.totalorder %s22, 3
      %p216 = por %p214, %p215
      %p218 = scmp.ne.s32.totalorder %s201, %s217
      %p219 = scmp.eq.s32.totalorder %s22, 0
      %p220 = por %p218, %p219
      %p221 = scmp.le.s32.totalorder 1, %s16
      %p222 = scmp.lt.s32.totalorder %s16, 5
      %p223 = pnand %p221, %p222
      %p224 = pneg %p223
      // Predicated region
      $region9: #{pointnet_torus_forward.12} parent=5 // pred_check
        _
      $region10: #{pointnet_torus_forward.12} parent=5 // pred_check_branch
        %226 = sbr.rel (%p223) target = $region12
      $region11: #{pointnet_torus_forward.12} parent=5 // pred_region
        %s227 = ssub.s32 %s16, 1
        // Predicated region
        $region13: #{pointnet_torus_forward.12} parent=11 // pred_check
          %p228 = pneg %p103
        $region14: #{pointnet_torus_forward.12} parent=11 // pred_check_branch
          %230 = sbr.rel (%p228) target = $region16
        $region15: #{pointnet_torus_forward.12} parent=11 // pred_region
          %232 = vsyncadd [#allocation3], 0
          %s234 = sshll.u32 %s2, 4
          %s235 = int_to_ptr.hbm [resolvable:$true] %s234
          %s236 = sshll.u32 [#allocation2], 4
          %s237 = int_to_ptr.vmem [resolvable:$true] %s236
          %239 = dma.hbm_to_vmem [thread:$0]  %s235, 16, %s237, [#allocation3]
        $region16: #{pointnet_torus_forward.12} parent=11 // pred_fallthru
          _
        // Predicated region
        $region17: #{pointnet_torus_forward.12} parent=11 // pred_check
          %p240 = pneg %p124
        $region18: #{pointnet_torus_forward.12} parent=11 // pred_check_branch
          %242 = sbr.rel (%p240) target = $region20
        $region19: #{pointnet_torus_forward.12} parent=11 // pred_region
          %244 = vsyncadd [#allocation5], 0
          %s245 = sshll.u32 %s3, 4
          %s246 = int_to_ptr.hbm [resolvable:$true] %s245
          %s247 = sshll.u32 [#allocation4], 4
          %s248 = int_to_ptr.vmem [resolvable:$true] %s247
          %253 = dma.hbm_to_vmem [thread:$0]  %s246, 512, %s248, [#allocation5], 64, 64, 4
        $region20: #{pointnet_torus_forward.12} parent=11 // pred_fallthru
          _
        // Predicated region
        $region21: #{pointnet_torus_forward.12} parent=11 // pred_check
          %p254 = pneg %p145
        $region22: #{pointnet_torus_forward.12} parent=11 // pred_check_branch
          %256 = sbr.rel (%p254) target = $region24
        $region23: #{pointnet_torus_forward.12} parent=11 // pred_region
          %258 = vsyncadd [#allocation5], 0
          %s260 = sshll.u32 %s4, 4
          %s261 = int_to_ptr.hbm [resolvable:$true] %s260
          %s262 = sshll.u32 [#allocation6], 4
          %s263 = int_to_ptr.vmem [resolvable:$true] %s262
          %265 = dma.hbm_to_vmem [thread:$0]  %s261, 16, %s263, [#allocation5]
        $region24: #{pointnet_torus_forward.12} parent=11 // pred_fallthru
          _
        // Predicated region
        $region25: #{pointnet_torus_forward.12} parent=11 // pred_check
          %p266 = pneg %p166
        $region26: #{pointnet_torus_forward.12} parent=11 // pred_check_branch
          %268 = sbr.rel (%p266) target = $region28
        $region27: #{pointnet_torus_forward.12} parent=11 // pred_region
          %270 = vsyncadd [#allocation8], 0
          %s271 = sshll.u32 %s5, 4
          %s272 = int_to_ptr.hbm [resolvable:$true] %s271
          %s273 = sshll.u32 [#allocation7], 4
          %s274 = int_to_ptr.vmem [resolvable:$true] %s273
          %279 = dma.hbm_to_vmem [thread:$0]  %s272, 8192, %s274, [#allocation8], 512, 512, 32
        $region28: #{pointnet_torus_forward.12} parent=11 // pred_fallthru
          _
        // Predicated region
        $region29: #{pointnet_torus_forward.12} parent=11 // pred_check
          %p280 = pneg %p187
        $region30: #{pointnet_torus_forward.12} parent=11 // pred_check_branch
          %282 = sbr.rel (%p280) target = $region32
        $region31: #{pointnet_torus_forward.12} parent=11 // pred_region
          %284 = vsyncadd [#allocation8], 0
          %s286 = sshll.u32 %s6, 4
          %s287 = int_to_ptr.hbm [resolvable:$true] %s286
          %s288 = sshll.u32 [#allocation9], 4
          %s289 = int_to_ptr.vmem [resolvable:$true] %s288
          %291 = dma.hbm_to_vmem [thread:$0]  %s287, 128, %s289, [#allocation8]
        $region32: #{pointnet_torus_forward.12} parent=11 // pred_fallthru
          _
      $region12: #{pointnet_torus_forward.12} parent=5 // pred_fallthru
        _
      %p292 = scmp.lt.s32.totalorder %s16, 4
      // Predicated region
      $region33: #{pointnet_torus_forward.12} parent=5 // pred_check
        %p293 = pneg %p292
      $region34: #{pointnet_torus_forward.12} parent=5 // pred_check_branch
        %295 = sbr.rel (%p293) target = $region36
      $region35: #{pointnet_torus_forward.12} parent=5 // pred_region
        // Predicated region
        $region37: #{pointnet_torus_forward.12} parent=35 // pred_check
          %p296 = pneg %p50
        $region38: #{pointnet_torus_forward.12} parent=35 // pred_check_branch
          %298 = sbr.rel (%p296) target = $region40
        $region39: #{pointnet_torus_forward.12} parent=35 // pred_region
          %s299 = smul.u32 32, %s24
          %p300 = scmp.lt.s32.totalorder %s23, 1
          %s301 = scalar_select %p300, %s23, 1
          %p302 = scmp.lt.s32.totalorder %s299, 63
          %s303 = scalar_select %p302, %s299, 63
          %s304 = smul.addr %s301, 64
          %s305 = sadd.s32 %s303, %s304
          %s306 = smul.addr %s305, 8
          %s307 = scalar_lea.vmem %s0, %s306
          %s308 = smul.u32 32, %s24
        $region40: #{pointnet_torus_forward.12} parent=35 // pred_fallthru
          _
        // Predicated region
        $region41: #{pointnet_torus_forward.12} parent=35 // pred_check
          %p309 = pneg %p76
        $region42: #{pointnet_torus_forward.12} parent=35 // pred_check_branch
          %311 = sbr.rel (%p309) target = $region44
        $region43: #{pointnet_torus_forward.12} parent=35 // pred_region
          %p312 = scmp.lt.s32.totalorder %s23, 1
          %s313 = scalar_select %p312, %s23, 1
          %s314 = smul.addr %s313, 4
          %s315 = scalar_lea.vmem %s1, %s314
        $region44: #{pointnet_torus_forward.12} parent=35 // pred_fallthru
          _
      $region36: #{pointnet_torus_forward.12} parent=5 // pred_fallthru
        _
      %p316 = scmp.le.s32.totalorder 1, %s16
      %p317 = scmp.lt.s32.totalorder %s16, 5
      %p318 = pnand %p316, %p317
      %p319 = pneg %p318
      // Predicated region
      $region45: #{pointnet_torus_forward.12} parent=5 // pred_check
        _
      $region46: #{pointnet_torus_forward.12} parent=5 // pred_check_branch
        %321 = sbr.rel (%p318) target = $region48
      $region47: #{pointnet_torus_forward.12} parent=5 // pred_region
        %s322 = ssub.s32 %s16, 1
        // Predicated region
        $region49: #{pointnet_torus_forward.12} parent=47 // pred_check
          %p323 = pneg %p103
        $region50: #{pointnet_torus_forward.12} parent=47 // pred_check_branch
          %325 = sbr.rel (%p323) target = $region52
        $region51: #{pointnet_torus_forward.12} parent=47 // pred_region
          %327 = dma.done [#allocation3], 16
        $region52: #{pointnet_torus_forward.12} parent=47 // pred_fallthru
          _
        // Predicated region
        $region53: #{pointnet_torus_forward.12} parent=47 // pred_check
          %p328 = pneg %p124
        $region54: #{pointnet_torus_forward.12} parent=47 // pred_check_branch
          %330 = sbr.rel (%p328) target = $region56
        $region55: #{pointnet_torus_forward.12} parent=47 // pred_region
          %332 = dma.done [#allocation5], 512
        $region56: #{pointnet_torus_forward.12} parent=47 // pred_fallthru
          _
        // Predicated region
        $region57: #{pointnet_torus_forward.12} parent=47 // pred_check
          %p333 = pneg %p145
        $region58: #{pointnet_torus_forward.12} parent=47 // pred_check_branch
          %335 = sbr.rel (%p333) target = $region60
        $region59: #{pointnet_torus_forward.12} parent=47 // pred_region
          %337 = dma.done [#allocation5], 16
        $region60: #{pointnet_torus_forward.12} parent=47 // pred_fallthru
          _
        // Predicated region
        $region61: #{pointnet_torus_forward.12} parent=47 // pred_check
          %p338 = pneg %p166
        $region62: #{pointnet_torus_forward.12} parent=47 // pred_check_branch
          %340 = sbr.rel (%p338) target = $region64
        $region63: #{pointnet_torus_forward.12} parent=47 // pred_region
          %342 = dma.done [#allocation8], 8192
        $region64: #{pointnet_torus_forward.12} parent=47 // pred_fallthru
          _
        // Predicated region
        $region65: #{pointnet_torus_forward.12} parent=47 // pred_check
          %p343 = pneg %p187
        $region66: #{pointnet_torus_forward.12} parent=47 // pred_check_branch
          %345 = sbr.rel (%p343) target = $region68
        $region67: #{pointnet_torus_forward.12} parent=47 // pred_region
          %347 = dma.done [#allocation8], 128
        $region68: #{pointnet_torus_forward.12} parent=47 // pred_fallthru
          _
        %s348 = smul.u32 32, %s26
        %p349 = scmp.lt.s32.totalorder %s25, 1
        %s350 = scalar_select %p349, %s25, 1
        %p351 = scmp.lt.s32.totalorder %s348, 63
        %s352 = scalar_select %p351, %s348, 63
        %s353 = smul.addr %s350, 64
        %s354 = sadd.s32 %s352, %s353
        %s355 = smul.addr %s354, 8
        %s356 = scalar_lea.vmem %s0, %s355
        %p357 = pneg %p56
        %p358 = pneg %p53
        %p359 = scmp.lt.s32.totalorder %s25, 1
        %s360 = scalar_select %p359, %s25, 1
        %s361 = smul.addr %s360, 4
        %s362 = scalar_lea.vmem %s1, %s361
        %p363 = pneg %p82
        %p364 = pneg %p79
        %p365 = pneg %p103
        %p366 = pneg %p100
        %p367 = pneg %p124
        %p368 = pneg %p121
        %p369 = pneg %p145
        %p370 = pneg %p142
        %p371 = pneg %p166
        %p372 = pneg %p163
        %p373 = pneg %p187
        %p374 = pneg %p184
        %p375 = pneg %p213
        %p376 = pneg %p210
        %p377 = scmp.lt.s32.totalorder %s25, 1
        %s378 = scalar_select %p377, %s25, 1
        %s379 = smul.addr %s378, 8
        %s380 = scalar_lea.vmem %s7, %s379
        %s381 = smul.u32 32, %s26
        %p382 = scmp.lt.s32.totalorder %s25, 1
        %s383 = scalar_select %p382, %s25, 1
        %p384 = scmp.lt.s32.totalorder %s381, 63
        %s385 = scalar_select %p384, %s381, 63
        %s386 = smul.addr %s383, 64
        %s387 = sadd.s32 %s385, %s386
        %s388 = smul.addr %s387, 8
        %s389 = scalar_lea.vmem %s0, %s388
        %s390 = smul.u32 32, %s26
        %p391 = scmp.lt.s32.totalorder %s25, 1
        %s392 = scalar_select %p391, %s25, 1
        %s393 = smul.addr %s392, 4
        %s394 = scalar_lea.vmem %s1, %s393
        %p395 = scmp.lt.s32.totalorder %s25, 1
        %s396 = scalar_select %p395, %s25, 1
        %s397 = smul.addr %s396, 8
        %s398 = scalar_lea.vmem %s7, %s397
        %v400 = vld [vmem:[%s389] sm:$0xff]
        %v401 = vld [vmem:[%s389 + $0x8] sm:$0xff]
        %v402 = vld [vmem:[%s389 + $0x10] sm:$0xff]
        %v403 = vld [vmem:[%s389 + $0x18] sm:$0xff]
        %v404 = vld [vmem:[%s389 + $0x20] sm:$0xff]
        %v405 = vld [vmem:[%s389 + $0x28] sm:$0xff]
        %v406 = vld [vmem:[%s389 + $0x30] sm:$0xff]
        %v407 = vld [vmem:[%s389 + $0x38] sm:$0xff]
        %v408 = vld [vmem:[%s389 + $0x40] sm:$0xff]
        %v409 = vld [vmem:[%s389 + $0x48] sm:$0xff]
        %v410 = vld [vmem:[%s389 + $0x50] sm:$0xff]
        %v411 = vld [vmem:[%s389 + $0x58] sm:$0xff]
        %v412 = vld [vmem:[%s389 + $0x60] sm:$0xff]
        %v413 = vld [vmem:[%s389 + $0x68] sm:$0xff]
        %v414 = vld [vmem:[%s389 + $0x70] sm:$0xff]
        %v415 = vld [vmem:[%s389 + $0x78] sm:$0xff]
        %v416 = vld [vmem:[%s389 + $0x80] sm:$0xff]
        %v417 = vld [vmem:[%s389 + $0x88] sm:$0xff]
        %v418 = vld [vmem:[%s389 + $0x90] sm:$0xff]
        %v419 = vld [vmem:[%s389 + $0x98] sm:$0xff]
        %v420 = vld [vmem:[%s389 + $0xa0] sm:$0xff]
        %v421 = vld [vmem:[%s389 + $0xa8] sm:$0xff]
        %v422 = vld [vmem:[%s389 + $0xb0] sm:$0xff]
        %v423 = vld [vmem:[%s389 + $0xb8] sm:$0xff]
        %v424 = vld [vmem:[%s389 + $0xc0] sm:$0xff]
        %v425 = vld [vmem:[%s389 + $0xc8] sm:$0xff]
        %v426 = vld [vmem:[%s389 + $0xd0] sm:$0xff]
        %v427 = vld [vmem:[%s389 + $0xd8] sm:$0xff]
        %v428 = vld [vmem:[%s389 + $0xe0] sm:$0xff]
        %v429 = vld [vmem:[%s389 + $0xe8] sm:$0xff]
        %v430 = vld [vmem:[%s389 + $0xf0] sm:$0xff]
        %v431 = vld [vmem:[%s389 + $0xf8] sm:$0xff]
        %v432 = vld [vmem:[%s394] sm:$0x7]
        %v433 = vld [vmem:[#allocation2] sm:$0x1]
        %v435 = vperm.slane %v433, 0
        %vm437 = vcmask 23552
        %v439 = vsel %vm437, %v400, 0
        %v442 = vsel %vm437, %v401, 0
        %v445 = vsel %vm437, %v402, 0
        %v448 = vsel %vm437, %v403, 0
        %v451 = vsel %vm437, %v404, 0
        %v454 = vsel %vm437, %v405, 0
        %v457 = vsel %vm437, %v406, 0
        %v460 = vsel %vm437, %v407, 0
        %v463 = vsel %vm437, %v408, 0
        %v466 = vsel %vm437, %v409, 0
        %v469 = vsel %vm437, %v410, 0
        %v472 = vsel %vm437, %v411, 0
        %v475 = vsel %vm437, %v412, 0
        %v478 = vsel %vm437, %v413, 0
        %v481 = vsel %vm437, %v414, 0
        %v484 = vsel %vm437, %v415, 0
        %v487 = vsel %vm437, %v416, 0
        %v490 = vsel %vm437, %v417, 0
        %v493 = vsel %vm437, %v418, 0
        %v496 = vsel %vm437, %v419, 0
        %v499 = vsel %vm437, %v420, 0
        %v502 = vsel %vm437, %v421, 0
        %v505 = vsel %vm437, %v422, 0
        %v508 = vsel %vm437, %v423, 0
        %v511 = vsel %vm437, %v424, 0
        %v514 = vsel %vm437, %v425, 0
        %v517 = vsel %vm437, %v426, 0
        %v520 = vsel %vm437, %v427, 0
        %v523 = vsel %vm437, %v428, 0
        %v526 = vsel %vm437, %v429, 0
        %v529 = vsel %vm437, %v430, 0
        %v532 = vsel %vm437, %v431, 0
        %vm534 = vcmask 1042432
        %v536 = vsel %vm534, %v432, 0
        %538 = vmatpush.msra.mxu0 0.0
        %539 = vmatpush.msra.mxu0 0.0
        %540 = vmatpush.msra.mxu0 0.0
        %541 = vmatpush.msra.mxu0 0.0
        %542 = vmatpush.msra.mxu0 0.0
        %543 = vmatpush.msra.mxu0 0.0
        %544 = vmatpush.msra.mxu0 0.0
        %545 = vmatpush.msra.mxu0 0.0
        %546 = vmatpush.msra.mxu0 0.0
        %547 = vmatpush.msra.mxu0 0.0
        %548 = vmatpush.msra.mxu0 0.0
        %549 = vmatpush.msra.mxu0 0.0
        %550 = vmatpush.msra.mxu0 0.0
        %551 = vmatpush.msra.mxu0 0.0
        %552 = vmatpush.msra.mxu0 0.0
        %553 = vmatpush.msra.mxu0 %v536
        %554 = vmatmul.f32.gmra.mxu0 %v439
        %v555 = vpop.f32.mrf.mxu0
        %v556 = vadd.f32 %v435, %v555
        %557 = vmatmul.f32.gmra.mxu0 %v442
        %v558 = vpop.f32.mrf.mxu0
        %v559 = vadd.f32 %v435, %v558
        %560 = vmatmul.f32.gmra.mxu0 %v445
        %v561 = vpop.f32.mrf.mxu0
        %v562 = vadd.f32 %v435, %v561
        %563 = vmatmul.f32.gmra.mxu0 %v448
        %v564 = vpop.f32.mrf.mxu0
        %v565 = vadd.f32 %v435, %v564
        %566 = vmatmul.f32.gmra.mxu0 %v451
        %v567 = vpop.f32.mrf.mxu0
        %v568 = vadd.f32 %v435, %v567
        %569 = vmatmul.f32.gmra.mxu0 %v454
        %v570 = vpop.f32.mrf.mxu0
        %v571 = vadd.f32 %v435, %v570
        %572 = vmatmul.f32.gmra.mxu0 %v457
        %v573 = vpop.f32.mrf.mxu0
        %v574 = vadd.f32 %v435, %v573
        %575 = vmatmul.f32.gmra.mxu0 %v460
        %v576 = vpop.f32.mrf.mxu0
        %v577 = vadd.f32 %v435, %v576
        %578 = vmatmul.f32.gmra.mxu0 %v463
        %v579 = vpop.f32.mrf.mxu0
        %v580 = vadd.f32 %v435, %v579
        %581 = vmatmul.f32.gmra.mxu0 %v466
        %v582 = vpop.f32.mrf.mxu0
        %v583 = vadd.f32 %v435, %v582
        %584 = vmatmul.f32.gmra.mxu0 %v469
        %v585 = vpop.f32.mrf.mxu0
        %v586 = vadd.f32 %v435, %v585
        %587 = vmatmul.f32.gmra.mxu0 %v472
        %v588 = vpop.f32.mrf.mxu0
        %v589 = vadd.f32 %v435, %v588
        %590 = vmatmul.f32.gmra.mxu0 %v475
        %v591 = vpop.f32.mrf.mxu0
        %v592 = vadd.f32 %v435, %v591
        %593 = vmatmul.f32.gmra.mxu0 %v478
        %v594 = vpop.f32.mrf.mxu0
        %v595 = vadd.f32 %v435, %v594
        %596 = vmatmul.f32.gmra.mxu0 %v481
        %v597 = vpop.f32.mrf.mxu0
        %v598 = vadd.f32 %v435, %v597
        %599 = vmatmul.f32.gmra.mxu0 %v484
        %v600 = vpop.f32.mrf.mxu0
        %v601 = vadd.f32 %v435, %v600
        %602 = vmatmul.f32.gmra.mxu0 %v487
        %v603 = vpop.f32.mrf.mxu0
        %v604 = vadd.f32 %v435, %v603
        %605 = vmatmul.f32.gmra.mxu0 %v490
        %v606 = vpop.f32.mrf.mxu0
        %v607 = vadd.f32 %v435, %v606
        %608 = vmatmul.f32.gmra.mxu0 %v493
        %v609 = vpop.f32.mrf.mxu0
        %v610 = vadd.f32 %v435, %v609
        %611 = vmatmul.f32.gmra.mxu0 %v496
        %v612 = vpop.f32.mrf.mxu0
        %v613 = vadd.f32 %v435, %v612
        %614 = vmatmul.f32.gmra.mxu0 %v499
        %v615 = vpop.f32.mrf.mxu0
        %v616 = vadd.f32 %v435, %v615
        %617 = vmatmul.f32.gmra.mxu0 %v502
        %v618 = vpop.f32.mrf.mxu0
        %v619 = vadd.f32 %v435, %v618
        %620 = vmatmul.f32.gmra.mxu0 %v505
        %v621 = vpop.f32.mrf.mxu0
        %v622 = vadd.f32 %v435, %v621
        %623 = vmatmul.f32.gmra.mxu0 %v508
        %v624 = vpop.f32.mrf.mxu0
        %v625 = vadd.f32 %v435, %v624
        %626 = vmatmul.f32.gmra.mxu0 %v511
        %v627 = vpop.f32.mrf.mxu0
        %v628 = vadd.f32 %v435, %v627
        %629 = vmatmul.f32.gmra.mxu0 %v514
        %v630 = vpop.f32.mrf.mxu0
        %v631 = vadd.f32 %v435, %v630
        %632 = vmatmul.f32.gmra.mxu0 %v517
        %v633 = vpop.f32.mrf.mxu0
        %v634 = vadd.f32 %v435, %v633
        %635 = vmatmul.f32.gmra.mxu0 %v520
        %v636 = vpop.f32.mrf.mxu0
        %v637 = vadd.f32 %v435, %v636
        %638 = vmatmul.f32.gmra.mxu0 %v523
        %v639 = vpop.f32.mrf.mxu0
        %v640 = vadd.f32 %v435, %v639
        %641 = vmatmul.f32.gmra.mxu0 %v526
        %v642 = vpop.f32.mrf.mxu0
        %v643 = vadd.f32 %v435, %v642
        %644 = vmatmul.f32.gmra.mxu0 %v529
        %v645 = vpop.f32.mrf.mxu0
        %v646 = vadd.f32 %v435, %v645
        %647 = vmatmul.f32.gmra.mxu0 %v532
        %v648 = vpop.f32.mrf.mxu0
        %v649 = vadd.f32 %v435, %v648
        %650 = vdwg.mxu0
        %v651 = vmax.f32 %v556, 0.0
        %v652 = vmax.f32 %v559, 0.0
        %v653 = vmax.f32 %v562, 0.0
        %v654 = vmax.f32 %v565, 0.0
        %v655 = vmax.f32 %v568, 0.0
        %v656 = vmax.f32 %v571, 0.0
        %v657 = vmax.f32 %v574, 0.0
        %v658 = vmax.f32 %v577, 0.0
        %v659 = vmax.f32 %v580, 0.0
        %v660 = vmax.f32 %v583, 0.0
        %v661 = vmax.f32 %v586, 0.0
        %v662 = vmax.f32 %v589, 0.0
        %v663 = vmax.f32 %v592, 0.0
        %v664 = vmax.f32 %v595, 0.0
        %v665 = vmax.f32 %v598, 0.0
        %v666 = vmax.f32 %v601, 0.0
        %v667 = vmax.f32 %v604, 0.0
        %v668 = vmax.f32 %v607, 0.0
        %v669 = vmax.f32 %v610, 0.0
        %v670 = vmax.f32 %v613, 0.0
        %v671 = vmax.f32 %v616, 0.0
        %v672 = vmax.f32 %v619, 0.0
        %v673 = vmax.f32 %v622, 0.0
        %v674 = vmax.f32 %v625, 0.0
        %v675 = vmax.f32 %v628, 0.0
        %v676 = vmax.f32 %v631, 0.0
        %v677 = vmax.f32 %v634, 0.0
        %v678 = vmax.f32 %v637, 0.0
        %v679 = vmax.f32 %v640, 0.0
        %v680 = vmax.f32 %v643, 0.0
        %v681 = vmax.f32 %v646, 0.0
        %v682 = vmax.f32 %v649, 0.0
        %v683 = vpack.c.bf16 %v652, %v651
        %v684 = vpack.c.bf16 %v654, %v653
        %v685 = vpack.c.bf16 %v656, %v655
        %v686 = vpack.c.bf16 %v658, %v657
        %v687 = vpack.c.bf16 %v660, %v659
        %v688 = vpack.c.bf16 %v662, %v661
        %v689 = vpack.c.bf16 %v664, %v663
        %v690 = vpack.c.bf16 %v666, %v665
        %v691 = vpack.c.bf16 %v668, %v667
        %v692 = vpack.c.bf16 %v670, %v669
        %v693 = vpack.c.bf16 %v672, %v671
        %v694 = vpack.c.bf16 %v674, %v673
        %v695 = vpack.c.bf16 %v676, %v675
        %v696 = vpack.c.bf16 %v678, %v677
        %v697 = vpack.c.bf16 %v680, %v679
        %v698 = vpack.c.bf16 %v682, %v681
        %v699 = vld [vmem:[#allocation4] sm:$0xf]
        %v700 = vld [vmem:[#allocation4 + $0x4] sm:$0xf]
        %v701 = vld [vmem:[#allocation4 + $0x8] sm:$0xf]
        %v702 = vld [vmem:[#allocation4 + $0xc] sm:$0xf]
        %v703 = vld [vmem:[#allocation4 + $0x10] sm:$0xf]
        %v704 = vld [vmem:[#allocation4 + $0x14] sm:$0xf]
        %v705 = vld [vmem:[#allocation4 + $0x18] sm:$0xf]
        %v706 = vld [vmem:[#allocation4 + $0x1c] sm:$0xf]
        %v707 = vld [vmem:[#allocation6] sm:$0x1]
        %v709 = vperm.slane %v707, 0
        %v719 = vunpack.c.l.b16 %v699
        %v720 = vunpack.c.l.b16 %v700
        %v721 = vunpack.c.l.b16 %v701
        %v722 = vunpack.c.l.b16 %v702
        %v723 = vunpack.c.l.b16 %v703
        %v724 = vunpack.c.l.b16 %v704
        %v725 = vunpack.c.l.b16 %v705
        %v726 = vunpack.c.l.b16 %v706
        %v727 = vpack.c.b16 %v720, %v719
        %v728 = vpack.c.b16 %v722, %v721
        %v729 = vpack.c.b16 %v724, %v723
        %v730 = vpack.c.b16 %v726, %v725
        %vm735 = vcmask 523264
        %v737 = vsel %vm735, %v683, 0
        %v740 = vsel %vm735, %v684, 0
        %v743 = vsel %vm735, %v685, 0
        %v746 = vsel %vm735, %v686, 0
        %v749 = vsel %vm735, %v687, 0
        %v752 = vsel %vm735, %v688, 0
        %v755 = vsel %vm735, %v689, 0
        %v758 = vsel %vm735, %v690, 0
        %v761 = vsel %vm735, %v691, 0
        %v764 = vsel %vm735, %v692, 0
        %v767 = vsel %vm735, %v693, 0
        %v770 = vsel %vm735, %v694, 0
        %v773 = vsel %vm735, %v695, 0
        %v776 = vsel %vm735, %v696, 0
        %v779 = vsel %vm735, %v697, 0
        %v782 = vsel %vm735, %v698, 0
        %784 = vmatpush.bf16.msra.mxu0 0
        %785 = vmatpush.bf16.msra.mxu0 0
        %786 = vmatpush.bf16.msra.mxu0 0
        %787 = vmatpush.bf16.msra.mxu0 0
        %788 = vmatpush.bf16.msra.mxu0 %v730
        %789 = vmatpush.bf16.msra.mxu0 %v729
        %790 = vmatpush.bf16.msra.mxu0 %v728
        %791 = vmatpush.bf16.msra.mxu0 %v727
        %792 = vmatmul.bf16.gmra.mxu0 %v737
        %v793 = vpop.f32.mrf.mxu0
        %v794 = vadd.f32 %v709, %v793
        %v795 = vpop.f32.mrf.mxu0
        %v796 = vadd.f32 %v709, %v795
        %797 = vmatmul.bf16.gmra.mxu0 %v740
        %v798 = vpop.f32.mrf.mxu0
        %v799 = vadd.f32 %v709, %v798
        %v800 = vpop.f32.mrf.mxu0
        %v801 = vadd.f32 %v709, %v800
        %802 = vmatmul.bf16.gmra.mxu0 %v743
        %v803 = vpop.f32.mrf.mxu0
        %v804 = vadd.f32 %v709, %v803
        %v805 = vpop.f32.mrf.mxu0
        %v806 = vadd.f32 %v709, %v805
        %807 = vmatmul.bf16.gmra.mxu0 %v746
        %v808 = vpop.f32.mrf.mxu0
        %v809 = vadd.f32 %v709, %v808
        %v810 = vpop.f32.mrf.mxu0
        %v811 = vadd.f32 %v709, %v810
        %812 = vmatmul.bf16.gmra.mxu0 %v749
        %v813 = vpop.f32.mrf.mxu0
        %v814 = vadd.f32 %v709, %v813
        %v815 = vpop.f32.mrf.mxu0
        %v816 = vadd.f32 %v709, %v815
        %817 = vmatmul.bf16.gmra.mxu0 %v752
        %v818 = vpop.f32.mrf.mxu0
        %v819 = vadd.f32 %v709, %v818
        %v820 = vpop.f32.mrf.mxu0
        %v821 = vadd.f32 %v709, %v820
        %822 = vmatmul.bf16.gmra.mxu0 %v755
        %v823 = vpop.f32.mrf.mxu0
        %v824 = vadd.f32 %v709, %v823
        %v825 = vpop.f32.mrf.mxu0
        %v826 = vadd.f32 %v709, %v825
        %827 = vmatmul.bf16.gmra.mxu0 %v758
        %v828 = vpop.f32.mrf.mxu0
        %v829 = vadd.f32 %v709, %v828
        %v830 = vpop.f32.mrf.mxu0
        %v831 = vadd.f32 %v709, %v830
        %832 = vmatmul.bf16.gmra.mxu0 %v761
        %v833 = vpop.f32.mrf.mxu0
        %v834 = vadd.f32 %v709, %v833
        %v835 = vpop.f32.mrf.mxu0
        %v836 = vadd.f32 %v709, %v835
        %837 = vmatmul.bf16.gmra.mxu0 %v764
        %v838 = vpop.f32.mrf.mxu0
        %v839 = vadd.f32 %v709, %v838
        %v840 = vpop.f32.mrf.mxu0
        %v841 = vadd.f32 %v709, %v840
        %842 = vmatmul.bf16.gmra.mxu0 %v767
        %v843 = vpop.f32.mrf.mxu0
        %v844 = vadd.f32 %v709, %v843
        %v845 = vpop.f32.mrf.mxu0
        %v846 = vadd.f32 %v709, %v845
        %847 = vmatmul.bf16.gmra.mxu0 %v770
        %v848 = vpop.f32.mrf.mxu0
        %v849 = vadd.f32 %v709, %v848
        %v850 = vpop.f32.mrf.mxu0
        %v851 = vadd.f32 %v709, %v850
        %852 = vmatmul.bf16.gmra.mxu0 %v773
        %v853 = vpop.f32.mrf.mxu0
        %v854 = vadd.f32 %v709, %v853
        %v855 = vpop.f32.mrf.mxu0
        %v856 = vadd.f32 %v709, %v855
        %857 = vmatmul.bf16.gmra.mxu0 %v776
        %v858 = vpop.f32.mrf.mxu0
        %v859 = vadd.f32 %v709, %v858
        %v860 = vpop.f32.mrf.mxu0
        %v861 = vadd.f32 %v709, %v860
        %862 = vmatmul.bf16.gmra.mxu0 %v779
        %v863 = vpop.f32.mrf.mxu0
        %v864 = vadd.f32 %v709, %v863
        %v865 = vpop.f32.mrf.mxu0
        %v866 = vadd.f32 %v709, %v865
        %867 = vmatmul.bf16.gmra.mxu0 %v782
        %v868 = vpop.f32.mrf.mxu0
        %v869 = vadd.f32 %v709, %v868
        %v870 = vpop.f32.mrf.mxu0
        %v871 = vadd.f32 %v709, %v870
        %872 = vdwg.mxu0
        %v873 = vmax.f32 %v794, 0.0
        %v874 = vmax.f32 %v796, 0.0
        %v875 = vmax.f32 %v799, 0.0
        %v876 = vmax.f32 %v801, 0.0
        %v877 = vmax.f32 %v804, 0.0
        %v878 = vmax.f32 %v806, 0.0
        %v879 = vmax.f32 %v809, 0.0
        %v880 = vmax.f32 %v811, 0.0
        %v881 = vmax.f32 %v814, 0.0
        %v882 = vmax.f32 %v816, 0.0
        %v883 = vmax.f32 %v819, 0.0
        %v884 = vmax.f32 %v821, 0.0
        %v885 = vmax.f32 %v824, 0.0
        %v886 = vmax.f32 %v826, 0.0
        %v887 = vmax.f32 %v829, 0.0
        %v888 = vmax.f32 %v831, 0.0
        %v889 = vmax.f32 %v834, 0.0
        %v890 = vmax.f32 %v836, 0.0
        %v891 = vmax.f32 %v839, 0.0
        %v892 = vmax.f32 %v841, 0.0
        %v893 = vmax.f32 %v844, 0.0
        %v894 = vmax.f32 %v846, 0.0
        %v895 = vmax.f32 %v849, 0.0
        %v896 = vmax.f32 %v851, 0.0
        %v897 = vmax.f32 %v854, 0.0
        %v898 = vmax.f32 %v856, 0.0
        %v899 = vmax.f32 %v859, 0.0
        %v900 = vmax.f32 %v861, 0.0
        %v901 = vmax.f32 %v864, 0.0
        %v902 = vmax.f32 %v866, 0.0
        %v903 = vmax.f32 %v869, 0.0
        %v904 = vmax.f32 %v871, 0.0
        %v905 = vpack.c.bf16 %v874, %v873
        %v906 = vpack.c.bf16 %v876, %v875
        %v907 = vpack.c.bf16 %v878, %v877
        %v908 = vpack.c.bf16 %v880, %v879
        %v909 = vpack.c.bf16 %v882, %v881
        %v910 = vpack.c.bf16 %v884, %v883
        %v911 = vpack.c.bf16 %v886, %v885
        %v912 = vpack.c.bf16 %v888, %v887
        %v913 = vpack.c.bf16 %v890, %v889
        %v914 = vpack.c.bf16 %v892, %v891
        %v915 = vpack.c.bf16 %v894, %v893
        %v916 = vpack.c.bf16 %v896, %v895
        %v917 = vpack.c.bf16 %v898, %v897
        %v918 = vpack.c.bf16 %v900, %v899
        %v919 = vpack.c.bf16 %v902, %v901
        %v920 = vpack.c.bf16 %v904, %v903
        %v921 = vld [vmem:[#allocation7] sm:$0xff]
        %v922 = vld [vmem:[#allocation7 + $0x8] sm:$0xff]
        %v923 = vld [vmem:[#allocation7 + $0x10] sm:$0xff]
        %v924 = vld [vmem:[#allocation7 + $0x18] sm:$0xff]
        %v925 = vld [vmem:[#allocation7 + $0x20] sm:$0xff]
        %v926 = vld [vmem:[#allocation7 + $0x28] sm:$0xff]
        %v927 = vld [vmem:[#allocation7 + $0x30] sm:$0xff]
        %v928 = vld [vmem:[#allocation7 + $0x38] sm:$0xff]
        %v929 = vld [vmem:[#allocation7 + $0x40] sm:$0xff]
        %v930 = vld [vmem:[#allocation7 + $0x48] sm:$0xff]
        %v931 = vld [vmem:[#allocation7 + $0x50] sm:$0xff]
        %v932 = vld [vmem:[#allocation7 + $0x58] sm:$0xff]
        %v933 = vld [vmem:[#allocation7 + $0x60] sm:$0xff]
        %v934 = vld [vmem:[#allocation7 + $0x68] sm:$0xff]
        %v935 = vld [vmem:[#allocation7 + $0x70] sm:$0xff]
        %v936 = vld [vmem:[#allocation7 + $0x78] sm:$0xff]
        %v937 = vld [vmem:[#allocation7 + $0x80] sm:$0xff]
        %v938 = vld [vmem:[#allocation7 + $0x88] sm:$0xff]
        %v939 = vld [vmem:[#allocation7 + $0x90] sm:$0xff]
        %v940 = vld [vmem:[#allocation7 + $0x98] sm:$0xff]
        %v941 = vld [vmem:[#allocation7 + $0xa0] sm:$0xff]
        %v942 = vld [vmem:[#allocation7 + $0xa8] sm:$0xff]
        %v943 = vld [vmem:[#allocation7 + $0xb0] sm:$0xff]
        %v944 = vld [vmem:[#allocation7 + $0xb8] sm:$0xff]
        %v945 = vld [vmem:[#allocation7 + $0xc0] sm:$0xff]
        %v946 = vld [vmem:[#allocation7 + $0xc8] sm:$0xff]
        %v947 = vld [vmem:[#allocation7 + $0xd0] sm:$0xff]
        %v948 = vld [vmem:[#allocation7 + $0xd8] sm:$0xff]
        %v949 = vld [vmem:[#allocation7 + $0xe0] sm:$0xff]
        %v950 = vld [vmem:[#allocation7 + $0xe8] sm:$0xff]
        %v951 = vld [vmem:[#allocation7 + $0xf0] sm:$0xff]
        %v952 = vld [vmem:[#allocation7 + $0xf8] sm:$0xff]
        %v953 = vld [vmem:[#allocation7 + $0x100] sm:$0xff]
        %v954 = vld [vmem:[#allocation7 + $0x108] sm:$0xff]
        %v955 = vld [vmem:[#allocation7 + $0x110] sm:$0xff]
        %v956 = vld [vmem:[#allocation7 + $0x118] sm:$0xff]
        %v957 = vld [vmem:[#allocation7 + $0x120] sm:$0xff]
        %v958 = vld [vmem:[#allocation7 + $0x128] sm:$0xff]
        %v959 = vld [vmem:[#allocation7 + $0x130] sm:$0xff]
        %v960 = vld [vmem:[#allocation7 + $0x138] sm:$0xff]
        %v961 = vld [vmem:[#allocation7 + $0x140] sm:$0xff]
        %v962 = vld [vmem:[#allocation7 + $0x148] sm:$0xff]
        %v963 = vld [vmem:[#allocation7 + $0x150] sm:$0xff]
        %v964 = vld [vmem:[#allocation7 + $0x158] sm:$0xff]
        %v965 = vld [vmem:[#allocation7 + $0x160] sm:$0xff]
        %v966 = vld [vmem:[#allocation7 + $0x168] sm:$0xff]
        %v967 = vld [vmem:[#allocation7 + $0x170] sm:$0xff]
        %v968 = vld [vmem:[#allocation7 + $0x178] sm:$0xff]
        %v969 = vld [vmem:[#allocation7 + $0x180] sm:$0xff]
        %v970 = vld [vmem:[#allocation7 + $0x188] sm:$0xff]
        %v971 = vld [vmem:[#allocation7 + $0x190] sm:$0xff]
        %v972 = vld [vmem:[#allocation7 + $0x198] sm:$0xff]
        %v973 = vld [vmem:[#allocation7 + $0x1a0] sm:$0xff]
        %v974 = vld [vmem:[#allocation7 + $0x1a8] sm:$0xff]
        %v975 = vld [vmem:[#allocation7 + $0x1b0] sm:$0xff]
        %v976 = vld [vmem:[#allocation7 + $0x1b8] sm:$0xff]
        %v977 = vld [vmem:[#allocation7 + $0x1c0] sm:$0xff]
        %v978 = vld [vmem:[#allocation7 + $0x1c8] sm:$0xff]
        %v979 = vld [vmem:[#allocation7 + $0x1d0] sm:$0xff]
        %v980 = vld [vmem:[#allocation7 + $0x1d8] sm:$0xff]
        %v981 = vld [vmem:[#allocation7 + $0x1e0] sm:$0xff]
        %v982 = vld [vmem:[#allocation7 + $0x1e8] sm:$0xff]
        %v983 = vld [vmem:[#allocation7 + $0x1f0] sm:$0xff]
        %v984 = vld [vmem:[#allocation7 + $0x1f8] sm:$0xff]
        %v985 = vld [vmem:[#allocation9] sm:$0xff]
        %v987 = vperm.slane %v985, 0
        %v988 = vperm.slane %v985, 1
        %v989 = vperm.slane %v985, 2
        %v990 = vperm.slane %v985, 3
        %v991 = vperm.slane %v985, 4
        %v992 = vperm.slane %v985, 5
        %v993 = vperm.slane %v985, 6
        %v994 = vperm.slane %v985, 7
        %v1067 = vunpack.c.l.b16 %v921
        %v1068 = vunpack.c.h.b16 %v921
        %v1069 = vunpack.c.l.b16 %v922
        %v1070 = vunpack.c.h.b16 %v922
        %v1071 = vunpack.c.l.b16 %v923
        %v1072 = vunpack.c.h.b16 %v923
        %v1073 = vunpack.c.l.b16 %v924
        %v1074 = vunpack.c.h.b16 %v924
        %v1075 = vunpack.c.l.b16 %v925
        %v1076 = vunpack.c.h.b16 %v925
        %v1077 = vunpack.c.l.b16 %v926
        %v1078 = vunpack.c.h.b16 %v926
        %v1079 = vunpack.c.l.b16 %v927
        %v1080 = vunpack.c.h.b16 %v927
        %v1081 = vunpack.c.l.b16 %v928
        %v1082 = vunpack.c.h.b16 %v928
        %v1083 = vunpack.c.l.b16 %v929
        %v1084 = vunpack.c.h.b16 %v929
        %v1085 = vunpack.c.l.b16 %v930
        %v1086 = vunpack.c.h.b16 %v930
        %v1087 = vunpack.c.l.b16 %v931
        %v1088 = vunpack.c.h.b16 %v931
        %v1089 = vunpack.c.l.b16 %v932
        %v1090 = vunpack.c.h.b16 %v932
        %v1091 = vunpack.c.l.b16 %v933
        %v1092 = vunpack.c.h.b16 %v933
        %v1093 = vunpack.c.l.b16 %v934
        %v1094 = vunpack.c.h.b16 %v934
        %v1095 = vunpack.c.l.b16 %v935
        %v1096 = vunpack.c.h.b16 %v935
        %v1097 = vunpack.c.l.b16 %v936
        %v1098 = vunpack.c.h.b16 %v936
        %v1099 = vunpack.c.l.b16 %v937
        %v1100 = vunpack.c.h.b16 %v937
        %v1101 = vunpack.c.l.b16 %v938
        %v1102 = vunpack.c.h.b16 %v938
        %v1103 = vunpack.c.l.b16 %v939
        %v1104 = vunpack.c.h.b16 %v939
        %v1105 = vunpack.c.l.b16 %v940
        %v1106 = vunpack.c.h.b16 %v940
        %v1107 = vunpack.c.l.b16 %v941
        %v1108 = vunpack.c.h.b16 %v941
        %v1109 = vunpack.c.l.b16 %v942
        %v1110 = vunpack.c.h.b16 %v942
        %v1111 = vunpack.c.l.b16 %v943
        %v1112 = vunpack.c.h.b16 %v943
        %v1113 = vunpack.c.l.b16 %v944
        %v1114 = vunpack.c.h.b16 %v944
        %v1115 = vunpack.c.l.b16 %v945
        %v1116 = vunpack.c.h.b16 %v945
        %v1117 = vunpack.c.l.b16 %v946
        %v1118 = vunpack.c.h.b16 %v946
        %v1119 = vunpack.c.l.b16 %v947
        %v1120 = vunpack.c.h.b16 %v947
        %v1121 = vunpack.c.l.b16 %v948
        %v1122 = vunpack.c.h.b16 %v948
        %v1123 = vunpack.c.l.b16 %v949
        %v1124 = vunpack.c.h.b16 %v949
        %v1125 = vunpack.c.l.b16 %v950
        %v1126 = vunpack.c.h.b16 %v950
        %v1127 = vunpack.c.l.b16 %v951
        %v1128 = vunpack.c.h.b16 %v951
        %v1129 = vunpack.c.l.b16 %v952
        %v1130 = vunpack.c.h.b16 %v952
        %v1131 = vunpack.c.l.b16 %v953
        %v1132 = vunpack.c.h.b16 %v953
        %v1133 = vunpack.c.l.b16 %v954
        %v1134 = vunpack.c.h.b16 %v954
        %v1135 = vunpack.c.l.b16 %v955
        %v1136 = vunpack.c.h.b16 %v955
        %v1137 = vunpack.c.l.b16 %v956
        %v1138 = vunpack.c.h.b16 %v956
        %v1139 = vunpack.c.l.b16 %v957
        %v1140 = vunpack.c.h.b16 %v957
        %v1141 = vunpack.c.l.b16 %v958
        %v1142 = vunpack.c.h.b16 %v958
        %v1143 = vunpack.c.l.b16 %v959
        %v1144 = vunpack.c.h.b16 %v959
        %v1145 = vunpack.c.l.b16 %v960
        %v1146 = vunpack.c.h.b16 %v960
        %v1147 = vunpack.c.l.b16 %v961
        %v1148 = vunpack.c.h.b16 %v961
        %v1149 = vunpack.c.l.b16 %v962
        %v1150 = vunpack.c.h.b16 %v962
        %v1151 = vunpack.c.l.b16 %v963
        %v1152 = vunpack.c.h.b16 %v963
        %v1153 = vunpack.c.l.b16 %v964
        %v1154 = vunpack.c.h.b16 %v964
        %v1155 = vunpack.c.l.b16 %v965
        %v1156 = vunpack.c.h.b16 %v965
        %v1157 = vunpack.c.l.b16 %v966
        %v1158 = vunpack.c.h.b16 %v966
        %v1159 = vunpack.c.l.b16 %v967
        %v1160 = vunpack.c.h.b16 %v967
        %v1161 = vunpack.c.l.b16 %v968
        %v1162 = vunpack.c.h.b16 %v968
        %v1163 = vunpack.c.l.b16 %v969
        %v1164 = vunpack.c.h.b16 %v969
        %v1165 = vunpack.c.l.b16 %v970
        %v1166 = vunpack.c.h.b16 %v970
        %v1167 = vunpack.c.l.b16 %v971
        %v1168 = vunpack.c.h.b16 %v971
        %v1169 = vunpack.c.l.b16 %v972
        %v1170 = vunpack.c.h.b16 %v972
        %v1171 = vunpack.c.l.b16 %v973
        %v1172 = vunpack.c.h.b16 %v973
        %v1173 = vunpack.c.l.b16 %v974
        %v1174 = vunpack.c.h.b16 %v974
        %v1175 = vunpack.c.l.b16 %v975
        %v1176 = vunpack.c.h.b16 %v975
        %v1177 = vunpack.c.l.b16 %v976
        %v1178 = vunpack.c.h.b16 %v976
        %v1179 = vunpack.c.l.b16 %v977
        %v1180 = vunpack.c.h.b16 %v977
        %v1181 = vunpack.c.l.b16 %v978
        %v1182 = vunpack.c.h.b16 %v978
        %v1183 = vunpack.c.l.b16 %v979
        %v1184 = vunpack.c.h.b16 %v979
        %v1185 = vunpack.c.l.b16 %v980
        %v1186 = vunpack.c.h.b16 %v980
        %v1187 = vunpack.c.l.b16 %v981
        %v1188 = vunpack.c.h.b16 %v981
        %v1189 = vunpack.c.l.b16 %v982
        %v1190 = vunpack.c.h.b16 %v982
        %v1191 = vunpack.c.l.b16 %v983
        %v1192 = vunpack.c.h.b16 %v983
        %v1193 = vunpack.c.l.b16 %v984
        %v1194 = vunpack.c.h.b16 %v984
        %v1195 = vpack.c.b16 %v1075, %v1067
        %v1196 = vpack.c.b16 %v1076, %v1068
        %v1197 = vpack.c.b16 %v1077, %v1069
        %v1198 = vpack.c.b16 %v1078, %v1070
        %v1199 = vpack.c.b16 %v1079, %v1071
        %v1200 = vpack.c.b16 %v1080, %v1072
        %v1201 = vpack.c.b16 %v1081, %v1073
        %v1202 = vpack.c.b16 %v1082, %v1074
        %v1203 = vpack.c.b16 %v1091, %v1083
        %v1204 = vpack.c.b16 %v1092, %v1084
        %v1205 = vpack.c.b16 %v1093, %v1085
        %v1206 = vpack.c.b16 %v1094, %v1086
        %v1207 = vpack.c.b16 %v1095, %v1087
        %v1208 = vpack.c.b16 %v1096, %v1088
        %v1209 = vpack.c.b16 %v1097, %v1089
        %v1210 = vpack.c.b16 %v1098, %v1090
        %v1211 = vpack.c.b16 %v1107, %v1099
        %v1212 = vpack.c.b16 %v1108, %v1100
        %v1213 = vpack.c.b16 %v1109, %v1101
        %v1214 = vpack.c.b16 %v1110, %v1102
        %v1215 = vpack.c.b16 %v1111, %v1103
        %v1216 = vpack.c.b16 %v1112, %v1104
        %v1217 = vpack.c.b16 %v1113, %v1105
        %v1218 = vpack.c.b16 %v1114, %v1106
        %v1219 = vpack.c.b16 %v1123, %v1115
        %v1220 = vpack.c.b16 %v1124, %v1116
        %v1221 = vpack.c.b16 %v1125, %v1117
        %v1222 = vpack.c.b16 %v1126, %v1118
        %v1223 = vpack.c.b16 %v1127, %v1119
        %v1224 = vpack.c.b16 %v1128, %v1120
        %v1225 = vpack.c.b16 %v1129, %v1121
        %v1226 = vpack.c.b16 %v1130, %v1122
        %v1227 = vpack.c.b16 %v1139, %v1131
        %v1228 = vpack.c.b16 %v1140, %v1132
        %v1229 = vpack.c.b16 %v1141, %v1133
        %v1230 = vpack.c.b16 %v1142, %v1134
        %v1231 = vpack.c.b16 %v1143, %v1135
        %v1232 = vpack.c.b16 %v1144, %v1136
        %v1233 = vpack.c.b16 %v1145, %v1137
        %v1234 = vpack.c.b16 %v1146, %v1138
        %v1235 = vpack.c.b16 %v1155, %v1147
        %v1236 = vpack.c.b16 %v1156, %v1148
        %v1237 = vpack.c.b16 %v1157, %v1149
        %v1238 = vpack.c.b16 %v1158, %v1150
        %v1239 = vpack.c.b16 %v1159, %v1151
        %v1240 = vpack.c.b16 %v1160, %v1152
        %v1241 = vpack.c.b16 %v1161, %v1153
        %v1242 = vpack.c.b16 %v1162, %v1154
        %v1243 = vpack.c.b16 %v1171, %v1163
        %v1244 = vpack.c.b16 %v1172, %v1164
        %v1245 = vpack.c.b16 %v1173, %v1165
        %v1246 = vpack.c.b16 %v1174, %v1166
        %v1247 = vpack.c.b16 %v1175, %v1167
        %v1248 = vpack.c.b16 %v1176, %v1168
        %v1249 = vpack.c.b16 %v1177, %v1169
        %v1250 = vpack.c.b16 %v1178, %v1170
        %v1251 = vpack.c.b16 %v1187, %v1179
        %v1252 = vpack.c.b16 %v1188, %v1180
        %v1253 = vpack.c.b16 %v1189, %v1181
        %v1254 = vpack.c.b16 %v1190, %v1182
        %v1255 = vpack.c.b16 %v1191, %v1183
        %v1256 = vpack.c.b16 %v1192, %v1184
        %v1257 = vpack.c.b16 %v1193, %v1185
        %v1258 = vpack.c.b16 %v1194, %v1186
        %1323 = vmatpush.bf16.msra.mxu0 %v1251
        %1324 = vmatpush.bf16.msra.mxu0 %v1243
        %1325 = vmatpush.bf16.msra.mxu0 %v1235
        %1326 = vmatpush.bf16.msra.mxu0 %v1227
        %1327 = vmatpush.bf16.msra.mxu0 %v1219
        %1328 = vmatpush.bf16.msra.mxu0 %v1211
        %1329 = vmatpush.bf16.msra.mxu0 %v1203
        %1330 = vmatpush.bf16.msra.mxu0 %v1195
        %1331 = vmatmul.bf16.gmra.mxu0 %v905
        %v1332 = vpop.f32.mrf.mxu0
        %v1333 = vadd.f32 %v987, %v1332
        %v1334 = vpop.f32.mrf.mxu0
        %v1335 = vadd.f32 %v987, %v1334
        %1336 = vmatmul.bf16.gmra.mxu0 %v906
        %v1337 = vpop.f32.mrf.mxu0
        %v1338 = vadd.f32 %v987, %v1337
        %v1339 = vpop.f32.mrf.mxu0
        %v1340 = vadd.f32 %v987, %v1339
        %1341 = vmatmul.bf16.gmra.mxu0 %v907
        %v1342 = vpop.f32.mrf.mxu0
        %v1343 = vadd.f32 %v987, %v1342
        %v1344 = vpop.f32.mrf.mxu0
        %v1345 = vadd.f32 %v987, %v1344
        %1346 = vmatmul.bf16.gmra.mxu0 %v908
        %v1347 = vpop.f32.mrf.mxu0
        %v1348 = vadd.f32 %v987, %v1347
        %v1349 = vpop.f32.mrf.mxu0
        %v1350 = vadd.f32 %v987, %v1349
        %1351 = vmatmul.bf16.gmra.mxu0 %v909
        %v1352 = vpop.f32.mrf.mxu0
        %v1353 = vadd.f32 %v987, %v1352
        %v1354 = vpop.f32.mrf.mxu0
        %v1355 = vadd.f32 %v987, %v1354
        %1356 = vmatmul.bf16.gmra.mxu0 %v910
        %v1357 = vpop.f32.mrf.mxu0
        %v1358 = vadd.f32 %v987, %v1357
        %v1359 = vpop.f32.mrf.mxu0
        %v1360 = vadd.f32 %v987, %v1359
        %1361 = vmatmul.bf16.gmra.mxu0 %v911
        %v1362 = vpop.f32.mrf.mxu0
        %v1363 = vadd.f32 %v987, %v1362
        %v1364 = vpop.f32.mrf.mxu0
        %v1365 = vadd.f32 %v987, %v1364
        %1366 = vmatmul.bf16.gmra.mxu0 %v912
        %v1367 = vpop.f32.mrf.mxu0
        %v1368 = vadd.f32 %v987, %v1367
        %v1369 = vpop.f32.mrf.mxu0
        %v1370 = vadd.f32 %v987, %v1369
        %1371 = vmatmul.bf16.gmra.mxu0 %v913
        %v1372 = vpop.f32.mrf.mxu0
        %v1373 = vadd.f32 %v987, %v1372
        %v1374 = vpop.f32.mrf.mxu0
        %v1375 = vadd.f32 %v987, %v1374
        %1376 = vmatmul.bf16.gmra.mxu0 %v914
        %v1377 = vpop.f32.mrf.mxu0
        %v1378 = vadd.f32 %v987, %v1377
        %v1379 = vpop.f32.mrf.mxu0
        %v1380 = vadd.f32 %v987, %v1379
        %1381 = vmatmul.bf16.gmra.mxu0 %v915
        %v1382 = vpop.f32.mrf.mxu0
        %v1383 = vadd.f32 %v987, %v1382
        %v1384 = vpop.f32.mrf.mxu0
        %v1385 = vadd.f32 %v987, %v1384
        %1386 = vmatmul.bf16.gmra.mxu0 %v916
        %v1387 = vpop.f32.mrf.mxu0
        %v1388 = vadd.f32 %v987, %v1387
        %v1389 = vpop.f32.mrf.mxu0
        %v1390 = vadd.f32 %v987, %v1389
        %1391 = vmatmul.bf16.gmra.mxu0 %v917
        %v1392 = vpop.f32.mrf.mxu0
        %v1393 = vadd.f32 %v987, %v1392
        %v1394 = vpop.f32.mrf.mxu0
        %v1395 = vadd.f32 %v987, %v1394
        %1396 = vmatmul.bf16.gmra.mxu0 %v918
        %v1397 = vpop.f32.mrf.mxu0
        %v1398 = vadd.f32 %v987, %v1397
        %v1399 = vpop.f32.mrf.mxu0
        %v1400 = vadd.f32 %v987, %v1399
        %1401 = vmatmul.bf16.gmra.mxu0 %v919
        %v1402 = vpop.f32.mrf.mxu0
        %v1403 = vadd.f32 %v987, %v1402
        %v1404 = vpop.f32.mrf.mxu0
        %v1405 = vadd.f32 %v987, %v1404
        %1406 = vmatmul.bf16.gmra.mxu0 %v920
        %v1407 = vpop.f32.mrf.mxu0
        %v1408 = vadd.f32 %v987, %v1407
        %v1409 = vpop.f32.mrf.mxu0
        %v1410 = vadd.f32 %v987, %v1409
        %1411 = vdwg.mxu0
        %1412 = vmatpush.bf16.msra.mxu0 %v1252
        %1413 = vmatpush.bf16.msra.mxu0 %v1244
        %1414 = vmatpush.bf16.msra.mxu0 %v1236
        %1415 = vmatpush.bf16.msra.mxu0 %v1228
        %1416 = vmatpush.bf16.msra.mxu0 %v1220
        %1417 = vmatpush.bf16.msra.mxu0 %v1212
        %1418 = vmatpush.bf16.msra.mxu0 %v1204
        %1419 = vmatpush.bf16.msra.mxu0 %v1196
        %1420 = vmatmul.bf16.gmra.mxu0 %v905
        %v1421 = vpop.f32.mrf.mxu0
        %v1422 = vadd.f32 %v988, %v1421
        %v1423 = vpop.f32.mrf.mxu0
        %v1424 = vadd.f32 %v988, %v1423
        %1425 = vmatmul.bf16.gmra.mxu0 %v906
        %v1426 = vpop.f32.mrf.mxu0
        %v1427 = vadd.f32 %v988, %v1426
        %v1428 = vpop.f32.mrf.mxu0
        %v1429 = vadd.f32 %v988, %v1428
        %1430 = vmatmul.bf16.gmra.mxu0 %v907
        %v1431 = vpop.f32.mrf.mxu0
        %v1432 = vadd.f32 %v988, %v1431
        %v1433 = vpop.f32.mrf.mxu0
        %v1434 = vadd.f32 %v988, %v1433
        %1435 = vmatmul.bf16.gmra.mxu0 %v908
        %v1436 = vpop.f32.mrf.mxu0
        %v1437 = vadd.f32 %v988, %v1436
        %v1438 = vpop.f32.mrf.mxu0
        %v1439 = vadd.f32 %v988, %v1438
        %1440 = vmatmul.bf16.gmra.mxu0 %v909
        %v1441 = vpop.f32.mrf.mxu0
        %v1442 = vadd.f32 %v988, %v1441
        %v1443 = vpop.f32.mrf.mxu0
        %v1444 = vadd.f32 %v988, %v1443
        %1445 = vmatmul.bf16.gmra.mxu0 %v910
        %v1446 = vpop.f32.mrf.mxu0
        %v1447 = vadd.f32 %v988, %v1446
        %v1448 = vpop.f32.mrf.mxu0
        %v1449 = vadd.f32 %v988, %v1448
        %1450 = vmatmul.bf16.gmra.mxu0 %v911
        %v1451 = vpop.f32.mrf.mxu0
        %v1452 = vadd.f32 %v988, %v1451
        %v1453 = vpop.f32.mrf.mxu0
        %v1454 = vadd.f32 %v988, %v1453
        %1455 = vmatmul.bf16.gmra.mxu0 %v912
        %v1456 = vpop.f32.mrf.mxu0
        %v1457 = vadd.f32 %v988, %v1456
        %v1458 = vpop.f32.mrf.mxu0
        %v1459 = vadd.f32 %v988, %v1458
        %1460 = vmatmul.bf16.gmra.mxu0 %v913
        %v1461 = vpop.f32.mrf.mxu0
        %v1462 = vadd.f32 %v988, %v1461
        %v1463 = vpop.f32.mrf.mxu0
        %v1464 = vadd.f32 %v988, %v1463
        %1465 = vmatmul.bf16.gmra.mxu0 %v914
        %v1466 = vpop.f32.mrf.mxu0
        %v1467 = vadd.f32 %v988, %v1466
        %v1468 = vpop.f32.mrf.mxu0
        %v1469 = vadd.f32 %v988, %v1468
        %1470 = vmatmul.bf16.gmra.mxu0 %v915
        %v1471 = vpop.f32.mrf.mxu0
        %v1472 = vadd.f32 %v988, %v1471
        %v1473 = vpop.f32.mrf.mxu0
        %v1474 = vadd.f32 %v988, %v1473
        %1475 = vmatmul.bf16.gmra.mxu0 %v916
        %v1476 = vpop.f32.mrf.mxu0
        %v1477 = vadd.f32 %v988, %v1476
        %v1478 = vpop.f32.mrf.mxu0
        %v1479 = vadd.f32 %v988, %v1478
        %1480 = vmatmul.bf16.gmra.mxu0 %v917
        %v1481 = vpop.f32.mrf.mxu0
        %v1482 = vadd.f32 %v988, %v1481
        %v1483 = vpop.f32.mrf.mxu0
        %v1484 = vadd.f32 %v988, %v1483
        %1485 = vmatmul.bf16.gmra.mxu0 %v918
        %v1486 = vpop.f32.mrf.mxu0
        %v1487 = vadd.f32 %v988, %v1486
        %v1488 = vpop.f32.mrf.mxu0
        %v1489 = vadd.f32 %v988, %v1488
        %1490 = vmatmul.bf16.gmra.mxu0 %v919
        %v1491 = vpop.f32.mrf.mxu0
        %v1492 = vadd.f32 %v988, %v1491
        %v1493 = vpop.f32.mrf.mxu0
        %v1494 = vadd.f32 %v988, %v1493
        %1495 = vmatmul.bf16.gmra.mxu0 %v920
        %v1496 = vpop.f32.mrf.mxu0
        %v1497 = vadd.f32 %v988, %v1496
        %v1498 = vpop.f32.mrf.mxu0
        %v1499 = vadd.f32 %v988, %v1498
        %1500 = vdwg.mxu0
        %1501 = vmatpush.bf16.msra.mxu0 %v1253
        %1502 = vmatpush.bf16.msra.mxu0 %v1245
        %1503 = vmatpush.bf16.msra.mxu0 %v1237
        %1504 = vmatpush.bf16.msra.mxu0 %v1229
        %1505 = vmatpush.bf16.msra.mxu0 %v1221
        %1506 = vmatpush.bf16.msra.mxu0 %v1213
        %1507 = vmatpush.bf16.msra.mxu0 %v1205
        %1508 = vmatpush.bf16.msra.mxu0 %v1197
        %1509 = vmatmul.bf16.gmra.mxu0 %v905
        %v1510 = vpop.f32.mrf.mxu0
        %v1511 = vadd.f32 %v989, %v1510
        %v1512 = vpop.f32.mrf.mxu0
        %v1513 = vadd.f32 %v989, %v1512
        %1514 = vmatmul.bf16.gmra.mxu0 %v906
        %v1515 = vpop.f32.mrf.mxu0
        %v1516 = vadd.f32 %v989, %v1515
        %v1517 = vpop.f32.mrf.mxu0
        %v1518 = vadd.f32 %v989, %v1517
        %1519 = vmatmul.bf16.gmra.mxu0 %v907
        %v1520 = vpop.f32.mrf.mxu0
        %v1521 = vadd.f32 %v989, %v1520
        %v1522 = vpop.f32.mrf.mxu0
        %v1523 = vadd.f32 %v989, %v1522
        %1524 = vmatmul.bf16.gmra.mxu0 %v908
        %v1525 = vpop.f32.mrf.mxu0
        %v1526 = vadd.f32 %v989, %v1525
        %v1527 = vpop.f32.mrf.mxu0
        %v1528 = vadd.f32 %v989, %v1527
        %1529 = vmatmul.bf16.gmra.mxu0 %v909
        %v1530 = vpop.f32.mrf.mxu0
        %v1531 = vadd.f32 %v989, %v1530
        %v1532 = vpop.f32.mrf.mxu0
        %v1533 = vadd.f32 %v989, %v1532
        %1534 = vmatmul.bf16.gmra.mxu0 %v910
        %v1535 = vpop.f32.mrf.mxu0
        %v1536 = vadd.f32 %v989, %v1535
        %v1537 = vpop.f32.mrf.mxu0
        %v1538 = vadd.f32 %v989, %v1537
        %1539 = vmatmul.bf16.gmra.mxu0 %v911
        %v1540 = vpop.f32.mrf.mxu0
        %v1541 = vadd.f32 %v989, %v1540
        %v1542 = vpop.f32.mrf.mxu0
        %v1543 = vadd.f32 %v989, %v1542
        %1544 = vmatmul.bf16.gmra.mxu0 %v912
        %v1545 = vpop.f32.mrf.mxu0
        %v1546 = vadd.f32 %v989, %v1545
        %v1547 = vpop.f32.mrf.mxu0
        %v1548 = vadd.f32 %v989, %v1547
        %1549 = vmatmul.bf16.gmra.mxu0 %v913
        %v1550 = vpop.f32.mrf.mxu0
        %v1551 = vadd.f32 %v989, %v1550
        %v1552 = vpop.f32.mrf.mxu0
        %v1553 = vadd.f32 %v989, %v1552
        %1554 = vmatmul.bf16.gmra.mxu0 %v914
        %v1555 = vpop.f32.mrf.mxu0
        %v1556 = vadd.f32 %v989, %v1555
        %v1557 = vpop.f32.mrf.mxu0
        %v1558 = vadd.f32 %v989, %v1557
        %1559 = vmatmul.bf16.gmra.mxu0 %v915
        %v1560 = vpop.f32.mrf.mxu0
        %v1561 = vadd.f32 %v989, %v1560
        %v1562 = vpop.f32.mrf.mxu0
        %v1563 = vadd.f32 %v989, %v1562
        %1564 = vmatmul.bf16.gmra.mxu0 %v916
        %v1565 = vpop.f32.mrf.mxu0
        %v1566 = vadd.f32 %v989, %v1565
        %v1567 = vpop.f32.mrf.mxu0
        %v1568 = vadd.f32 %v989, %v1567
        %1569 = vmatmul.bf16.gmra.mxu0 %v917
        %v1570 = vpop.f32.mrf.mxu0
        %v1571 = vadd.f32 %v989, %v1570
        %v1572 = vpop.f32.mrf.mxu0
        %v1573 = vadd.f32 %v989, %v1572
        %1574 = vmatmul.bf16.gmra.mxu0 %v918
        %v1575 = vpop.f32.mrf.mxu0
        %v1576 = vadd.f32 %v989, %v1575
        %v1577 = vpop.f32.mrf.mxu0
        %v1578 = vadd.f32 %v989, %v1577
        %1579 = vmatmul.bf16.gmra.mxu0 %v919
        %v1580 = vpop.f32.mrf.mxu0
        %v1581 = vadd.f32 %v989, %v1580
        %v1582 = vpop.f32.mrf.mxu0
        %v1583 = vadd.f32 %v989, %v1582
        %1584 = vmatmul.bf16.gmra.mxu0 %v920
        %v1585 = vpop.f32.mrf.mxu0
        %v1586 = vadd.f32 %v989, %v1585
        %v1587 = vpop.f32.mrf.mxu0
        %v1588 = vadd.f32 %v989, %v1587
        %1589 = vdwg.mxu0
        %1590 = vmatpush.bf16.msra.mxu0 %v1254
        %1591 = vmatpush.bf16.msra.mxu0 %v1246
        %1592 = vmatpush.bf16.msra.mxu0 %v1238
        %1593 = vmatpush.bf16.msra.mxu0 %v1230
        %1594 = vmatpush.bf16.msra.mxu0 %v1222
        %1595 = vmatpush.bf16.msra.mxu0 %v1214
        %1596 = vmatpush.bf16.msra.mxu0 %v1206
        %1597 = vmatpush.bf16.msra.mxu0 %v1198
        %1598 = vmatmul.bf16.gmra.mxu0 %v905
        %v1599 = vpop.f32.mrf.mxu0
        %v1600 = vadd.f32 %v990, %v1599
        %v1601 = vpop.f32.mrf.mxu0
        %v1602 = vadd.f32 %v990, %v1601
        %1603 = vmatmul.bf16.gmra.mxu0 %v906
        %v1604 = vpop.f32.mrf.mxu0
        %v1605 = vadd.f32 %v990, %v1604
        %v1606 = vpop.f32.mrf.mxu0
        %v1607 = vadd.f32 %v990, %v1606
        %1608 = vmatmul.bf16.gmra.mxu0 %v907
        %v1609 = vpop.f32.mrf.mxu0
        %v1610 = vadd.f32 %v990, %v1609
        %v1611 = vpop.f32.mrf.mxu0
        %v1612 = vadd.f32 %v990, %v1611
        %1613 = vmatmul.bf16.gmra.mxu0 %v908
        %v1614 = vpop.f32.mrf.mxu0
        %v1615 = vadd.f32 %v990, %v1614
        %v1616 = vpop.f32.mrf.mxu0
        %v1617 = vadd.f32 %v990, %v1616
        %1618 = vmatmul.bf16.gmra.mxu0 %v909
        %v1619 = vpop.f32.mrf.mxu0
        %v1620 = vadd.f32 %v990, %v1619
        %v1621 = vpop.f32.mrf.mxu0
        %v1622 = vadd.f32 %v990, %v1621
        %1623 = vmatmul.bf16.gmra.mxu0 %v910
        %v1624 = vpop.f32.mrf.mxu0
        %v1625 = vadd.f32 %v990, %v1624
        %v1626 = vpop.f32.mrf.mxu0
        %v1627 = vadd.f32 %v990, %v1626
        %1628 = vmatmul.bf16.gmra.mxu0 %v911
        %v1629 = vpop.f32.mrf.mxu0
        %v1630 = vadd.f32 %v990, %v1629
        %v1631 = vpop.f32.mrf.mxu0
        %v1632 = vadd.f32 %v990, %v1631
        %1633 = vmatmul.bf16.gmra.mxu0 %v912
        %v1634 = vpop.f32.mrf.mxu0
        %v1635 = vadd.f32 %v990, %v1634
        %v1636 = vpop.f32.mrf.mxu0
        %v1637 = vadd.f32 %v990, %v1636
        %1638 = vmatmul.bf16.gmra.mxu0 %v913
        %v1639 = vpop.f32.mrf.mxu0
        %v1640 = vadd.f32 %v990, %v1639
        %v1641 = vpop.f32.mrf.mxu0
        %v1642 = vadd.f32 %v990, %v1641
        %1643 = vmatmul.bf16.gmra.mxu0 %v914
        %v1644 = vpop.f32.mrf.mxu0
        %v1645 = vadd.f32 %v990, %v1644
        %v1646 = vpop.f32.mrf.mxu0
        %v1647 = vadd.f32 %v990, %v1646
        %1648 = vmatmul.bf16.gmra.mxu0 %v915
        %v1649 = vpop.f32.mrf.mxu0
        %v1650 = vadd.f32 %v990, %v1649
        %v1651 = vpop.f32.mrf.mxu0
        %v1652 = vadd.f32 %v990, %v1651
        %1653 = vmatmul.bf16.gmra.mxu0 %v916
        %v1654 = vpop.f32.mrf.mxu0
        %v1655 = vadd.f32 %v990, %v1654
        %v1656 = vpop.f32.mrf.mxu0
        %v1657 = vadd.f32 %v990, %v1656
        %1658 = vmatmul.bf16.gmra.mxu0 %v917
        %v1659 = vpop.f32.mrf.mxu0
        %v1660 = vadd.f32 %v990, %v1659
        %v1661 = vpop.f32.mrf.mxu0
        %v1662 = vadd.f32 %v990, %v1661
        %1663 = vmatmul.bf16.gmra.mxu0 %v918
        %v1664 = vpop.f32.mrf.mxu0
        %v1665 = vadd.f32 %v990, %v1664
        %v1666 = vpop.f32.mrf.mxu0
        %v1667 = vadd.f32 %v990, %v1666
        %1668 = vmatmul.bf16.gmra.mxu0 %v919
        %v1669 = vpop.f32.mrf.mxu0
        %v1670 = vadd.f32 %v990, %v1669
        %v1671 = vpop.f32.mrf.mxu0
        %v1672 = vadd.f32 %v990, %v1671
        %1673 = vmatmul.bf16.gmra.mxu0 %v920
        %v1674 = vpop.f32.mrf.mxu0
        %v1675 = vadd.f32 %v990, %v1674
        %v1676 = vpop.f32.mrf.mxu0
        %v1677 = vadd.f32 %v990, %v1676
        %1678 = vdwg.mxu0
        %1679 = vmatpush.bf16.msra.mxu0 %v1255
        %1680 = vmatpush.bf16.msra.mxu0 %v1247
        %1681 = vmatpush.bf16.msra.mxu0 %v1239
        %1682 = vmatpush.bf16.msra.mxu0 %v1231
        %1683 = vmatpush.bf16.msra.mxu0 %v1223
        %1684 = vmatpush.bf16.msra.mxu0 %v1215
        %1685 = vmatpush.bf16.msra.mxu0 %v1207
        %1686 = vmatpush.bf16.msra.mxu0 %v1199
        %1687 = vmatmul.bf16.gmra.mxu0 %v905
        %v1688 = vpop.f32.mrf.mxu0
        %v1689 = vadd.f32 %v991, %v1688
        %v1690 = vpop.f32.mrf.mxu0
        %v1691 = vadd.f32 %v991, %v1690
        %1692 = vmatmul.bf16.gmra.mxu0 %v906
        %v1693 = vpop.f32.mrf.mxu0
        %v1694 = vadd.f32 %v991, %v1693
        %v1695 = vpop.f32.mrf.mxu0
        %v1696 = vadd.f32 %v991, %v1695
        %1697 = vmatmul.bf16.gmra.mxu0 %v907
        %v1698 = vpop.f32.mrf.mxu0
        %v1699 = vadd.f32 %v991, %v1698
        %v1700 = vpop.f32.mrf.mxu0
        %v1701 = vadd.f32 %v991, %v1700
        %1702 = vmatmul.bf16.gmra.mxu0 %v908
        %v1703 = vpop.f32.mrf.mxu0
        %v1704 = vadd.f32 %v991, %v1703
        %v1705 = vpop.f32.mrf.mxu0
        %v1706 = vadd.f32 %v991, %v1705
        %1707 = vmatmul.bf16.gmra.mxu0 %v909
        %v1708 = vpop.f32.mrf.mxu0
        %v1709 = vadd.f32 %v991, %v1708
        %v1710 = vpop.f32.mrf.mxu0
        %v1711 = vadd.f32 %v991, %v1710
        %1712 = vmatmul.bf16.gmra.mxu0 %v910
        %v1713 = vpop.f32.mrf.mxu0
        %v1714 = vadd.f32 %v991, %v1713
        %v1715 = vpop.f32.mrf.mxu0
        %v1716 = vadd.f32 %v991, %v1715
        %1717 = vmatmul.bf16.gmra.mxu0 %v911
        %v1718 = vpop.f32.mrf.mxu0
        %v1719 = vadd.f32 %v991, %v1718
        %v1720 = vpop.f32.mrf.mxu0
        %v1721 = vadd.f32 %v991, %v1720
        %1722 = vmatmul.bf16.gmra.mxu0 %v912
        %v1723 = vpop.f32.mrf.mxu0
        %v1724 = vadd.f32 %v991, %v1723
        %v1725 = vpop.f32.mrf.mxu0
        %v1726 = vadd.f32 %v991, %v1725
        %1727 = vmatmul.bf16.gmra.mxu0 %v913
        %v1728 = vpop.f32.mrf.mxu0
        %v1729 = vadd.f32 %v991, %v1728
        %v1730 = vpop.f32.mrf.mxu0
        %v1731 = vadd.f32 %v991, %v1730
        %1732 = vmatmul.bf16.gmra.mxu0 %v914
        %v1733 = vpop.f32.mrf.mxu0
        %v1734 = vadd.f32 %v991, %v1733
        %v1735 = vpop.f32.mrf.mxu0
        %v1736 = vadd.f32 %v991, %v1735
        %1737 = vmatmul.bf16.gmra.mxu0 %v915
        %v1738 = vpop.f32.mrf.mxu0
        %v1739 = vadd.f32 %v991, %v1738
        %v1740 = vpop.f32.mrf.mxu0
        %v1741 = vadd.f32 %v991, %v1740
        %1742 = vmatmul.bf16.gmra.mxu0 %v916
        %v1743 = vpop.f32.mrf.mxu0
        %v1744 = vadd.f32 %v991, %v1743
        %v1745 = vpop.f32.mrf.mxu0
        %v1746 = vadd.f32 %v991, %v1745
        %1747 = vmatmul.bf16.gmra.mxu0 %v917
        %v1748 = vpop.f32.mrf.mxu0
        %v1749 = vadd.f32 %v991, %v1748
        %v1750 = vpop.f32.mrf.mxu0
        %v1751 = vadd.f32 %v991, %v1750
        %1752 = vmatmul.bf16.gmra.mxu0 %v918
        %v1753 = vpop.f32.mrf.mxu0
        %v1754 = vadd.f32 %v991, %v1753
        %v1755 = vpop.f32.mrf.mxu0
        %v1756 = vadd.f32 %v991, %v1755
        %1757 = vmatmul.bf16.gmra.mxu0 %v919
        %v1758 = vpop.f32.mrf.mxu0
        %v1759 = vadd.f32 %v991, %v1758
        %v1760 = vpop.f32.mrf.mxu0
        %v1761 = vadd.f32 %v991, %v1760
        %1762 = vmatmul.bf16.gmra.mxu0 %v920
        %v1763 = vpop.f32.mrf.mxu0
        %v1764 = vadd.f32 %v991, %v1763
        %v1765 = vpop.f32.mrf.mxu0
        %v1766 = vadd.f32 %v991, %v1765
        %1767 = vdwg.mxu0
        %1768 = vmatpush.bf16.msra.mxu0 %v1256
        %1769 = vmatpush.bf16.msra.mxu0 %v1248
        %1770 = vmatpush.bf16.msra.mxu0 %v1240
        %1771 = vmatpush.bf16.msra.mxu0 %v1232
        %1772 = vmatpush.bf16.msra.mxu0 %v1224
        %1773 = vmatpush.bf16.msra.mxu0 %v1216
        %1774 = vmatpush.bf16.msra.mxu0 %v1208
        %1775 = vmatpush.bf16.msra.mxu0 %v1200
        %1776 = vmatmul.bf16.gmra.mxu0 %v905
        %v1777 = vpop.f32.mrf.mxu0
        %v1778 = vadd.f32 %v992, %v1777
        %v1779 = vpop.f32.mrf.mxu0
        %v1780 = vadd.f32 %v992, %v1779
        %1781 = vmatmul.bf16.gmra.mxu0 %v906
        %v1782 = vpop.f32.mrf.mxu0
        %v1783 = vadd.f32 %v992, %v1782
        %v1784 = vpop.f32.mrf.mxu0
        %v1785 = vadd.f32 %v992, %v1784
        %1786 = vmatmul.bf16.gmra.mxu0 %v907
        %v1787 = vpop.f32.mrf.mxu0
        %v1788 = vadd.f32 %v992, %v1787
        %v1789 = vpop.f32.mrf.mxu0
        %v1790 = vadd.f32 %v992, %v1789
        %1791 = vmatmul.bf16.gmra.mxu0 %v908
        %v1792 = vpop.f32.mrf.mxu0
        %v1793 = vadd.f32 %v992, %v1792
        %v1794 = vpop.f32.mrf.mxu0
        %v1795 = vadd.f32 %v992, %v1794
        %1796 = vmatmul.bf16.gmra.mxu0 %v909
        %v1797 = vpop.f32.mrf.mxu0
        %v1798 = vadd.f32 %v992, %v1797
        %v1799 = vpop.f32.mrf.mxu0
        %v1800 = vadd.f32 %v992, %v1799
        %1801 = vmatmul.bf16.gmra.mxu0 %v910
        %v1802 = vpop.f32.mrf.mxu0
        %v1803 = vadd.f32 %v992, %v1802
        %v1804 = vpop.f32.mrf.mxu0
        %v1805 = vadd.f32 %v992, %v1804
        %1806 = vmatmul.bf16.gmra.mxu0 %v911
        %v1807 = vpop.f32.mrf.mxu0
        %v1808 = vadd.f32 %v992, %v1807
        %v1809 = vpop.f32.mrf.mxu0
        %v1810 = vadd.f32 %v992, %v1809
        %1811 = vmatmul.bf16.gmra.mxu0 %v912
        %v1812 = vpop.f32.mrf.mxu0
        %v1813 = vadd.f32 %v992, %v1812
        %v1814 = vpop.f32.mrf.mxu0
        %v1815 = vadd.f32 %v992, %v1814
        %1816 = vmatmul.bf16.gmra.mxu0 %v913
        %v1817 = vpop.f32.mrf.mxu0
        %v1818 = vadd.f32 %v992, %v1817
        %v1819 = vpop.f32.mrf.mxu0
        %v1820 = vadd.f32 %v992, %v1819
        %1821 = vmatmul.bf16.gmra.mxu0 %v914
        %v1822 = vpop.f32.mrf.mxu0
        %v1823 = vadd.f32 %v992, %v1822
        %v1824 = vpop.f32.mrf.mxu0
        %v1825 = vadd.f32 %v992, %v1824
        %1826 = vmatmul.bf16.gmra.mxu0 %v915
        %v1827 = vpop.f32.mrf.mxu0
        %v1828 = vadd.f32 %v992, %v1827
        %v1829 = vpop.f32.mrf.mxu0
        %v1830 = vadd.f32 %v992, %v1829
        %1831 = vmatmul.bf16.gmra.mxu0 %v916
        %v1832 = vpop.f32.mrf.mxu0
        %v1833 = vadd.f32 %v992, %v1832
        %v1834 = vpop.f32.mrf.mxu0
        %v1835 = vadd.f32 %v992, %v1834
        %1836 = vmatmul.bf16.gmra.mxu0 %v917
        %v1837 = vpop.f32.mrf.mxu0
        %v1838 = vadd.f32 %v992, %v1837
        %v1839 = vpop.f32.mrf.mxu0
        %v1840 = vadd.f32 %v992, %v1839
        %1841 = vmatmul.bf16.gmra.mxu0 %v918
        %v1842 = vpop.f32.mrf.mxu0
        %v1843 = vadd.f32 %v992, %v1842
        %v1844 = vpop.f32.mrf.mxu0
        %v1845 = vadd.f32 %v992, %v1844
        %1846 = vmatmul.bf16.gmra.mxu0 %v919
        %v1847 = vpop.f32.mrf.mxu0
        %v1848 = vadd.f32 %v992, %v1847
        %v1849 = vpop.f32.mrf.mxu0
        %v1850 = vadd.f32 %v992, %v1849
        %1851 = vmatmul.bf16.gmra.mxu0 %v920
        %v1852 = vpop.f32.mrf.mxu0
        %v1853 = vadd.f32 %v992, %v1852
        %v1854 = vpop.f32.mrf.mxu0
        %v1855 = vadd.f32 %v992, %v1854
        %1856 = vdwg.mxu0
        %1857 = vmatpush.bf16.msra.mxu0 %v1257
        %1858 = vmatpush.bf16.msra.mxu0 %v1249
        %1859 = vmatpush.bf16.msra.mxu0 %v1241
        %1860 = vmatpush.bf16.msra.mxu0 %v1233
        %1861 = vmatpush.bf16.msra.mxu0 %v1225
        %1862 = vmatpush.bf16.msra.mxu0 %v1217
        %1863 = vmatpush.bf16.msra.mxu0 %v1209
        %1864 = vmatpush.bf16.msra.mxu0 %v1201
        %1865 = vmatmul.bf16.gmra.mxu0 %v905
        %v1866 = vpop.f32.mrf.mxu0
        %v1867 = vadd.f32 %v993, %v1866
        %v1868 = vpop.f32.mrf.mxu0
        %v1869 = vadd.f32 %v993, %v1868
        %1870 = vmatmul.bf16.gmra.mxu0 %v906
        %v1871 = vpop.f32.mrf.mxu0
        %v1872 = vadd.f32 %v993, %v1871
        %v1873 = vpop.f32.mrf.mxu0
        %v1874 = vadd.f32 %v993, %v1873
        %1875 = vmatmul.bf16.gmra.mxu0 %v907
        %v1876 = vpop.f32.mrf.mxu0
        %v1877 = vadd.f32 %v993, %v1876
        %v1878 = vpop.f32.mrf.mxu0
        %v1879 = vadd.f32 %v993, %v1878
        %1880 = vmatmul.bf16.gmra.mxu0 %v908
        %v1881 = vpop.f32.mrf.mxu0
        %v1882 = vadd.f32 %v993, %v1881
        %v1883 = vpop.f32.mrf.mxu0
        %v1884 = vadd.f32 %v993, %v1883
        %1885 = vmatmul.bf16.gmra.mxu0 %v909
        %v1886 = vpop.f32.mrf.mxu0
        %v1887 = vadd.f32 %v993, %v1886
        %v1888 = vpop.f32.mrf.mxu0
        %v1889 = vadd.f32 %v993, %v1888
        %1890 = vmatmul.bf16.gmra.mxu0 %v910
        %v1891 = vpop.f32.mrf.mxu0
        %v1892 = vadd.f32 %v993, %v1891
        %v1893 = vpop.f32.mrf.mxu0
        %v1894 = vadd.f32 %v993, %v1893
        %1895 = vmatmul.bf16.gmra.mxu0 %v911
        %v1896 = vpop.f32.mrf.mxu0
        %v1897 = vadd.f32 %v993, %v1896
        %v1898 = vpop.f32.mrf.mxu0
        %v1899 = vadd.f32 %v993, %v1898
        %1900 = vmatmul.bf16.gmra.mxu0 %v912
        %v1901 = vpop.f32.mrf.mxu0
        %v1902 = vadd.f32 %v993, %v1901
        %v1903 = vpop.f32.mrf.mxu0
        %v1904 = vadd.f32 %v993, %v1903
        %1905 = vmatmul.bf16.gmra.mxu0 %v913
        %v1906 = vpop.f32.mrf.mxu0
        %v1907 = vadd.f32 %v993, %v1906
        %v1908 = vpop.f32.mrf.mxu0
        %v1909 = vadd.f32 %v993, %v1908
        %1910 = vmatmul.bf16.gmra.mxu0 %v914
        %v1911 = vpop.f32.mrf.mxu0
        %v1912 = vadd.f32 %v993, %v1911
        %v1913 = vpop.f32.mrf.mxu0
        %v1914 = vadd.f32 %v993, %v1913
        %1915 = vmatmul.bf16.gmra.mxu0 %v915
        %v1916 = vpop.f32.mrf.mxu0
        %v1917 = vadd.f32 %v993, %v1916
        %v1918 = vpop.f32.mrf.mxu0
        %v1919 = vadd.f32 %v993, %v1918
        %1920 = vmatmul.bf16.gmra.mxu0 %v916
        %v1921 = vpop.f32.mrf.mxu0
        %v1922 = vadd.f32 %v993, %v1921
        %v1923 = vpop.f32.mrf.mxu0
        %v1924 = vadd.f32 %v993, %v1923
        %1925 = vmatmul.bf16.gmra.mxu0 %v917
        %v1926 = vpop.f32.mrf.mxu0
        %v1927 = vadd.f32 %v993, %v1926
        %v1928 = vpop.f32.mrf.mxu0
        %v1929 = vadd.f32 %v993, %v1928
        %1930 = vmatmul.bf16.gmra.mxu0 %v918
        %v1931 = vpop.f32.mrf.mxu0
        %v1932 = vadd.f32 %v993, %v1931
        %v1933 = vpop.f32.mrf.mxu0
        %v1934 = vadd.f32 %v993, %v1933
        %1935 = vmatmul.bf16.gmra.mxu0 %v919
        %v1936 = vpop.f32.mrf.mxu0
        %v1937 = vadd.f32 %v993, %v1936
        %v1938 = vpop.f32.mrf.mxu0
        %v1939 = vadd.f32 %v993, %v1938
        %1940 = vmatmul.bf16.gmra.mxu0 %v920
        %v1941 = vpop.f32.mrf.mxu0
        %v1942 = vadd.f32 %v993, %v1941
        %v1943 = vpop.f32.mrf.mxu0
        %v1944 = vadd.f32 %v993, %v1943
        %1945 = vdwg.mxu0
        %1946 = vmatpush.bf16.msra.mxu0 %v1258
        %1947 = vmatpush.bf16.msra.mxu0 %v1250
        %1948 = vmatpush.bf16.msra.mxu0 %v1242
        %1949 = vmatpush.bf16.msra.mxu0 %v1234
        %1950 = vmatpush.bf16.msra.mxu0 %v1226
        %1951 = vmatpush.bf16.msra.mxu0 %v1218
        %1952 = vmatpush.bf16.msra.mxu0 %v1210
        %1953 = vmatpush.bf16.msra.mxu0 %v1202
        %1954 = vmatmul.bf16.gmra.mxu0 %v905
        %v1955 = vpop.f32.mrf.mxu0
        %v1956 = vadd.f32 %v994, %v1955
        %v1957 = vpop.f32.mrf.mxu0
        %v1958 = vadd.f32 %v994, %v1957
        %1959 = vmatmul.bf16.gmra.mxu0 %v906
        %v1960 = vpop.f32.mrf.mxu0
        %v1961 = vadd.f32 %v994, %v1960
        %v1962 = vpop.f32.mrf.mxu0
        %v1963 = vadd.f32 %v994, %v1962
        %1964 = vmatmul.bf16.gmra.mxu0 %v907
        %v1965 = vpop.f32.mrf.mxu0
        %v1966 = vadd.f32 %v994, %v1965
        %v1967 = vpop.f32.mrf.mxu0
        %v1968 = vadd.f32 %v994, %v1967
        %1969 = vmatmul.bf16.gmra.mxu0 %v908
        %v1970 = vpop.f32.mrf.mxu0
        %v1971 = vadd.f32 %v994, %v1970
        %v1972 = vpop.f32.mrf.mxu0
        %v1973 = vadd.f32 %v994, %v1972
        %1974 = vmatmul.bf16.gmra.mxu0 %v909
        %v1975 = vpop.f32.mrf.mxu0
        %v1976 = vadd.f32 %v994, %v1975
        %v1977 = vpop.f32.mrf.mxu0
        %v1978 = vadd.f32 %v994, %v1977
        %1979 = vmatmul.bf16.gmra.mxu0 %v910
        %v1980 = vpop.f32.mrf.mxu0
        %v1981 = vadd.f32 %v994, %v1980
        %v1982 = vpop.f32.mrf.mxu0
        %v1983 = vadd.f32 %v994, %v1982
        %1984 = vmatmul.bf16.gmra.mxu0 %v911
        %v1985 = vpop.f32.mrf.mxu0
        %v1986 = vadd.f32 %v994, %v1985
        %v1987 = vpop.f32.mrf.mxu0
        %v1988 = vadd.f32 %v994, %v1987
        %1989 = vmatmul.bf16.gmra.mxu0 %v912
        %v1990 = vpop.f32.mrf.mxu0
        %v1991 = vadd.f32 %v994, %v1990
        %v1992 = vpop.f32.mrf.mxu0
        %v1993 = vadd.f32 %v994, %v1992
        %1994 = vmatmul.bf16.gmra.mxu0 %v913
        %v1995 = vpop.f32.mrf.mxu0
        %v1996 = vadd.f32 %v994, %v1995
        %v1997 = vpop.f32.mrf.mxu0
        %v1998 = vadd.f32 %v994, %v1997
        %1999 = vmatmul.bf16.gmra.mxu0 %v914
        %v2000 = vpop.f32.mrf.mxu0
        %v2001 = vadd.f32 %v994, %v2000
        %v2002 = vpop.f32.mrf.mxu0
        %v2003 = vadd.f32 %v994, %v2002
        %2004 = vmatmul.bf16.gmra.mxu0 %v915
        %v2005 = vpop.f32.mrf.mxu0
        %v2006 = vadd.f32 %v994, %v2005
        %v2007 = vpop.f32.mrf.mxu0
        %v2008 = vadd.f32 %v994, %v2007
        %2009 = vmatmul.bf16.gmra.mxu0 %v916
        %v2010 = vpop.f32.mrf.mxu0
        %v2011 = vadd.f32 %v994, %v2010
        %v2012 = vpop.f32.mrf.mxu0
        %v2013 = vadd.f32 %v994, %v2012
        %2014 = vmatmul.bf16.gmra.mxu0 %v917
        %v2015 = vpop.f32.mrf.mxu0
        %v2016 = vadd.f32 %v994, %v2015
        %v2017 = vpop.f32.mrf.mxu0
        %v2018 = vadd.f32 %v994, %v2017
        %2019 = vmatmul.bf16.gmra.mxu0 %v918
        %v2020 = vpop.f32.mrf.mxu0
        %v2021 = vadd.f32 %v994, %v2020
        %v2022 = vpop.f32.mrf.mxu0
        %v2023 = vadd.f32 %v994, %v2022
        %2024 = vmatmul.bf16.gmra.mxu0 %v919
        %v2025 = vpop.f32.mrf.mxu0
        %v2026 = vadd.f32 %v994, %v2025
        %v2027 = vpop.f32.mrf.mxu0
        %v2028 = vadd.f32 %v994, %v2027
        %2029 = vmatmul.bf16.gmra.mxu0 %v920
        %v2030 = vpop.f32.mrf.mxu0
        %v2031 = vadd.f32 %v994, %v2030
        %v2032 = vpop.f32.mrf.mxu0
        %v2033 = vadd.f32 %v994, %v2032
        %2034 = vdwg.mxu0
        %v2035 = vmax.f32 %v1333, %v1335
        %v2036 = vmax.f32 %v2035, %v1338
        %v2037 = vmax.f32 %v2036, %v1340
        %v2038 = vmax.f32 %v2037, %v1343
        %v2039 = vmax.f32 %v2038, %v1345
        %v2040 = vmax.f32 %v2039, %v1348
        %v2041 = vmax.f32 %v2040, %v1350
        %v2042 = vmax.f32 %v2041, %v1353
        %v2043 = vmax.f32 %v2042, %v1355
        %v2044 = vmax.f32 %v2043, %v1358
        %v2045 = vmax.f32 %v2044, %v1360
        %v2046 = vmax.f32 %v2045, %v1363
        %v2047 = vmax.f32 %v2046, %v1365
        %v2048 = vmax.f32 %v2047, %v1368
        %v2049 = vmax.f32 %v2048, %v1370
        %v2050 = vmax.f32 %v2049, %v1373
        %v2051 = vmax.f32 %v2050, %v1375
        %v2052 = vmax.f32 %v2051, %v1378
        %v2053 = vmax.f32 %v2052, %v1380
        %v2054 = vmax.f32 %v2053, %v1383
        %v2055 = vmax.f32 %v2054, %v1385
        %v2056 = vmax.f32 %v2055, %v1388
        %v2057 = vmax.f32 %v2056, %v1390
        %v2058 = vmax.f32 %v2057, %v1393
        %v2059 = vmax.f32 %v2058, %v1395
        %v2060 = vmax.f32 %v2059, %v1398
        %v2061 = vmax.f32 %v2060, %v1400
        %v2062 = vmax.f32 %v2061, %v1403
        %v2063 = vmax.f32 %v2062, %v1405
        %v2064 = vmax.f32 %v2063, %v1408
        %v2065 = vmax.f32 %v2064, %v1410
        %v2066 = vrot.slane %v2065, 4
        %v2067 = vmax.f32 %v2065, %v2066
        %v2068 = vrot.slane %v2067, 2
        %v2069 = vmax.f32 %v2067, %v2068
        %v2070 = vrot.slane %v2069, 1
        %v2071 = vmax.f32 %v2069, %v2070
        %v2072 = vmax.f32 %v1422, %v1424
        %v2073 = vmax.f32 %v2072, %v1427
        %v2074 = vmax.f32 %v2073, %v1429
        %v2075 = vmax.f32 %v2074, %v1432
        %v2076 = vmax.f32 %v2075, %v1434
        %v2077 = vmax.f32 %v2076, %v1437
        %v2078 = vmax.f32 %v2077, %v1439
        %v2079 = vmax.f32 %v2078, %v1442
        %v2080 = vmax.f32 %v2079, %v1444
        %v2081 = vmax.f32 %v2080, %v1447
        %v2082 = vmax.f32 %v2081, %v1449
        %v2083 = vmax.f32 %v2082, %v1452
        %v2084 = vmax.f32 %v2083, %v1454
        %v2085 = vmax.f32 %v2084, %v1457
        %v2086 = vmax.f32 %v2085, %v1459
        %v2087 = vmax.f32 %v2086, %v1462
        %v2088 = vmax.f32 %v2087, %v1464
        %v2089 = vmax.f32 %v2088, %v1467
        %v2090 = vmax.f32 %v2089, %v1469
        %v2091 = vmax.f32 %v2090, %v1472
        %v2092 = vmax.f32 %v2091, %v1474
        %v2093 = vmax.f32 %v2092, %v1477
        %v2094 = vmax.f32 %v2093, %v1479
        %v2095 = vmax.f32 %v2094, %v1482
        %v2096 = vmax.f32 %v2095, %v1484
        %v2097 = vmax.f32 %v2096, %v1487
        %v2098 = vmax.f32 %v2097, %v1489
        %v2099 = vmax.f32 %v2098, %v1492
        %v2100 = vmax.f32 %v2099, %v1494
        %v2101 = vmax.f32 %v2100, %v1497
        %v2102 = vmax.f32 %v2101, %v1499
        %v2103 = vrot.slane %v2102, 4
        %v2104 = vmax.f32 %v2102, %v2103
        %v2105 = vrot.slane %v2104, 2
        %v2106 = vmax.f32 %v2104, %v2105
        %v2107 = vrot.slane %v2106, 1
        %v2108 = vmax.f32 %v2106, %v2107
        %v2109 = vmax.f32 %v1511, %v1513
        %v2110 = vmax.f32 %v2109, %v1516
        %v2111 = vmax.f32 %v2110, %v1518
        %v2112 = vmax.f32 %v2111, %v1521
        %v2113 = vmax.f32 %v2112, %v1523
        %v2114 = vmax.f32 %v2113, %v1526
        %v2115 = vmax.f32 %v2114, %v1528
        %v2116 = vmax.f32 %v2115, %v1531
        %v2117 = vmax.f32 %v2116, %v1533
        %v2118 = vmax.f32 %v2117, %v1536
        %v2119 = vmax.f32 %v2118, %v1538
        %v2120 = vmax.f32 %v2119, %v1541
        %v2121 = vmax.f32 %v2120, %v1543
        %v2122 = vmax.f32 %v2121, %v1546
        %v2123 = vmax.f32 %v2122, %v1548
        %v2124 = vmax.f32 %v2123, %v1551
        %v2125 = vmax.f32 %v2124, %v1553
        %v2126 = vmax.f32 %v2125, %v1556
        %v2127 = vmax.f32 %v2126, %v1558
        %v2128 = vmax.f32 %v2127, %v1561
        %v2129 = vmax.f32 %v2128, %v1563
        %v2130 = vmax.f32 %v2129, %v1566
        %v2131 = vmax.f32 %v2130, %v1568
        %v2132 = vmax.f32 %v2131, %v1571
        %v2133 = vmax.f32 %v2132, %v1573
        %v2134 = vmax.f32 %v2133, %v1576
        %v2135 = vmax.f32 %v2134, %v1578
        %v2136 = vmax.f32 %v2135, %v1581
        %v2137 = vmax.f32 %v2136, %v1583
        %v2138 = vmax.f32 %v2137, %v1586
        %v2139 = vmax.f32 %v2138, %v1588
        %v2140 = vrot.slane %v2139, 4
        %v2141 = vmax.f32 %v2139, %v2140
        %v2142 = vrot.slane %v2141, 2
        %v2143 = vmax.f32 %v2141, %v2142
        %v2144 = vrot.slane %v2143, 1
        %v2145 = vmax.f32 %v2143, %v2144
        %v2146 = vmax.f32 %v1600, %v1602
        %v2147 = vmax.f32 %v2146, %v1605
        %v2148 = vmax.f32 %v2147, %v1607
        %v2149 = vmax.f32 %v2148, %v1610
        %v2150 = vmax.f32 %v2149, %v1612
        %v2151 = vmax.f32 %v2150, %v1615
        %v2152 = vmax.f32 %v2151, %v1617
        %v2153 = vmax.f32 %v2152, %v1620
        %v2154 = vmax.f32 %v2153, %v1622
        %v2155 = vmax.f32 %v2154, %v1625
        %v2156 = vmax.f32 %v2155, %v1627
        %v2157 = vmax.f32 %v2156, %v1630
        %v2158 = vmax.f32 %v2157, %v1632
        %v2159 = vmax.f32 %v2158, %v1635
        %v2160 = vmax.f32 %v2159, %v1637
        %v2161 = vmax.f32 %v2160, %v1640
        %v2162 = vmax.f32 %v2161, %v1642
        %v2163 = vmax.f32 %v2162, %v1645
        %v2164 = vmax.f32 %v2163, %v1647
        %v2165 = vmax.f32 %v2164, %v1650
        %v2166 = vmax.f32 %v2165, %v1652
        %v2167 = vmax.f32 %v2166, %v1655
        %v2168 = vmax.f32 %v2167, %v1657
        %v2169 = vmax.f32 %v2168, %v1660
        %v2170 = vmax.f32 %v2169, %v1662
        %v2171 = vmax.f32 %v2170, %v1665
        %v2172 = vmax.f32 %v2171, %v1667
        %v2173 = vmax.f32 %v2172, %v1670
        %v2174 = vmax.f32 %v2173, %v1672
        %v2175 = vmax.f32 %v2174, %v1675
        %v2176 = vmax.f32 %v2175, %v1677
        %v2177 = vrot.slane %v2176, 4
        %v2178 = vmax.f32 %v2176, %v2177
        %v2179 = vrot.slane %v2178, 2
        %v2180 = vmax.f32 %v2178, %v2179
        %v2181 = vrot.slane %v2180, 1
        %v2182 = vmax.f32 %v2180, %v2181
        %v2183 = vmax.f32 %v1689, %v1691
        %v2184 = vmax.f32 %v2183, %v1694
        %v2185 = vmax.f32 %v2184, %v1696
        %v2186 = vmax.f32 %v2185, %v1699
        %v2187 = vmax.f32 %v2186, %v1701
        %v2188 = vmax.f32 %v2187, %v1704
        %v2189 = vmax.f32 %v2188, %v1706
        %v2190 = vmax.f32 %v2189, %v1709
        %v2191 = vmax.f32 %v2190, %v1711
        %v2192 = vmax.f32 %v2191, %v1714
        %v2193 = vmax.f32 %v2192, %v1716
        %v2194 = vmax.f32 %v2193, %v1719
        %v2195 = vmax.f32 %v2194, %v1721
        %v2196 = vmax.f32 %v2195, %v1724
        %v2197 = vmax.f32 %v2196, %v1726
        %v2198 = vmax.f32 %v2197, %v1729
        %v2199 = vmax.f32 %v2198, %v1731
        %v2200 = vmax.f32 %v2199, %v1734
        %v2201 = vmax.f32 %v2200, %v1736
        %v2202 = vmax.f32 %v2201, %v1739
        %v2203 = vmax.f32 %v2202, %v1741
        %v2204 = vmax.f32 %v2203, %v1744
        %v2205 = vmax.f32 %v2204, %v1746
        %v2206 = vmax.f32 %v2205, %v1749
        %v2207 = vmax.f32 %v2206, %v1751
        %v2208 = vmax.f32 %v2207, %v1754
        %v2209 = vmax.f32 %v2208, %v1756
        %v2210 = vmax.f32 %v2209, %v1759
        %v2211 = vmax.f32 %v2210, %v1761
        %v2212 = vmax.f32 %v2211, %v1764
        %v2213 = vmax.f32 %v2212, %v1766
        %v2214 = vrot.slane %v2213, 4
        %v2215 = vmax.f32 %v2213, %v2214
        %v2216 = vrot.slane %v2215, 2
        %v2217 = vmax.f32 %v2215, %v2216
        %v2218 = vrot.slane %v2217, 1
        %v2219 = vmax.f32 %v2217, %v2218
        %v2220 = vmax.f32 %v1778, %v1780
        %v2221 = vmax.f32 %v2220, %v1783
        %v2222 = vmax.f32 %v2221, %v1785
        %v2223 = vmax.f32 %v2222, %v1788
        %v2224 = vmax.f32 %v2223, %v1790
        %v2225 = vmax.f32 %v2224, %v1793
        %v2226 = vmax.f32 %v2225, %v1795
        %v2227 = vmax.f32 %v2226, %v1798
        %v2228 = vmax.f32 %v2227, %v1800
        %v2229 = vmax.f32 %v2228, %v1803
        %v2230 = vmax.f32 %v2229, %v1805
        %v2231 = vmax.f32 %v2230, %v1808
        %v2232 = vmax.f32 %v2231, %v1810
        %v2233 = vmax.f32 %v2232, %v1813
        %v2234 = vmax.f32 %v2233, %v1815
        %v2235 = vmax.f32 %v2234, %v1818
        %v2236 = vmax.f32 %v2235, %v1820
        %v2237 = vmax.f32 %v2236, %v1823
        %v2238 = vmax.f32 %v2237, %v1825
        %v2239 = vmax.f32 %v2238, %v1828
        %v2240 = vmax.f32 %v2239, %v1830
        %v2241 = vmax.f32 %v2240, %v1833
        %v2242 = vmax.f32 %v2241, %v1835
        %v2243 = vmax.f32 %v2242, %v1838
        %v2244 = vmax.f32 %v2243, %v1840
        %v2245 = vmax.f32 %v2244, %v1843
        %v2246 = vmax.f32 %v2245, %v1845
        %v2247 = vmax.f32 %v2246, %v1848
        %v2248 = vmax.f32 %v2247, %v1850
        %v2249 = vmax.f32 %v2248, %v1853
        %v2250 = vmax.f32 %v2249, %v1855
        %v2251 = vrot.slane %v2250, 4
        %v2252 = vmax.f32 %v2250, %v2251
        %v2253 = vrot.slane %v2252, 2
        %v2254 = vmax.f32 %v2252, %v2253
        %v2255 = vrot.slane %v2254, 1
        %v2256 = vmax.f32 %v2254, %v2255
        %v2257 = vmax.f32 %v1867, %v1869
        %v2258 = vmax.f32 %v2257, %v1872
        %v2259 = vmax.f32 %v2258, %v1874
        %v2260 = vmax.f32 %v2259, %v1877
        %v2261 = vmax.f32 %v2260, %v1879
        %v2262 = vmax.f32 %v2261, %v1882
        %v2263 = vmax.f32 %v2262, %v1884
        %v2264 = vmax.f32 %v2263, %v1887
        %v2265 = vmax.f32 %v2264, %v1889
        %v2266 = vmax.f32 %v2265, %v1892
        %v2267 = vmax.f32 %v2266, %v1894
        %v2268 = vmax.f32 %v2267, %v1897
        %v2269 = vmax.f32 %v2268, %v1899
        %v2270 = vmax.f32 %v2269, %v1902
        %v2271 = vmax.f32 %v2270, %v1904
        %v2272 = vmax.f32 %v2271, %v1907
        %v2273 = vmax.f32 %v2272, %v1909
        %v2274 = vmax.f32 %v2273, %v1912
        %v2275 = vmax.f32 %v2274, %v1914
        %v2276 = vmax.f32 %v2275, %v1917
        %v2277 = vmax.f32 %v2276, %v1919
        %v2278 = vmax.f32 %v2277, %v1922
        %v2279 = vmax.f32 %v2278, %v1924
        %v2280 = vmax.f32 %v2279, %v1927
        %v2281 = vmax.f32 %v2280, %v1929
        %v2282 = vmax.f32 %v2281, %v1932
        %v2283 = vmax.f32 %v2282, %v1934
        %v2284 = vmax.f32 %v2283, %v1937
        %v2285 = vmax.f32 %v2284, %v1939
        %v2286 = vmax.f32 %v2285, %v1942
        %v2287 = vmax.f32 %v2286, %v1944
        %v2288 = vrot.slane %v2287, 4
        %v2289 = vmax.f32 %v2287, %v2288
        %v2290 = vrot.slane %v2289, 2
        %v2291 = vmax.f32 %v2289, %v2290
        %v2292 = vrot.slane %v2291, 1
        %v2293 = vmax.f32 %v2291, %v2292
        %v2294 = vmax.f32 %v1956, %v1958
        %v2295 = vmax.f32 %v2294, %v1961
        %v2296 = vmax.f32 %v2295, %v1963
        %v2297 = vmax.f32 %v2296, %v1966
        %v2298 = vmax.f32 %v2297, %v1968
        %v2299 = vmax.f32 %v2298, %v1971
        %v2300 = vmax.f32 %v2299, %v1973
        %v2301 = vmax.f32 %v2300, %v1976
        %v2302 = vmax.f32 %v2301, %v1978
        %v2303 = vmax.f32 %v2302, %v1981
        %v2304 = vmax.f32 %v2303, %v1983
        %v2305 = vmax.f32 %v2304, %v1986
        %v2306 = vmax.f32 %v2305, %v1988
        %v2307 = vmax.f32 %v2306, %v1991
        %v2308 = vmax.f32 %v2307, %v1993
        %v2309 = vmax.f32 %v2308, %v1996
        %v2310 = vmax.f32 %v2309, %v1998
        %v2311 = vmax.f32 %v2310, %v2001
        %v2312 = vmax.f32 %v2311, %v2003
        %v2313 = vmax.f32 %v2312, %v2006
        %v2314 = vmax.f32 %v2313, %v2008
        %v2315 = vmax.f32 %v2314, %v2011
        %v2316 = vmax.f32 %v2315, %v2013
        %v2317 = vmax.f32 %v2316, %v2016
        %v2318 = vmax.f32 %v2317, %v2018
        %v2319 = vmax.f32 %v2318, %v2021
        %v2320 = vmax.f32 %v2319, %v2023
        %v2321 = vmax.f32 %v2320, %v2026
        %v2322 = vmax.f32 %v2321, %v2028
        %v2323 = vmax.f32 %v2322, %v2031
        %v2324 = vmax.f32 %v2323, %v2033
        %v2325 = vrot.slane %v2324, 4
        %v2326 = vmax.f32 %v2324, %v2325
        %v2327 = vrot.slane %v2326, 2
        %v2328 = vmax.f32 %v2326, %v2327
        %v2329 = vrot.slane %v2328, 1
        %v2330 = vmax.f32 %v2328, %v2329
        %p2331 = scmp.eq.s32.totalorder %s26, 0
        // Predicated region
        $region69: #{pointnet_torus_forward.12} parent=47 // pred_check
          %p2332 = pneg %p2331
        $region70: #{pointnet_torus_forward.12} parent=47 // pred_check_branch
          %2334 = sbr.rel (%p2332) target = $region72
        $region71: #{pointnet_torus_forward.12} parent=47 // pred_region
          %2335 = vst [vmem:[%s398] sm:$0xff] -inf
        $region72: #{pointnet_torus_forward.12} parent=47 // pred_fallthru
          _
        %v2336 = vld [vmem:[%s398] sm:$0xff]
        %v2345 = vrot.slane %v2108, 7
        %v2346 = vrot.slane %v2145, 6
        %v2347 = vrot.slane %v2182, 5
        %v2348 = vrot.slane %v2219, 4
        %v2349 = vrot.slane %v2256, 3
        %v2350 = vrot.slane %v2293, 2
        %v2351 = vrot.slane %v2330, 1
        %vm2352 = vcmask 1040384
        %v2353 = vsel %vm2352, %v2071, %v2345
        %vm2354 = vcmask 1042434
        %v2355 = vsel %vm2354, %v2346, %v2347
        %vm2356 = vcmask 1041408
        %v2357 = vsel %vm2356, %v2353, %v2355
        %vm2358 = vcmask 1044484
        %v2359 = vsel %vm2358, %v2348, %v2349
        %vm2360 = vcmask 1046534
        %v2361 = vsel %vm2360, %v2350, %v2351
        %vm2362 = vcmask 1045508
        %v2363 = vsel %vm2362, %v2359, %v2361
        %vm2364 = vcmask 1043456
        %v2365 = vsel %vm2364, %v2357, %v2363
        %v2367 = vmax.f32 %v2336, %v2365
        %2368 = vst [vmem:[%s398] sm:$0xff] %v2367
        %p2369 = scmp.lt.s32.totalorder %s25, 1
        %s2370 = scalar_select %p2369, %s25, 1
        %s2371 = smul.addr %s2370, 8
        %s2372 = scalar_lea.vmem %s7, %s2371
        // Predicated region
        $region73: #{pointnet_torus_forward.12} parent=47 // pred_check
          %p2373 = pneg %p210
        $region74: #{pointnet_torus_forward.12} parent=47 // pred_check_branch
          %2375 = sbr.rel (%p2373) target = $region76
        $region75: #{pointnet_torus_forward.12} parent=47 // pred_region
          _
        $region76: #{pointnet_torus_forward.12} parent=47 // pred_fallthru
          _
      $region48: #{pointnet_torus_forward.12} parent=5 // pred_fallthru
        _
      %p2376 = scmp.le.s32.totalorder 2, %s16
      // Predicated region
      $region77: #{pointnet_torus_forward.12} parent=5 // pred_check
        %p2377 = pneg %p2376
      $region78: #{pointnet_torus_forward.12} parent=5 // pred_check_branch
        %2379 = sbr.rel (%p2377) target = $region80
      $region79: #{pointnet_torus_forward.12} parent=5 // pred_region
        %s2380 = ssub.s32 %s16, 2
        // Predicated region
        $region81: #{pointnet_torus_forward.12} parent=79 // pred_check
          %p2381 = pneg %p216
        $region82: #{pointnet_torus_forward.12} parent=79 // pred_check_branch
          %2383 = sbr.rel (%p2381) target = $region84
        $region83: #{pointnet_torus_forward.12} parent=79 // pred_region
          %p2384 = scmp.lt.s32.totalorder %s27, 1
          %s2385 = scalar_select %p2384, %s27, 1
          %s2386 = smul.addr %s2385, 8
          %s2387 = scalar_lea.vmem %s7, %s2386
        $region84: #{pointnet_torus_forward.12} parent=79 // pred_fallthru
          _
      $region80: #{pointnet_torus_forward.12} parent=5 // pred_fallthru
        _
    $region6: #{pointnet_torus_forward.12} parent=1 // loop_footer
      %s20 = sadd.s32 1, %s16
    $region7: #{pointnet_torus_forward.12} parent=1 // loop_footer_branch
      %15 = sbr.rel target = $region3
    $region8: #{pointnet_torus_forward.12} parent=1 // loop_exit
      _
    %2388 = vsyncpa [#allocation3], 1
    %s2389 = scalar_lea.sflag [#allocation3], 1
    %2390 = vsyncpa %s2389, 1
    %2391 = vsyncpa [#allocation5], 1
    %2392 = vsyncpa [#allocation8], 1

// kernel: pointnet_torus_forward.15
$region0: #{pointnet_torus_forward.15}
  #allocation0 [shape = 'u32[]', space=smem, size = 0x4, offset = 0x4, fixed_abs, tag = 'smem constant byte address 0x4 - core index']
  #allocation1 [shape = 'u32[72,128]{1,0:T(1,128)}', space=vmem, size = 0x9000, scoped, tag = 'internal scratch']
  #allocation2 [shape = 'f32[2,128]{1,0:T(2,128)}', space=vmem, size = 0x400, scoped, tag = 'scratch operand']
  %s0 = inlined_call_operand.vmem [shape: bf16[2,256], index: 0, kind: input, shape index: {}]
  %s1 = inlined_call_operand.vmem [shape: bf16[256,128], index: 1, kind: input, shape index: {}]
  %s2 = inlined_call_operand.hbm [shape: f32[1,128], index: 2, kind: input, shape index: {}]
  %s3 = inlined_call_operand.vmem [shape: f32[2,128], index: 3, kind: output, shape index: {}]
  %s4 = sld [smem:[#allocation0]]
  $region34: #{pointnet_torus_forward.15} parent=0
    _
  %s6 = ssub.s32 1, %s4
  %s7 = scalar_select 0, %s6, %s4
  $region1: #{pointnet_torus_forward.15} parent=0
    #allocation3 [shape = 'u8[512]{0}', space=vmem, size = 0x400, scoped, tag = 'input window, operand 2, single buffered']
    #allocation4 [shape = 's32[1]{0}', space=sflag, size = 0x4, scoped, tag = 'scoped memory for pointnet_torus_forward.15']
    %8 = vsyncpa [#allocation4], 0
    // Predicated region
    $region2: #{pointnet_torus_forward.15} parent=1 // pred_check
      _
    $region3: #{pointnet_torus_forward.15} parent=1 // pred_check_branch
      %10 = sbr.rel (0) target = $region5
    $region4: #{pointnet_torus_forward.15} parent=1 // pred_region
      _
    $region5: #{pointnet_torus_forward.15} parent=1 // pred_fallthru
      _
    // Predicated region
    $region6: #{pointnet_torus_forward.15} parent=1 // pred_check
      _
    $region7: #{pointnet_torus_forward.15} parent=1 // pred_check_branch
      %12 = sbr.rel (0) target = $region9
    $region8: #{pointnet_torus_forward.15} parent=1 // pred_region
      _
    $region9: #{pointnet_torus_forward.15} parent=1 // pred_fallthru
      _
    // Predicated region
    $region10: #{pointnet_torus_forward.15} parent=1 // pred_check
      _
    $region11: #{pointnet_torus_forward.15} parent=1 // pred_check_branch
      %14 = sbr.rel (0) target = $region13
    $region12: #{pointnet_torus_forward.15} parent=1 // pred_region
      %16 = vsyncadd [#allocation4], 0
      %s18 = sshll.u32 %s2, 4
      %s19 = int_to_ptr.hbm [resolvable:$true] %s18
      %s20 = sshll.u32 [#allocation3], 4
      %s21 = int_to_ptr.vmem [resolvable:$true] %s20
      %23 = dma.hbm_to_vmem [thread:$0]  %s19, 16, %s21, [#allocation4]
    $region13: #{pointnet_torus_forward.15} parent=1 // pred_fallthru
      _
    // Predicated region
    $region14: #{pointnet_torus_forward.15} parent=1 // pred_check
      _
    $region15: #{pointnet_torus_forward.15} parent=1 // pred_check_branch
      %25 = sbr.rel (0) target = $region17
    $region16: #{pointnet_torus_forward.15} parent=1 // pred_region
      %27 = dma.done [#allocation4], 16
    $region17: #{pointnet_torus_forward.15} parent=1 // pred_fallthru
      _
    %p28 = scmp.eq.s32.totalorder 0, 0
    // Predicated region
    $region18: #{pointnet_torus_forward.15} parent=1 // pred_check
      %p29 = pneg %p28
    $region19: #{pointnet_torus_forward.15} parent=1 // pred_check_branch
      %31 = sbr.rel (%p29) target = $region21
    $region20: #{pointnet_torus_forward.15} parent=1 // pred_region
      %32 = vst [vmem:[#allocation2] sm:$0x3] 0.0
    $region21: #{pointnet_torus_forward.15} parent=1 // pred_fallthru
      _
    %v33 = vld [vmem:[#allocation2] sm:$0x3]
    %v34 = vld [vmem:[%s0] sm:$0x3]
    %v35 = vld [vmem:[%s1] sm:$0xf]
    %v36 = vld [vmem:[%s1 + $0x4] sm:$0xf]
    %v37 = vld [vmem:[%s1 + $0x8] sm:$0xf]
    %v38 = vld [vmem:[%s1 + $0xc] sm:$0xf]
    %v39 = vld [vmem:[%s1 + $0x10] sm:$0xf]
    %v40 = vld [vmem:[%s1 + $0x14] sm:$0xf]
    %v41 = vld [vmem:[%s1 + $0x18] sm:$0xf]
    %v42 = vld [vmem:[%s1 + $0x1c] sm:$0xf]
    %v43 = vld [vmem:[%s1 + $0x20] sm:$0xf]
    %v44 = vld [vmem:[%s1 + $0x24] sm:$0xf]
    %v45 = vld [vmem:[%s1 + $0x28] sm:$0xf]
    %v46 = vld [vmem:[%s1 + $0x2c] sm:$0xf]
    %v47 = vld [vmem:[%s1 + $0x30] sm:$0xf]
    %v48 = vld [vmem:[%s1 + $0x34] sm:$0xf]
    %v49 = vld [vmem:[%s1 + $0x38] sm:$0xf]
    %v50 = vld [vmem:[%s1 + $0x3c] sm:$0xf]
    %v51 = vld [vmem:[%s1 + $0x40] sm:$0xf]
    %v52 = vld [vmem:[%s1 + $0x44] sm:$0xf]
    %v53 = vld [vmem:[%s1 + $0x48] sm:$0xf]
    %v54 = vld [vmem:[%s1 + $0x4c] sm:$0xf]
    %v55 = vld [vmem:[%s1 + $0x50] sm:$0xf]
    %v56 = vld [vmem:[%s1 + $0x54] sm:$0xf]
    %v57 = vld [vmem:[%s1 + $0x58] sm:$0xf]
    %v58 = vld [vmem:[%s1 + $0x5c] sm:$0xf]
    %v59 = vld [vmem:[%s1 + $0x60] sm:$0xf]
    %v60 = vld [vmem:[%s1 + $0x64] sm:$0xf]
    %v61 = vld [vmem:[%s1 + $0x68] sm:$0xf]
    %v62 = vld [vmem:[%s1 + $0x6c] sm:$0xf]
    %v63 = vld [vmem:[%s1 + $0x70] sm:$0xf]
    %v64 = vld [vmem:[%s1 + $0x74] sm:$0xf]
    %v65 = vld [vmem:[%s1 + $0x78] sm:$0xf]
    %v66 = vld [vmem:[%s1 + $0x7c] sm:$0xf]
    %68 = vst [vmem:[#allocation1] ss:$9 sm:$0xff] %v34
    %v69 = vld [vmem:[#allocation1] sm:$0xff]
    %v70 = vld [vmem:[#allocation1 + $0x9] sm:$0xff]
    %v105 = vunpack.c.l.b16 %v35
    %v106 = vunpack.c.l.b16 %v36
    %v107 = vunpack.c.l.b16 %v37
    %v108 = vunpack.c.l.b16 %v38
    %v109 = vunpack.c.l.b16 %v39
    %v110 = vunpack.c.l.b16 %v40
    %v111 = vunpack.c.l.b16 %v41
    %v112 = vunpack.c.l.b16 %v42
    %v113 = vunpack.c.l.b16 %v43
    %v114 = vunpack.c.l.b16 %v44
    %v115 = vunpack.c.l.b16 %v45
    %v116 = vunpack.c.l.b16 %v46
    %v117 = vunpack.c.l.b16 %v47
    %v118 = vunpack.c.l.b16 %v48
    %v119 = vunpack.c.l.b16 %v49
    %v120 = vunpack.c.l.b16 %v50
    %v121 = vunpack.c.l.b16 %v51
    %v122 = vunpack.c.l.b16 %v52
    %v123 = vunpack.c.l.b16 %v53
    %v124 = vunpack.c.l.b16 %v54
    %v125 = vunpack.c.l.b16 %v55
    %v126 = vunpack.c.l.b16 %v56
    %v127 = vunpack.c.l.b16 %v57
    %v128 = vunpack.c.l.b16 %v58
    %v129 = vunpack.c.l.b16 %v59
    %v130 = vunpack.c.l.b16 %v60
    %v131 = vunpack.c.l.b16 %v61
    %v132 = vunpack.c.l.b16 %v62
    %v133 = vunpack.c.l.b16 %v63
    %v134 = vunpack.c.l.b16 %v64
    %v135 = vunpack.c.l.b16 %v65
    %v136 = vunpack.c.l.b16 %v66
    %v137 = vpack.c.b16 %v106, %v105
    %v138 = vpack.c.b16 %v108, %v107
    %v139 = vpack.c.b16 %v110, %v109
    %v140 = vpack.c.b16 %v112, %v111
    %v141 = vpack.c.b16 %v114, %v113
    %v142 = vpack.c.b16 %v116, %v115
    %v143 = vpack.c.b16 %v118, %v117
    %v144 = vpack.c.b16 %v120, %v119
    %v145 = vpack.c.b16 %v122, %v121
    %v146 = vpack.c.b16 %v124, %v123
    %v147 = vpack.c.b16 %v126, %v125
    %v148 = vpack.c.b16 %v128, %v127
    %v149 = vpack.c.b16 %v130, %v129
    %v150 = vpack.c.b16 %v132, %v131
    %v151 = vpack.c.b16 %v134, %v133
    %v152 = vpack.c.b16 %v136, %v135
    %169 = vmatpush.bf16.msra.mxu0 %v144
    %170 = vmatpush.bf16.msra.mxu0 %v143
    %171 = vmatpush.bf16.msra.mxu0 %v142
    %172 = vmatpush.bf16.msra.mxu0 %v141
    %173 = vmatpush.bf16.msra.mxu0 %v140
    %174 = vmatpush.bf16.msra.mxu0 %v139
    %175 = vmatpush.bf16.msra.mxu0 %v138
    %176 = vmatpush.bf16.msra.mxu0 %v137
    %177 = vmatmul.bf16.gmra.mxu0 %v69
    %v178 = vpop.f32.mrf.mxu0
    %v179 = vadd.f32 0.0, %v178
    %v180 = vpop.f32.mrf.mxu0
    %181 = vdwg.mxu0
    %182 = vmatpush.bf16.msra.mxu0 %v152
    %183 = vmatpush.bf16.msra.mxu0 %v151
    %184 = vmatpush.bf16.msra.mxu0 %v150
    %185 = vmatpush.bf16.msra.mxu0 %v149
    %186 = vmatpush.bf16.msra.mxu0 %v148
    %187 = vmatpush.bf16.msra.mxu0 %v147
    %188 = vmatpush.bf16.msra.mxu0 %v146
    %189 = vmatpush.bf16.msra.mxu0 %v145
    %190 = vmatmul.bf16.gmra.mxu0 %v70
    %v191 = vpop.f32.mrf.mxu0
    %v192 = vadd.f32 %v179, %v191
    %v193 = vpop.f32.mrf.mxu0
    %194 = vdwg.mxu0
    %v195 = vadd.f32 %v33, %v192
    %196 = vst [vmem:[#allocation2] sm:$0x3] %v195
    // Predicated region
    $region22: #{pointnet_torus_forward.15} parent=1 // pred_check
      %p197 = pneg %p28
    $region23: #{pointnet_torus_forward.15} parent=1 // pred_check_branch
      %199 = sbr.rel (%p197) target = $region25
    $region24: #{pointnet_torus_forward.15} parent=1 // pred_region
      %v200 = vld [vmem:[#allocation2] sm:$0x3]
      %v201 = vld [vmem:[#allocation3] sm:$0x1]
      %v203 = vperm.slane %v201, 0
      %v205 = vadd.f32 %v200, %v203
      %206 = vst [vmem:[%s3] sm:$0x3] %v205
    $region25: #{pointnet_torus_forward.15} parent=1 // pred_fallthru
      _
    // Predicated region
    $region26: #{pointnet_torus_forward.15} parent=1 // pred_check
      _
    $region27: #{pointnet_torus_forward.15} parent=1 // pred_check_branch
      %208 = sbr.rel (0) target = $region29
    $region28: #{pointnet_torus_forward.15} parent=1 // pred_region
      _
    $region29: #{pointnet_torus_forward.15} parent=1 // pred_fallthru
      _
    // Predicated region
    $region30: #{pointnet_torus_forward.15} parent=1 // pred_check
      _
    $region31: #{pointnet_torus_forward.15} parent=1 // pred_check_branch
      %210 = sbr.rel (0) target = $region33
    $region32: #{pointnet_torus_forward.15} parent=1 // pred_region
      _
    $region33: #{pointnet_torus_forward.15} parent=1 // pred_fallthru
      _
    %211 = vsyncpa [#allocation4], 1

</llo_original>
